<compile_context>
chip_gen: v7x
topology: tpu7x:2x2x1
jax: 0.10.0
libtpu: 0.0.40
codegen_flags: <defaults>
</compile_context>

<pallas_src>
import functools

import numpy as np
import jax
import jax.numpy as jnp
from jax import lax
from jax.experimental import pallas as pl
from jax.experimental.pallas import tpu as pltpu

_BN_EPS = 1e-5


def _t_dot(a, b):
    """a^T @ b without materializing the transpose (contract dim 0 of both)."""
    return lax.dot_general(a, b, dimension_numbers=(((0,), (0,)), ((), ())),
                           preferred_element_type=jnp.float32)


def _softmax_lastdim(x):
    m = jnp.max(x, axis=-1, keepdims=True)
    e = jnp.exp(x - m)
    s = jnp.sum(e, axis=-1, keepdims=True)
    # exact reciprocal (approx=True would exceed the reference tolerance through 1/tau).
    return e * pl.reciprocal(s, approx=False)


def _sigmoid(x):
    """Overflow-safe sigmoid: exp argument is always <= 0 (EUP exp + exact reciprocal)."""
    ex = jnp.exp(-jnp.abs(x))                       # in (0, 1]
    pos = pl.reciprocal(1.0 + ex, approx=False)     # sigmoid(|x|), denom in [1, 2]
    return jnp.where(x >= 0, pos, ex * pos)


def _mlp(parts, w1_parts, b1, b2, gamma, beta, w2):
    """NRI `MLP` block: relu(fc1) -> relu(fc2) -> BatchNorm1d (batch statistics).

    `parts` / `w1_parts` are matching lists so that concat(parts, -1) @ vstack(w1_parts)
    is computed as a sum of split matmuls (avoids lane concatenation).  gamma is folded
    into the rsqrt scale (single full-tile multiply in the BN epilogue).
    """
    acc = jnp.dot(parts[0], w1_parts[0], preferred_element_type=jnp.float32)
    for p, w in zip(parts[1:], w1_parts[1:]):
        acc = acc + jnp.dot(p, w, preferred_element_type=jnp.float32)
    h = jnp.maximum(acc + b1, 0.0)
    h = jnp.maximum(jnp.dot(h, w2, preferred_element_type=jnp.float32) + b2, 0.0)
    mu = jnp.mean(h, axis=0, keepdims=True)
    d = h - mu
    var = jnp.mean(d * d, axis=0, keepdims=True)
    return d * (gamma * lax.rsqrt(var + _BN_EPS)) + beta


def _vae_forward_kernel(
    # data / structure / noise / packed small parameters
    data_ref, sp_sr_ref, gumbel_ref, slab_ref,
    # encoder weight matrices
    m1_w1_ref, m1_w2_ref, m2_w1_ref, m2_w2_ref,
    m3_w1_ref, m3_w2_ref, m4_w1_ref, m4_w2_ref, fco_w_ref,
    # decoder weight matrices (fused message MLPs, split/expanded out_fc1)
    msg_w1_ref, msg_w2_ref, ow1_top_ref, ow1_bot_ref, ow2_ref, ow3_ref,
    # outputs
    graphs_ref, recon_ref, prob_ref,
    *, tau, hidden_dim, input_dim, edge_type_num, concept_num,
    msg_hidden_dim, msg_output_dim, edge_num):
    H = hidden_dim
    D = input_dim
    K = edge_type_num
    E = edge_num
    Mh = msg_hidden_dim
    Mo = msg_output_dim
    inv_tau = jnp.float32(1.0 / tau)          # constant multiply, not a divide

    data = data_ref[...]                      # [C, D]
    sr = sp_sr_ref[...]                       # [2E, C] = [send; rec] stacked one-hots
    send = sr[0:E, :]                         # [E, C]
    rec = sr[E:2 * E, :]                      # [E, C]
    slab = slab_ref[...]                      # [22+K, W] packed small parameters

    # Slab layout (rows): 0-15 BN vecs of MLP1..4 (b1,b2,gamma,beta each), 16 fc_out_b,
    # 17 msg_b1_cat, 18 msg_b2_cat, 19 out_b1, 20 out_b2, 21 out_b3, 22:22+K rep one-hot.
    def vrow4(r):
        return (slab[r:r + 1, 0:H], slab[r + 1:r + 2, 0:H],
                slab[r + 2:r + 3, 0:H], slab[r + 3:r + 4, 0:H])

    # ------------------------- MLPEncoder (factor=True) -------------------------
    b1, b2, g, bt = vrow4(0)
    x = _mlp([data], [m1_w1_ref[...]], b1, b2, g, bt, m1_w2_ref[...])            # [C, H]

    both = jnp.dot(sr, x, preferred_element_type=jnp.float32)                    # [2E, H]
    b1, b2, g, bt = vrow4(4)
    w = m2_w1_ref[...]                                                            # [2H, H]
    x = _mlp([both[0:E, :], both[E:2 * E, :]], [w[0:H, :], w[H:2 * H, :]],
             b1, b2, g, bt, m2_w2_ref[...])                                       # [E, H]
    x_skip = x

    n = _t_dot(rec, x)                            # edge2node [C, H]; 1/C folded into m3_w1
    b1, b2, g, bt = vrow4(8)
    x = _mlp([n], [m3_w1_ref[...]], b1, b2, g, bt, m3_w2_ref[...])                # [C, H]

    both = jnp.dot(sr, x, preferred_element_type=jnp.float32)                     # [2E, H]
    b1, b2, g, bt = vrow4(12)
    w = m4_w1_ref[...]                                                             # [3H, H]
    x = _mlp([both[0:E, :], both[E:2 * E, :], x_skip],
             [w[0:H, :], w[H:2 * H, :], w[2 * H:3 * H, :]],
             b1, b2, g, bt, m4_w2_ref[...])                                        # [E, H]

    logits = (jnp.dot(x, fco_w_ref[...], preferred_element_type=jnp.float32)
              + slab[16:17, 0:K])                                                  # [E, K]

    # ---------------- gumbel-softmax sample (edges) + posterior (prob) ----------------
    if K == 2:
        # softmax over a 2-wide last dim == sigmoid of the logit difference (no cross-lane
        # max/sum/broadcast on almost-empty vregs).
        col0 = lax.broadcasted_iota(jnp.int32, (E, K), 1) == 0
        p0 = _sigmoid(logits[:, 0:1] - logits[:, 1:2])
        prob_ref[...] = jnp.where(col0, p0, 1.0 - p0)
        z = logits + gumbel_ref[...]
        e0 = _sigmoid((z[:, 0:1] - z[:, 1:2]) * inv_tau)
        edges = jnp.where(col0, e0, 1.0 - e0)
    else:
        prob_ref[...] = _softmax_lastdim(logits)
        edges = _softmax_lastdim((logits + gumbel_ref[...]) * inv_tau)             # [E, K]

    # ---------------- latent graphs (pair-free scatter) ----------------
    # graphs[k, i, j] = sum_e send[e,i] * rec[e,j] * edges[e,k]  ==  the index_put scatter
    # for unique (send, rec) pairs; no O(E*C^2) pair tensor is ever built.
    for k in range(K):                                      # static unrolled, K is tiny
        graphs_ref[k] = _t_dot(send * edges[:, k:k + 1], rec)                      # [C, C]

    # ------------------------- MLPDecoder (fused message MLPs) -------------------------
    both_d = jnp.dot(sr, data, preferred_element_type=jnp.float32)                 # [2E, D]
    d_send = both_d[0:E, :]
    d_rec = both_d[E:2 * E, :]

    w1 = msg_w1_ref[...]                                                            # [2D, K*Mh]
    m = jnp.maximum(
        jnp.dot(d_send, w1[0:D, :], preferred_element_type=jnp.float32)
        + jnp.dot(d_rec, w1[D:2 * D, :], preferred_element_type=jnp.float32)
        + slab[17:18, 0:K * Mh], 0.0)                                               # [E, K*Mh]
    m = jnp.maximum(
        jnp.dot(m, msg_w2_ref[...], preferred_element_type=jnp.float32)             # block-diag
        + slab[18:19, 0:K * Mo], 0.0)                                               # [E, K*Mo]

    # lane-replicate edges over each Mo-wide group via a tiny packed one-hot matmul,
    # weight the messages, aggregate over edges once on the wide matrix; the final sum
    # over the K groups is folded into the K-tiled out_w1 bottom block.
    rep = slab[22:22 + K, 0:K * Mo]                                                 # [K, K*Mo]
    edges_rep = jnp.dot(edges, rep, preferred_element_type=jnp.float32)             # [E, K*Mo]
    agg_wide = _t_dot(rec, m * edges_rep)                                           # [C, K*Mo]

    h = jnp.maximum(
        jnp.dot(data, ow1_top_ref[...], preferred_element_type=jnp.float32)
        + jnp.dot(agg_wide, ow1_bot_ref[...], preferred_element_type=jnp.float32)
        + slab[19:20, 0:H], 0.0)                                                    # [C, H]
    h = jnp.maximum(
        jnp.dot(h, ow2_ref[...], preferred_element_type=jnp.float32)
        + slab[20:21, 0:H], 0.0)
    recon_ref[...] = (jnp.dot(h, ow3_ref[...], preferred_element_type=jnp.float32)
                      + slab[21:22, 0:D])                                           # [C, D]


def vae_forward(data, sp_send, sp_rec, sp_send_t, sp_rec_t, params, gumbel_noise, tau):
    """Returns (graphs [K, C, C], output [C, D], prob [E, K]) like VAE.forward."""
    concept_num, input_dim = data.shape
    edge_num = sp_send.shape[0]
    edge_type_num = params["fc_out_w"].shape[1]
    hidden_dim = params["m1_w2"].shape[0]
    msg_hidden_dim = params["msg_w1"].shape[2]
    msg_output_dim = params["msg_w2"].shape[2]
    C, D, E, K = concept_num, input_dim, edge_num, edge_type_num
    H, Mh, Mo = hidden_dim, msg_hidden_dim, msg_output_dim

    # sp_send_t / sp_rec_t are accepted for signature fidelity with the torch module but
    # are not needed: the kernel contracts over the edge axis directly (transpose-free).
    del sp_send_t, sp_rec_t

    # Stack send/rec so every one-hot gather pair is a single matmul in the kernel.
    sp_sr = jnp.concatenate([sp_send, sp_rec], axis=0)                    # [2E, C]

    # Fuse the per-edge-type message MLPs: concat fc1 along output lanes, block-diagonal
    # fc2; fold the K-group reduction into a K-tiled out_fc1 bottom block.
    msg_w1_cat = jnp.concatenate([params["msg_w1"][k] for k in range(K)], axis=1)   # [2D, K*Mh]
    msg_w2_bd = jnp.zeros((K * Mh, K * Mo), jnp.float32)
    for k in range(K):
        msg_w2_bd = msg_w2_bd.at[k * Mh:(k + 1) * Mh, k * Mo:(k + 1) * Mo].set(params["msg_w2"][k])
    ow1_top = params["out_w1"][0:D, :]                                    # [D, H]
    ow1_bot_exp = jnp.tile(params["out_w1"][D:, :], (K, 1))               # [K*Mo, H]

    # Fold the 1/concept_num edge2node normalization into the MLP3 fc1 weight.
    m3_w1_scaled = params["m3_w1"] * jnp.float32(1.0 / C)

    # ---- pack every small vector parameter into one slab (single DMA) ----
    W = max(H, D, K, K * Mh, K * Mo)

    def pad_row(v):
        v = jnp.reshape(v, (1, -1)).astype(jnp.float32)
        return jnp.pad(v, ((0, 0), (0, W - v.shape[1])))

    rep_onehot = jnp.kron(jnp.eye(K, dtype=jnp.float32),
                          jnp.ones((1, Mo), jnp.float32))                 # [K, K*Mo]

    slab_rows = []
    for name in ("m1_v", "m2_v", "m3_v", "m4_v"):
        vm = params[name]                                                  # [4, H]
        for r in range(4):
            slab_rows.append(pad_row(vm[r]))
    slab_rows.append(pad_row(params["fc_out_b"]))
    slab_rows.append(pad_row(jnp.concatenate([params["msg_b1"][k] for k in range(K)], axis=1)))
    slab_rows.append(pad_row(jnp.concatenate([params["msg_b2"][k] for k in range(K)], axis=1)))
    slab_rows.append(pad_row(params["out_b1"]))
    slab_rows.append(pad_row(params["out_b2"]))
    slab_rows.append(pad_row(params["out_b3"]))
    for r in range(K):
        slab_rows.append(pad_row(rep_onehot[r]))
    slab = jnp.concatenate(slab_rows, axis=0)                              # [22+K, W]

    kernel = functools.partial(
        _vae_forward_kernel, tau=float(tau), hidden_dim=H, input_dim=D,
        edge_type_num=K, concept_num=C, msg_hidden_dim=Mh, msg_output_dim=Mo,
        edge_num=E)

    ordered_inputs = (
        data, sp_sr, gumbel_noise, slab,
        params["m1_w1"], params["m1_w2"], params["m2_w1"], params["m2_w2"],
        m3_w1_scaled, params["m3_w2"], params["m4_w1"], params["m4_w2"],
        params["fc_out_w"],
        msg_w1_cat, msg_w2_bd, ow1_top, ow1_bot_exp, params["out_w2"], params["out_w3"],
    )

    out_shapes = (
        jax.ShapeDtypeStruct((K, C, C), jnp.float32),
        jax.ShapeDtypeStruct((C, D), jnp.float32),
        jax.ShapeDtypeStruct((E, K), jnp.float32),
    )

    # Explicit VMEM budget sized from the actual resident set (important on v7x's
    # 64 MiB physical / 32 MiB default-scoped VMEM and v5e's 16 MiB default).
    resident_bytes = sum(int(np.prod(a.shape)) * 4 for a in ordered_inputs)
    resident_bytes += sum(int(np.prod(s.shape)) * 4 for s in out_shapes)
    vmem_limit = int(min(64 * 2**20, max(4 * resident_bytes + (2 << 20), 16 * 2**20)))

    vmem = pl.BlockSpec(memory_space=pltpu.MemorySpace.VMEM)
    graphs, recon, prob = pl.pallas_call(
        kernel,
        out_shape=out_shapes,
        in_specs=[vmem] * len(ordered_inputs),
        out_specs=(vmem, vmem, vmem),
        compiler_params=pltpu.CompilerParams(vmem_limit_bytes=vmem_limit),
        # No grid: everything fits comfortably in VMEM at GKT sizes; for very large
        # concept_num an E-axis grid with row-tiled BlockSpecs would be added here.
    )(*ordered_inputs)

    return graphs, recon, prob


# --------------------------- pure-JAX reference (naive formulation) ---------------------------
def _reference_forward(data, sp_send, sp_rec, sp_send_t, sp_rec_t, params, gumbel_noise, tau):
    def mlp(x, w1, w2, v):
        b1, b2, gamma, beta = v[0], v[1], v[2], v[3]
        h = jax.nn.relu(x @ w1 + b1)
        h = jax.nn.relu(h @ w2 + b2)
        mu = h.mean(0, keepdims=True)
        var = ((h - mu) ** 2).mean(0, keepdims=True)
        return gamma * (h - mu) / jnp.sqrt(var + _BN_EPS) + beta

    C = data.shape[0]
    x = mlp(data, params["m1_w1"], params["m1_w2"], params["m1_v"])
    e = jnp.concatenate([sp_send @ x, sp_rec @ x], -1)
    x = mlp(e, params["m2_w1"], params["m2_w2"], params["m2_v"])
    x_skip = x
    n = (sp_rec_t @ x) / C
    x = mlp(n, params["m3_w1"], params["m3_w2"], params["m3_v"])
    e = jnp.concatenate([sp_send @ x, sp_rec @ x], -1)
    x = mlp(jnp.concatenate([e, x_skip], -1), params["m4_w1"], params["m4_w2"], params["m4_v"])
    logits = x @ params["fc_out_w"] + params["fc_out_b"]

    prob = jax.nn.softmax(logits, -1)
    edges = jax.nn.softmax((logits + gumbel_noise) / tau, -1)

    pre_msg = jnp.concatenate([sp_send @ data, sp_rec @ data], -1)
    K = edges.shape[1]
    all_msgs = jnp.zeros((pre_msg.shape[0], params["msg_w2"].shape[2]), jnp.float32)
    for k in range(K):
        m = jax.nn.relu(pre_msg @ params["msg_w1"][k] + params["msg_b1"][k])
        m = jax.nn.relu(m @ params["msg_w2"][k] + params["msg_b2"][k])
        all_msgs = all_msgs + m * edges[:, k:k + 1]
    agg = sp_rec_t @ all_msgs
    aug = jnp.concatenate([data, agg], -1)
    h = jax.nn.relu(aug @ params["out_w1"] + params["out_b1"])
    h = jax.nn.relu(h @ params["out_w2"] + params["out_b2"])
    recon = h @ params["out_w3"] + params["out_b3"]

    send_idx = jnp.argmax(sp_send, axis=1)
    rec_idx = jnp.argmax(sp_rec, axis=1)
    graphs = jnp.zeros((K, C, C), jnp.float32)
    for k in range(K):
        graphs = graphs.at[k, send_idx, rec_idx].set(edges[:, k])
    return graphs, recon, prob


if __name__ == "__main__":
    # Small deterministic config consistent with VAE.__init__.
    concept_num = 16
    input_dim = 32          # concept embedding dim (encoder/decoder input_dim)
    hidden_dim = 32
    edge_type_num = 2       # encoder output_dim == edge_type_num
    msg_hidden_dim = 32
    msg_output_dim = 32
    tau = 0.1
    edge_num = concept_num * (concept_num - 1)

    root = jax.random.PRNGKey(0)
    kit = iter(jax.random.split(root, 32))

    def dense(k, shape, scale=0.3):
        return jax.random.normal(k, shape, jnp.float32) * scale

    def mlp_params(k, d_in, h):
        k1, k2, k3 = jax.random.split(k, 3)
        w1 = dense(k1, (d_in, h))
        w2 = dense(k2, (h, h))
        # rows: fc1 bias, fc2 bias, BN gamma (init 1), BN beta (init 0)
        v = jnp.concatenate([dense(k3, (2, h), scale=0.1),
                             jnp.ones((1, h), jnp.float32),
                             jnp.zeros((1, h), jnp.float32)], axis=0)
        return w1, w2, v

    params = {}
    params["m1_w1"], params["m1_w2"], params["m1_v"] = mlp_params(next(kit), input_dim, hidden_dim)
    params["m2_w1"], params["m2_w2"], params["m2_v"] = mlp_params(next(kit), 2 * hidden_dim, hidden_dim)
    params["m3_w1"], params["m3_w2"], params["m3_v"] = mlp_params(next(kit), hidden_dim, hidden_dim)
    params["m4_w1"], params["m4_w2"], params["m4_v"] = mlp_params(next(kit), 3 * hidden_dim, hidden_dim)
    params["fc_out_w"] = dense(next(kit), (hidden_dim, edge_type_num))
    params["fc_out_b"] = dense(next(kit), (1, edge_type_num), scale=0.1)

    params["msg_w1"] = dense(next(kit), (edge_type_num, 2 * input_dim, msg_hidden_dim), scale=0.1)
    params["msg_b1"] = dense(next(kit), (edge_type_num, 1, msg_hidden_dim), scale=0.1)
    params["msg_w2"] = dense(next(kit), (edge_type_num, msg_hidden_dim, msg_output_dim), scale=0.1)
    params["msg_b2"] = dense(next(kit), (edge_type_num, 1, msg_output_dim), scale=0.1)
    params["out_w1"] = dense(next(kit), (input_dim + msg_output_dim, hidden_dim), scale=0.1)
    params["out_b1"] = dense(next(kit), (1, hidden_dim), scale=0.1)
    params["out_w2"] = dense(next(kit), (hidden_dim, hidden_dim), scale=0.1)
    params["out_b2"] = dense(next(kit), (1, hidden_dim), scale=0.1)
    params["out_w3"] = dense(next(kit), (hidden_dim, input_dim), scale=0.1)
    params["out_b3"] = dense(next(kit), (1, input_dim), scale=0.1)

    # Dense stand-ins for the sparse one-hot send/receive matrices: all directed edges
    # between distinct concepts, as built by GKT's VAE preprocessing.
    send_idx = np.array([i for i in range(concept_num) for j in range(concept_num) if i != j],
                        dtype=np.int32)
    rec_idx = np.array([j for i in range(concept_num) for j in range(concept_num) if i != j],
                       dtype=np.int32)
    eye = np.eye(concept_num, dtype=np.float32)
    sp_send = jnp.asarray(eye[send_idx])        # [E, C]
    sp_rec = jnp.asarray(eye[rec_idx])          # [E, C]
    sp_send_t = sp_send.T                       # [C, E]
    sp_rec_t = sp_rec.T                         # [C, E]

    data = dense(next(kit), (concept_num, input_dim), scale=1.0)
    gumbel_noise = jax.random.gumbel(next(kit), (edge_num, edge_type_num), jnp.float32)

    graphs, recon, prob = vae_forward(data, sp_send, sp_rec, sp_send_t, sp_rec_t,
                                      params, gumbel_noise, tau)
    graphs, recon, prob = jax.block_until_ready((graphs, recon, prob))

    with jax.default_matmul_precision("float32"):
        g_ref, r_ref, p_ref = _reference_forward(data, sp_send, sp_rec, sp_send_t, sp_rec_t,
                                                 params, gumbel_noise, tau)

    assert graphs.shape == (edge_type_num, concept_num, concept_num)
    assert recon.shape == (concept_num, input_dim)
    assert prob.shape == (edge_num, edge_type_num)
    # Tolerance accounts for MXU f32 matmul-pass differences amplified by 1/tau in the
    # gumbel-softmax exponent.
    assert jnp.allclose(graphs, g_ref, atol=5e-3, rtol=5e-3), "graphs mismatch vs reference"
    assert jnp.allclose(recon, r_ref, atol=5e-3, rtol=5e-3), "output mismatch vs reference"
    assert jnp.allclose(prob, p_ref, atol=5e-3, rtol=5e-3), "prob mismatch vs reference"

    print("KERNEL_OK")
</pallas_src>

<mosaic_0001>
module attributes {stable_mosaic.version = 11 : i64} {
  func.func @_vae_forward_kernel(%arg0: memref<16x32xf32, #tpu.memory_space<vmem>>, %arg1: memref<480x16xf32, #tpu.memory_space<vmem>>, %arg2: memref<240x2xf32, #tpu.memory_space<vmem>>, %arg3: memref<24x64xf32, #tpu.memory_space<vmem>>, %arg4: memref<32x32xf32, #tpu.memory_space<vmem>>, %arg5: memref<32x32xf32, #tpu.memory_space<vmem>>, %arg6: memref<64x32xf32, #tpu.memory_space<vmem>>, %arg7: memref<32x32xf32, #tpu.memory_space<vmem>>, %arg8: memref<32x32xf32, #tpu.memory_space<vmem>>, %arg9: memref<32x32xf32, #tpu.memory_space<vmem>>, %arg10: memref<96x32xf32, #tpu.memory_space<vmem>>, %arg11: memref<32x32xf32, #tpu.memory_space<vmem>>, %arg12: memref<32x2xf32, #tpu.memory_space<vmem>>, %arg13: memref<64x64xf32, #tpu.memory_space<vmem>>, %arg14: memref<64x64xf32, #tpu.memory_space<vmem>>, %arg15: memref<32x32xf32, #tpu.memory_space<vmem>>, %arg16: memref<64x32xf32, #tpu.memory_space<vmem>>, %arg17: memref<32x32xf32, #tpu.memory_space<vmem>>, %arg18: memref<32x32xf32, #tpu.memory_space<vmem>>, %arg19: memref<2x16x16xf32, #tpu.memory_space<vmem>>, %arg20: memref<16x32xf32, #tpu.memory_space<vmem>>, %arg21: memref<240x2xf32, #tpu.memory_space<vmem>>) attributes {dimension_semantics = [], scalar_prefetch = 0 : i64, scratch_operands = 0 : i64, tpu.core_type = #tpu.core_type<tc>} {
    %c0 = arith.constant 0 : index
    %c0_0 = arith.constant 0 : index
    %0 = vector.load %arg0[%c0, %c0_0] : memref<16x32xf32, #tpu.memory_space<vmem>>, vector<16x32xf32>
    %c0_1 = arith.constant 0 : index
    %c0_2 = arith.constant 0 : index
    %1 = vector.load %arg1[%c0_1, %c0_2] : memref<480x16xf32, #tpu.memory_space<vmem>>, vector<480x16xf32>
    %2 = vector.extract_strided_slice %1 {offsets = [0, 0], sizes = [240, 16], strides = [1, 1]} : vector<480x16xf32> to vector<240x16xf32>
    %3 = vector.extract_strided_slice %1 {offsets = [240, 0], sizes = [240, 16], strides = [1, 1]} : vector<480x16xf32> to vector<240x16xf32>
    %c0_3 = arith.constant 0 : index
    %c0_4 = arith.constant 0 : index
    %4 = vector.load %arg3[%c0_3, %c0_4] : memref<24x64xf32, #tpu.memory_space<vmem>>, vector<24x64xf32>
    %5 = vector.extract_strided_slice %4 {offsets = [0, 0], sizes = [1, 32], strides = [1, 1]} : vector<24x64xf32> to vector<1x32xf32>
    %6 = vector.extract_strided_slice %4 {offsets = [1, 0], sizes = [1, 32], strides = [1, 1]} : vector<24x64xf32> to vector<1x32xf32>
    %7 = vector.extract_strided_slice %4 {offsets = [2, 0], sizes = [1, 32], strides = [1, 1]} : vector<24x64xf32> to vector<1x32xf32>
    %8 = vector.extract_strided_slice %4 {offsets = [3, 0], sizes = [1, 32], strides = [1, 1]} : vector<24x64xf32> to vector<1x32xf32>
    %c0_5 = arith.constant 0 : index
    %c0_6 = arith.constant 0 : index
    %9 = vector.load %arg4[%c0_5, %c0_6] : memref<32x32xf32, #tpu.memory_space<vmem>>, vector<32x32xf32>
    %c0_7 = arith.constant 0 : index
    %c0_8 = arith.constant 0 : index
    %10 = vector.load %arg5[%c0_7, %c0_8] : memref<32x32xf32, #tpu.memory_space<vmem>>, vector<32x32xf32>
    %cst = arith.constant dense<0.000000e+00> : vector<16x32xf32>
    %11 = tpu.matmul %0, %9, %cst {dimension_numbers = #tpu.dot_dimension_numbers<[1], [0], [0], [1], [0, 0, 1, 1], [], []>} : vector<16x32xf32>, vector<32x32xf32>, vector<16x32xf32> -> vector<16x32xf32>
    %12 = vector.broadcast %5 : vector<1x32xf32> to vector<16x32xf32>
    %13 = arith.addf %11, %12 : vector<16x32xf32>
    %cst_9 = arith.constant 0.000000e+00 : f32
    %14 = vector.broadcast %cst_9 : f32 to vector<16x32xf32>
    %15 = arith.maximumf %13, %14 : vector<16x32xf32>
    %cst_10 = arith.constant dense<0.000000e+00> : vector<16x32xf32>
    %16 = tpu.matmul %15, %10, %cst_10 {dimension_numbers = #tpu.dot_dimension_numbers<[1], [0], [0], [1], [0, 0, 1, 1], [], []>} : vector<16x32xf32>, vector<32x32xf32>, vector<16x32xf32> -> vector<16x32xf32>
    %17 = vector.broadcast %6 : vector<1x32xf32> to vector<16x32xf32>
    %18 = arith.addf %16, %17 : vector<16x32xf32>
    %cst_11 = arith.constant 0.000000e+00 : f32
    %19 = vector.broadcast %cst_11 : f32 to vector<16x32xf32>
    %20 = arith.maximumf %18, %19 : vector<16x32xf32>
    %cst_12 = arith.constant dense<0.000000e+00> : vector<32xf32>
    %21 = vector.multi_reduction <add>, %20, %cst_12 [0] : vector<16x32xf32> to vector<32xf32>
    %22 = vector.shape_cast %21 : vector<32xf32> to vector<1x32xf32>
    %cst_13 = arith.constant 1.600000e+01 : f32
    %23 = vector.broadcast %cst_13 : f32 to vector<1x32xf32>
    %24 = arith.divf %22, %23 : vector<1x32xf32>
    %25 = vector.broadcast %24 : vector<1x32xf32> to vector<16x32xf32>
    %26 = arith.subf %20, %25 : vector<16x32xf32>
    %27 = arith.mulf %26, %26 : vector<16x32xf32>
    %cst_14 = arith.constant dense<0.000000e+00> : vector<32xf32>
    %28 = vector.multi_reduction <add>, %27, %cst_14 [0] : vector<16x32xf32> to vector<32xf32>
    %29 = vector.shape_cast %28 : vector<32xf32> to vector<1x32xf32>
    %cst_15 = arith.constant 1.600000e+01 : f32
    %30 = vector.broadcast %cst_15 : f32 to vector<1x32xf32>
    %31 = arith.divf %29, %30 : vector<1x32xf32>
    %cst_16 = arith.constant 9.99999974E-6 : f32
    %32 = vector.broadcast %cst_16 : f32 to vector<1x32xf32>
    %33 = arith.addf %31, %32 : vector<1x32xf32>
    %34 = math.rsqrt %33 : vector<1x32xf32>
    %35 = arith.mulf %7, %34 : vector<1x32xf32>
    %36 = vector.broadcast %35 : vector<1x32xf32> to vector<16x32xf32>
    %37 = arith.mulf %26, %36 : vector<16x32xf32>
    %38 = vector.broadcast %8 : vector<1x32xf32> to vector<16x32xf32>
    %39 = arith.addf %37, %38 : vector<16x32xf32>
    %cst_17 = arith.constant dense<0.000000e+00> : vector<480x32xf32>
    %40 = tpu.matmul %1, %39, %cst_17 {dimension_numbers = #tpu.dot_dimension_numbers<[1], [0], [0], [1], [0, 0, 1, 1], [], []>} : vector<480x16xf32>, vector<16x32xf32>, vector<480x32xf32> -> vector<480x32xf32>
    %41 = vector.extract_strided_slice %4 {offsets = [4, 0], sizes = [1, 32], strides = [1, 1]} : vector<24x64xf32> to vector<1x32xf32>
    %42 = vector.extract_strided_slice %4 {offsets = [5, 0], sizes = [1, 32], strides = [1, 1]} : vector<24x64xf32> to vector<1x32xf32>
    %43 = vector.extract_strided_slice %4 {offsets = [6, 0], sizes = [1, 32], strides = [1, 1]} : vector<24x64xf32> to vector<1x32xf32>
    %44 = vector.extract_strided_slice %4 {offsets = [7, 0], sizes = [1, 32], strides = [1, 1]} : vector<24x64xf32> to vector<1x32xf32>
    %c0_18 = arith.constant 0 : index
    %c0_19 = arith.constant 0 : index
    %45 = vector.load %arg6[%c0_18, %c0_19] : memref<64x32xf32, #tpu.memory_space<vmem>>, vector<64x32xf32>
    %46 = vector.extract_strided_slice %40 {offsets = [0, 0], sizes = [240, 32], strides = [1, 1]} : vector<480x32xf32> to vector<240x32xf32>
    %47 = vector.extract_strided_slice %40 {offsets = [240, 0], sizes = [240, 32], strides = [1, 1]} : vector<480x32xf32> to vector<240x32xf32>
    %48 = vector.extract_strided_slice %45 {offsets = [0, 0], sizes = [32, 32], strides = [1, 1]} : vector<64x32xf32> to vector<32x32xf32>
    %49 = vector.extract_strided_slice %45 {offsets = [32, 0], sizes = [32, 32], strides = [1, 1]} : vector<64x32xf32> to vector<32x32xf32>
    %c0_20 = arith.constant 0 : index
    %c0_21 = arith.constant 0 : index
    %50 = vector.load %arg7[%c0_20, %c0_21] : memref<32x32xf32, #tpu.memory_space<vmem>>, vector<32x32xf32>
    %cst_22 = arith.constant dense<0.000000e+00> : vector<240x32xf32>
    %51 = tpu.matmul %46, %48, %cst_22 {dimension_numbers = #tpu.dot_dimension_numbers<[1], [0], [0], [1], [0, 0, 1, 1], [], []>} : vector<240x32xf32>, vector<32x32xf32>, vector<240x32xf32> -> vector<240x32xf32>
    %cst_23 = arith.constant dense<0.000000e+00> : vector<240x32xf32>
    %52 = tpu.matmul %47, %49, %cst_23 {dimension_numbers = #tpu.dot_dimension_numbers<[1], [0], [0], [1], [0, 0, 1, 1], [], []>} : vector<240x32xf32>, vector<32x32xf32>, vector<240x32xf32> -> vector<240x32xf32>
    %53 = arith.addf %51, %52 : vector<240x32xf32>
    %54 = vector.broadcast %41 : vector<1x32xf32> to vector<240x32xf32>
    %55 = arith.addf %53, %54 : vector<240x32xf32>
    %cst_24 = arith.constant 0.000000e+00 : f32
    %56 = vector.broadcast %cst_24 : f32 to vector<240x32xf32>
    %57 = arith.maximumf %55, %56 : vector<240x32xf32>
    %cst_25 = arith.constant dense<0.000000e+00> : vector<240x32xf32>
    %58 = tpu.matmul %57, %50, %cst_25 {dimension_numbers = #tpu.dot_dimension_numbers<[1], [0], [0], [1], [0, 0, 1, 1], [], []>} : vector<240x32xf32>, vector<32x32xf32>, vector<240x32xf32> -> vector<240x32xf32>
    %59 = vector.broadcast %42 : vector<1x32xf32> to vector<240x32xf32>
    %60 = arith.addf %58, %59 : vector<240x32xf32>
    %cst_26 = arith.constant 0.000000e+00 : f32
    %61 = vector.broadcast %cst_26 : f32 to vector<240x32xf32>
    %62 = arith.maximumf %60, %61 : vector<240x32xf32>
    %cst_27 = arith.constant dense<0.000000e+00> : vector<32xf32>
    %63 = vector.multi_reduction <add>, %62, %cst_27 [0] : vector<240x32xf32> to vector<32xf32>
    %64 = vector.shape_cast %63 : vector<32xf32> to vector<1x32xf32>
    %cst_28 = arith.constant 2.400000e+02 : f32
    %65 = vector.broadcast %cst_28 : f32 to vector<1x32xf32>
    %66 = arith.divf %64, %65 : vector<1x32xf32>
    %67 = vector.broadcast %66 : vector<1x32xf32> to vector<240x32xf32>
    %68 = arith.subf %62, %67 : vector<240x32xf32>
    %69 = arith.mulf %68, %68 : vector<240x32xf32>
    %cst_29 = arith.constant dense<0.000000e+00> : vector<32xf32>
    %70 = vector.multi_reduction <add>, %69, %cst_29 [0] : vector<240x32xf32> to vector<32xf32>
    %71 = vector.shape_cast %70 : vector<32xf32> to vector<1x32xf32>
    %cst_30 = arith.constant 2.400000e+02 : f32
    %72 = vector.broadcast %cst_30 : f32 to vector<1x32xf32>
    %73 = arith.divf %71, %72 : vector<1x32xf32>
    %cst_31 = arith.constant 9.99999974E-6 : f32
    %74 = vector.broadcast %cst_31 : f32 to vector<1x32xf32>
    %75 = arith.addf %73, %74 : vector<1x32xf32>
    %76 = math.rsqrt %75 : vector<1x32xf32>
    %77 = arith.mulf %43, %76 : vector<1x32xf32>
    %78 = vector.broadcast %77 : vector<1x32xf32> to vector<240x32xf32>
    %79 = arith.mulf %68, %78 : vector<240x32xf32>
    %80 = vector.broadcast %44 : vector<1x32xf32> to vector<240x32xf32>
    %81 = arith.addf %79, %80 : vector<240x32xf32>
    %cst_32 = arith.constant dense<0.000000e+00> : vector<16x32xf32>
    %82 = tpu.matmul %3, %81, %cst_32 {dimension_numbers = #tpu.dot_dimension_numbers<[0], [0], [1], [1], [0, 1, 1, 1], [], []>} : vector<240x16xf32>, vector<240x32xf32>, vector<16x32xf32> -> vector<16x32xf32>
    %83 = vector.extract_strided_slice %4 {offsets = [8, 0], sizes = [1, 32], strides = [1, 1]} : vector<24x64xf32> to vector<1x32xf32>
    %84 = vector.extract_strided_slice %4 {offsets = [9, 0], sizes = [1, 32], strides = [1, 1]} : vector<24x64xf32> to vector<1x32xf32>
    %85 = vector.extract_strided_slice %4 {offsets = [10, 0], sizes = [1, 32], strides = [1, 1]} : vector<24x64xf32> to vector<1x32xf32>
    %86 = vector.extract_strided_slice %4 {offsets = [11, 0], sizes = [1, 32], strides = [1, 1]} : vector<24x64xf32> to vector<1x32xf32>
    %c0_33 = arith.constant 0 : index
    %c0_34 = arith.constant 0 : index
    %87 = vector.load %arg8[%c0_33, %c0_34] : memref<32x32xf32, #tpu.memory_space<vmem>>, vector<32x32xf32>
    %c0_35 = arith.constant 0 : index
    %c0_36 = arith.constant 0 : index
    %88 = vector.load %arg9[%c0_35, %c0_36] : memref<32x32xf32, #tpu.memory_space<vmem>>, vector<32x32xf32>
    %cst_37 = arith.constant dense<0.000000e+00> : vector<16x32xf32>
    %89 = tpu.matmul %82, %87, %cst_37 {dimension_numbers = #tpu.dot_dimension_numbers<[1], [0], [0], [1], [0, 0, 1, 1], [], []>} : vector<16x32xf32>, vector<32x32xf32>, vector<16x32xf32> -> vector<16x32xf32>
    %90 = vector.broadcast %83 : vector<1x32xf32> to vector<16x32xf32>
    %91 = arith.addf %89, %90 : vector<16x32xf32>
    %cst_38 = arith.constant 0.000000e+00 : f32
    %92 = vector.broadcast %cst_38 : f32 to vector<16x32xf32>
    %93 = arith.maximumf %91, %92 : vector<16x32xf32>
    %cst_39 = arith.constant dense<0.000000e+00> : vector<16x32xf32>
    %94 = tpu.matmul %93, %88, %cst_39 {dimension_numbers = #tpu.dot_dimension_numbers<[1], [0], [0], [1], [0, 0, 1, 1], [], []>} : vector<16x32xf32>, vector<32x32xf32>, vector<16x32xf32> -> vector<16x32xf32>
    %95 = vector.broadcast %84 : vector<1x32xf32> to vector<16x32xf32>
    %96 = arith.addf %94, %95 : vector<16x32xf32>
    %cst_40 = arith.constant 0.000000e+00 : f32
    %97 = vector.broadcast %cst_40 : f32 to vector<16x32xf32>
    %98 = arith.maximumf %96, %97 : vector<16x32xf32>
    %cst_41 = arith.constant dense<0.000000e+00> : vector<32xf32>
    %99 = vector.multi_reduction <add>, %98, %cst_41 [0] : vector<16x32xf32> to vector<32xf32>
    %100 = vector.shape_cast %99 : vector<32xf32> to vector<1x32xf32>
    %cst_42 = arith.constant 1.600000e+01 : f32
    %101 = vector.broadcast %cst_42 : f32 to vector<1x32xf32>
    %102 = arith.divf %100, %101 : vector<1x32xf32>
    %103 = vector.broadcast %102 : vector<1x32xf32> to vector<16x32xf32>
    %104 = arith.subf %98, %103 : vector<16x32xf32>
    %105 = arith.mulf %104, %104 : vector<16x32xf32>
    %cst_43 = arith.constant dense<0.000000e+00> : vector<32xf32>
    %106 = vector.multi_reduction <add>, %105, %cst_43 [0] : vector<16x32xf32> to vector<32xf32>
    %107 = vector.shape_cast %106 : vector<32xf32> to vector<1x32xf32>
    %cst_44 = arith.constant 1.600000e+01 : f32
    %108 = vector.broadcast %cst_44 : f32 to vector<1x32xf32>
    %109 = arith.divf %107, %108 : vector<1x32xf32>
    %cst_45 = arith.constant 9.99999974E-6 : f32
    %110 = vector.broadcast %cst_45 : f32 to vector<1x32xf32>
    %111 = arith.addf %109, %110 : vector<1x32xf32>
    %112 = math.rsqrt %111 : vector<1x32xf32>
    %113 = arith.mulf %85, %112 : vector<1x32xf32>
    %114 = vector.broadcast %113 : vector<1x32xf32> to vector<16x32xf32>
    %115 = arith.mulf %104, %114 : vector<16x32xf32>
    %116 = vector.broadcast %86 : vector<1x32xf32> to vector<16x32xf32>
    %117 = arith.addf %115, %116 : vector<16x32xf32>
    %cst_46 = arith.constant dense<0.000000e+00> : vector<480x32xf32>
    %118 = tpu.matmul %1, %117, %cst_46 {dimension_numbers = #tpu.dot_dimension_numbers<[1], [0], [0], [1], [0, 0, 1, 1], [], []>} : vector<480x16xf32>, vector<16x32xf32>, vector<480x32xf32> -> vector<480x32xf32>
    %119 = vector.extract_strided_slice %4 {offsets = [12, 0], sizes = [1, 32], strides = [1, 1]} : vector<24x64xf32> to vector<1x32xf32>
    %120 = vector.extract_strided_slice %4 {offsets = [13, 0], sizes = [1, 32], strides = [1, 1]} : vector<24x64xf32> to vector<1x32xf32>
    %121 = vector.extract_strided_slice %4 {offsets = [14, 0], sizes = [1, 32], strides = [1, 1]} : vector<24x64xf32> to vector<1x32xf32>
    %122 = vector.extract_strided_slice %4 {offsets = [15, 0], sizes = [1, 32], strides = [1, 1]} : vector<24x64xf32> to vector<1x32xf32>
    %c0_47 = arith.constant 0 : index
    %c0_48 = arith.constant 0 : index
    %123 = vector.load %arg10[%c0_47, %c0_48] : memref<96x32xf32, #tpu.memory_space<vmem>>, vector<96x32xf32>
    %124 = vector.extract_strided_slice %118 {offsets = [0, 0], sizes = [240, 32], strides = [1, 1]} : vector<480x32xf32> to vector<240x32xf32>
    %125 = vector.extract_strided_slice %118 {offsets = [240, 0], sizes = [240, 32], strides = [1, 1]} : vector<480x32xf32> to vector<240x32xf32>
    %126 = vector.extract_strided_slice %123 {offsets = [0, 0], sizes = [32, 32], strides = [1, 1]} : vector<96x32xf32> to vector<32x32xf32>
    %127 = vector.extract_strided_slice %123 {offsets = [32, 0], sizes = [32, 32], strides = [1, 1]} : vector<96x32xf32> to vector<32x32xf32>
    %128 = vector.extract_strided_slice %123 {offsets = [64, 0], sizes = [32, 32], strides = [1, 1]} : vector<96x32xf32> to vector<32x32xf32>
    %c0_49 = arith.constant 0 : index
    %c0_50 = arith.constant 0 : index
    %129 = vector.load %arg11[%c0_49, %c0_50] : memref<32x32xf32, #tpu.memory_space<vmem>>, vector<32x32xf32>
    %cst_51 = arith.constant dense<0.000000e+00> : vector<240x32xf32>
    %130 = tpu.matmul %124, %126, %cst_51 {dimension_numbers = #tpu.dot_dimension_numbers<[1], [0], [0], [1], [0, 0, 1, 1], [], []>} : vector<240x32xf32>, vector<32x32xf32>, vector<240x32xf32> -> vector<240x32xf32>
    %cst_52 = arith.constant dense<0.000000e+00> : vector<240x32xf32>
    %131 = tpu.matmul %125, %127, %cst_52 {dimension_numbers = #tpu.dot_dimension_numbers<[1], [0], [0], [1], [0, 0, 1, 1], [], []>} : vector<240x32xf32>, vector<32x32xf32>, vector<240x32xf32> -> vector<240x32xf32>
    %132 = arith.addf %130, %131 : vector<240x32xf32>
    %cst_53 = arith.constant dense<0.000000e+00> : vector<240x32xf32>
    %133 = tpu.matmul %81, %128, %cst_53 {dimension_numbers = #tpu.dot_dimension_numbers<[1], [0], [0], [1], [0, 0, 1, 1], [], []>} : vector<240x32xf32>, vector<32x32xf32>, vector<240x32xf32> -> vector<240x32xf32>
    %134 = arith.addf %132, %133 : vector<240x32xf32>
    %135 = vector.broadcast %119 : vector<1x32xf32> to vector<240x32xf32>
    %136 = arith.addf %134, %135 : vector<240x32xf32>
    %cst_54 = arith.constant 0.000000e+00 : f32
    %137 = vector.broadcast %cst_54 : f32 to vector<240x32xf32>
    %138 = arith.maximumf %136, %137 : vector<240x32xf32>
    %cst_55 = arith.constant dense<0.000000e+00> : vector<240x32xf32>
    %139 = tpu.matmul %138, %129, %cst_55 {dimension_numbers = #tpu.dot_dimension_numbers<[1], [0], [0], [1], [0, 0, 1, 1], [], []>} : vector<240x32xf32>, vector<32x32xf32>, vector<240x32xf32> -> vector<240x32xf32>
    %140 = vector.broadcast %120 : vector<1x32xf32> to vector<240x32xf32>
    %141 = arith.addf %139, %140 : vector<240x32xf32>
    %cst_56 = arith.constant 0.000000e+00 : f32
    %142 = vector.broadcast %cst_56 : f32 to vector<240x32xf32>
    %143 = arith.maximumf %141, %142 : vector<240x32xf32>
    %cst_57 = arith.constant dense<0.000000e+00> : vector<32xf32>
    %144 = vector.multi_reduction <add>, %143, %cst_57 [0] : vector<240x32xf32> to vector<32xf32>
    %145 = vector.shape_cast %144 : vector<32xf32> to vector<1x32xf32>
    %cst_58 = arith.constant 2.400000e+02 : f32
    %146 = vector.broadcast %cst_58 : f32 to vector<1x32xf32>
    %147 = arith.divf %145, %146 : vector<1x32xf32>
    %148 = vector.broadcast %147 : vector<1x32xf32> to vector<240x32xf32>
    %149 = arith.subf %143, %148 : vector<240x32xf32>
    %150 = arith.mulf %149, %149 : vector<240x32xf32>
    %cst_59 = arith.constant dense<0.000000e+00> : vector<32xf32>
    %151 = vector.multi_reduction <add>, %150, %cst_59 [0] : vector<240x32xf32> to vector<32xf32>
    %152 = vector.shape_cast %151 : vector<32xf32> to vector<1x32xf32>
    %cst_60 = arith.constant 2.400000e+02 : f32
    %153 = vector.broadcast %cst_60 : f32 to vector<1x32xf32>
    %154 = arith.divf %152, %153 : vector<1x32xf32>
    %cst_61 = arith.constant 9.99999974E-6 : f32
    %155 = vector.broadcast %cst_61 : f32 to vector<1x32xf32>
    %156 = arith.addf %154, %155 : vector<1x32xf32>
    %157 = math.rsqrt %156 : vector<1x32xf32>
    %158 = arith.mulf %121, %157 : vector<1x32xf32>
    %159 = vector.broadcast %158 : vector<1x32xf32> to vector<240x32xf32>
    %160 = arith.mulf %149, %159 : vector<240x32xf32>
    %161 = vector.broadcast %122 : vector<1x32xf32> to vector<240x32xf32>
    %162 = arith.addf %160, %161 : vector<240x32xf32>
    %c0_62 = arith.constant 0 : index
    %c0_63 = arith.constant 0 : index
    %163 = vector.load %arg12[%c0_62, %c0_63] : memref<32x2xf32, #tpu.memory_space<vmem>>, vector<32x2xf32>
    %cst_64 = arith.constant dense<0.000000e+00> : vector<240x2xf32>
    %164 = tpu.matmul %162, %163, %cst_64 {dimension_numbers = #tpu.dot_dimension_numbers<[1], [0], [0], [1], [0, 0, 1, 1], [], []>} : vector<240x32xf32>, vector<32x2xf32>, vector<240x2xf32> -> vector<240x2xf32>
    %165 = vector.extract_strided_slice %4 {offsets = [16, 0], sizes = [1, 2], strides = [1, 1]} : vector<24x64xf32> to vector<1x2xf32>
    %166 = vector.broadcast %165 : vector<1x2xf32> to vector<240x2xf32>
    %167 = arith.addf %164, %166 : vector<240x2xf32>
    %168 = tpu.iota {dimensions = array<i32: 1>} : vector<240x2xi32>
    %c0_i32 = arith.constant 0 : i32
    %169 = vector.broadcast %c0_i32 : i32 to vector<240x2xi32>
    %170 = arith.cmpi eq, %168, %169 : vector<240x2xi32>
    %171 = vector.extract_strided_slice %167 {offsets = [0, 0], sizes = [240, 1], strides = [1, 1]} : vector<240x2xf32> to vector<240x1xf32>
    %172 = vector.extract_strided_slice %167 {offsets = [0, 1], sizes = [240, 1], strides = [1, 1]} : vector<240x2xf32> to vector<240x1xf32>
    %173 = arith.subf %171, %172 : vector<240x1xf32>
    %174 = math.absf %173 : vector<240x1xf32>
    %cst_65 = arith.constant 0.000000e+00 : f32
    %175 = vector.broadcast %cst_65 : f32 to vector<240x1xf32>
    %176 = arith.subf %175, %174 : vector<240x1xf32>
    %177 = math.exp %176 : vector<240x1xf32>
    %cst_66 = arith.constant 1.000000e+00 : f32
    %178 = vector.broadcast %cst_66 : f32 to vector<240x1xf32>
    %179 = arith.addf %178, %177 : vector<240x1xf32>
    %180 = tpu.reciprocal %179 : vector<240x1xf32> -> vector<240x1xf32>
    %cst_67 = arith.constant 0.000000e+00 : f32
    %181 = vector.broadcast %cst_67 : f32 to vector<240x1xf32>
    %182 = arith.cmpf oge, %173, %181 : vector<240x1xf32>
    %183 = arith.mulf %177, %180 : vector<240x1xf32>
    %184 = arith.select %182, %180, %183 : vector<240x1xi1>, vector<240x1xf32>
    %cst_68 = arith.constant 1.000000e+00 : f32
    %185 = vector.broadcast %cst_68 : f32 to vector<240x1xf32>
    %186 = arith.subf %185, %184 : vector<240x1xf32>
    %187 = vector.shape_cast %184 : vector<240x1xf32> to vector<240x1xf32>
    %188 = vector.broadcast %187 : vector<240x1xf32> to vector<240x2xf32>
    %189 = vector.shape_cast %186 : vector<240x1xf32> to vector<240x1xf32>
    %190 = vector.broadcast %189 : vector<240x1xf32> to vector<240x2xf32>
    %191 = arith.select %170, %188, %190 : vector<240x2xi1>, vector<240x2xf32>
    %c0_69 = arith.constant 0 : index
    %c0_70 = arith.constant 0 : index
    %192 = vector.load %arg21[%c0_69, %c0_70] : memref<240x2xf32, #tpu.memory_space<vmem>>, vector<240x2xf32>
    tpu.vector_store %arg21[%c0_69, %c0_70], %191 {strides = array<i32>} : memref<240x2xf32, #tpu.memory_space<vmem>>, vector<240x2xf32>,
    %c0_71 = arith.constant 0 : index
    %c0_72 = arith.constant 0 : index
    %193 = vector.load %arg2[%c0_71, %c0_72] : memref<240x2xf32, #tpu.memory_space<vmem>>, vector<240x2xf32>
    %194 = arith.addf %167, %193 : vector<240x2xf32>
    %195 = vector.extract_strided_slice %194 {offsets = [0, 0], sizes = [240, 1], strides = [1, 1]} : vector<240x2xf32> to vector<240x1xf32>
    %196 = vector.extract_strided_slice %194 {offsets = [0, 1], sizes = [240, 1], strides = [1, 1]} : vector<240x2xf32> to vector<240x1xf32>
    %197 = arith.subf %195, %196 : vector<240x1xf32>
    %cst_73 = arith.constant 1.000000e+01 : f32
    %198 = vector.broadcast %cst_73 : f32 to vector<240x1xf32>
    %199 = arith.mulf %197, %198 : vector<240x1xf32>
    %200 = math.absf %199 : vector<240x1xf32>
    %cst_74 = arith.constant 0.000000e+00 : f32
    %201 = vector.broadcast %cst_74 : f32 to vector<240x1xf32>
    %202 = arith.subf %201, %200 : vector<240x1xf32>
    %203 = math.exp %202 : vector<240x1xf32>
    %cst_75 = arith.constant 1.000000e+00 : f32
    %204 = vector.broadcast %cst_75 : f32 to vector<240x1xf32>
    %205 = arith.addf %204, %203 : vector<240x1xf32>
    %206 = tpu.reciprocal %205 : vector<240x1xf32> -> vector<240x1xf32>
    %cst_76 = arith.constant 0.000000e+00 : f32
    %207 = vector.broadcast %cst_76 : f32 to vector<240x1xf32>
    %208 = arith.cmpf oge, %199, %207 : vector<240x1xf32>
    %209 = arith.mulf %203, %206 : vector<240x1xf32>
    %210 = arith.select %208, %206, %209 : vector<240x1xi1>, vector<240x1xf32>
    %cst_77 = arith.constant 1.000000e+00 : f32
    %211 = vector.broadcast %cst_77 : f32 to vector<240x1xf32>
    %212 = arith.subf %211, %210 : vector<240x1xf32>
    %213 = vector.shape_cast %210 : vector<240x1xf32> to vector<240x1xf32>
    %214 = vector.broadcast %213 : vector<240x1xf32> to vector<240x2xf32>
    %215 = vector.shape_cast %212 : vector<240x1xf32> to vector<240x1xf32>
    %216 = vector.broadcast %215 : vector<240x1xf32> to vector<240x2xf32>
    %217 = arith.select %170, %214, %216 : vector<240x2xi1>, vector<240x2xf32>
    %218 = vector.extract_strided_slice %217 {offsets = [0, 0], sizes = [240, 1], strides = [1, 1]} : vector<240x2xf32> to vector<240x1xf32>
    %219 = vector.broadcast %218 : vector<240x1xf32> to vector<240x16xf32>
    %220 = arith.mulf %2, %219 : vector<240x16xf32>
    %cst_78 = arith.constant dense<0.000000e+00> : vector<16x16xf32>
    %221 = tpu.matmul %220, %3, %cst_78 {dimension_numbers = #tpu.dot_dimension_numbers<[0], [0], [1], [1], [0, 1, 1, 1], [], []>} : vector<240x16xf32>, vector<240x16xf32>, vector<16x16xf32> -> vector<16x16xf32>
    %c0_79 = arith.constant 0 : index
    %c0_80 = arith.constant 0 : index
    %c0_81 = arith.constant 0 : index
    %222 = vector.load %arg19[%c0_79, %c0_80, %c0_81] : memref<2x16x16xf32, #tpu.memory_space<vmem>>, vector<1x16x16xf32>
    %223 = vector.shape_cast %222 : vector<1x16x16xf32> to vector<16x16xf32>
    %224 = vector.shape_cast %221 : vector<16x16xf32> to vector<1x16x16xf32>
    tpu.vector_store %arg19[%c0_79, %c0_80, %c0_81], %224 {strides = array<i32>} : memref<2x16x16xf32, #tpu.memory_space<vmem>>, vector<1x16x16xf32>,
    %225 = vector.extract_strided_slice %217 {offsets = [0, 1], sizes = [240, 1], strides = [1, 1]} : vector<240x2xf32> to vector<240x1xf32>
    %226 = vector.broadcast %225 : vector<240x1xf32> to vector<240x16xf32>
    %227 = arith.mulf %2, %226 : vector<240x16xf32>
    %cst_82 = arith.constant dense<0.000000e+00> : vector<16x16xf32>
    %228 = tpu.matmul %227, %3, %cst_82 {dimension_numbers = #tpu.dot_dimension_numbers<[0], [0], [1], [1], [0, 1, 1, 1], [], []>} : vector<240x16xf32>, vector<240x16xf32>, vector<16x16xf32> -> vector<16x16xf32>
    %c1 = arith.constant 1 : index
    %c0_83 = arith.constant 0 : index
    %c0_84 = arith.constant 0 : index
    %229 = vector.load %arg19[%c1, %c0_83, %c0_84] : memref<2x16x16xf32, #tpu.memory_space<vmem>>, vector<1x16x16xf32>
    %230 = vector.shape_cast %229 : vector<1x16x16xf32> to vector<16x16xf32>
    %231 = vector.shape_cast %228 : vector<16x16xf32> to vector<1x16x16xf32>
    tpu.vector_store %arg19[%c1, %c0_83, %c0_84], %231 {strides = array<i32>} : memref<2x16x16xf32, #tpu.memory_space<vmem>>, vector<1x16x16xf32>,
    %cst_85 = arith.constant dense<0.000000e+00> : vector<480x32xf32>
    %232 = tpu.matmul %1, %0, %cst_85 {dimension_numbers = #tpu.dot_dimension_numbers<[1], [0], [0], [1], [0, 0, 1, 1], [], []>} : vector<480x16xf32>, vector<16x32xf32>, vector<480x32xf32> -> vector<480x32xf32>
    %233 = vector.extract_strided_slice %232 {offsets = [0, 0], sizes = [240, 32], strides = [1, 1]} : vector<480x32xf32> to vector<240x32xf32>
    %234 = vector.extract_strided_slice %232 {offsets = [240, 0], sizes = [240, 32], strides = [1, 1]} : vector<480x32xf32> to vector<240x32xf32>
    %c0_86 = arith.constant 0 : index
    %c0_87 = arith.constant 0 : index
    %235 = vector.load %arg13[%c0_86, %c0_87] : memref<64x64xf32, #tpu.memory_space<vmem>>, vector<64x64xf32>
    %236 = vector.extract_strided_slice %235 {offsets = [0, 0], sizes = [32, 64], strides = [1, 1]} : vector<64x64xf32> to vector<32x64xf32>
    %cst_88 = arith.constant dense<0.000000e+00> : vector<240x64xf32>
    %237 = tpu.matmul %233, %236, %cst_88 {dimension_numbers = #tpu.dot_dimension_numbers<[1], [0], [0], [1], [0, 0, 1, 1], [], []>} : vector<240x32xf32>, vector<32x64xf32>, vector<240x64xf32> -> vector<240x64xf32>
    %238 = vector.extract_strided_slice %235 {offsets = [32, 0], sizes = [32, 64], strides = [1, 1]} : vector<64x64xf32> to vector<32x64xf32>
    %cst_89 = arith.constant dense<0.000000e+00> : vector<240x64xf32>
    %239 = tpu.matmul %234, %238, %cst_89 {dimension_numbers = #tpu.dot_dimension_numbers<[1], [0], [0], [1], [0, 0, 1, 1], [], []>} : vector<240x32xf32>, vector<32x64xf32>, vector<240x64xf32> -> vector<240x64xf32>
    %240 = arith.addf %237, %239 : vector<240x64xf32>
    %241 = vector.extract_strided_slice %4 {offsets = [17, 0], sizes = [1, 64], strides = [1, 1]} : vector<24x64xf32> to vector<1x64xf32>
    %242 = vector.broadcast %241 : vector<1x64xf32> to vector<240x64xf32>
    %243 = arith.addf %240, %242 : vector<240x64xf32>
    %cst_90 = arith.constant 0.000000e+00 : f32
    %244 = vector.broadcast %cst_90 : f32 to vector<240x64xf32>
    %245 = arith.maximumf %243, %244 : vector<240x64xf32>
    %c0_91 = arith.constant 0 : index
    %c0_92 = arith.constant 0 : index
    %246 = vector.load %arg14[%c0_91, %c0_92] : memref<64x64xf32, #tpu.memory_space<vmem>>, vector<64x64xf32>
    %cst_93 = arith.constant dense<0.000000e+00> : vector<240x64xf32>
    %247 = tpu.matmul %245, %246, %cst_93 {dimension_numbers = #tpu.dot_dimension_numbers<[1], [0], [0], [1], [0, 0, 1, 1], [], []>} : vector<240x64xf32>, vector<64x64xf32>, vector<240x64xf32> -> vector<240x64xf32>
    %248 = vector.extract_strided_slice %4 {offsets = [18, 0], sizes = [1, 64], strides = [1, 1]} : vector<24x64xf32> to vector<1x64xf32>
    %249 = vector.broadcast %248 : vector<1x64xf32> to vector<240x64xf32>
    %250 = arith.addf %247, %249 : vector<240x64xf32>
    %cst_94 = arith.constant 0.000000e+00 : f32
    %251 = vector.broadcast %cst_94 : f32 to vector<240x64xf32>
    %252 = arith.maximumf %250, %251 : vector<240x64xf32>
    %253 = vector.extract_strided_slice %4 {offsets = [22, 0], sizes = [2, 64], strides = [1, 1]} : vector<24x64xf32> to vector<2x64xf32>
    %cst_95 = arith.constant dense<0.000000e+00> : vector<240x64xf32>
    %254 = tpu.matmul %217, %253, %cst_95 {dimension_numbers = #tpu.dot_dimension_numbers<[1], [0], [0], [1], [0, 0, 1, 1], [], []>} : vector<240x2xf32>, vector<2x64xf32>, vector<240x64xf32> -> vector<240x64xf32>
    %255 = arith.mulf %252, %254 : vector<240x64xf32>
    %cst_96 = arith.constant dense<0.000000e+00> : vector<16x64xf32>
    %256 = tpu.matmul %3, %255, %cst_96 {dimension_numbers = #tpu.dot_dimension_numbers<[0], [0], [1], [1], [0, 1, 1, 1], [], []>} : vector<240x16xf32>, vector<240x64xf32>, vector<16x64xf32> -> vector<16x64xf32>
    %c0_97 = arith.constant 0 : index
    %c0_98 = arith.constant 0 : index
    %257 = vector.load %arg15[%c0_97, %c0_98] : memref<32x32xf32, #tpu.memory_space<vmem>>, vector<32x32xf32>
    %cst_99 = arith.constant dense<0.000000e+00> : vector<16x32xf32>
    %258 = tpu.matmul %0, %257, %cst_99 {dimension_numbers = #tpu.dot_dimension_numbers<[1], [0], [0], [1], [0, 0, 1, 1], [], []>} : vector<16x32xf32>, vector<32x32xf32>, vector<16x32xf32> -> vector<16x32xf32>
    %c0_100 = arith.constant 0 : index
    %c0_101 = arith.constant 0 : index
    %259 = vector.load %arg16[%c0_100, %c0_101] : memref<64x32xf32, #tpu.memory_space<vmem>>, vector<64x32xf32>
    %cst_102 = arith.constant dense<0.000000e+00> : vector<16x32xf32>
    %260 = tpu.matmul %256, %259, %cst_102 {dimension_numbers = #tpu.dot_dimension_numbers<[1], [0], [0], [1], [0, 0, 1, 1], [], []>} : vector<16x64xf32>, vector<64x32xf32>, vector<16x32xf32> -> vector<16x32xf32>
    %261 = arith.addf %258, %260 : vector<16x32xf32>
    %262 = vector.extract_strided_slice %4 {offsets = [19, 0], sizes = [1, 32], strides = [1, 1]} : vector<24x64xf32> to vector<1x32xf32>
    %263 = vector.broadcast %262 : vector<1x32xf32> to vector<16x32xf32>
    %264 = arith.addf %261, %263 : vector<16x32xf32>
    %cst_103 = arith.constant 0.000000e+00 : f32
    %265 = vector.broadcast %cst_103 : f32 to vector<16x32xf32>
    %266 = arith.maximumf %264, %265 : vector<16x32xf32>
    %c0_104 = arith.constant 0 : index
    %c0_105 = arith.constant 0 : index
    %267 = vector.load %arg17[%c0_104, %c0_105] : memref<32x32xf32, #tpu.memory_space<vmem>>, vector<32x32xf32>
    %cst_106 = arith.constant dense<0.000000e+00> : vector<16x32xf32>
    %268 = tpu.matmul %266, %267, %cst_106 {dimension_numbers = #tpu.dot_dimension_numbers<[1], [0], [0], [1], [0, 0, 1, 1], [], []>} : vector<16x32xf32>, vector<32x32xf32>, vector<16x32xf32> -> vector<16x32xf32>
    %269 = vector.extract_strided_slice %4 {offsets = [20, 0], sizes = [1, 32], strides = [1, 1]} : vector<24x64xf32> to vector<1x32xf32>
    %270 = vector.broadcast %269 : vector<1x32xf32> to vector<16x32xf32>
    %271 = arith.addf %268, %270 : vector<16x32xf32>
    %cst_107 = arith.constant 0.000000e+00 : f32
    %272 = vector.broadcast %cst_107 : f32 to vector<16x32xf32>
    %273 = arith.maximumf %271, %272 : vector<16x32xf32>
    %c0_108 = arith.constant 0 : index
    %c0_109 = arith.constant 0 : index
    %274 = vector.load %arg18[%c0_108, %c0_109] : memref<32x32xf32, #tpu.memory_space<vmem>>, vector<32x32xf32>
    %cst_110 = arith.constant dense<0.000000e+00> : vector<16x32xf32>
    %275 = tpu.matmul %273, %274, %cst_110 {dimension_numbers = #tpu.dot_dimension_numbers<[1], [0], [0], [1], [0, 0, 1, 1], [], []>} : vector<16x32xf32>, vector<32x32xf32>, vector<16x32xf32> -> vector<16x32xf32>
    %276 = vector.extract_strided_slice %4 {offsets = [21, 0], sizes = [1, 32], strides = [1, 1]} : vector<24x64xf32> to vector<1x32xf32>
    %277 = vector.broadcast %276 : vector<1x32xf32> to vector<16x32xf32>
    %278 = arith.addf %275, %277 : vector<16x32xf32>
    %c0_111 = arith.constant 0 : index
    %c0_112 = arith.constant 0 : index
    %279 = vector.load %arg20[%c0_111, %c0_112] : memref<16x32xf32, #tpu.memory_space<vmem>>, vector<16x32xf32>
    tpu.vector_store %arg20[%c0_111, %c0_112], %278 {strides = array<i32>} : memref<16x32xf32, #tpu.memory_space<vmem>>, vector<16x32xf32>,
    return
  }
}

</mosaic_0001>

<llo_original>
// kernel: tpu_custom_call.1
$region0: #{tpu_custom_call.1}
  #allocation0 [shape = 'u32[]', space=smem, size = 0x4, offset = 0x4, fixed_abs, tag = 'smem constant byte address 0x4 - core index']
  #allocation1 [shape = 'u32[144,128]{1,0:T(1,128)}', space=vmem, size = 0x12000, scoped, tag = 'internal scratch']
  %s0 = inlined_call_operand.vmem [shape: f32[16,32], index: 0, kind: input, shape index: {}]
  %s1 = inlined_call_operand.vmem [shape: f32[480,16], index: 1, kind: input, shape index: {}]
  %s2 = inlined_call_operand.vmem [shape: f32[240,2], index: 2, kind: input, shape index: {}]
  %s3 = inlined_call_operand.vmem [shape: f32[24,64], index: 3, kind: input, shape index: {}]
  %s4 = inlined_call_operand.vmem [shape: f32[32,32], index: 4, kind: input, shape index: {}]
  %s5 = inlined_call_operand.vmem [shape: f32[32,32], index: 5, kind: input, shape index: {}]
  %s6 = inlined_call_operand.vmem [shape: f32[64,32], index: 6, kind: input, shape index: {}]
  %s7 = inlined_call_operand.vmem [shape: f32[32,32], index: 7, kind: input, shape index: {}]
  %s8 = inlined_call_operand.vmem [shape: f32[32,32], index: 8, kind: input, shape index: {}]
  %s9 = inlined_call_operand.vmem [shape: f32[32,32], index: 9, kind: input, shape index: {}]
  %s10 = inlined_call_operand.vmem [shape: f32[96,32], index: 10, kind: input, shape index: {}]
  %s11 = inlined_call_operand.vmem [shape: f32[32,32], index: 11, kind: input, shape index: {}]
  %s12 = inlined_call_operand.vmem [shape: f32[32,2], index: 12, kind: input, shape index: {}]
  %s13 = inlined_call_operand.vmem [shape: f32[64,64], index: 13, kind: input, shape index: {}]
  %s14 = inlined_call_operand.vmem [shape: f32[64,64], index: 14, kind: input, shape index: {}]
  %s15 = inlined_call_operand.vmem [shape: f32[32,32], index: 15, kind: input, shape index: {}]
  %s16 = inlined_call_operand.vmem [shape: f32[64,32], index: 16, kind: input, shape index: {}]
  %s17 = inlined_call_operand.vmem [shape: f32[32,32], index: 17, kind: input, shape index: {}]
  %s18 = inlined_call_operand.vmem [shape: f32[32,32], index: 18, kind: input, shape index: {}]
  %s19 = inlined_call_operand.hbm [shape: f32[2,16,16], index: 19, kind: output, shape index: {0}]
  %s20 = inlined_call_operand.hbm [shape: f32[16,32], index: 20, kind: output, shape index: {1}]
  %s21 = inlined_call_operand.vmem [shape: f32[240,2], index: 21, kind: output, shape index: {2}]
  %22 = xla_tuple %s19, %s20, %s21
  %s23 = sld [smem:[#allocation0]]
  $region102: #{tpu_custom_call.1} parent=0
    _
  %s25 = ssub.s32 1, %s23
  %s26 = scalar_select 0, %s25, %s23
  $region1: #{tpu_custom_call.1} parent=0
    #allocation2 [shape = 'u8[16384]{0}', space=vmem, size = 0x4000, scoped, tag = 'output window, operand 0, single buffered']
    #allocation3 [shape = 's32[1]{0}', space=sflag, size = 0x4, scoped, tag = 'scoped memory for tpu_custom_call.1']
    #allocation4 [shape = 'u8[8192]{0}', space=vmem, size = 0x2000, scoped, tag = 'output window, operand 1, single buffered']
    #allocation5 [shape = 's32[1]{0}', space=sflag, size = 0x4, scoped, tag = 'scoped memory for tpu_custom_call.1']
    %27 = vsyncpa [#allocation3], 0
    %28 = vsyncpa [#allocation5], 0
    // Predicated region
    $region2: #{tpu_custom_call.1} parent=1 // pred_check
      _
    $region3: #{tpu_custom_call.1} parent=1 // pred_check_branch
      %30 = sbr.rel (0) target = $region5
    $region4: #{tpu_custom_call.1} parent=1 // pred_region
      _
    $region5: #{tpu_custom_call.1} parent=1 // pred_fallthru
      _
    // Predicated region
    $region6: #{tpu_custom_call.1} parent=1 // pred_check
      _
    $region7: #{tpu_custom_call.1} parent=1 // pred_check_branch
      %32 = sbr.rel (0) target = $region9
    $region8: #{tpu_custom_call.1} parent=1 // pred_region
      _
    $region9: #{tpu_custom_call.1} parent=1 // pred_fallthru
      _
    // Predicated region
    $region10: #{tpu_custom_call.1} parent=1 // pred_check
      _
    $region11: #{tpu_custom_call.1} parent=1 // pred_check_branch
      %34 = sbr.rel (0) target = $region13
    $region12: #{tpu_custom_call.1} parent=1 // pred_region
      _
    $region13: #{tpu_custom_call.1} parent=1 // pred_fallthru
      _
    // Predicated region
    $region14: #{tpu_custom_call.1} parent=1 // pred_check
      _
    $region15: #{tpu_custom_call.1} parent=1 // pred_check_branch
      %36 = sbr.rel (0) target = $region17
    $region16: #{tpu_custom_call.1} parent=1 // pred_region
      _
    $region17: #{tpu_custom_call.1} parent=1 // pred_fallthru
      _
    // Predicated region
    $region18: #{tpu_custom_call.1} parent=1 // pred_check
      _
    $region19: #{tpu_custom_call.1} parent=1 // pred_check_branch
      %38 = sbr.rel (0) target = $region21
    $region20: #{tpu_custom_call.1} parent=1 // pred_region
      _
    $region21: #{tpu_custom_call.1} parent=1 // pred_fallthru
      _
    // Predicated region
    $region22: #{tpu_custom_call.1} parent=1 // pred_check
      _
    $region23: #{tpu_custom_call.1} parent=1 // pred_check_branch
      %40 = sbr.rel (0) target = $region25
    $region24: #{tpu_custom_call.1} parent=1 // pred_region
      _
    $region25: #{tpu_custom_call.1} parent=1 // pred_fallthru
      _
    // Predicated region
    $region26: #{tpu_custom_call.1} parent=1 // pred_check
      _
    $region27: #{tpu_custom_call.1} parent=1 // pred_check_branch
      %42 = sbr.rel (0) target = $region29
    $region28: #{tpu_custom_call.1} parent=1 // pred_region
      _
    $region29: #{tpu_custom_call.1} parent=1 // pred_fallthru
      _
    // Predicated region
    $region30: #{tpu_custom_call.1} parent=1 // pred_check
      _
    $region31: #{tpu_custom_call.1} parent=1 // pred_check_branch
      %44 = sbr.rel (0) target = $region33
    $region32: #{tpu_custom_call.1} parent=1 // pred_region
      _
    $region33: #{tpu_custom_call.1} parent=1 // pred_fallthru
      _
    // Predicated region
    $region34: #{tpu_custom_call.1} parent=1 // pred_check
      _
    $region35: #{tpu_custom_call.1} parent=1 // pred_check_branch
      %46 = sbr.rel (0) target = $region37
    $region36: #{tpu_custom_call.1} parent=1 // pred_region
      _
    $region37: #{tpu_custom_call.1} parent=1 // pred_fallthru
      _
    // Predicated region
    $region38: #{tpu_custom_call.1} parent=1 // pred_check
      _
    $region39: #{tpu_custom_call.1} parent=1 // pred_check_branch
      %48 = sbr.rel (0) target = $region41
    $region40: #{tpu_custom_call.1} parent=1 // pred_region
      _
    $region41: #{tpu_custom_call.1} parent=1 // pred_fallthru
      _
    // Predicated region
    $region42: #{tpu_custom_call.1} parent=1 // pred_check
      _
    $region43: #{tpu_custom_call.1} parent=1 // pred_check_branch
      %50 = sbr.rel (0) target = $region45
    $region44: #{tpu_custom_call.1} parent=1 // pred_region
      _
    $region45: #{tpu_custom_call.1} parent=1 // pred_fallthru
      _
    // Predicated region
    $region46: #{tpu_custom_call.1} parent=1 // pred_check
      _
    $region47: #{tpu_custom_call.1} parent=1 // pred_check_branch
      %52 = sbr.rel (0) target = $region49
    $region48: #{tpu_custom_call.1} parent=1 // pred_region
      _
    $region49: #{tpu_custom_call.1} parent=1 // pred_fallthru
      _
    // Predicated region
    $region50: #{tpu_custom_call.1} parent=1 // pred_check
      _
    $region51: #{tpu_custom_call.1} parent=1 // pred_check_branch
      %54 = sbr.rel (0) target = $region53
    $region52: #{tpu_custom_call.1} parent=1 // pred_region
      _
    $region53: #{tpu_custom_call.1} parent=1 // pred_fallthru
      _
    // Predicated region
    $region54: #{tpu_custom_call.1} parent=1 // pred_check
      _
    $region55: #{tpu_custom_call.1} parent=1 // pred_check_branch
      %56 = sbr.rel (0) target = $region57
    $region56: #{tpu_custom_call.1} parent=1 // pred_region
      _
    $region57: #{tpu_custom_call.1} parent=1 // pred_fallthru
      _
    // Predicated region
    $region58: #{tpu_custom_call.1} parent=1 // pred_check
      _
    $region59: #{tpu_custom_call.1} parent=1 // pred_check_branch
      %58 = sbr.rel (0) target = $region61
    $region60: #{tpu_custom_call.1} parent=1 // pred_region
      _
    $region61: #{tpu_custom_call.1} parent=1 // pred_fallthru
      _
    // Predicated region
    $region62: #{tpu_custom_call.1} parent=1 // pred_check
      _
    $region63: #{tpu_custom_call.1} parent=1 // pred_check_branch
      %60 = sbr.rel (0) target = $region65
    $region64: #{tpu_custom_call.1} parent=1 // pred_region
      _
    $region65: #{tpu_custom_call.1} parent=1 // pred_fallthru
      _
    // Predicated region
    $region66: #{tpu_custom_call.1} parent=1 // pred_check
      _
    $region67: #{tpu_custom_call.1} parent=1 // pred_check_branch
      %62 = sbr.rel (0) target = $region69
    $region68: #{tpu_custom_call.1} parent=1 // pred_region
      _
    $region69: #{tpu_custom_call.1} parent=1 // pred_fallthru
      _
    // Predicated region
    $region70: #{tpu_custom_call.1} parent=1 // pred_check
      _
    $region71: #{tpu_custom_call.1} parent=1 // pred_check_branch
      %64 = sbr.rel (0) target = $region73
    $region72: #{tpu_custom_call.1} parent=1 // pred_region
      _
    $region73: #{tpu_custom_call.1} parent=1 // pred_fallthru
      _
    // Predicated region
    $region74: #{tpu_custom_call.1} parent=1 // pred_check
      _
    $region75: #{tpu_custom_call.1} parent=1 // pred_check_branch
      %66 = sbr.rel (0) target = $region77
    $region76: #{tpu_custom_call.1} parent=1 // pred_region
      _
    $region77: #{tpu_custom_call.1} parent=1 // pred_fallthru
      _
    %v67 = vld [vmem:[%s0] sm:$0xff]
    %v68 = vld [vmem:[%s0 + $0x8] sm:$0xff]
    %v69 = vld [vmem:[%s1] sm:$0xff]
    %v70 = vld [vmem:[%s1 + $0x8] sm:$0xff]
    %v71 = vld [vmem:[%s1 + $0x10] sm:$0xff]
    %v72 = vld [vmem:[%s1 + $0x18] sm:$0xff]
    %v73 = vld [vmem:[%s1 + $0x20] sm:$0xff]
    %v74 = vld [vmem:[%s1 + $0x28] sm:$0xff]
    %v75 = vld [vmem:[%s1 + $0x30] sm:$0xff]
    %v76 = vld [vmem:[%s1 + $0x38] sm:$0xff]
    %v77 = vld [vmem:[%s1 + $0x40] sm:$0xff]
    %v78 = vld [vmem:[%s1 + $0x48] sm:$0xff]
    %v79 = vld [vmem:[%s1 + $0x50] sm:$0xff]
    %v80 = vld [vmem:[%s1 + $0x58] sm:$0xff]
    %v81 = vld [vmem:[%s1 + $0x60] sm:$0xff]
    %v82 = vld [vmem:[%s1 + $0x68] sm:$0xff]
    %v83 = vld [vmem:[%s1 + $0x70] sm:$0xff]
    %v84 = vld [vmem:[%s1 + $0x78] sm:$0xff]
    %v85 = vld [vmem:[%s1 + $0x80] sm:$0xff]
    %v86 = vld [vmem:[%s1 + $0x88] sm:$0xff]
    %v87 = vld [vmem:[%s1 + $0x90] sm:$0xff]
    %v88 = vld [vmem:[%s1 + $0x98] sm:$0xff]
    %v89 = vld [vmem:[%s1 + $0xa0] sm:$0xff]
    %v90 = vld [vmem:[%s1 + $0xa8] sm:$0xff]
    %v91 = vld [vmem:[%s1 + $0xb0] sm:$0xff]
    %v92 = vld [vmem:[%s1 + $0xb8] sm:$0xff]
    %v93 = vld [vmem:[%s1 + $0xc0] sm:$0xff]
    %v94 = vld [vmem:[%s1 + $0xc8] sm:$0xff]
    %v95 = vld [vmem:[%s1 + $0xd0] sm:$0xff]
    %v96 = vld [vmem:[%s1 + $0xd8] sm:$0xff]
    %v97 = vld [vmem:[%s1 + $0xe0] sm:$0xff]
    %v98 = vld [vmem:[%s1 + $0xe8] sm:$0xff]
    %v99 = vld [vmem:[%s1 + $0xf0] sm:$0xff]
    %v100 = vld [vmem:[%s1 + $0xf8] sm:$0xff]
    %v101 = vld [vmem:[%s1 + $0x100] sm:$0xff]
    %v102 = vld [vmem:[%s1 + $0x108] sm:$0xff]
    %v103 = vld [vmem:[%s1 + $0x110] sm:$0xff]
    %v104 = vld [vmem:[%s1 + $0x118] sm:$0xff]
    %v105 = vld [vmem:[%s1 + $0x120] sm:$0xff]
    %v106 = vld [vmem:[%s1 + $0x128] sm:$0xff]
    %v107 = vld [vmem:[%s1 + $0x130] sm:$0xff]
    %v108 = vld [vmem:[%s1 + $0x138] sm:$0xff]
    %v109 = vld [vmem:[%s1 + $0x140] sm:$0xff]
    %v110 = vld [vmem:[%s1 + $0x148] sm:$0xff]
    %v111 = vld [vmem:[%s1 + $0x150] sm:$0xff]
    %v112 = vld [vmem:[%s1 + $0x158] sm:$0xff]
    %v113 = vld [vmem:[%s1 + $0x160] sm:$0xff]
    %v114 = vld [vmem:[%s1 + $0x168] sm:$0xff]
    %v115 = vld [vmem:[%s1 + $0x170] sm:$0xff]
    %v116 = vld [vmem:[%s1 + $0x178] sm:$0xff]
    %v117 = vld [vmem:[%s1 + $0x180] sm:$0xff]
    %v118 = vld [vmem:[%s1 + $0x188] sm:$0xff]
    %v119 = vld [vmem:[%s1 + $0x190] sm:$0xff]
    %v120 = vld [vmem:[%s1 + $0x198] sm:$0xff]
    %v121 = vld [vmem:[%s1 + $0x1a0] sm:$0xff]
    %v122 = vld [vmem:[%s1 + $0x1a8] sm:$0xff]
    %v123 = vld [vmem:[%s1 + $0x1b0] sm:$0xff]
    %v124 = vld [vmem:[%s1 + $0x1b8] sm:$0xff]
    %v125 = vld [vmem:[%s1 + $0x1c0] sm:$0xff]
    %v126 = vld [vmem:[%s1 + $0x1c8] sm:$0xff]
    %v127 = vld [vmem:[%s1 + $0x1d0] sm:$0xff]
    %v128 = vld [vmem:[%s1 + $0x1d8] sm:$0xff]
    %v129 = vld [vmem:[%s3] sm:$0xff]
    %v130 = vld [vmem:[%s3 + $0x8] sm:$0xff]
    %v131 = vld [vmem:[%s3 + $0x10] sm:$0xff]
    %v132 = vld [vmem:[%s4] sm:$0xff]
    %v133 = vld [vmem:[%s4 + $0x8] sm:$0xff]
    %v134 = vld [vmem:[%s4 + $0x10] sm:$0xff]
    %v135 = vld [vmem:[%s4 + $0x18] sm:$0xff]
    %v136 = vld [vmem:[%s5] sm:$0xff]
    %v137 = vld [vmem:[%s5 + $0x8] sm:$0xff]
    %v138 = vld [vmem:[%s5 + $0x10] sm:$0xff]
    %v139 = vld [vmem:[%s5 + $0x18] sm:$0xff]
    %v140 = vlaneseq
    %v141 = vshrl.u32 %v140, 7
    %v142 = vsub.s32 0, %v141
    %v143 = vrot.slane %v129, %v142
    %vm144 = vcmask 261120
    %v146 = vsel %vm144, %v67, 0
    %v149 = vsel %vm144, %v68, 0
    %151 = vmatprep.subr.mxu0 0.0
    %152 = vmatpush1.msra.mxu0 %v132
    %153 = vmatprep.subr.mxu0 0.0
    %154 = vmatpush1.msra.mxu0 %v133
    %155 = vmatprep.subr.mxu0 0.0
    %156 = vmatpush1.msra.mxu0 %v134
    %157 = vmatprep.subr.mxu0 0.0
    %158 = vmatpush1.msra.mxu0 %v135
    %159 = vmatprep.subr.mxu0 0.0
    %160 = vmatpush1.msra.mxu0 0.0
    %161 = vmatprep.subr.mxu0 0.0
    %162 = vmatpush1.msra.mxu0 0.0
    %163 = vmatprep.subr.mxu0 0.0
    %164 = vmatpush1.msra.mxu0 0.0
    %165 = vmatprep.subr.mxu0 0.0
    %166 = vmatpush1.msra.mxu0 0.0
    %167 = vmatprep.subr.mxu0 0.0
    %168 = vmatpush1.msra.mxu0 0.0
    %169 = vmatprep.subr.mxu0 0.0
    %170 = vmatpush1.msra.mxu0 0.0
    %171 = vmatprep.subr.mxu0 0.0
    %172 = vmatpush1.msra.mxu0 0.0
    %173 = vmatprep.subr.mxu0 0.0
    %174 = vmatpush1.msra.mxu0 0.0
    %175 = vmatprep.subr.mxu0 0.0
    %176 = vmatpush1.msra.mxu0 0.0
    %177 = vmatprep.subr.mxu0 0.0
    %178 = vmatpush1.msra.mxu0 0.0
    %179 = vmatprep.subr.mxu0 0.0
    %180 = vmatpush1.msra.mxu0 0.0
    %181 = vmatprep.subr.mxu0 0.0
    %182 = vmatpush1.msra.mxu0 0.0
    %183 = vmatprep.subr.mxu0 0.0
    %184 = vmatpush1.msra.mxu0 0.0
    %185 = vmatprep.subr.mxu0 0.0
    %186 = vmatpush1.msra.mxu0 0.0
    %187 = vmatprep.subr.mxu0 0.0
    %188 = vmatpush1.msra.mxu0 0.0
    %189 = vmatprep.subr.mxu0 0.0
    %190 = vmatpush1.msra.mxu0 0.0
    %191 = vmatprep.subr.mxu0 0.0
    %192 = vmatpush1.msra.mxu0 0.0
    %193 = vmatprep.subr.mxu0 0.0
    %194 = vmatpush1.msra.mxu0 0.0
    %195 = vmatprep.subr.mxu0 0.0
    %196 = vmatpush1.msra.mxu0 0.0
    %197 = vmatprep.subr.mxu0 0.0
    %198 = vmatpush1.msra.mxu0 0.0
    %199 = vmatprep.subr.mxu0 0.0
    %200 = vmatpush1.msra.mxu0 0.0
    %201 = vmatprep.subr.mxu0 0.0
    %202 = vmatpush1.msra.mxu0 0.0
    %203 = vmatprep.subr.mxu0 0.0
    %204 = vmatpush1.msra.mxu0 0.0
    %205 = vmatprep.subr.mxu0 0.0
    %206 = vmatpush1.msra.mxu0 0.0
    %207 = vmatprep.subr.mxu0 0.0
    %208 = vmatpush1.msra.mxu0 0.0
    %209 = vmatprep.subr.mxu0 0.0
    %210 = vmatpush1.msra.mxu0 0.0
    %211 = vmatprep.subr.mxu0 0.0
    %212 = vmatpush1.msra.mxu0 0.0
    %213 = vmatprep.subr.mxu0 0.0
    %214 = vmatpush1.msra.mxu0 0.0
    %215 = vmatprep.mubr.f32.mxu0 0.0
    %216 = vmatmul.mubr.f32.gmra.mrb[0].mxu0 %v146
    %v217 = vpop.f32.mrb[0].mxu0
    %v218 = vadd.f32 %v143, %v217
    %v219 = vpop.f32.mrb[0].mxu0
    %220 = vmatprep.mubr.f32.mxu0 0.0
    %221 = vmatmul.mubr.f32.gmra.mrb[0].mxu0 %v149
    %v222 = vpop.f32.mrb[0].mxu0
    %v223 = vadd.f32 %v143, %v222
    %v224 = vpop.f32.mrb[0].mxu0
    %225 = vdwg.mxu0
    %v226 = vmax.f32 %v218, 0.0
    %v227 = vmax.f32 %v223, 0.0
    %v228 = vlaneseq
    %v229 = vshrl.u32 %v228, 7
    %v230 = vsub.s32 1, %v229
    %v231 = vrot.slane %v129, %v230
    %v233 = vsel %vm144, %v226, 0
    %v236 = vsel %vm144, %v227, 0
    %238 = vmatprep.subr.mxu0 0.0
    %239 = vmatpush1.msra.mxu0 %v136
    %240 = vmatprep.subr.mxu0 0.0
    %241 = vmatpush1.msra.mxu0 %v137
    %242 = vmatprep.subr.mxu0 0.0
    %243 = vmatpush1.msra.mxu0 %v138
    %244 = vmatprep.subr.mxu0 0.0
    %245 = vmatpush1.msra.mxu0 %v139
    %246 = vmatprep.subr.mxu0 0.0
    %247 = vmatpush1.msra.mxu0 0.0
    %248 = vmatprep.subr.mxu0 0.0
    %249 = vmatpush1.msra.mxu0 0.0
    %250 = vmatprep.subr.mxu0 0.0
    %251 = vmatpush1.msra.mxu0 0.0
    %252 = vmatprep.subr.mxu0 0.0
    %253 = vmatpush1.msra.mxu0 0.0
    %254 = vmatprep.subr.mxu0 0.0
    %255 = vmatpush1.msra.mxu0 0.0
    %256 = vmatprep.subr.mxu0 0.0
    %257 = vmatpush1.msra.mxu0 0.0
    %258 = vmatprep.subr.mxu0 0.0
    %259 = vmatpush1.msra.mxu0 0.0
    %260 = vmatprep.subr.mxu0 0.0
    %261 = vmatpush1.msra.mxu0 0.0
    %262 = vmatprep.subr.mxu0 0.0
    %263 = vmatpush1.msra.mxu0 0.0
    %264 = vmatprep.subr.mxu0 0.0
    %265 = vmatpush1.msra.mxu0 0.0
    %266 = vmatprep.subr.mxu0 0.0
    %267 = vmatpush1.msra.mxu0 0.0
    %268 = vmatprep.subr.mxu0 0.0
    %269 = vmatpush1.msra.mxu0 0.0
    %270 = vmatprep.subr.mxu0 0.0
    %271 = vmatpush1.msra.mxu0 0.0
    %272 = vmatprep.subr.mxu0 0.0
    %273 = vmatpush1.msra.mxu0 0.0
    %274 = vmatprep.subr.mxu0 0.0
    %275 = vmatpush1.msra.mxu0 0.0
    %276 = vmatprep.subr.mxu0 0.0
    %277 = vmatpush1.msra.mxu0 0.0
    %278 = vmatprep.subr.mxu0 0.0
    %279 = vmatpush1.msra.mxu0 0.0
    %280 = vmatprep.subr.mxu0 0.0
    %281 = vmatpush1.msra.mxu0 0.0
    %282 = vmatprep.subr.mxu0 0.0
    %283 = vmatpush1.msra.mxu0 0.0
    %284 = vmatprep.subr.mxu0 0.0
    %285 = vmatpush1.msra.mxu0 0.0
    %286 = vmatprep.subr.mxu0 0.0
    %287 = vmatpush1.msra.mxu0 0.0
    %288 = vmatprep.subr.mxu0 0.0
    %289 = vmatpush1.msra.mxu0 0.0
    %290 = vmatprep.subr.mxu0 0.0
    %291 = vmatpush1.msra.mxu0 0.0
    %292 = vmatprep.subr.mxu0 0.0
    %293 = vmatpush1.msra.mxu0 0.0
    %294 = vmatprep.subr.mxu0 0.0
    %295 = vmatpush1.msra.mxu0 0.0
    %296 = vmatprep.subr.mxu0 0.0
    %297 = vmatpush1.msra.mxu0 0.0
    %298 = vmatprep.subr.mxu0 0.0
    %299 = vmatpush1.msra.mxu0 0.0
    %300 = vmatprep.subr.mxu0 0.0
    %301 = vmatpush1.msra.mxu0 0.0
    %302 = vmatprep.mubr.f32.mxu0 0.0
    %303 = vmatmul.mubr.f32.gmra.mrb[0].mxu0 %v233
    %v304 = vpop.f32.mrb[0].mxu0
    %v305 = vadd.f32 %v231, %v304
    %v306 = vpop.f32.mrb[0].mxu0
    %307 = vmatprep.mubr.f32.mxu0 0.0
    %308 = vmatmul.mubr.f32.gmra.mrb[0].mxu0 %v236
    %v309 = vpop.f32.mrb[0].mxu0
    %v310 = vadd.f32 %v231, %v309
    %v311 = vpop.f32.mrb[0].mxu0
    %312 = vdwg.mxu0
    %v313 = vmax.f32 %v305, 0.0
    %v314 = vmax.f32 %v310, 0.0
    %v315 = vsel %vm144, %v313, 0.0
    %v316 = vsel %vm144, %v314, 0.0
    %v317 = vadd.f32 %v315, %v316
    %v318 = vrot.slane %v317, 4
    %v319 = vadd.f32 %v317, %v318
    %v320 = vrot.slane %v319, 2
    %v321 = vadd.f32 %v319, %v320
    %v322 = vrot.slane %v321, 1
    %v323 = vadd.f32 %v321, %v322
    %v324 = vrcp.pop 16.0
    %v325 = vmul.f32 %v323, %v324
    %v326 = vsub.f32 %v313, %v325
    %v327 = vsub.f32 %v314, %v325
    %v328 = vmul.f32 %v326, %v326
    %v329 = vmul.f32 %v327, %v327
    %v330 = vsel %vm144, %v328, 0.0
    %v331 = vsel %vm144, %v329, 0.0
    %v332 = vadd.f32 %v330, %v331
    %v333 = vrot.slane %v332, 4
    %v334 = vadd.f32 %v332, %v333
    %v335 = vrot.slane %v334, 2
    %v336 = vadd.f32 %v334, %v335
    %v337 = vrot.slane %v336, 1
    %v338 = vadd.f32 %v336, %v337
    %v339 = vmul.f32 %v338, %v324
    %v340 = vadd.f32 %v339, 1e-05
    %v341 = vrsqrt.pop %v340
    %v342 = vmul.f32 %v129, %v341
    %v343 = vlaneseq
    %v344 = vshrl.u32 %v343, 7
    %v345 = vsub.s32 2, %v344
    %v346 = vrot.slane %v342, %v345
    %v347 = vmul.f32 %v326, %v346
    %v348 = vmul.f32 %v327, %v346
    %v349 = vlaneseq
    %v350 = vshrl.u32 %v349, 7
    %v351 = vsub.s32 3, %v350
    %v352 = vrot.slane %v129, %v351
    %v353 = vadd.f32 %v347, %v352
    %v354 = vadd.f32 %v348, %v352
    %vm355 = vcmask 130048
    %v357 = vsel %vm355, %v69, 0
    %v360 = vsel %vm355, %v70, 0
    %v363 = vsel %vm355, %v71, 0
    %v366 = vsel %vm355, %v72, 0
    %v369 = vsel %vm355, %v73, 0
    %v372 = vsel %vm355, %v74, 0
    %v375 = vsel %vm355, %v75, 0
    %v378 = vsel %vm355, %v76, 0
    %v381 = vsel %vm355, %v77, 0
    %v384 = vsel %vm355, %v78, 0
    %v387 = vsel %vm355, %v79, 0
    %v390 = vsel %vm355, %v80, 0
    %v393 = vsel %vm355, %v81, 0
    %v396 = vsel %vm355, %v82, 0
    %v399 = vsel %vm355, %v83, 0
    %v402 = vsel %vm355, %v84, 0
    %v405 = vsel %vm355, %v85, 0
    %v408 = vsel %vm355, %v86, 0
    %v411 = vsel %vm355, %v87, 0
    %v414 = vsel %vm355, %v88, 0
    %v417 = vsel %vm355, %v89, 0
    %v420 = vsel %vm355, %v90, 0
    %v423 = vsel %vm355, %v91, 0
    %v426 = vsel %vm355, %v92, 0
    %v429 = vsel %vm355, %v93, 0
    %v432 = vsel %vm355, %v94, 0
    %v435 = vsel %vm355, %v95, 0
    %v438 = vsel %vm355, %v96, 0
    %v441 = vsel %vm355, %v97, 0
    %v444 = vsel %vm355, %v98, 0
    %v447 = vsel %vm355, %v99, 0
    %v450 = vsel %vm355, %v100, 0
    %v453 = vsel %vm355, %v101, 0
    %v456 = vsel %vm355, %v102, 0
    %v459 = vsel %vm355, %v103, 0
    %v462 = vsel %vm355, %v104, 0
    %v465 = vsel %vm355, %v105, 0
    %v468 = vsel %vm355, %v106, 0
    %v471 = vsel %vm355, %v107, 0
    %v474 = vsel %vm355, %v108, 0
    %v477 = vsel %vm355, %v109, 0
    %v480 = vsel %vm355, %v110, 0
    %v483 = vsel %vm355, %v111, 0
    %v486 = vsel %vm355, %v112, 0
    %v489 = vsel %vm355, %v113, 0
    %v492 = vsel %vm355, %v114, 0
    %v495 = vsel %vm355, %v115, 0
    %v498 = vsel %vm355, %v116, 0
    %v501 = vsel %vm355, %v117, 0
    %v504 = vsel %vm355, %v118, 0
    %v507 = vsel %vm355, %v119, 0
    %v510 = vsel %vm355, %v120, 0
    %v513 = vsel %vm355, %v121, 0
    %v516 = vsel %vm355, %v122, 0
    %v519 = vsel %vm355, %v123, 0
    %v522 = vsel %vm355, %v124, 0
    %v525 = vsel %vm355, %v125, 0
    %v528 = vsel %vm355, %v126, 0
    %v531 = vsel %vm355, %v127, 0
    %v534 = vsel %vm355, %v128, 0
    %536 = vmatprep.subr.mxu0 0.0
    %537 = vmatpush1.msra.mxu0 %v353
    %538 = vmatprep.subr.mxu0 0.0
    %539 = vmatpush1.msra.mxu0 %v354
    %540 = vmatprep.subr.mxu0 0.0
    %541 = vmatpush1.msra.mxu0 0.0
    %542 = vmatprep.subr.mxu0 0.0
    %543 = vmatpush1.msra.mxu0 0.0
    %544 = vmatprep.subr.mxu0 0.0
    %545 = vmatpush1.msra.mxu0 0.0
    %546 = vmatprep.subr.mxu0 0.0
    %547 = vmatpush1.msra.mxu0 0.0
    %548 = vmatprep.subr.mxu0 0.0
    %549 = vmatpush1.msra.mxu0 0.0
    %550 = vmatprep.subr.mxu0 0.0
    %551 = vmatpush1.msra.mxu0 0.0
    %552 = vmatprep.subr.mxu0 0.0
    %553 = vmatpush1.msra.mxu0 0.0
    %554 = vmatprep.subr.mxu0 0.0
    %555 = vmatpush1.msra.mxu0 0.0
    %556 = vmatprep.subr.mxu0 0.0
    %557 = vmatpush1.msra.mxu0 0.0
    %558 = vmatprep.subr.mxu0 0.0
    %559 = vmatpush1.msra.mxu0 0.0
    %560 = vmatprep.subr.mxu0 0.0
    %561 = vmatpush1.msra.mxu0 0.0
    %562 = vmatprep.subr.mxu0 0.0
    %563 = vmatpush1.msra.mxu0 0.0
    %564 = vmatprep.subr.mxu0 0.0
    %565 = vmatpush1.msra.mxu0 0.0
    %566 = vmatprep.subr.mxu0 0.0
    %567 = vmatpush1.msra.mxu0 0.0
    %568 = vmatprep.subr.mxu0 0.0
    %569 = vmatpush1.msra.mxu0 0.0
    %570 = vmatprep.subr.mxu0 0.0
    %571 = vmatpush1.msra.mxu0 0.0
    %572 = vmatprep.subr.mxu0 0.0
    %573 = vmatpush1.msra.mxu0 0.0
    %574 = vmatprep.subr.mxu0 0.0
    %575 = vmatpush1.msra.mxu0 0.0
    %576 = vmatprep.subr.mxu0 0.0
    %577 = vmatpush1.msra.mxu0 0.0
    %578 = vmatprep.subr.mxu0 0.0
    %579 = vmatpush1.msra.mxu0 0.0
    %580 = vmatprep.subr.mxu0 0.0
    %581 = vmatpush1.msra.mxu0 0.0
    %582 = vmatprep.subr.mxu0 0.0
    %583 = vmatpush1.msra.mxu0 0.0
    %584 = vmatprep.subr.mxu0 0.0
    %585 = vmatpush1.msra.mxu0 0.0
    %586 = vmatprep.subr.mxu0 0.0
    %587 = vmatpush1.msra.mxu0 0.0
    %588 = vmatprep.subr.mxu0 0.0
    %589 = vmatpush1.msra.mxu0 0.0
    %590 = vmatprep.subr.mxu0 0.0
    %591 = vmatpush1.msra.mxu0 0.0
    %592 = vmatprep.subr.mxu0 0.0
    %593 = vmatpush1.msra.mxu0 0.0
    %594 = vmatprep.subr.mxu0 0.0
    %595 = vmatpush1.msra.mxu0 0.0
    %596 = vmatprep.subr.mxu0 0.0
    %597 = vmatpush1.msra.mxu0 0.0
    %598 = vmatprep.subr.mxu0 0.0
    %599 = vmatpush1.msra.mxu0 0.0
    %600 = vmatprep.mubr.f32.mxu0 0.0
    %601 = vmatmul.mubr.f32.gmra.mrb[0].mxu0 %v357
    %v602 = vpop.f32.mrb[0].mxu0
    %v603 = vadd.f32 0.0, %v602
    %v604 = vpop.f32.mrb[0].mxu0
    %605 = vmatprep.mubr.f32.mxu0 0.0
    %606 = vmatmul.mubr.f32.gmra.mrb[0].mxu0 %v360
    %v607 = vpop.f32.mrb[0].mxu0
    %v608 = vadd.f32 0.0, %v607
    %v609 = vpop.f32.mrb[0].mxu0
    %610 = vmatprep.mubr.f32.mxu0 0.0
    %611 = vmatmul.mubr.f32.gmra.mrb[0].mxu0 %v363
    %v612 = vpop.f32.mrb[0].mxu0
    %v613 = vadd.f32 0.0, %v612
    %v614 = vpop.f32.mrb[0].mxu0
    %615 = vmatprep.mubr.f32.mxu0 0.0
    %616 = vmatmul.mubr.f32.gmra.mrb[0].mxu0 %v366
    %v617 = vpop.f32.mrb[0].mxu0
    %v618 = vadd.f32 0.0, %v617
    %v619 = vpop.f32.mrb[0].mxu0
    %620 = vmatprep.mubr.f32.mxu0 0.0
    %621 = vmatmul.mubr.f32.gmra.mrb[0].mxu0 %v369
    %v622 = vpop.f32.mrb[0].mxu0
    %v623 = vadd.f32 0.0, %v622
    %v624 = vpop.f32.mrb[0].mxu0
    %625 = vmatprep.mubr.f32.mxu0 0.0
    %626 = vmatmul.mubr.f32.gmra.mrb[0].mxu0 %v372
    %v627 = vpop.f32.mrb[0].mxu0
    %v628 = vadd.f32 0.0, %v627
    %v629 = vpop.f32.mrb[0].mxu0
    %630 = vmatprep.mubr.f32.mxu0 0.0
    %631 = vmatmul.mubr.f32.gmra.mrb[0].mxu0 %v375
    %v632 = vpop.f32.mrb[0].mxu0
    %v633 = vadd.f32 0.0, %v632
    %v634 = vpop.f32.mrb[0].mxu0
    %635 = vmatprep.mubr.f32.mxu0 0.0
    %636 = vmatmul.mubr.f32.gmra.mrb[0].mxu0 %v378
    %v637 = vpop.f32.mrb[0].mxu0
    %v638 = vadd.f32 0.0, %v637
    %v639 = vpop.f32.mrb[0].mxu0
    %640 = vmatprep.mubr.f32.mxu0 0.0
    %641 = vmatmul.mubr.f32.gmra.mrb[0].mxu0 %v381
    %v642 = vpop.f32.mrb[0].mxu0
    %v643 = vadd.f32 0.0, %v642
    %v644 = vpop.f32.mrb[0].mxu0
    %645 = vmatprep.mubr.f32.mxu0 0.0
    %646 = vmatmul.mubr.f32.gmra.mrb[0].mxu0 %v384
    %v647 = vpop.f32.mrb[0].mxu0
    %v648 = vadd.f32 0.0, %v647
    %v649 = vpop.f32.mrb[0].mxu0
    %650 = vmatprep.mubr.f32.mxu0 0.0
    %651 = vmatmul.mubr.f32.gmra.mrb[0].mxu0 %v387
    %v652 = vpop.f32.mrb[0].mxu0
    %v653 = vadd.f32 0.0, %v652
    %v654 = vpop.f32.mrb[0].mxu0
    %655 = vmatprep.mubr.f32.mxu0 0.0
    %656 = vmatmul.mubr.f32.gmra.mrb[0].mxu0 %v390
    %v657 = vpop.f32.mrb[0].mxu0
    %v658 = vadd.f32 0.0, %v657
    %v659 = vpop.f32.mrb[0].mxu0
    %660 = vmatprep.mubr.f32.mxu0 0.0
    %661 = vmatmul.mubr.f32.gmra.mrb[0].mxu0 %v393
    %v662 = vpop.f32.mrb[0].mxu0
    %v663 = vadd.f32 0.0, %v662
    %v664 = vpop.f32.mrb[0].mxu0
    %665 = vmatprep.mubr.f32.mxu0 0.0
    %666 = vmatmul.mubr.f32.gmra.mrb[0].mxu0 %v396
    %v667 = vpop.f32.mrb[0].mxu0
    %v668 = vadd.f32 0.0, %v667
    %v669 = vpop.f32.mrb[0].mxu0
    %670 = vmatprep.mubr.f32.mxu0 0.0
    %671 = vmatmul.mubr.f32.gmra.mrb[0].mxu0 %v399
    %v672 = vpop.f32.mrb[0].mxu0
    %v673 = vadd.f32 0.0, %v672
    %v674 = vpop.f32.mrb[0].mxu0
    %675 = vmatprep.mubr.f32.mxu0 0.0
    %676 = vmatmul.mubr.f32.gmra.mrb[0].mxu0 %v402
    %v677 = vpop.f32.mrb[0].mxu0
    %v678 = vadd.f32 0.0, %v677
    %v679 = vpop.f32.mrb[0].mxu0
    %680 = vmatprep.mubr.f32.mxu0 0.0
    %681 = vmatmul.mubr.f32.gmra.mrb[0].mxu0 %v405
    %v682 = vpop.f32.mrb[0].mxu0
    %v683 = vadd.f32 0.0, %v682
    %v684 = vpop.f32.mrb[0].mxu0
    %685 = vmatprep.mubr.f32.mxu0 0.0
    %686 = vmatmul.mubr.f32.gmra.mrb[0].mxu0 %v408
    %v687 = vpop.f32.mrb[0].mxu0
    %v688 = vadd.f32 0.0, %v687
    %v689 = vpop.f32.mrb[0].mxu0
    %690 = vmatprep.mubr.f32.mxu0 0.0
    %691 = vmatmul.mubr.f32.gmra.mrb[0].mxu0 %v411
    %v692 = vpop.f32.mrb[0].mxu0
    %v693 = vadd.f32 0.0, %v692
    %v694 = vpop.f32.mrb[0].mxu0
    %695 = vmatprep.mubr.f32.mxu0 0.0
    %696 = vmatmul.mubr.f32.gmra.mrb[0].mxu0 %v414
    %v697 = vpop.f32.mrb[0].mxu0
    %v698 = vadd.f32 0.0, %v697
    %v699 = vpop.f32.mrb[0].mxu0
    %700 = vmatprep.mubr.f32.mxu0 0.0
    %701 = vmatmul.mubr.f32.gmra.mrb[0].mxu0 %v417
    %v702 = vpop.f32.mrb[0].mxu0
    %v703 = vadd.f32 0.0, %v702
    %v704 = vpop.f32.mrb[0].mxu0
    %705 = vmatprep.mubr.f32.mxu0 0.0
    %706 = vmatmul.mubr.f32.gmra.mrb[0].mxu0 %v420
    %v707 = vpop.f32.mrb[0].mxu0
    %v708 = vadd.f32 0.0, %v707
    %v709 = vpop.f32.mrb[0].mxu0
    %710 = vmatprep.mubr.f32.mxu0 0.0
    %711 = vmatmul.mubr.f32.gmra.mrb[0].mxu0 %v423
    %v712 = vpop.f32.mrb[0].mxu0
    %v713 = vadd.f32 0.0, %v712
    %v714 = vpop.f32.mrb[0].mxu0
    %715 = vmatprep.mubr.f32.mxu0 0.0
    %716 = vmatmul.mubr.f32.gmra.mrb[0].mxu0 %v426
    %v717 = vpop.f32.mrb[0].mxu0
    %v718 = vadd.f32 0.0, %v717
    %v719 = vpop.f32.mrb[0].mxu0
    %720 = vmatprep.mubr.f32.mxu0 0.0
    %721 = vmatmul.mubr.f32.gmra.mrb[0].mxu0 %v429
    %v722 = vpop.f32.mrb[0].mxu0
    %v723 = vadd.f32 0.0, %v722
    %v724 = vpop.f32.mrb[0].mxu0
    %725 = vmatprep.mubr.f32.mxu0 0.0
    %726 = vmatmul.mubr.f32.gmra.mrb[0].mxu0 %v432
    %v727 = vpop.f32.mrb[0].mxu0
    %v728 = vadd.f32 0.0, %v727
    %v729 = vpop.f32.mrb[0].mxu0
    %730 = vmatprep.mubr.f32.mxu0 0.0
    %731 = vmatmul.mubr.f32.gmra.mrb[0].mxu0 %v435
    %v732 = vpop.f32.mrb[0].mxu0
    %v733 = vadd.f32 0.0, %v732
    %v734 = vpop.f32.mrb[0].mxu0
    %735 = vmatprep.mubr.f32.mxu0 0.0
    %736 = vmatmul.mubr.f32.gmra.mrb[0].mxu0 %v438
    %v737 = vpop.f32.mrb[0].mxu0
    %v738 = vadd.f32 0.0, %v737
    %v739 = vpop.f32.mrb[0].mxu0
    %740 = vmatprep.mubr.f32.mxu0 0.0
    %741 = vmatmul.mubr.f32.gmra.mrb[0].mxu0 %v441
    %v742 = vpop.f32.mrb[0].mxu0
    %v743 = vadd.f32 0.0, %v742
    %v744 = vpop.f32.mrb[0].mxu0
    %745 = vmatprep.mubr.f32.mxu0 0.0
    %746 = vmatmul.mubr.f32.gmra.mrb[0].mxu0 %v444
    %v747 = vpop.f32.mrb[0].mxu0
    %v748 = vadd.f32 0.0, %v747
    %v749 = vpop.f32.mrb[0].mxu0
    %750 = vmatprep.mubr.f32.mxu0 0.0
    %751 = vmatmul.mubr.f32.gmra.mrb[0].mxu0 %v447
    %v752 = vpop.f32.mrb[0].mxu0
    %v753 = vadd.f32 0.0, %v752
    %v754 = vpop.f32.mrb[0].mxu0
    %755 = vmatprep.mubr.f32.mxu0 0.0
    %756 = vmatmul.mubr.f32.gmra.mrb[0].mxu0 %v450
    %v757 = vpop.f32.mrb[0].mxu0
    %v758 = vadd.f32 0.0, %v757
    %v759 = vpop.f32.mrb[0].mxu0
    %760 = vmatprep.mubr.f32.mxu0 0.0
    %761 = vmatmul.mubr.f32.gmra.mrb[0].mxu0 %v453
    %v762 = vpop.f32.mrb[0].mxu0
    %v763 = vadd.f32 0.0, %v762
    %v764 = vpop.f32.mrb[0].mxu0
    %765 = vmatprep.mubr.f32.mxu0 0.0
    %766 = vmatmul.mubr.f32.gmra.mrb[0].mxu0 %v456
    %v767 = vpop.f32.mrb[0].mxu0
    %v768 = vadd.f32 0.0, %v767
    %v769 = vpop.f32.mrb[0].mxu0
    %770 = vmatprep.mubr.f32.mxu0 0.0
    %771 = vmatmul.mubr.f32.gmra.mrb[0].mxu0 %v459
    %v772 = vpop.f32.mrb[0].mxu0
    %v773 = vadd.f32 0.0, %v772
    %v774 = vpop.f32.mrb[0].mxu0
    %775 = vmatprep.mubr.f32.mxu0 0.0
    %776 = vmatmul.mubr.f32.gmra.mrb[0].mxu0 %v462
    %v777 = vpop.f32.mrb[0].mxu0
    %v778 = vadd.f32 0.0, %v777
    %v779 = vpop.f32.mrb[0].mxu0
    %780 = vmatprep.mubr.f32.mxu0 0.0
    %781 = vmatmul.mubr.f32.gmra.mrb[0].mxu0 %v465
    %v782 = vpop.f32.mrb[0].mxu0
    %v783 = vadd.f32 0.0, %v782
    %v784 = vpop.f32.mrb[0].mxu0
    %785 = vmatprep.mubr.f32.mxu0 0.0
    %786 = vmatmul.mubr.f32.gmra.mrb[0].mxu0 %v468
    %v787 = vpop.f32.mrb[0].mxu0
    %v788 = vadd.f32 0.0, %v787
    %v789 = vpop.f32.mrb[0].mxu0
    %790 = vmatprep.mubr.f32.mxu0 0.0
    %791 = vmatmul.mubr.f32.gmra.mrb[0].mxu0 %v471
    %v792 = vpop.f32.mrb[0].mxu0
    %v793 = vadd.f32 0.0, %v792
    %v794 = vpop.f32.mrb[0].mxu0
    %795 = vmatprep.mubr.f32.mxu0 0.0
    %796 = vmatmul.mubr.f32.gmra.mrb[0].mxu0 %v474
    %v797 = vpop.f32.mrb[0].mxu0
    %v798 = vadd.f32 0.0, %v797
    %v799 = vpop.f32.mrb[0].mxu0
    %800 = vmatprep.mubr.f32.mxu0 0.0
    %801 = vmatmul.mubr.f32.gmra.mrb[0].mxu0 %v477
    %v802 = vpop.f32.mrb[0].mxu0
    %v803 = vadd.f32 0.0, %v802
    %v804 = vpop.f32.mrb[0].mxu0
    %805 = vmatprep.mubr.f32.mxu0 0.0
    %806 = vmatmul.mubr.f32.gmra.mrb[0].mxu0 %v480
    %v807 = vpop.f32.mrb[0].mxu0
    %v808 = vadd.f32 0.0, %v807
    %v809 = vpop.f32.mrb[0].mxu0
    %810 = vmatprep.mubr.f32.mxu0 0.0
    %811 = vmatmul.mubr.f32.gmra.mrb[0].mxu0 %v483
    %v812 = vpop.f32.mrb[0].mxu0
    %v813 = vadd.f32 0.0, %v812
    %v814 = vpop.f32.mrb[0].mxu0
    %815 = vmatprep.mubr.f32.mxu0 0.0
    %816 = vmatmul.mubr.f32.gmra.mrb[0].mxu0 %v486
    %v817 = vpop.f32.mrb[0].mxu0
    %v818 = vadd.f32 0.0, %v817
    %v819 = vpop.f32.mrb[0].mxu0
    %820 = vmatprep.mubr.f32.mxu0 0.0
    %821 = vmatmul.mubr.f32.gmra.mrb[0].mxu0 %v489
    %v822 = vpop.f32.mrb[0].mxu0
    %v823 = vadd.f32 0.0, %v822
    %v824 = vpop.f32.mrb[0].mxu0
    %825 = vmatprep.mubr.f32.mxu0 0.0
    %826 = vmatmul.mubr.f32.gmra.mrb[0].mxu0 %v492
    %v827 = vpop.f32.mrb[0].mxu0
    %v828 = vadd.f32 0.0, %v827
    %v829 = vpop.f32.mrb[0].mxu0
    %830 = vmatprep.mubr.f32.mxu0 0.0
    %831 = vmatmul.mubr.f32.gmra.mrb[0].mxu0 %v495
    %v832 = vpop.f32.mrb[0].mxu0
    %v833 = vadd.f32 0.0, %v832
    %v834 = vpop.f32.mrb[0].mxu0
    %835 = vmatprep.mubr.f32.mxu0 0.0
    %836 = vmatmul.mubr.f32.gmra.mrb[0].mxu0 %v498
    %v837 = vpop.f32.mrb[0].mxu0
    %v838 = vadd.f32 0.0, %v837
    %v839 = vpop.f32.mrb[0].mxu0
    %840 = vmatprep.mubr.f32.mxu0 0.0
    %841 = vmatmul.mubr.f32.gmra.mrb[0].mxu0 %v501
    %v842 = vpop.f32.mrb[0].mxu0
    %v843 = vadd.f32 0.0, %v842
    %v844 = vpop.f32.mrb[0].mxu0
    %845 = vmatprep.mubr.f32.mxu0 0.0
    %846 = vmatmul.mubr.f32.gmra.mrb[0].mxu0 %v504
    %v847 = vpop.f32.mrb[0].mxu0
    %v848 = vadd.f32 0.0, %v847
    %v849 = vpop.f32.mrb[0].mxu0
    %850 = vmatprep.mubr.f32.mxu0 0.0
    %851 = vmatmul.mubr.f32.gmra.mrb[0].mxu0 %v507
    %v852 = vpop.f32.mrb[0].mxu0
    %v853 = vadd.f32 0.0, %v852
    %v854 = vpop.f32.mrb[0].mxu0
    %855 = vmatprep.mubr.f32.mxu0 0.0
    %856 = vmatmul.mubr.f32.gmra.mrb[0].mxu0 %v510
    %v857 = vpop.f32.mrb[0].mxu0
    %v858 = vadd.f32 0.0, %v857
    %v859 = vpop.f32.mrb[0].mxu0
    %860 = vmatprep.mubr.f32.mxu0 0.0
    %861 = vmatmul.mubr.f32.gmra.mrb[0].mxu0 %v513
    %v862 = vpop.f32.mrb[0].mxu0
    %v863 = vadd.f32 0.0, %v862
    %v864 = vpop.f32.mrb[0].mxu0
    %865 = vmatprep.mubr.f32.mxu0 0.0
    %866 = vmatmul.mubr.f32.gmra.mrb[0].mxu0 %v516
    %v867 = vpop.f32.mrb[0].mxu0
    %v868 = vadd.f32 0.0, %v867
    %v869 = vpop.f32.mrb[0].mxu0
    %870 = vmatprep.mubr.f32.mxu0 0.0
    %871 = vmatmul.mubr.f32.gmra.mrb[0].mxu0 %v519
    %v872 = vpop.f32.mrb[0].mxu0
    %v873 = vadd.f32 0.0, %v872
    %v874 = vpop.f32.mrb[0].mxu0
    %875 = vmatprep.mubr.f32.mxu0 0.0
    %876 = vmatmul.mubr.f32.gmra.mrb[0].mxu0 %v522
    %v877 = vpop.f32.mrb[0].mxu0
    %v878 = vadd.f32 0.0, %v877
    %v879 = vpop.f32.mrb[0].mxu0
    %880 = vmatprep.mubr.f32.mxu0 0.0
    %881 = vmatmul.mubr.f32.gmra.mrb[0].mxu0 %v525
    %v882 = vpop.f32.mrb[0].mxu0
    %v883 = vadd.f32 0.0, %v882
    %v884 = vpop.f32.mrb[0].mxu0
    %885 = vmatprep.mubr.f32.mxu0 0.0
    %886 = vmatmul.mubr.f32.gmra.mrb[0].mxu0 %v528
    %v887 = vpop.f32.mrb[0].mxu0
    %v888 = vadd.f32 0.0, %v887
    %v889 = vpop.f32.mrb[0].mxu0
    %890 = vmatprep.mubr.f32.mxu0 0.0
    %891 = vmatmul.mubr.f32.gmra.mrb[0].mxu0 %v531
    %v892 = vpop.f32.mrb[0].mxu0
    %v893 = vadd.f32 0.0, %v892
    %v894 = vpop.f32.mrb[0].mxu0
    %895 = vmatprep.mubr.f32.mxu0 0.0
    %896 = vmatmul.mubr.f32.gmra.mrb[0].mxu0 %v534
    %v897 = vpop.f32.mrb[0].mxu0
    %v898 = vadd.f32 0.0, %v897
    %v899 = vpop.f32.mrb[0].mxu0
    %900 = vdwg.mxu0
    %v901 = vld [vmem:[%s6] sm:$0xff]
    %v902 = vld [vmem:[%s6 + $0x8] sm:$0xff]
    %v903 = vld [vmem:[%s6 + $0x10] sm:$0xff]
    %v904 = vld [vmem:[%s6 + $0x18] sm:$0xff]
    %v905 = vld [vmem:[%s6 + $0x20] sm:$0xff]
    %v906 = vld [vmem:[%s6 + $0x28] sm:$0xff]
    %v907 = vld [vmem:[%s6 + $0x30] sm:$0xff]
    %v908 = vld [vmem:[%s6 + $0x38] sm:$0xff]
    %v909 = vld [vmem:[%s7] sm:$0xff]
    %v910 = vld [vmem:[%s7 + $0x8] sm:$0xff]
    %v911 = vld [vmem:[%s7 + $0x10] sm:$0xff]
    %v912 = vld [vmem:[%s7 + $0x18] sm:$0xff]
    %v914 = vsel %vm144, %v753, 0
    %v917 = vsel %vm144, %v758, 0
    %v920 = vsel %vm144, %v763, 0
    %v923 = vsel %vm144, %v768, 0
    %v926 = vsel %vm144, %v773, 0
    %v929 = vsel %vm144, %v778, 0
    %v932 = vsel %vm144, %v783, 0
    %v935 = vsel %vm144, %v788, 0
    %v938 = vsel %vm144, %v793, 0
    %v941 = vsel %vm144, %v798, 0
    %v944 = vsel %vm144, %v803, 0
    %v947 = vsel %vm144, %v808, 0
    %v950 = vsel %vm144, %v813, 0
    %v953 = vsel %vm144, %v818, 0
    %v956 = vsel %vm144, %v823, 0
    %v959 = vsel %vm144, %v828, 0
    %v962 = vsel %vm144, %v833, 0
    %v965 = vsel %vm144, %v838, 0
    %v968 = vsel %vm144, %v843, 0
    %v971 = vsel %vm144, %v848, 0
    %v974 = vsel %vm144, %v853, 0
    %v977 = vsel %vm144, %v858, 0
    %v980 = vsel %vm144, %v863, 0
    %v983 = vsel %vm144, %v868, 0
    %v986 = vsel %vm144, %v873, 0
    %v989 = vsel %vm144, %v878, 0
    %v992 = vsel %vm144, %v883, 0
    %v995 = vsel %vm144, %v888, 0
    %v998 = vsel %vm144, %v893, 0
    %v1001 = vsel %vm144, %v898, 0
    %1003 = vmatprep.subr.mxu0 0.0
    %1004 = vmatpush1.msra.mxu0 %v905
    %1005 = vmatprep.subr.mxu0 0.0
    %1006 = vmatpush1.msra.mxu0 %v906
    %1007 = vmatprep.subr.mxu0 0.0
    %1008 = vmatpush1.msra.mxu0 %v907
    %1009 = vmatprep.subr.mxu0 0.0
    %1010 = vmatpush1.msra.mxu0 %v908
    %1011 = vmatprep.subr.mxu0 0.0
    %1012 = vmatpush1.msra.mxu0 0.0
    %1013 = vmatprep.subr.mxu0 0.0
    %1014 = vmatpush1.msra.mxu0 0.0
    %1015 = vmatprep.subr.mxu0 0.0
    %1016 = vmatpush1.msra.mxu0 0.0
    %1017 = vmatprep.subr.mxu0 0.0
    %1018 = vmatpush1.msra.mxu0 0.0
    %1019 = vmatprep.subr.mxu0 0.0
    %1020 = vmatpush1.msra.mxu0 0.0
    %1021 = vmatprep.subr.mxu0 0.0
    %1022 = vmatpush1.msra.mxu0 0.0
    %1023 = vmatprep.subr.mxu0 0.0
    %1024 = vmatpush1.msra.mxu0 0.0
    %1025 = vmatprep.subr.mxu0 0.0
    %1026 = vmatpush1.msra.mxu0 0.0
    %1027 = vmatprep.subr.mxu0 0.0
    %1028 = vmatpush1.msra.mxu0 0.0
    %1029 = vmatprep.subr.mxu0 0.0
    %1030 = vmatpush1.msra.mxu0 0.0
    %1031 = vmatprep.subr.mxu0 0.0
    %1032 = vmatpush1.msra.mxu0 0.0
    %1033 = vmatprep.subr.mxu0 0.0
    %1034 = vmatpush1.msra.mxu0 0.0
    %1035 = vmatprep.subr.mxu0 0.0
    %1036 = vmatpush1.msra.mxu0 0.0
    %1037 = vmatprep.subr.mxu0 0.0
    %1038 = vmatpush1.msra.mxu0 0.0
    %1039 = vmatprep.subr.mxu0 0.0
    %1040 = vmatpush1.msra.mxu0 0.0
    %1041 = vmatprep.subr.mxu0 0.0
    %1042 = vmatpush1.msra.mxu0 0.0
    %1043 = vmatprep.subr.mxu0 0.0
    %1044 = vmatpush1.msra.mxu0 0.0
    %1045 = vmatprep.subr.mxu0 0.0
    %1046 = vmatpush1.msra.mxu0 0.0
    %1047 = vmatprep.subr.mxu0 0.0
    %1048 = vmatpush1.msra.mxu0 0.0
    %1049 = vmatprep.subr.mxu0 0.0
    %1050 = vmatpush1.msra.mxu0 0.0
    %1051 = vmatprep.subr.mxu0 0.0
    %1052 = vmatpush1.msra.mxu0 0.0
    %1053 = vmatprep.subr.mxu0 0.0
    %1054 = vmatpush1.msra.mxu0 0.0
    %1055 = vmatprep.subr.mxu0 0.0
    %1056 = vmatpush1.msra.mxu0 0.0
    %1057 = vmatprep.subr.mxu0 0.0
    %1058 = vmatpush1.msra.mxu0 0.0
    %1059 = vmatprep.subr.mxu0 0.0
    %1060 = vmatpush1.msra.mxu0 0.0
    %1061 = vmatprep.subr.mxu0 0.0
    %1062 = vmatpush1.msra.mxu0 0.0
    %1063 = vmatprep.subr.mxu0 0.0
    %1064 = vmatpush1.msra.mxu0 0.0
    %1065 = vmatprep.subr.mxu0 0.0
    %1066 = vmatpush1.msra.mxu0 0.0
    %1067 = vmatprep.mubr.f32.mxu0 0.0
    %1068 = vmatmul.mubr.f32.gmra.mrb[0].mxu0 %v914
    %v1069 = vpop.f32.mrb[0].mxu0
    %v1070 = vadd.f32 0.0, %v1069
    %v1071 = vpop.f32.mrb[0].mxu0
    %1072 = vmatprep.mubr.f32.mxu0 0.0
    %1073 = vmatmul.mubr.f32.gmra.mrb[0].mxu0 %v917
    %v1074 = vpop.f32.mrb[0].mxu0
    %v1075 = vadd.f32 0.0, %v1074
    %v1076 = vpop.f32.mrb[0].mxu0
    %1077 = vmatprep.mubr.f32.mxu0 0.0
    %1078 = vmatmul.mubr.f32.gmra.mrb[0].mxu0 %v920
    %v1079 = vpop.f32.mrb[0].mxu0
    %v1080 = vadd.f32 0.0, %v1079
    %v1081 = vpop.f32.mrb[0].mxu0
    %1082 = vmatprep.mubr.f32.mxu0 0.0
    %1083 = vmatmul.mubr.f32.gmra.mrb[0].mxu0 %v923
    %v1084 = vpop.f32.mrb[0].mxu0
    %v1085 = vadd.f32 0.0, %v1084
    %v1086 = vpop.f32.mrb[0].mxu0
    %1087 = vmatprep.mubr.f32.mxu0 0.0
    %1088 = vmatmul.mubr.f32.gmra.mrb[0].mxu0 %v926
    %v1089 = vpop.f32.mrb[0].mxu0
    %v1090 = vadd.f32 0.0, %v1089
    %v1091 = vpop.f32.mrb[0].mxu0
    %1092 = vmatprep.mubr.f32.mxu0 0.0
    %1093 = vmatmul.mubr.f32.gmra.mrb[0].mxu0 %v929
    %v1094 = vpop.f32.mrb[0].mxu0
    %v1095 = vadd.f32 0.0, %v1094
    %v1096 = vpop.f32.mrb[0].mxu0
    %1097 = vmatprep.mubr.f32.mxu0 0.0
    %1098 = vmatmul.mubr.f32.gmra.mrb[0].mxu0 %v932
    %v1099 = vpop.f32.mrb[0].mxu0
    %v1100 = vadd.f32 0.0, %v1099
    %v1101 = vpop.f32.mrb[0].mxu0
    %1102 = vmatprep.mubr.f32.mxu0 0.0
    %1103 = vmatmul.mubr.f32.gmra.mrb[0].mxu0 %v935
    %v1104 = vpop.f32.mrb[0].mxu0
    %v1105 = vadd.f32 0.0, %v1104
    %v1106 = vpop.f32.mrb[0].mxu0
    %1107 = vmatprep.mubr.f32.mxu0 0.0
    %1108 = vmatmul.mubr.f32.gmra.mrb[0].mxu0 %v938
    %v1109 = vpop.f32.mrb[0].mxu0
    %v1110 = vadd.f32 0.0, %v1109
    %v1111 = vpop.f32.mrb[0].mxu0
    %1112 = vmatprep.mubr.f32.mxu0 0.0
    %1113 = vmatmul.mubr.f32.gmra.mrb[0].mxu0 %v941
    %v1114 = vpop.f32.mrb[0].mxu0
    %v1115 = vadd.f32 0.0, %v1114
    %v1116 = vpop.f32.mrb[0].mxu0
    %1117 = vmatprep.mubr.f32.mxu0 0.0
    %1118 = vmatmul.mubr.f32.gmra.mrb[0].mxu0 %v944
    %v1119 = vpop.f32.mrb[0].mxu0
    %v1120 = vadd.f32 0.0, %v1119
    %v1121 = vpop.f32.mrb[0].mxu0
    %1122 = vmatprep.mubr.f32.mxu0 0.0
    %1123 = vmatmul.mubr.f32.gmra.mrb[0].mxu0 %v947
    %v1124 = vpop.f32.mrb[0].mxu0
    %v1125 = vadd.f32 0.0, %v1124
    %v1126 = vpop.f32.mrb[0].mxu0
    %1127 = vmatprep.mubr.f32.mxu0 0.0
    %1128 = vmatmul.mubr.f32.gmra.mrb[0].mxu0 %v950
    %v1129 = vpop.f32.mrb[0].mxu0
    %v1130 = vadd.f32 0.0, %v1129
    %v1131 = vpop.f32.mrb[0].mxu0
    %1132 = vmatprep.mubr.f32.mxu0 0.0
    %1133 = vmatmul.mubr.f32.gmra.mrb[0].mxu0 %v953
    %v1134 = vpop.f32.mrb[0].mxu0
    %v1135 = vadd.f32 0.0, %v1134
    %v1136 = vpop.f32.mrb[0].mxu0
    %1137 = vmatprep.mubr.f32.mxu0 0.0
    %1138 = vmatmul.mubr.f32.gmra.mrb[0].mxu0 %v956
    %v1139 = vpop.f32.mrb[0].mxu0
    %v1140 = vadd.f32 0.0, %v1139
    %v1141 = vpop.f32.mrb[0].mxu0
    %1142 = vmatprep.mubr.f32.mxu0 0.0
    %1143 = vmatmul.mubr.f32.gmra.mrb[0].mxu0 %v959
    %v1144 = vpop.f32.mrb[0].mxu0
    %v1145 = vadd.f32 0.0, %v1144
    %v1146 = vpop.f32.mrb[0].mxu0
    %1147 = vmatprep.mubr.f32.mxu0 0.0
    %1148 = vmatmul.mubr.f32.gmra.mrb[0].mxu0 %v962
    %v1149 = vpop.f32.mrb[0].mxu0
    %v1150 = vadd.f32 0.0, %v1149
    %v1151 = vpop.f32.mrb[0].mxu0
    %1152 = vmatprep.mubr.f32.mxu0 0.0
    %1153 = vmatmul.mubr.f32.gmra.mrb[0].mxu0 %v965
    %v1154 = vpop.f32.mrb[0].mxu0
    %v1155 = vadd.f32 0.0, %v1154
    %v1156 = vpop.f32.mrb[0].mxu0
    %1157 = vmatprep.mubr.f32.mxu0 0.0
    %1158 = vmatmul.mubr.f32.gmra.mrb[0].mxu0 %v968
    %v1159 = vpop.f32.mrb[0].mxu0
    %v1160 = vadd.f32 0.0, %v1159
    %v1161 = vpop.f32.mrb[0].mxu0
    %1162 = vmatprep.mubr.f32.mxu0 0.0
    %1163 = vmatmul.mubr.f32.gmra.mrb[0].mxu0 %v971
    %v1164 = vpop.f32.mrb[0].mxu0
    %v1165 = vadd.f32 0.0, %v1164
    %v1166 = vpop.f32.mrb[0].mxu0
    %1167 = vmatprep.mubr.f32.mxu0 0.0
    %1168 = vmatmul.mubr.f32.gmra.mrb[0].mxu0 %v974
    %v1169 = vpop.f32.mrb[0].mxu0
    %v1170 = vadd.f32 0.0, %v1169
    %v1171 = vpop.f32.mrb[0].mxu0
    %1172 = vmatprep.mubr.f32.mxu0 0.0
    %1173 = vmatmul.mubr.f32.gmra.mrb[0].mxu0 %v977
    %v1174 = vpop.f32.mrb[0].mxu0
    %v1175 = vadd.f32 0.0, %v1174
    %v1176 = vpop.f32.mrb[0].mxu0
    %1177 = vmatprep.mubr.f32.mxu0 0.0
    %1178 = vmatmul.mubr.f32.gmra.mrb[0].mxu0 %v980
    %v1179 = vpop.f32.mrb[0].mxu0
    %v1180 = vadd.f32 0.0, %v1179
    %v1181 = vpop.f32.mrb[0].mxu0
    %1182 = vmatprep.mubr.f32.mxu0 0.0
    %1183 = vmatmul.mubr.f32.gmra.mrb[0].mxu0 %v983
    %v1184 = vpop.f32.mrb[0].mxu0
    %v1185 = vadd.f32 0.0, %v1184
    %v1186 = vpop.f32.mrb[0].mxu0
    %1187 = vmatprep.mubr.f32.mxu0 0.0
    %1188 = vmatmul.mubr.f32.gmra.mrb[0].mxu0 %v986
    %v1189 = vpop.f32.mrb[0].mxu0
    %v1190 = vadd.f32 0.0, %v1189
    %v1191 = vpop.f32.mrb[0].mxu0
    %1192 = vmatprep.mubr.f32.mxu0 0.0
    %1193 = vmatmul.mubr.f32.gmra.mrb[0].mxu0 %v989
    %v1194 = vpop.f32.mrb[0].mxu0
    %v1195 = vadd.f32 0.0, %v1194
    %v1196 = vpop.f32.mrb[0].mxu0
    %1197 = vmatprep.mubr.f32.mxu0 0.0
    %1198 = vmatmul.mubr.f32.gmra.mrb[0].mxu0 %v992
    %v1199 = vpop.f32.mrb[0].mxu0
    %v1200 = vadd.f32 0.0, %v1199
    %v1201 = vpop.f32.mrb[0].mxu0
    %1202 = vmatprep.mubr.f32.mxu0 0.0
    %1203 = vmatmul.mubr.f32.gmra.mrb[0].mxu0 %v995
    %v1204 = vpop.f32.mrb[0].mxu0
    %v1205 = vadd.f32 0.0, %v1204
    %v1206 = vpop.f32.mrb[0].mxu0
    %1207 = vmatprep.mubr.f32.mxu0 0.0
    %1208 = vmatmul.mubr.f32.gmra.mrb[0].mxu0 %v998
    %v1209 = vpop.f32.mrb[0].mxu0
    %v1210 = vadd.f32 0.0, %v1209
    %v1211 = vpop.f32.mrb[0].mxu0
    %1212 = vmatprep.mubr.f32.mxu0 0.0
    %1213 = vmatmul.mubr.f32.gmra.mrb[0].mxu0 %v1001
    %v1214 = vpop.f32.mrb[0].mxu0
    %v1215 = vadd.f32 0.0, %v1214
    %v1216 = vpop.f32.mrb[0].mxu0
    %1217 = vdwg.mxu0
    %v1219 = vsel %vm144, %v603, 0
    %v1222 = vsel %vm144, %v608, 0
    %v1225 = vsel %vm144, %v613, 0
    %v1228 = vsel %vm144, %v618, 0
    %v1231 = vsel %vm144, %v623, 0
    %v1234 = vsel %vm144, %v628, 0
    %v1237 = vsel %vm144, %v633, 0
    %v1240 = vsel %vm144, %v638, 0
    %v1243 = vsel %vm144, %v643, 0
    %v1246 = vsel %vm144, %v648, 0
    %v1249 = vsel %vm144, %v653, 0
    %v1252 = vsel %vm144, %v658, 0
    %v1255 = vsel %vm144, %v663, 0
    %v1258 = vsel %vm144, %v668, 0
    %v1261 = vsel %vm144, %v673, 0
    %v1264 = vsel %vm144, %v678, 0
    %v1267 = vsel %vm144, %v683, 0
    %v1270 = vsel %vm144, %v688, 0
    %v1273 = vsel %vm144, %v693, 0
    %v1276 = vsel %vm144, %v698, 0
    %v1279 = vsel %vm144, %v703, 0
    %v1282 = vsel %vm144, %v708, 0
    %v1285 = vsel %vm144, %v713, 0
    %v1288 = vsel %vm144, %v718, 0
    %v1291 = vsel %vm144, %v723, 0
    %v1294 = vsel %vm144, %v728, 0
    %v1297 = vsel %vm144, %v733, 0
    %v1300 = vsel %vm144, %v738, 0
    %v1303 = vsel %vm144, %v743, 0
    %v1306 = vsel %vm144, %v748, 0
    %1308 = vmatprep.subr.mxu0 0.0
    %1309 = vmatpush1.msra.mxu0 %v901
    %1310 = vmatprep.subr.mxu0 0.0
    %1311 = vmatpush1.msra.mxu0 %v902
    %1312 = vmatprep.subr.mxu0 0.0
    %1313 = vmatpush1.msra.mxu0 %v903
    %1314 = vmatprep.subr.mxu0 0.0
    %1315 = vmatpush1.msra.mxu0 %v904
    %1316 = vmatprep.subr.mxu0 0.0
    %1317 = vmatpush1.msra.mxu0 0.0
    %1318 = vmatprep.subr.mxu0 0.0
    %1319 = vmatpush1.msra.mxu0 0.0
    %1320 = vmatprep.subr.mxu0 0.0
    %1321 = vmatpush1.msra.mxu0 0.0
    %1322 = vmatprep.subr.mxu0 0.0
    %1323 = vmatpush1.msra.mxu0 0.0
    %1324 = vmatprep.subr.mxu0 0.0
    %1325 = vmatpush1.msra.mxu0 0.0
    %1326 = vmatprep.subr.mxu0 0.0
    %1327 = vmatpush1.msra.mxu0 0.0
    %1328 = vmatprep.subr.mxu0 0.0
    %1329 = vmatpush1.msra.mxu0 0.0
    %1330 = vmatprep.subr.mxu0 0.0
    %1331 = vmatpush1.msra.mxu0 0.0
    %1332 = vmatprep.subr.mxu0 0.0
    %1333 = vmatpush1.msra.mxu0 0.0
    %1334 = vmatprep.subr.mxu0 0.0
    %1335 = vmatpush1.msra.mxu0 0.0
    %1336 = vmatprep.subr.mxu0 0.0
    %1337 = vmatpush1.msra.mxu0 0.0
    %1338 = vmatprep.subr.mxu0 0.0
    %1339 = vmatpush1.msra.mxu0 0.0
    %1340 = vmatprep.subr.mxu0 0.0
    %1341 = vmatpush1.msra.mxu0 0.0
    %1342 = vmatprep.subr.mxu0 0.0
    %1343 = vmatpush1.msra.mxu0 0.0
    %1344 = vmatprep.subr.mxu0 0.0
    %1345 = vmatpush1.msra.mxu0 0.0
    %1346 = vmatprep.subr.mxu0 0.0
    %1347 = vmatpush1.msra.mxu0 0.0
    %1348 = vmatprep.subr.mxu0 0.0
    %1349 = vmatpush1.msra.mxu0 0.0
    %1350 = vmatprep.subr.mxu0 0.0
    %1351 = vmatpush1.msra.mxu0 0.0
    %1352 = vmatprep.subr.mxu0 0.0
    %1353 = vmatpush1.msra.mxu0 0.0
    %1354 = vmatprep.subr.mxu0 0.0
    %1355 = vmatpush1.msra.mxu0 0.0
    %1356 = vmatprep.subr.mxu0 0.0
    %1357 = vmatpush1.msra.mxu0 0.0
    %1358 = vmatprep.subr.mxu0 0.0
    %1359 = vmatpush1.msra.mxu0 0.0
    %1360 = vmatprep.subr.mxu0 0.0
    %1361 = vmatpush1.msra.mxu0 0.0
    %1362 = vmatprep.subr.mxu0 0.0
    %1363 = vmatpush1.msra.mxu0 0.0
    %1364 = vmatprep.subr.mxu0 0.0
    %1365 = vmatpush1.msra.mxu0 0.0
    %1366 = vmatprep.subr.mxu0 0.0
    %1367 = vmatpush1.msra.mxu0 0.0
    %1368 = vmatprep.subr.mxu0 0.0
    %1369 = vmatpush1.msra.mxu0 0.0
    %1370 = vmatprep.subr.mxu0 0.0
    %1371 = vmatpush1.msra.mxu0 0.0
    %1372 = vmatprep.mubr.f32.mxu0 0.0
    %1373 = vmatmul.mubr.f32.gmra.mrb[0].mxu0 %v1219
    %v1374 = vpop.f32.mrb[0].mxu0
    %v1375 = vadd.f32 %v1070, %v1374
    %v1376 = vpop.f32.mrb[0].mxu0
    %1377 = vmatprep.mubr.f32.mxu0 0.0
    %1378 = vmatmul.mubr.f32.gmra.mrb[0].mxu0 %v1222
    %v1379 = vpop.f32.mrb[0].mxu0
    %v1380 = vadd.f32 %v1075, %v1379
    %v1381 = vpop.f32.mrb[0].mxu0
    %1382 = vmatprep.mubr.f32.mxu0 0.0
    %1383 = vmatmul.mubr.f32.gmra.mrb[0].mxu0 %v1225
    %v1384 = vpop.f32.mrb[0].mxu0
    %v1385 = vadd.f32 %v1080, %v1384
    %v1386 = vpop.f32.mrb[0].mxu0
    %1387 = vmatprep.mubr.f32.mxu0 0.0
    %1388 = vmatmul.mubr.f32.gmra.mrb[0].mxu0 %v1228
    %v1389 = vpop.f32.mrb[0].mxu0
    %v1390 = vadd.f32 %v1085, %v1389
    %v1391 = vpop.f32.mrb[0].mxu0
    %1392 = vmatprep.mubr.f32.mxu0 0.0
    %1393 = vmatmul.mubr.f32.gmra.mrb[0].mxu0 %v1231
    %v1394 = vpop.f32.mrb[0].mxu0
    %v1395 = vadd.f32 %v1090, %v1394
    %v1396 = vpop.f32.mrb[0].mxu0
    %1397 = vmatprep.mubr.f32.mxu0 0.0
    %1398 = vmatmul.mubr.f32.gmra.mrb[0].mxu0 %v1234
    %v1399 = vpop.f32.mrb[0].mxu0
    %v1400 = vadd.f32 %v1095, %v1399
    %v1401 = vpop.f32.mrb[0].mxu0
    %1402 = vmatprep.mubr.f32.mxu0 0.0
    %1403 = vmatmul.mubr.f32.gmra.mrb[0].mxu0 %v1237
    %v1404 = vpop.f32.mrb[0].mxu0
    %v1405 = vadd.f32 %v1100, %v1404
    %v1406 = vpop.f32.mrb[0].mxu0
    %1407 = vmatprep.mubr.f32.mxu0 0.0
    %1408 = vmatmul.mubr.f32.gmra.mrb[0].mxu0 %v1240
    %v1409 = vpop.f32.mrb[0].mxu0
    %v1410 = vadd.f32 %v1105, %v1409
    %v1411 = vpop.f32.mrb[0].mxu0
    %1412 = vmatprep.mubr.f32.mxu0 0.0
    %1413 = vmatmul.mubr.f32.gmra.mrb[0].mxu0 %v1243
    %v1414 = vpop.f32.mrb[0].mxu0
    %v1415 = vadd.f32 %v1110, %v1414
    %v1416 = vpop.f32.mrb[0].mxu0
    %1417 = vmatprep.mubr.f32.mxu0 0.0
    %1418 = vmatmul.mubr.f32.gmra.mrb[0].mxu0 %v1246
    %v1419 = vpop.f32.mrb[0].mxu0
    %v1420 = vadd.f32 %v1115, %v1419
    %v1421 = vpop.f32.mrb[0].mxu0
    %1422 = vmatprep.mubr.f32.mxu0 0.0
    %1423 = vmatmul.mubr.f32.gmra.mrb[0].mxu0 %v1249
    %v1424 = vpop.f32.mrb[0].mxu0
    %v1425 = vadd.f32 %v1120, %v1424
    %v1426 = vpop.f32.mrb[0].mxu0
    %1427 = vmatprep.mubr.f32.mxu0 0.0
    %1428 = vmatmul.mubr.f32.gmra.mrb[0].mxu0 %v1252
    %v1429 = vpop.f32.mrb[0].mxu0
    %v1430 = vadd.f32 %v1125, %v1429
    %v1431 = vpop.f32.mrb[0].mxu0
    %1432 = vmatprep.mubr.f32.mxu0 0.0
    %1433 = vmatmul.mubr.f32.gmra.mrb[0].mxu0 %v1255
    %v1434 = vpop.f32.mrb[0].mxu0
    %v1435 = vadd.f32 %v1130, %v1434
    %v1436 = vpop.f32.mrb[0].mxu0
    %1437 = vmatprep.mubr.f32.mxu0 0.0
    %1438 = vmatmul.mubr.f32.gmra.mrb[0].mxu0 %v1258
    %v1439 = vpop.f32.mrb[0].mxu0
    %v1440 = vadd.f32 %v1135, %v1439
    %v1441 = vpop.f32.mrb[0].mxu0
    %1442 = vmatprep.mubr.f32.mxu0 0.0
    %1443 = vmatmul.mubr.f32.gmra.mrb[0].mxu0 %v1261
    %v1444 = vpop.f32.mrb[0].mxu0
    %v1445 = vadd.f32 %v1140, %v1444
    %v1446 = vpop.f32.mrb[0].mxu0
    %1447 = vmatprep.mubr.f32.mxu0 0.0
    %1448 = vmatmul.mubr.f32.gmra.mrb[0].mxu0 %v1264
    %v1449 = vpop.f32.mrb[0].mxu0
    %v1450 = vadd.f32 %v1145, %v1449
    %v1451 = vpop.f32.mrb[0].mxu0
    %1452 = vmatprep.mubr.f32.mxu0 0.0
    %1453 = vmatmul.mubr.f32.gmra.mrb[0].mxu0 %v1267
    %v1454 = vpop.f32.mrb[0].mxu0
    %v1455 = vadd.f32 %v1150, %v1454
    %v1456 = vpop.f32.mrb[0].mxu0
    %1457 = vmatprep.mubr.f32.mxu0 0.0
    %1458 = vmatmul.mubr.f32.gmra.mrb[0].mxu0 %v1270
    %v1459 = vpop.f32.mrb[0].mxu0
    %v1460 = vadd.f32 %v1155, %v1459
    %v1461 = vpop.f32.mrb[0].mxu0
    %1462 = vmatprep.mubr.f32.mxu0 0.0
    %1463 = vmatmul.mubr.f32.gmra.mrb[0].mxu0 %v1273
    %v1464 = vpop.f32.mrb[0].mxu0
    %v1465 = vadd.f32 %v1160, %v1464
    %v1466 = vpop.f32.mrb[0].mxu0
    %1467 = vmatprep.mubr.f32.mxu0 0.0
    %1468 = vmatmul.mubr.f32.gmra.mrb[0].mxu0 %v1276
    %v1469 = vpop.f32.mrb[0].mxu0
    %v1470 = vadd.f32 %v1165, %v1469
    %v1471 = vpop.f32.mrb[0].mxu0
    %1472 = vmatprep.mubr.f32.mxu0 0.0
    %1473 = vmatmul.mubr.f32.gmra.mrb[0].mxu0 %v1279
    %v1474 = vpop.f32.mrb[0].mxu0
    %v1475 = vadd.f32 %v1170, %v1474
    %v1476 = vpop.f32.mrb[0].mxu0
    %1477 = vmatprep.mubr.f32.mxu0 0.0
    %1478 = vmatmul.mubr.f32.gmra.mrb[0].mxu0 %v1282
    %v1479 = vpop.f32.mrb[0].mxu0
    %v1480 = vadd.f32 %v1175, %v1479
    %v1481 = vpop.f32.mrb[0].mxu0
    %1482 = vmatprep.mubr.f32.mxu0 0.0
    %1483 = vmatmul.mubr.f32.gmra.mrb[0].mxu0 %v1285
    %v1484 = vpop.f32.mrb[0].mxu0
    %v1485 = vadd.f32 %v1180, %v1484
    %v1486 = vpop.f32.mrb[0].mxu0
    %1487 = vmatprep.mubr.f32.mxu0 0.0
    %1488 = vmatmul.mubr.f32.gmra.mrb[0].mxu0 %v1288
    %v1489 = vpop.f32.mrb[0].mxu0
    %v1490 = vadd.f32 %v1185, %v1489
    %v1491 = vpop.f32.mrb[0].mxu0
    %1492 = vmatprep.mubr.f32.mxu0 0.0
    %1493 = vmatmul.mubr.f32.gmra.mrb[0].mxu0 %v1291
    %v1494 = vpop.f32.mrb[0].mxu0
    %v1495 = vadd.f32 %v1190, %v1494
    %v1496 = vpop.f32.mrb[0].mxu0
    %1497 = vmatprep.mubr.f32.mxu0 0.0
    %1498 = vmatmul.mubr.f32.gmra.mrb[0].mxu0 %v1294
    %v1499 = vpop.f32.mrb[0].mxu0
    %v1500 = vadd.f32 %v1195, %v1499
    %v1501 = vpop.f32.mrb[0].mxu0
    %1502 = vmatprep.mubr.f32.mxu0 0.0
    %1503 = vmatmul.mubr.f32.gmra.mrb[0].mxu0 %v1297
    %v1504 = vpop.f32.mrb[0].mxu0
    %v1505 = vadd.f32 %v1200, %v1504
    %v1506 = vpop.f32.mrb[0].mxu0
    %1507 = vmatprep.mubr.f32.mxu0 0.0
    %1508 = vmatmul.mubr.f32.gmra.mrb[0].mxu0 %v1300
    %v1509 = vpop.f32.mrb[0].mxu0
    %v1510 = vadd.f32 %v1205, %v1509
    %v1511 = vpop.f32.mrb[0].mxu0
    %1512 = vmatprep.mubr.f32.mxu0 0.0
    %1513 = vmatmul.mubr.f32.gmra.mrb[0].mxu0 %v1303
    %v1514 = vpop.f32.mrb[0].mxu0
    %v1515 = vadd.f32 %v1210, %v1514
    %v1516 = vpop.f32.mrb[0].mxu0
    %1517 = vmatprep.mubr.f32.mxu0 0.0
    %1518 = vmatmul.mubr.f32.gmra.mrb[0].mxu0 %v1306
    %v1519 = vpop.f32.mrb[0].mxu0
    %v1520 = vadd.f32 %v1215, %v1519
    %v1521 = vpop.f32.mrb[0].mxu0
    %1522 = vdwg.mxu0
    %v1523 = vlaneseq
    %v1524 = vshrl.u32 %v1523, 7
    %v1525 = vsub.s32 4, %v1524
    %v1526 = vrot.slane %v129, %v1525
    %v1527 = vadd.f32 %v1375, %v1526
    %v1528 = vadd.f32 %v1380, %v1526
    %v1529 = vadd.f32 %v1385, %v1526
    %v1530 = vadd.f32 %v1390, %v1526
    %v1531 = vadd.f32 %v1395, %v1526
    %v1532 = vadd.f32 %v1400, %v1526
    %v1533 = vadd.f32 %v1405, %v1526
    %v1534 = vadd.f32 %v1410, %v1526
    %v1535 = vadd.f32 %v1415, %v1526
    %v1536 = vadd.f32 %v1420, %v1526
    %v1537 = vadd.f32 %v1425, %v1526
    %v1538 = vadd.f32 %v1430, %v1526
    %v1539 = vadd.f32 %v1435, %v1526
    %v1540 = vadd.f32 %v1440, %v1526
    %v1541 = vadd.f32 %v1445, %v1526
    %v1542 = vadd.f32 %v1450, %v1526
    %v1543 = vadd.f32 %v1455, %v1526
    %v1544 = vadd.f32 %v1460, %v1526
    %v1545 = vadd.f32 %v1465, %v1526
    %v1546 = vadd.f32 %v1470, %v1526
    %v1547 = vadd.f32 %v1475, %v1526
    %v1548 = vadd.f32 %v1480, %v1526
    %v1549 = vadd.f32 %v1485, %v1526
    %v1550 = vadd.f32 %v1490, %v1526
    %v1551 = vadd.f32 %v1495, %v1526
    %v1552 = vadd.f32 %v1500, %v1526
    %v1553 = vadd.f32 %v1505, %v1526
    %v1554 = vadd.f32 %v1510, %v1526
    %v1555 = vadd.f32 %v1515, %v1526
    %v1556 = vadd.f32 %v1520, %v1526
    %v1557 = vmax.f32 %v1527, 0.0
    %v1558 = vmax.f32 %v1528, 0.0
    %v1559 = vmax.f32 %v1529, 0.0
    %v1560 = vmax.f32 %v1530, 0.0
    %v1561 = vmax.f32 %v1531, 0.0
    %v1562 = vmax.f32 %v1532, 0.0
    %v1563 = vmax.f32 %v1533, 0.0
    %v1564 = vmax.f32 %v1534, 0.0
    %v1565 = vmax.f32 %v1535, 0.0
    %v1566 = vmax.f32 %v1536, 0.0
    %v1567 = vmax.f32 %v1537, 0.0
    %v1568 = vmax.f32 %v1538, 0.0
    %v1569 = vmax.f32 %v1539, 0.0
    %v1570 = vmax.f32 %v1540, 0.0
    %v1571 = vmax.f32 %v1541, 0.0
    %v1572 = vmax.f32 %v1542, 0.0
    %v1573 = vmax.f32 %v1543, 0.0
    %v1574 = vmax.f32 %v1544, 0.0
    %v1575 = vmax.f32 %v1545, 0.0
    %v1576 = vmax.f32 %v1546, 0.0
    %v1577 = vmax.f32 %v1547, 0.0
    %v1578 = vmax.f32 %v1548, 0.0
    %v1579 = vmax.f32 %v1549, 0.0
    %v1580 = vmax.f32 %v1550, 0.0
    %v1581 = vmax.f32 %v1551, 0.0
    %v1582 = vmax.f32 %v1552, 0.0
    %v1583 = vmax.f32 %v1553, 0.0
    %v1584 = vmax.f32 %v1554, 0.0
    %v1585 = vmax.f32 %v1555, 0.0
    %v1586 = vmax.f32 %v1556, 0.0
    %v1587 = vlaneseq
    %v1588 = vshrl.u32 %v1587, 7
    %v1589 = vsub.s32 5, %v1588
    %v1590 = vrot.slane %v129, %v1589
    %v1592 = vsel %vm144, %v1557, 0
    %v1595 = vsel %vm144, %v1558, 0
    %v1598 = vsel %vm144, %v1559, 0
    %v1601 = vsel %vm144, %v1560, 0
    %v1604 = vsel %vm144, %v1561, 0
    %v1607 = vsel %vm144, %v1562, 0
    %v1610 = vsel %vm144, %v1563, 0
    %v1613 = vsel %vm144, %v1564, 0
    %v1616 = vsel %vm144, %v1565, 0
    %v1619 = vsel %vm144, %v1566, 0
    %v1622 = vsel %vm144, %v1567, 0
    %v1625 = vsel %vm144, %v1568, 0
    %v1628 = vsel %vm144, %v1569, 0
    %v1631 = vsel %vm144, %v1570, 0
    %v1634 = vsel %vm144, %v1571, 0
    %v1637 = vsel %vm144, %v1572, 0
    %v1640 = vsel %vm144, %v1573, 0
    %v1643 = vsel %vm144, %v1574, 0
    %v1646 = vsel %vm144, %v1575, 0
    %v1649 = vsel %vm144, %v1576, 0
    %v1652 = vsel %vm144, %v1577, 0
    %v1655 = vsel %vm144, %v1578, 0
    %v1658 = vsel %vm144, %v1579, 0
    %v1661 = vsel %vm144, %v1580, 0
    %v1664 = vsel %vm144, %v1581, 0
    %v1667 = vsel %vm144, %v1582, 0
    %v1670 = vsel %vm144, %v1583, 0
    %v1673 = vsel %vm144, %v1584, 0
    %v1676 = vsel %vm144, %v1585, 0
    %v1679 = vsel %vm144, %v1586, 0
    %1681 = vmatprep.subr.mxu0 0.0
    %1682 = vmatpush1.msra.mxu0 %v909
    %1683 = vmatprep.subr.mxu0 0.0
    %1684 = vmatpush1.msra.mxu0 %v910
    %1685 = vmatprep.subr.mxu0 0.0
    %1686 = vmatpush1.msra.mxu0 %v911
    %1687 = vmatprep.subr.mxu0 0.0
    %1688 = vmatpush1.msra.mxu0 %v912
    %1689 = vmatprep.subr.mxu0 0.0
    %1690 = vmatpush1.msra.mxu0 0.0
    %1691 = vmatprep.subr.mxu0 0.0
    %1692 = vmatpush1.msra.mxu0 0.0
    %1693 = vmatprep.subr.mxu0 0.0
    %1694 = vmatpush1.msra.mxu0 0.0
    %1695 = vmatprep.subr.mxu0 0.0
    %1696 = vmatpush1.msra.mxu0 0.0
    %1697 = vmatprep.subr.mxu0 0.0
    %1698 = vmatpush1.msra.mxu0 0.0
    %1699 = vmatprep.subr.mxu0 0.0
    %1700 = vmatpush1.msra.mxu0 0.0
    %1701 = vmatprep.subr.mxu0 0.0
    %1702 = vmatpush1.msra.mxu0 0.0
    %1703 = vmatprep.subr.mxu0 0.0
    %1704 = vmatpush1.msra.mxu0 0.0
    %1705 = vmatprep.subr.mxu0 0.0
    %1706 = vmatpush1.msra.mxu0 0.0
    %1707 = vmatprep.subr.mxu0 0.0
    %1708 = vmatpush1.msra.mxu0 0.0
    %1709 = vmatprep.subr.mxu0 0.0
    %1710 = vmatpush1.msra.mxu0 0.0
    %1711 = vmatprep.subr.mxu0 0.0
    %1712 = vmatpush1.msra.mxu0 0.0
    %1713 = vmatprep.subr.mxu0 0.0
    %1714 = vmatpush1.msra.mxu0 0.0
    %1715 = vmatprep.subr.mxu0 0.0
    %1716 = vmatpush1.msra.mxu0 0.0
    %1717 = vmatprep.subr.mxu0 0.0
    %1718 = vmatpush1.msra.mxu0 0.0
    %1719 = vmatprep.subr.mxu0 0.0
    %1720 = vmatpush1.msra.mxu0 0.0
    %1721 = vmatprep.subr.mxu0 0.0
    %1722 = vmatpush1.msra.mxu0 0.0
    %1723 = vmatprep.subr.mxu0 0.0
    %1724 = vmatpush1.msra.mxu0 0.0
    %1725 = vmatprep.subr.mxu0 0.0
    %1726 = vmatpush1.msra.mxu0 0.0
    %1727 = vmatprep.subr.mxu0 0.0
    %1728 = vmatpush1.msra.mxu0 0.0
    %1729 = vmatprep.subr.mxu0 0.0
    %1730 = vmatpush1.msra.mxu0 0.0
    %1731 = vmatprep.subr.mxu0 0.0
    %1732 = vmatpush1.msra.mxu0 0.0
    %1733 = vmatprep.subr.mxu0 0.0
    %1734 = vmatpush1.msra.mxu0 0.0
    %1735 = vmatprep.subr.mxu0 0.0
    %1736 = vmatpush1.msra.mxu0 0.0
    %1737 = vmatprep.subr.mxu0 0.0
    %1738 = vmatpush1.msra.mxu0 0.0
    %1739 = vmatprep.subr.mxu0 0.0
    %1740 = vmatpush1.msra.mxu0 0.0
    %1741 = vmatprep.subr.mxu0 0.0
    %1742 = vmatpush1.msra.mxu0 0.0
    %1743 = vmatprep.subr.mxu0 0.0
    %1744 = vmatpush1.msra.mxu0 0.0
    %1745 = vmatprep.mubr.f32.mxu0 0.0
    %1746 = vmatmul.mubr.f32.gmra.mrb[0].mxu0 %v1592
    %v1747 = vpop.f32.mrb[0].mxu0
    %v1748 = vadd.f32 %v1590, %v1747
    %v1749 = vpop.f32.mrb[0].mxu0
    %1750 = vmatprep.mubr.f32.mxu0 0.0
    %1751 = vmatmul.mubr.f32.gmra.mrb[0].mxu0 %v1595
    %v1752 = vpop.f32.mrb[0].mxu0
    %v1753 = vadd.f32 %v1590, %v1752
    %v1754 = vpop.f32.mrb[0].mxu0
    %1755 = vmatprep.mubr.f32.mxu0 0.0
    %1756 = vmatmul.mubr.f32.gmra.mrb[0].mxu0 %v1598
    %v1757 = vpop.f32.mrb[0].mxu0
    %v1758 = vadd.f32 %v1590, %v1757
    %v1759 = vpop.f32.mrb[0].mxu0
    %1760 = vmatprep.mubr.f32.mxu0 0.0
    %1761 = vmatmul.mubr.f32.gmra.mrb[0].mxu0 %v1601
    %v1762 = vpop.f32.mrb[0].mxu0
    %v1763 = vadd.f32 %v1590, %v1762
    %v1764 = vpop.f32.mrb[0].mxu0
    %1765 = vmatprep.mubr.f32.mxu0 0.0
    %1766 = vmatmul.mubr.f32.gmra.mrb[0].mxu0 %v1604
    %v1767 = vpop.f32.mrb[0].mxu0
    %v1768 = vadd.f32 %v1590, %v1767
    %v1769 = vpop.f32.mrb[0].mxu0
    %1770 = vmatprep.mubr.f32.mxu0 0.0
    %1771 = vmatmul.mubr.f32.gmra.mrb[0].mxu0 %v1607
    %v1772 = vpop.f32.mrb[0].mxu0
    %v1773 = vadd.f32 %v1590, %v1772
    %v1774 = vpop.f32.mrb[0].mxu0
    %1775 = vmatprep.mubr.f32.mxu0 0.0
    %1776 = vmatmul.mubr.f32.gmra.mrb[0].mxu0 %v1610
    %v1777 = vpop.f32.mrb[0].mxu0
    %v1778 = vadd.f32 %v1590, %v1777
    %v1779 = vpop.f32.mrb[0].mxu0
    %1780 = vmatprep.mubr.f32.mxu0 0.0
    %1781 = vmatmul.mubr.f32.gmra.mrb[0].mxu0 %v1613
    %v1782 = vpop.f32.mrb[0].mxu0
    %v1783 = vadd.f32 %v1590, %v1782
    %v1784 = vpop.f32.mrb[0].mxu0
    %1785 = vmatprep.mubr.f32.mxu0 0.0
    %1786 = vmatmul.mubr.f32.gmra.mrb[0].mxu0 %v1616
    %v1787 = vpop.f32.mrb[0].mxu0
    %v1788 = vadd.f32 %v1590, %v1787
    %v1789 = vpop.f32.mrb[0].mxu0
    %1790 = vmatprep.mubr.f32.mxu0 0.0
    %1791 = vmatmul.mubr.f32.gmra.mrb[0].mxu0 %v1619
    %v1792 = vpop.f32.mrb[0].mxu0
    %v1793 = vadd.f32 %v1590, %v1792
    %v1794 = vpop.f32.mrb[0].mxu0
    %1795 = vmatprep.mubr.f32.mxu0 0.0
    %1796 = vmatmul.mubr.f32.gmra.mrb[0].mxu0 %v1622
    %v1797 = vpop.f32.mrb[0].mxu0
    %v1798 = vadd.f32 %v1590, %v1797
    %v1799 = vpop.f32.mrb[0].mxu0
    %1800 = vmatprep.mubr.f32.mxu0 0.0
    %1801 = vmatmul.mubr.f32.gmra.mrb[0].mxu0 %v1625
    %v1802 = vpop.f32.mrb[0].mxu0
    %v1803 = vadd.f32 %v1590, %v1802
    %v1804 = vpop.f32.mrb[0].mxu0
    %1805 = vmatprep.mubr.f32.mxu0 0.0
    %1806 = vmatmul.mubr.f32.gmra.mrb[0].mxu0 %v1628
    %v1807 = vpop.f32.mrb[0].mxu0
    %v1808 = vadd.f32 %v1590, %v1807
    %v1809 = vpop.f32.mrb[0].mxu0
    %1810 = vmatprep.mubr.f32.mxu0 0.0
    %1811 = vmatmul.mubr.f32.gmra.mrb[0].mxu0 %v1631
    %v1812 = vpop.f32.mrb[0].mxu0
    %v1813 = vadd.f32 %v1590, %v1812
    %v1814 = vpop.f32.mrb[0].mxu0
    %1815 = vmatprep.mubr.f32.mxu0 0.0
    %1816 = vmatmul.mubr.f32.gmra.mrb[0].mxu0 %v1634
    %v1817 = vpop.f32.mrb[0].mxu0
    %v1818 = vadd.f32 %v1590, %v1817
    %v1819 = vpop.f32.mrb[0].mxu0
    %1820 = vmatprep.mubr.f32.mxu0 0.0
    %1821 = vmatmul.mubr.f32.gmra.mrb[0].mxu0 %v1637
    %v1822 = vpop.f32.mrb[0].mxu0
    %v1823 = vadd.f32 %v1590, %v1822
    %v1824 = vpop.f32.mrb[0].mxu0
    %1825 = vmatprep.mubr.f32.mxu0 0.0
    %1826 = vmatmul.mubr.f32.gmra.mrb[0].mxu0 %v1640
    %v1827 = vpop.f32.mrb[0].mxu0
    %v1828 = vadd.f32 %v1590, %v1827
    %v1829 = vpop.f32.mrb[0].mxu0
    %1830 = vmatprep.mubr.f32.mxu0 0.0
    %1831 = vmatmul.mubr.f32.gmra.mrb[0].mxu0 %v1643
    %v1832 = vpop.f32.mrb[0].mxu0
    %v1833 = vadd.f32 %v1590, %v1832
    %v1834 = vpop.f32.mrb[0].mxu0
    %1835 = vmatprep.mubr.f32.mxu0 0.0
    %1836 = vmatmul.mubr.f32.gmra.mrb[0].mxu0 %v1646
    %v1837 = vpop.f32.mrb[0].mxu0
    %v1838 = vadd.f32 %v1590, %v1837
    %v1839 = vpop.f32.mrb[0].mxu0
    %1840 = vmatprep.mubr.f32.mxu0 0.0
    %1841 = vmatmul.mubr.f32.gmra.mrb[0].mxu0 %v1649
    %v1842 = vpop.f32.mrb[0].mxu0
    %v1843 = vadd.f32 %v1590, %v1842
    %v1844 = vpop.f32.mrb[0].mxu0
    %1845 = vmatprep.mubr.f32.mxu0 0.0
    %1846 = vmatmul.mubr.f32.gmra.mrb[0].mxu0 %v1652
    %v1847 = vpop.f32.mrb[0].mxu0
    %v1848 = vadd.f32 %v1590, %v1847
    %v1849 = vpop.f32.mrb[0].mxu0
    %1850 = vmatprep.mubr.f32.mxu0 0.0
    %1851 = vmatmul.mubr.f32.gmra.mrb[0].mxu0 %v1655
    %v1852 = vpop.f32.mrb[0].mxu0
    %v1853 = vadd.f32 %v1590, %v1852
    %v1854 = vpop.f32.mrb[0].mxu0
    %1855 = vmatprep.mubr.f32.mxu0 0.0
    %1856 = vmatmul.mubr.f32.gmra.mrb[0].mxu0 %v1658
    %v1857 = vpop.f32.mrb[0].mxu0
    %v1858 = vadd.f32 %v1590, %v1857
    %v1859 = vpop.f32.mrb[0].mxu0
    %1860 = vmatprep.mubr.f32.mxu0 0.0
    %1861 = vmatmul.mubr.f32.gmra.mrb[0].mxu0 %v1661
    %v1862 = vpop.f32.mrb[0].mxu0
    %v1863 = vadd.f32 %v1590, %v1862
    %v1864 = vpop.f32.mrb[0].mxu0
    %1865 = vmatprep.mubr.f32.mxu0 0.0
    %1866 = vmatmul.mubr.f32.gmra.mrb[0].mxu0 %v1664
    %v1867 = vpop.f32.mrb[0].mxu0
    %v1868 = vadd.f32 %v1590, %v1867
    %v1869 = vpop.f32.mrb[0].mxu0
    %1870 = vmatprep.mubr.f32.mxu0 0.0
    %1871 = vmatmul.mubr.f32.gmra.mrb[0].mxu0 %v1667
    %v1872 = vpop.f32.mrb[0].mxu0
    %v1873 = vadd.f32 %v1590, %v1872
    %v1874 = vpop.f32.mrb[0].mxu0
    %1875 = vmatprep.mubr.f32.mxu0 0.0
    %1876 = vmatmul.mubr.f32.gmra.mrb[0].mxu0 %v1670
    %v1877 = vpop.f32.mrb[0].mxu0
    %v1878 = vadd.f32 %v1590, %v1877
    %v1879 = vpop.f32.mrb[0].mxu0
    %1880 = vmatprep.mubr.f32.mxu0 0.0
    %1881 = vmatmul.mubr.f32.gmra.mrb[0].mxu0 %v1673
    %v1882 = vpop.f32.mrb[0].mxu0
    %v1883 = vadd.f32 %v1590, %v1882
    %v1884 = vpop.f32.mrb[0].mxu0
    %1885 = vmatprep.mubr.f32.mxu0 0.0
    %1886 = vmatmul.mubr.f32.gmra.mrb[0].mxu0 %v1676
    %v1887 = vpop.f32.mrb[0].mxu0
    %v1888 = vadd.f32 %v1590, %v1887
    %v1889 = vpop.f32.mrb[0].mxu0
    %1890 = vmatprep.mubr.f32.mxu0 0.0
    %1891 = vmatmul.mubr.f32.gmra.mrb[0].mxu0 %v1679
    %v1892 = vpop.f32.mrb[0].mxu0
    %v1893 = vadd.f32 %v1590, %v1892
    %v1894 = vpop.f32.mrb[0].mxu0
    %1895 = vdwg.mxu0
    %v1896 = vmax.f32 %v1748, 0.0
    %v1897 = vmax.f32 %v1753, 0.0
    %v1898 = vmax.f32 %v1758, 0.0
    %v1899 = vmax.f32 %v1763, 0.0
    %v1900 = vmax.f32 %v1768, 0.0
    %v1901 = vmax.f32 %v1773, 0.0
    %v1902 = vmax.f32 %v1778, 0.0
    %v1903 = vmax.f32 %v1783, 0.0
    %v1904 = vmax.f32 %v1788, 0.0
    %v1905 = vmax.f32 %v1793, 0.0
    %v1906 = vmax.f32 %v1798, 0.0
    %v1907 = vmax.f32 %v1803, 0.0
    %v1908 = vmax.f32 %v1808, 0.0
    %v1909 = vmax.f32 %v1813, 0.0
    %v1910 = vmax.f32 %v1818, 0.0
    %v1911 = vmax.f32 %v1823, 0.0
    %v1912 = vmax.f32 %v1828, 0.0
    %v1913 = vmax.f32 %v1833, 0.0
    %v1914 = vmax.f32 %v1838, 0.0
    %v1915 = vmax.f32 %v1843, 0.0
    %v1916 = vmax.f32 %v1848, 0.0
    %v1917 = vmax.f32 %v1853, 0.0
    %v1918 = vmax.f32 %v1858, 0.0
    %v1919 = vmax.f32 %v1863, 0.0
    %v1920 = vmax.f32 %v1868, 0.0
    %v1921 = vmax.f32 %v1873, 0.0
    %v1922 = vmax.f32 %v1878, 0.0
    %v1923 = vmax.f32 %v1883, 0.0
    %v1924 = vmax.f32 %v1888, 0.0
    %v1925 = vmax.f32 %v1893, 0.0
    %v1926 = vsel %vm144, %v1896, 0.0
    %v1927 = vsel %vm144, %v1897, 0.0
    %v1928 = vadd.f32 %v1926, %v1927
    %v1929 = vsel %vm144, %v1898, 0.0
    %v1930 = vadd.f32 %v1928, %v1929
    %v1931 = vsel %vm144, %v1899, 0.0
    %v1932 = vadd.f32 %v1930, %v1931
    %v1933 = vsel %vm144, %v1900, 0.0
    %v1934 = vadd.f32 %v1932, %v1933
    %v1935 = vsel %vm144, %v1901, 0.0
    %v1936 = vadd.f32 %v1934, %v1935
    %v1937 = vsel %vm144, %v1902, 0.0
    %v1938 = vadd.f32 %v1936, %v1937
    %v1939 = vsel %vm144, %v1903, 0.0
    %v1940 = vadd.f32 %v1938, %v1939
    %v1941 = vsel %vm144, %v1904, 0.0
    %v1942 = vadd.f32 %v1940, %v1941
    %v1943 = vsel %vm144, %v1905, 0.0
    %v1944 = vadd.f32 %v1942, %v1943
    %v1945 = vsel %vm144, %v1906, 0.0
    %v1946 = vadd.f32 %v1944, %v1945
    %v1947 = vsel %vm144, %v1907, 0.0
    %v1948 = vadd.f32 %v1946, %v1947
    %v1949 = vsel %vm144, %v1908, 0.0
    %v1950 = vadd.f32 %v1948, %v1949
    %v1951 = vsel %vm144, %v1909, 0.0
    %v1952 = vadd.f32 %v1950, %v1951
    %v1953 = vsel %vm144, %v1910, 0.0
    %v1954 = vadd.f32 %v1952, %v1953
    %v1955 = vsel %vm144, %v1911, 0.0
    %v1956 = vadd.f32 %v1954, %v1955
    %v1957 = vsel %vm144, %v1912, 0.0
    %v1958 = vadd.f32 %v1956, %v1957
    %v1959 = vsel %vm144, %v1913, 0.0
    %v1960 = vadd.f32 %v1958, %v1959
    %v1961 = vsel %vm144, %v1914, 0.0
    %v1962 = vadd.f32 %v1960, %v1961
    %v1963 = vsel %vm144, %v1915, 0.0
    %v1964 = vadd.f32 %v1962, %v1963
    %v1965 = vsel %vm144, %v1916, 0.0
    %v1966 = vadd.f32 %v1964, %v1965
    %v1967 = vsel %vm144, %v1917, 0.0
    %v1968 = vadd.f32 %v1966, %v1967
    %v1969 = vsel %vm144, %v1918, 0.0
    %v1970 = vadd.f32 %v1968, %v1969
    %v1971 = vsel %vm144, %v1919, 0.0
    %v1972 = vadd.f32 %v1970, %v1971
    %v1973 = vsel %vm144, %v1920, 0.0
    %v1974 = vadd.f32 %v1972, %v1973
    %v1975 = vsel %vm144, %v1921, 0.0
    %v1976 = vadd.f32 %v1974, %v1975
    %v1977 = vsel %vm144, %v1922, 0.0
    %v1978 = vadd.f32 %v1976, %v1977
    %v1979 = vsel %vm144, %v1923, 0.0
    %v1980 = vadd.f32 %v1978, %v1979
    %v1981 = vsel %vm144, %v1924, 0.0
    %v1982 = vadd.f32 %v1980, %v1981
    %v1983 = vsel %vm144, %v1925, 0.0
    %v1984 = vadd.f32 %v1982, %v1983
    %v1985 = vrot.slane %v1984, 4
    %v1986 = vadd.f32 %v1984, %v1985
    %v1987 = vrot.slane %v1986, 2
    %v1988 = vadd.f32 %v1986, %v1987
    %v1989 = vrot.slane %v1988, 1
    %v1990 = vadd.f32 %v1988, %v1989
    %v1991 = vrcp.pop 240.0
    %v1992 = vmul.f32 %v1990, %v1991
    %v1993 = vsub.f32 %v1896, %v1992
    %v1994 = vsub.f32 %v1897, %v1992
    %v1995 = vsub.f32 %v1898, %v1992
    %v1996 = vsub.f32 %v1899, %v1992
    %v1997 = vsub.f32 %v1900, %v1992
    %v1998 = vsub.f32 %v1901, %v1992
    %v1999 = vsub.f32 %v1902, %v1992
    %v2000 = vsub.f32 %v1903, %v1992
    %v2001 = vsub.f32 %v1904, %v1992
    %v2002 = vsub.f32 %v1905, %v1992
    %v2003 = vsub.f32 %v1906, %v1992
    %v2004 = vsub.f32 %v1907, %v1992
    %v2005 = vsub.f32 %v1908, %v1992
    %v2006 = vsub.f32 %v1909, %v1992
    %v2007 = vsub.f32 %v1910, %v1992
    %v2008 = vsub.f32 %v1911, %v1992
    %v2009 = vsub.f32 %v1912, %v1992
    %v2010 = vsub.f32 %v1913, %v1992
    %v2011 = vsub.f32 %v1914, %v1992
    %v2012 = vsub.f32 %v1915, %v1992
    %v2013 = vsub.f32 %v1916, %v1992
    %v2014 = vsub.f32 %v1917, %v1992
    %v2015 = vsub.f32 %v1918, %v1992
    %v2016 = vsub.f32 %v1919, %v1992
    %v2017 = vsub.f32 %v1920, %v1992
    %v2018 = vsub.f32 %v1921, %v1992
    %v2019 = vsub.f32 %v1922, %v1992
    %v2020 = vsub.f32 %v1923, %v1992
    %v2021 = vsub.f32 %v1924, %v1992
    %v2022 = vsub.f32 %v1925, %v1992
    %v2023 = vmul.f32 %v1993, %v1993
    %v2024 = vmul.f32 %v1994, %v1994
    %v2025 = vmul.f32 %v1995, %v1995
    %v2026 = vmul.f32 %v1996, %v1996
    %v2027 = vmul.f32 %v1997, %v1997
    %v2028 = vmul.f32 %v1998, %v1998
    %v2029 = vmul.f32 %v1999, %v1999
    %v2030 = vmul.f32 %v2000, %v2000
    %v2031 = vmul.f32 %v2001, %v2001
    %v2032 = vmul.f32 %v2002, %v2002
    %v2033 = vmul.f32 %v2003, %v2003
    %v2034 = vmul.f32 %v2004, %v2004
    %v2035 = vmul.f32 %v2005, %v2005
    %v2036 = vmul.f32 %v2006, %v2006
    %v2037 = vmul.f32 %v2007, %v2007
    %v2038 = vmul.f32 %v2008, %v2008
    %v2039 = vmul.f32 %v2009, %v2009
    %v2040 = vmul.f32 %v2010, %v2010
    %v2041 = vmul.f32 %v2011, %v2011
    %v2042 = vmul.f32 %v2012, %v2012
    %v2043 = vmul.f32 %v2013, %v2013
    %v2044 = vmul.f32 %v2014, %v2014
    %v2045 = vmul.f32 %v2015, %v2015
    %v2046 = vmul.f32 %v2016, %v2016
    %v2047 = vmul.f32 %v2017, %v2017
    %v2048 = vmul.f32 %v2018, %v2018
    %v2049 = vmul.f32 %v2019, %v2019
    %v2050 = vmul.f32 %v2020, %v2020
    %v2051 = vmul.f32 %v2021, %v2021
    %v2052 = vmul.f32 %v2022, %v2022
    %v2053 = vsel %vm144, %v2023, 0.0
    %v2054 = vsel %vm144, %v2024, 0.0
    %v2055 = vadd.f32 %v2053, %v2054
    %v2056 = vsel %vm144, %v2025, 0.0
    %v2057 = vadd.f32 %v2055, %v2056
    %v2058 = vsel %vm144, %v2026, 0.0
    %v2059 = vadd.f32 %v2057, %v2058
    %v2060 = vsel %vm144, %v2027, 0.0
    %v2061 = vadd.f32 %v2059, %v2060
    %v2062 = vsel %vm144, %v2028, 0.0
    %v2063 = vadd.f32 %v2061, %v2062
    %v2064 = vsel %vm144, %v2029, 0.0
    %v2065 = vadd.f32 %v2063, %v2064
    %v2066 = vsel %vm144, %v2030, 0.0
    %v2067 = vadd.f32 %v2065, %v2066
    %v2068 = vsel %vm144, %v2031, 0.0
    %v2069 = vadd.f32 %v2067, %v2068
    %v2070 = vsel %vm144, %v2032, 0.0
    %v2071 = vadd.f32 %v2069, %v2070
    %v2072 = vsel %vm144, %v2033, 0.0
    %v2073 = vadd.f32 %v2071, %v2072
    %v2074 = vsel %vm144, %v2034, 0.0
    %v2075 = vadd.f32 %v2073, %v2074
    %v2076 = vsel %vm144, %v2035, 0.0
    %v2077 = vadd.f32 %v2075, %v2076
    %v2078 = vsel %vm144, %v2036, 0.0
    %v2079 = vadd.f32 %v2077, %v2078
    %v2080 = vsel %vm144, %v2037, 0.0
    %v2081 = vadd.f32 %v2079, %v2080
    %v2082 = vsel %vm144, %v2038, 0.0
    %v2083 = vadd.f32 %v2081, %v2082
    %v2084 = vsel %vm144, %v2039, 0.0
    %v2085 = vadd.f32 %v2083, %v2084
    %v2086 = vsel %vm144, %v2040, 0.0
    %v2087 = vadd.f32 %v2085, %v2086
    %v2088 = vsel %vm144, %v2041, 0.0
    %v2089 = vadd.f32 %v2087, %v2088
    %v2090 = vsel %vm144, %v2042, 0.0
    %v2091 = vadd.f32 %v2089, %v2090
    %v2092 = vsel %vm144, %v2043, 0.0
    %v2093 = vadd.f32 %v2091, %v2092
    %v2094 = vsel %vm144, %v2044, 0.0
    %v2095 = vadd.f32 %v2093, %v2094
    %v2096 = vsel %vm144, %v2045, 0.0
    %v2097 = vadd.f32 %v2095, %v2096
    %v2098 = vsel %vm144, %v2046, 0.0
    %v2099 = vadd.f32 %v2097, %v2098
    %v2100 = vsel %vm144, %v2047, 0.0
    %v2101 = vadd.f32 %v2099, %v2100
    %v2102 = vsel %vm144, %v2048, 0.0
    %v2103 = vadd.f32 %v2101, %v2102
    %v2104 = vsel %vm144, %v2049, 0.0
    %v2105 = vadd.f32 %v2103, %v2104
    %v2106 = vsel %vm144, %v2050, 0.0
    %v2107 = vadd.f32 %v2105, %v2106
    %v2108 = vsel %vm144, %v2051, 0.0
    %v2109 = vadd.f32 %v2107, %v2108
    %v2110 = vsel %vm144, %v2052, 0.0
    %v2111 = vadd.f32 %v2109, %v2110
    %v2112 = vrot.slane %v2111, 4
    %v2113 = vadd.f32 %v2111, %v2112
    %v2114 = vrot.slane %v2113, 2
    %v2115 = vadd.f32 %v2113, %v2114
    %v2116 = vrot.slane %v2115, 1
    %v2117 = vadd.f32 %v2115, %v2116
    %v2118 = vmul.f32 %v2117, %v1991
    %v2119 = vadd.f32 %v2118, 1e-05
    %v2120 = vrsqrt.pop %v2119
    %v2121 = vmul.f32 %v129, %v2120
    %v2122 = vlaneseq
    %v2123 = vshrl.u32 %v2122, 7
    %v2124 = vsub.s32 6, %v2123
    %v2125 = vrot.slane %v2121, %v2124
    %v2126 = vmul.f32 %v1993, %v2125
    %v2127 = vmul.f32 %v1994, %v2125
    %v2128 = vmul.f32 %v1995, %v2125
    %v2129 = vmul.f32 %v1996, %v2125
    %v2130 = vmul.f32 %v1997, %v2125
    %v2131 = vmul.f32 %v1998, %v2125
    %v2132 = vmul.f32 %v1999, %v2125
    %v2133 = vmul.f32 %v2000, %v2125
    %v2134 = vmul.f32 %v2001, %v2125
    %v2135 = vmul.f32 %v2002, %v2125
    %v2136 = vmul.f32 %v2003, %v2125
    %v2137 = vmul.f32 %v2004, %v2125
    %v2138 = vmul.f32 %v2005, %v2125
    %v2139 = vmul.f32 %v2006, %v2125
    %v2140 = vmul.f32 %v2007, %v2125
    %v2141 = vmul.f32 %v2008, %v2125
    %v2142 = vmul.f32 %v2009, %v2125
    %v2143 = vmul.f32 %v2010, %v2125
    %v2144 = vmul.f32 %v2011, %v2125
    %v2145 = vmul.f32 %v2012, %v2125
    %v2146 = vmul.f32 %v2013, %v2125
    %v2147 = vmul.f32 %v2014, %v2125
    %v2148 = vmul.f32 %v2015, %v2125
    %v2149 = vmul.f32 %v2016, %v2125
    %v2150 = vmul.f32 %v2017, %v2125
    %v2151 = vmul.f32 %v2018, %v2125
    %v2152 = vmul.f32 %v2019, %v2125
    %v2153 = vmul.f32 %v2020, %v2125
    %v2154 = vmul.f32 %v2021, %v2125
    %v2155 = vmul.f32 %v2022, %v2125
    %v2156 = vlaneseq
    %v2157 = vshrl.u32 %v2156, 7
    %v2158 = vsub.s32 7, %v2157
    %v2159 = vrot.slane %v129, %v2158
    %v2160 = vadd.f32 %v2126, %v2159
    %v2161 = vadd.f32 %v2127, %v2159
    %v2162 = vadd.f32 %v2128, %v2159
    %v2163 = vadd.f32 %v2129, %v2159
    %v2164 = vadd.f32 %v2130, %v2159
    %v2165 = vadd.f32 %v2131, %v2159
    %v2166 = vadd.f32 %v2132, %v2159
    %v2167 = vadd.f32 %v2133, %v2159
    %v2168 = vadd.f32 %v2134, %v2159
    %v2169 = vadd.f32 %v2135, %v2159
    %v2170 = vadd.f32 %v2136, %v2159
    %v2171 = vadd.f32 %v2137, %v2159
    %v2172 = vadd.f32 %v2138, %v2159
    %v2173 = vadd.f32 %v2139, %v2159
    %v2174 = vadd.f32 %v2140, %v2159
    %v2175 = vadd.f32 %v2141, %v2159
    %v2176 = vadd.f32 %v2142, %v2159
    %v2177 = vadd.f32 %v2143, %v2159
    %v2178 = vadd.f32 %v2144, %v2159
    %v2179 = vadd.f32 %v2145, %v2159
    %v2180 = vadd.f32 %v2146, %v2159
    %v2181 = vadd.f32 %v2147, %v2159
    %v2182 = vadd.f32 %v2148, %v2159
    %v2183 = vadd.f32 %v2149, %v2159
    %v2184 = vadd.f32 %v2150, %v2159
    %v2185 = vadd.f32 %v2151, %v2159
    %v2186 = vadd.f32 %v2152, %v2159
    %v2187 = vadd.f32 %v2153, %v2159
    %v2188 = vadd.f32 %v2154, %v2159
    %v2189 = vadd.f32 %v2155, %v2159
    %2190 = vxpose.xlu0.b32.start [1/16] %v99, 128
    %2191 = vxpose.xlu0.b32.cont [2/16] %v100, 128
    %2192 = vxpose.xlu0.b32.cont [3/16] %v101, 128
    %2193 = vxpose.xlu0.b32.cont [4/16] %v102, 128
    %2194 = vxpose.xlu0.b32.cont [5/16] %v103, 128
    %2195 = vxpose.xlu0.b32.cont [6/16] %v104, 128
    %2196 = vxpose.xlu0.b32.cont [7/16] %v105, 128
    %2197 = vxpose.xlu0.b32.cont [8/16] %v106, 128
    %2198 = vxpose.xlu0.b32.cont [9/16] %v107, 128
    %2199 = vxpose.xlu0.b32.cont [10/16] %v108, 128
    %2200 = vxpose.xlu0.b32.cont [11/16] %v109, 128
    %2201 = vxpose.xlu0.b32.cont [12/16] %v110, 128
    %2202 = vxpose.xlu0.b32.cont [13/16] %v111, 128
    %2203 = vxpose.xlu0.b32.cont [14/16] %v112, 128
    %2204 = vxpose.xlu0.b32.cont [15/16] %v113, 128
    %2205 = vxpose.xlu0.b32.end [16/16] %v114, 128
    %v2206 = vpop.trf.xlu0
    %v2207 = vpop.trf.xlu0
    %v2208 = vpop.trf.xlu0
    %v2209 = vpop.trf.xlu0
    %v2210 = vpop.trf.xlu0
    %v2211 = vpop.trf.xlu0
    %v2212 = vpop.trf.xlu0
    %v2213 = vpop.trf.xlu0
    %v2214 = vpop.trf.xlu0
    %v2215 = vpop.trf.xlu0
    %v2216 = vpop.trf.xlu0
    %v2217 = vpop.trf.xlu0
    %v2218 = vpop.trf.xlu0
    %v2219 = vpop.trf.xlu0
    %v2220 = vpop.trf.xlu0
    %v2221 = vpop.trf.xlu0
    %2222 = vxpose.xlu0.b32.start [1/16] %v115, 128
    %2223 = vxpose.xlu0.b32.cont [2/16] %v116, 128
    %2224 = vxpose.xlu0.b32.cont [3/16] %v117, 128
    %2225 = vxpose.xlu0.b32.cont [4/16] %v118, 128
    %2226 = vxpose.xlu0.b32.cont [5/16] %v119, 128
    %2227 = vxpose.xlu0.b32.cont [6/16] %v120, 128
    %2228 = vxpose.xlu0.b32.cont [7/16] %v121, 128
    %2229 = vxpose.xlu0.b32.cont [8/16] %v122, 128
    %2230 = vxpose.xlu0.b32.cont [9/16] %v123, 128
    %2231 = vxpose.xlu0.b32.cont [10/16] %v124, 128
    %2232 = vxpose.xlu0.b32.cont [11/16] %v125, 128
    %2233 = vxpose.xlu0.b32.cont [12/16] %v126, 128
    %2234 = vxpose.xlu0.b32.cont [13/16] %v127, 128
    %2235 = vxpose.xlu0.b32.cont [14/16] %v128, 128
    %2236 = vxpose.xlu0.b32.cont [15/16] 0.0, 128
    %2237 = vxpose.xlu0.b32.end [16/16] 0.0, 128
    %v2238 = vpop.trf.xlu0
    %v2239 = vpop.trf.xlu0
    %v2240 = vpop.trf.xlu0
    %v2241 = vpop.trf.xlu0
    %v2242 = vpop.trf.xlu0
    %v2243 = vpop.trf.xlu0
    %v2244 = vpop.trf.xlu0
    %v2245 = vpop.trf.xlu0
    %v2246 = vpop.trf.xlu0
    %v2247 = vpop.trf.xlu0
    %v2248 = vpop.trf.xlu0
    %v2249 = vpop.trf.xlu0
    %v2250 = vpop.trf.xlu0
    %v2251 = vpop.trf.xlu0
    %v2252 = vpop.trf.xlu0
    %v2253 = vpop.trf.xlu0
    %vm2254 = vcmask 916480
    %v2256 = vsel %vm2254, %v2238, 0
    %v2259 = vsel %vm2254, %v2239, 0
    %2261 = vmatprep.subr.mxu0 0.0
    %2262 = vmatpush1.msra.mxu0 %v2160
    %2263 = vmatprep.subr.mxu0 0.0
    %2264 = vmatpush1.msra.mxu0 %v2161
    %2265 = vmatprep.subr.mxu0 0.0
    %2266 = vmatpush1.msra.mxu0 %v2162
    %2267 = vmatprep.subr.mxu0 0.0
    %2268 = vmatpush1.msra.mxu0 %v2163
    %2269 = vmatprep.subr.mxu0 0.0
    %2270 = vmatpush1.msra.mxu0 %v2164
    %2271 = vmatprep.subr.mxu0 0.0
    %2272 = vmatpush1.msra.mxu0 %v2165
    %2273 = vmatprep.subr.mxu0 0.0
    %2274 = vmatpush1.msra.mxu0 %v2166
    %2275 = vmatprep.subr.mxu0 0.0
    %2276 = vmatpush1.msra.mxu0 %v2167
    %2277 = vmatprep.subr.mxu0 0.0
    %2278 = vmatpush1.msra.mxu0 %v2168
    %2279 = vmatprep.subr.mxu0 0.0
    %2280 = vmatpush1.msra.mxu0 %v2169
    %2281 = vmatprep.subr.mxu0 0.0
    %2282 = vmatpush1.msra.mxu0 %v2170
    %2283 = vmatprep.subr.mxu0 0.0
    %2284 = vmatpush1.msra.mxu0 %v2171
    %2285 = vmatprep.subr.mxu0 0.0
    %2286 = vmatpush1.msra.mxu0 %v2172
    %2287 = vmatprep.subr.mxu0 0.0
    %2288 = vmatpush1.msra.mxu0 %v2173
    %2289 = vmatprep.subr.mxu0 0.0
    %2290 = vmatpush1.msra.mxu0 %v2174
    %2291 = vmatprep.subr.mxu0 0.0
    %2292 = vmatpush1.msra.mxu0 %v2175
    %2293 = vmatprep.subr.mxu0 0.0
    %2294 = vmatpush1.msra.mxu0 %v2176
    %2295 = vmatprep.subr.mxu0 0.0
    %2296 = vmatpush1.msra.mxu0 %v2177
    %2297 = vmatprep.subr.mxu0 0.0
    %2298 = vmatpush1.msra.mxu0 %v2178
    %2299 = vmatprep.subr.mxu0 0.0
    %2300 = vmatpush1.msra.mxu0 %v2179
    %2301 = vmatprep.subr.mxu0 0.0
    %2302 = vmatpush1.msra.mxu0 %v2180
    %2303 = vmatprep.subr.mxu0 0.0
    %2304 = vmatpush1.msra.mxu0 %v2181
    %2305 = vmatprep.subr.mxu0 0.0
    %2306 = vmatpush1.msra.mxu0 %v2182
    %2307 = vmatprep.subr.mxu0 0.0
    %2308 = vmatpush1.msra.mxu0 %v2183
    %2309 = vmatprep.subr.mxu0 0.0
    %2310 = vmatpush1.msra.mxu0 %v2184
    %2311 = vmatprep.subr.mxu0 0.0
    %2312 = vmatpush1.msra.mxu0 %v2185
    %2313 = vmatprep.subr.mxu0 0.0
    %2314 = vmatpush1.msra.mxu0 %v2186
    %2315 = vmatprep.subr.mxu0 0.0
    %2316 = vmatpush1.msra.mxu0 %v2187
    %2317 = vmatprep.subr.mxu0 0.0
    %2318 = vmatpush1.msra.mxu0 %v2188
    %2319 = vmatprep.subr.mxu0 0.0
    %2320 = vmatpush1.msra.mxu0 %v2189
    %2321 = vmatprep.subr.mxu0 0.0
    %2322 = vmatpush1.msra.mxu0 0.0
    %2323 = vmatprep.subr.mxu0 0.0
    %2324 = vmatpush1.msra.mxu0 0.0
    %2325 = vmatprep.mubr.f32.mxu0 %v2256
    %2326 = vmatmul.mubr.f32.gmra.mrb[0].mxu0 %v2206
    %v2327 = vpop.f32.mrb[0].mxu0
    %v2328 = vadd.f32 0.0, %v2327
    %v2329 = vpop.f32.mrb[0].mxu0
    %2330 = vmatprep.mubr.f32.mxu0 %v2259
    %2331 = vmatmul.mubr.f32.gmra.mrb[0].mxu0 %v2207
    %v2332 = vpop.f32.mrb[0].mxu0
    %v2333 = vadd.f32 0.0, %v2332
    %v2334 = vpop.f32.mrb[0].mxu0
    %2335 = vdwg.mxu0
    %v2336 = vld [vmem:[%s8] sm:$0xff]
    %v2337 = vld [vmem:[%s8 + $0x8] sm:$0xff]
    %v2338 = vld [vmem:[%s8 + $0x10] sm:$0xff]
    %v2339 = vld [vmem:[%s8 + $0x18] sm:$0xff]
    %v2340 = vld [vmem:[%s9] sm:$0xff]
    %v2341 = vld [vmem:[%s9 + $0x8] sm:$0xff]
    %v2342 = vld [vmem:[%s9 + $0x10] sm:$0xff]
    %v2343 = vld [vmem:[%s9 + $0x18] sm:$0xff]
    %v2344 = vlaneseq
    %v2345 = vshrl.u32 %v2344, 7
    %v2346 = vsub.s32 0, %v2345
    %v2347 = vrot.slane %v130, %v2346
    %v2349 = vsel %vm144, %v2328, 0
    %v2352 = vsel %vm144, %v2333, 0
    %2354 = vmatprep.subr.mxu0 0.0
    %2355 = vmatpush1.msra.mxu0 %v2336
    %2356 = vmatprep.subr.mxu0 0.0
    %2357 = vmatpush1.msra.mxu0 %v2337
    %2358 = vmatprep.subr.mxu0 0.0
    %2359 = vmatpush1.msra.mxu0 %v2338
    %2360 = vmatprep.subr.mxu0 0.0
    %2361 = vmatpush1.msra.mxu0 %v2339
    %2362 = vmatprep.subr.mxu0 0.0
    %2363 = vmatpush1.msra.mxu0 0.0
    %2364 = vmatprep.subr.mxu0 0.0
    %2365 = vmatpush1.msra.mxu0 0.0
    %2366 = vmatprep.subr.mxu0 0.0
    %2367 = vmatpush1.msra.mxu0 0.0
    %2368 = vmatprep.subr.mxu0 0.0
    %2369 = vmatpush1.msra.mxu0 0.0
    %2370 = vmatprep.subr.mxu0 0.0
    %2371 = vmatpush1.msra.mxu0 0.0
    %2372 = vmatprep.subr.mxu0 0.0
    %2373 = vmatpush1.msra.mxu0 0.0
    %2374 = vmatprep.subr.mxu0 0.0
    %2375 = vmatpush1.msra.mxu0 0.0
    %2376 = vmatprep.subr.mxu0 0.0
    %2377 = vmatpush1.msra.mxu0 0.0
    %2378 = vmatprep.subr.mxu0 0.0
    %2379 = vmatpush1.msra.mxu0 0.0
    %2380 = vmatprep.subr.mxu0 0.0
    %2381 = vmatpush1.msra.mxu0 0.0
    %2382 = vmatprep.subr.mxu0 0.0
    %2383 = vmatpush1.msra.mxu0 0.0
    %2384 = vmatprep.subr.mxu0 0.0
    %2385 = vmatpush1.msra.mxu0 0.0
    %2386 = vmatprep.subr.mxu0 0.0
    %2387 = vmatpush1.msra.mxu0 0.0
    %2388 = vmatprep.subr.mxu0 0.0
    %2389 = vmatpush1.msra.mxu0 0.0
    %2390 = vmatprep.subr.mxu0 0.0
    %2391 = vmatpush1.msra.mxu0 0.0
    %2392 = vmatprep.subr.mxu0 0.0
    %2393 = vmatpush1.msra.mxu0 0.0
    %2394 = vmatprep.subr.mxu0 0.0
    %2395 = vmatpush1.msra.mxu0 0.0
    %2396 = vmatprep.subr.mxu0 0.0
    %2397 = vmatpush1.msra.mxu0 0.0
    %2398 = vmatprep.subr.mxu0 0.0
    %2399 = vmatpush1.msra.mxu0 0.0
    %2400 = vmatprep.subr.mxu0 0.0
    %2401 = vmatpush1.msra.mxu0 0.0
    %2402 = vmatprep.subr.mxu0 0.0
    %2403 = vmatpush1.msra.mxu0 0.0
    %2404 = vmatprep.subr.mxu0 0.0
    %2405 = vmatpush1.msra.mxu0 0.0
    %2406 = vmatprep.subr.mxu0 0.0
    %2407 = vmatpush1.msra.mxu0 0.0
    %2408 = vmatprep.subr.mxu0 0.0
    %2409 = vmatpush1.msra.mxu0 0.0
    %2410 = vmatprep.subr.mxu0 0.0
    %2411 = vmatpush1.msra.mxu0 0.0
    %2412 = vmatprep.subr.mxu0 0.0
    %2413 = vmatpush1.msra.mxu0 0.0
    %2414 = vmatprep.subr.mxu0 0.0
    %2415 = vmatpush1.msra.mxu0 0.0
    %2416 = vmatprep.subr.mxu0 0.0
    %2417 = vmatpush1.msra.mxu0 0.0
    %2418 = vmatprep.mubr.f32.mxu0 0.0
    %2419 = vmatmul.mubr.f32.gmra.mrb[0].mxu0 %v2349
    %v2420 = vpop.f32.mrb[0].mxu0
    %v2421 = vadd.f32 %v2347, %v2420
    %v2422 = vpop.f32.mrb[0].mxu0
    %2423 = vmatprep.mubr.f32.mxu0 0.0
    %2424 = vmatmul.mubr.f32.gmra.mrb[0].mxu0 %v2352
    %v2425 = vpop.f32.mrb[0].mxu0
    %v2426 = vadd.f32 %v2347, %v2425
    %v2427 = vpop.f32.mrb[0].mxu0
    %2428 = vdwg.mxu0
    %v2429 = vmax.f32 %v2421, 0.0
    %v2430 = vmax.f32 %v2426, 0.0
    %v2431 = vlaneseq
    %v2432 = vshrl.u32 %v2431, 7
    %v2433 = vsub.s32 1, %v2432
    %v2434 = vrot.slane %v130, %v2433
    %v2436 = vsel %vm144, %v2429, 0
    %v2439 = vsel %vm144, %v2430, 0
    %2441 = vmatprep.subr.mxu0 0.0
    %2442 = vmatpush1.msra.mxu0 %v2340
    %2443 = vmatprep.subr.mxu0 0.0
    %2444 = vmatpush1.msra.mxu0 %v2341
    %2445 = vmatprep.subr.mxu0 0.0
    %2446 = vmatpush1.msra.mxu0 %v2342
    %2447 = vmatprep.subr.mxu0 0.0
    %2448 = vmatpush1.msra.mxu0 %v2343
    %2449 = vmatprep.subr.mxu0 0.0
    %2450 = vmatpush1.msra.mxu0 0.0
    %2451 = vmatprep.subr.mxu0 0.0
    %2452 = vmatpush1.msra.mxu0 0.0
    %2453 = vmatprep.subr.mxu0 0.0
    %2454 = vmatpush1.msra.mxu0 0.0
    %2455 = vmatprep.subr.mxu0 0.0
    %2456 = vmatpush1.msra.mxu0 0.0
    %2457 = vmatprep.subr.mxu0 0.0
    %2458 = vmatpush1.msra.mxu0 0.0
    %2459 = vmatprep.subr.mxu0 0.0
    %2460 = vmatpush1.msra.mxu0 0.0
    %2461 = vmatprep.subr.mxu0 0.0
    %2462 = vmatpush1.msra.mxu0 0.0
    %2463 = vmatprep.subr.mxu0 0.0
    %2464 = vmatpush1.msra.mxu0 0.0
    %2465 = vmatprep.subr.mxu0 0.0
    %2466 = vmatpush1.msra.mxu0 0.0
    %2467 = vmatprep.subr.mxu0 0.0
    %2468 = vmatpush1.msra.mxu0 0.0
    %2469 = vmatprep.subr.mxu0 0.0
    %2470 = vmatpush1.msra.mxu0 0.0
    %2471 = vmatprep.subr.mxu0 0.0
    %2472 = vmatpush1.msra.mxu0 0.0
    %2473 = vmatprep.subr.mxu0 0.0
    %2474 = vmatpush1.msra.mxu0 0.0
    %2475 = vmatprep.subr.mxu0 0.0
    %2476 = vmatpush1.msra.mxu0 0.0
    %2477 = vmatprep.subr.mxu0 0.0
    %2478 = vmatpush1.msra.mxu0 0.0
    %2479 = vmatprep.subr.mxu0 0.0
    %2480 = vmatpush1.msra.mxu0 0.0
    %2481 = vmatprep.subr.mxu0 0.0
    %2482 = vmatpush1.msra.mxu0 0.0
    %2483 = vmatprep.subr.mxu0 0.0
    %2484 = vmatpush1.msra.mxu0 0.0
    %2485 = vmatprep.subr.mxu0 0.0
    %2486 = vmatpush1.msra.mxu0 0.0
    %2487 = vmatprep.subr.mxu0 0.0
    %2488 = vmatpush1.msra.mxu0 0.0
    %2489 = vmatprep.subr.mxu0 0.0
    %2490 = vmatpush1.msra.mxu0 0.0
    %2491 = vmatprep.subr.mxu0 0.0
    %2492 = vmatpush1.msra.mxu0 0.0
    %2493 = vmatprep.subr.mxu0 0.0
    %2494 = vmatpush1.msra.mxu0 0.0
    %2495 = vmatprep.subr.mxu0 0.0
    %2496 = vmatpush1.msra.mxu0 0.0
    %2497 = vmatprep.subr.mxu0 0.0
    %2498 = vmatpush1.msra.mxu0 0.0
    %2499 = vmatprep.subr.mxu0 0.0
    %2500 = vmatpush1.msra.mxu0 0.0
    %2501 = vmatprep.subr.mxu0 0.0
    %2502 = vmatpush1.msra.mxu0 0.0
    %2503 = vmatprep.subr.mxu0 0.0
    %2504 = vmatpush1.msra.mxu0 0.0
    %2505 = vmatprep.mubr.f32.mxu0 0.0
    %2506 = vmatmul.mubr.f32.gmra.mrb[0].mxu0 %v2436
    %v2507 = vpop.f32.mrb[0].mxu0
    %v2508 = vadd.f32 %v2434, %v2507
    %v2509 = vpop.f32.mrb[0].mxu0
    %2510 = vmatprep.mubr.f32.mxu0 0.0
    %2511 = vmatmul.mubr.f32.gmra.mrb[0].mxu0 %v2439
    %v2512 = vpop.f32.mrb[0].mxu0
    %v2513 = vadd.f32 %v2434, %v2512
    %v2514 = vpop.f32.mrb[0].mxu0
    %2515 = vdwg.mxu0
    %v2516 = vmax.f32 %v2508, 0.0
    %v2517 = vmax.f32 %v2513, 0.0
    %v2518 = vsel %vm144, %v2516, 0.0
    %v2519 = vsel %vm144, %v2517, 0.0
    %v2520 = vadd.f32 %v2518, %v2519
    %v2521 = vrot.slane %v2520, 4
    %v2522 = vadd.f32 %v2520, %v2521
    %v2523 = vrot.slane %v2522, 2
    %v2524 = vadd.f32 %v2522, %v2523
    %v2525 = vrot.slane %v2524, 1
    %v2526 = vadd.f32 %v2524, %v2525
    %v2527 = vmul.f32 %v2526, %v324
    %v2528 = vsub.f32 %v2516, %v2527
    %v2529 = vsub.f32 %v2517, %v2527
    %v2530 = vmul.f32 %v2528, %v2528
    %v2531 = vmul.f32 %v2529, %v2529
    %v2532 = vsel %vm144, %v2530, 0.0
    %v2533 = vsel %vm144, %v2531, 0.0
    %v2534 = vadd.f32 %v2532, %v2533
    %v2535 = vrot.slane %v2534, 4
    %v2536 = vadd.f32 %v2534, %v2535
    %v2537 = vrot.slane %v2536, 2
    %v2538 = vadd.f32 %v2536, %v2537
    %v2539 = vrot.slane %v2538, 1
    %v2540 = vadd.f32 %v2538, %v2539
    %v2541 = vmul.f32 %v2540, %v324
    %v2542 = vadd.f32 %v2541, 1e-05
    %v2543 = vrsqrt.pop %v2542
    %v2544 = vmul.f32 %v130, %v2543
    %v2545 = vlaneseq
    %v2546 = vshrl.u32 %v2545, 7
    %v2547 = vsub.s32 2, %v2546
    %v2548 = vrot.slane %v2544, %v2547
    %v2549 = vmul.f32 %v2528, %v2548
    %v2550 = vmul.f32 %v2529, %v2548
    %v2551 = vlaneseq
    %v2552 = vshrl.u32 %v2551, 7
    %v2553 = vsub.s32 3, %v2552
    %v2554 = vrot.slane %v130, %v2553
    %v2555 = vadd.f32 %v2549, %v2554
    %v2556 = vadd.f32 %v2550, %v2554
    %2557 = vmatprep.subr.mxu0 0.0
    %2558 = vmatpush1.msra.mxu0 %v2555
    %2559 = vmatprep.subr.mxu0 0.0
    %2560 = vmatpush1.msra.mxu0 %v2556
    %2561 = vmatprep.subr.mxu0 0.0
    %2562 = vmatpush1.msra.mxu0 0.0
    %2563 = vmatprep.subr.mxu0 0.0
    %2564 = vmatpush1.msra.mxu0 0.0
    %2565 = vmatprep.subr.mxu0 0.0
    %2566 = vmatpush1.msra.mxu0 0.0
    %2567 = vmatprep.subr.mxu0 0.0
    %2568 = vmatpush1.msra.mxu0 0.0
    %2569 = vmatprep.subr.mxu0 0.0
    %2570 = vmatpush1.msra.mxu0 0.0
    %2571 = vmatprep.subr.mxu0 0.0
    %2572 = vmatpush1.msra.mxu0 0.0
    %2573 = vmatprep.subr.mxu0 0.0
    %2574 = vmatpush1.msra.mxu0 0.0
    %2575 = vmatprep.subr.mxu0 0.0
    %2576 = vmatpush1.msra.mxu0 0.0
    %2577 = vmatprep.subr.mxu0 0.0
    %2578 = vmatpush1.msra.mxu0 0.0
    %2579 = vmatprep.subr.mxu0 0.0
    %2580 = vmatpush1.msra.mxu0 0.0
    %2581 = vmatprep.subr.mxu0 0.0
    %2582 = vmatpush1.msra.mxu0 0.0
    %2583 = vmatprep.subr.mxu0 0.0
    %2584 = vmatpush1.msra.mxu0 0.0
    %2585 = vmatprep.subr.mxu0 0.0
    %2586 = vmatpush1.msra.mxu0 0.0
    %2587 = vmatprep.subr.mxu0 0.0
    %2588 = vmatpush1.msra.mxu0 0.0
    %2589 = vmatprep.subr.mxu0 0.0
    %2590 = vmatpush1.msra.mxu0 0.0
    %2591 = vmatprep.subr.mxu0 0.0
    %2592 = vmatpush1.msra.mxu0 0.0
    %2593 = vmatprep.subr.mxu0 0.0
    %2594 = vmatpush1.msra.mxu0 0.0
    %2595 = vmatprep.subr.mxu0 0.0
    %2596 = vmatpush1.msra.mxu0 0.0
    %2597 = vmatprep.subr.mxu0 0.0
    %2598 = vmatpush1.msra.mxu0 0.0
    %2599 = vmatprep.subr.mxu0 0.0
    %2600 = vmatpush1.msra.mxu0 0.0
    %2601 = vmatprep.subr.mxu0 0.0
    %2602 = vmatpush1.msra.mxu0 0.0
    %2603 = vmatprep.subr.mxu0 0.0
    %2604 = vmatpush1.msra.mxu0 0.0
    %2605 = vmatprep.subr.mxu0 0.0
    %2606 = vmatpush1.msra.mxu0 0.0
    %2607 = vmatprep.subr.mxu0 0.0
    %2608 = vmatpush1.msra.mxu0 0.0
    %2609 = vmatprep.subr.mxu0 0.0
    %2610 = vmatpush1.msra.mxu0 0.0
    %2611 = vmatprep.subr.mxu0 0.0
    %2612 = vmatpush1.msra.mxu0 0.0
    %2613 = vmatprep.subr.mxu0 0.0
    %2614 = vmatpush1.msra.mxu0 0.0
    %2615 = vmatprep.subr.mxu0 0.0
    %2616 = vmatpush1.msra.mxu0 0.0
    %2617 = vmatprep.subr.mxu0 0.0
    %2618 = vmatpush1.msra.mxu0 0.0
    %2619 = vmatprep.subr.mxu0 0.0
    %2620 = vmatpush1.msra.mxu0 0.0
    %2621 = vmatprep.mubr.f32.mxu0 0.0
    %2622 = vmatmul.mubr.f32.gmra.mrb[0].mxu0 %v357
    %v2623 = vpop.f32.mrb[0].mxu0
    %v2624 = vadd.f32 0.0, %v2623
    %v2625 = vpop.f32.mrb[0].mxu0
    %2626 = vmatprep.mubr.f32.mxu0 0.0
    %2627 = vmatmul.mubr.f32.gmra.mrb[0].mxu0 %v360
    %v2628 = vpop.f32.mrb[0].mxu0
    %v2629 = vadd.f32 0.0, %v2628
    %v2630 = vpop.f32.mrb[0].mxu0
    %2631 = vmatprep.mubr.f32.mxu0 0.0
    %2632 = vmatmul.mubr.f32.gmra.mrb[0].mxu0 %v363
    %v2633 = vpop.f32.mrb[0].mxu0
    %v2634 = vadd.f32 0.0, %v2633
    %v2635 = vpop.f32.mrb[0].mxu0
    %2636 = vmatprep.mubr.f32.mxu0 0.0
    %2637 = vmatmul.mubr.f32.gmra.mrb[0].mxu0 %v366
    %v2638 = vpop.f32.mrb[0].mxu0
    %v2639 = vadd.f32 0.0, %v2638
    %v2640 = vpop.f32.mrb[0].mxu0
    %2641 = vmatprep.mubr.f32.mxu0 0.0
    %2642 = vmatmul.mubr.f32.gmra.mrb[0].mxu0 %v369
    %v2643 = vpop.f32.mrb[0].mxu0
    %v2644 = vadd.f32 0.0, %v2643
    %v2645 = vpop.f32.mrb[0].mxu0
    %2646 = vmatprep.mubr.f32.mxu0 0.0
    %2647 = vmatmul.mubr.f32.gmra.mrb[0].mxu0 %v372
    %v2648 = vpop.f32.mrb[0].mxu0
    %v2649 = vadd.f32 0.0, %v2648
    %v2650 = vpop.f32.mrb[0].mxu0
    %2651 = vmatprep.mubr.f32.mxu0 0.0
    %2652 = vmatmul.mubr.f32.gmra.mrb[0].mxu0 %v375
    %v2653 = vpop.f32.mrb[0].mxu0
    %v2654 = vadd.f32 0.0, %v2653
    %v2655 = vpop.f32.mrb[0].mxu0
    %2656 = vmatprep.mubr.f32.mxu0 0.0
    %2657 = vmatmul.mubr.f32.gmra.mrb[0].mxu0 %v378
    %v2658 = vpop.f32.mrb[0].mxu0
    %v2659 = vadd.f32 0.0, %v2658
    %v2660 = vpop.f32.mrb[0].mxu0
    %2661 = vmatprep.mubr.f32.mxu0 0.0
    %2662 = vmatmul.mubr.f32.gmra.mrb[0].mxu0 %v381
    %v2663 = vpop.f32.mrb[0].mxu0
    %v2664 = vadd.f32 0.0, %v2663
    %v2665 = vpop.f32.mrb[0].mxu0
    %2666 = vmatprep.mubr.f32.mxu0 0.0
    %2667 = vmatmul.mubr.f32.gmra.mrb[0].mxu0 %v384
    %v2668 = vpop.f32.mrb[0].mxu0
    %v2669 = vadd.f32 0.0, %v2668
    %v2670 = vpop.f32.mrb[0].mxu0
    %2671 = vmatprep.mubr.f32.mxu0 0.0
    %2672 = vmatmul.mubr.f32.gmra.mrb[0].mxu0 %v387
    %v2673 = vpop.f32.mrb[0].mxu0
    %v2674 = vadd.f32 0.0, %v2673
    %v2675 = vpop.f32.mrb[0].mxu0
    %2676 = vmatprep.mubr.f32.mxu0 0.0
    %2677 = vmatmul.mubr.f32.gmra.mrb[0].mxu0 %v390
    %v2678 = vpop.f32.mrb[0].mxu0
    %v2679 = vadd.f32 0.0, %v2678
    %v2680 = vpop.f32.mrb[0].mxu0
    %2681 = vmatprep.mubr.f32.mxu0 0.0
    %2682 = vmatmul.mubr.f32.gmra.mrb[0].mxu0 %v393
    %v2683 = vpop.f32.mrb[0].mxu0
    %v2684 = vadd.f32 0.0, %v2683
    %v2685 = vpop.f32.mrb[0].mxu0
    %2686 = vmatprep.mubr.f32.mxu0 0.0
    %2687 = vmatmul.mubr.f32.gmra.mrb[0].mxu0 %v396
    %v2688 = vpop.f32.mrb[0].mxu0
    %v2689 = vadd.f32 0.0, %v2688
    %v2690 = vpop.f32.mrb[0].mxu0
    %2691 = vmatprep.mubr.f32.mxu0 0.0
    %2692 = vmatmul.mubr.f32.gmra.mrb[0].mxu0 %v399
    %v2693 = vpop.f32.mrb[0].mxu0
    %v2694 = vadd.f32 0.0, %v2693
    %v2695 = vpop.f32.mrb[0].mxu0
    %2696 = vmatprep.mubr.f32.mxu0 0.0
    %2697 = vmatmul.mubr.f32.gmra.mrb[0].mxu0 %v402
    %v2698 = vpop.f32.mrb[0].mxu0
    %v2699 = vadd.f32 0.0, %v2698
    %v2700 = vpop.f32.mrb[0].mxu0
    %2701 = vmatprep.mubr.f32.mxu0 0.0
    %2702 = vmatmul.mubr.f32.gmra.mrb[0].mxu0 %v405
    %v2703 = vpop.f32.mrb[0].mxu0
    %v2704 = vadd.f32 0.0, %v2703
    %v2705 = vpop.f32.mrb[0].mxu0
    %2706 = vmatprep.mubr.f32.mxu0 0.0
    %2707 = vmatmul.mubr.f32.gmra.mrb[0].mxu0 %v408
    %v2708 = vpop.f32.mrb[0].mxu0
    %v2709 = vadd.f32 0.0, %v2708
    %v2710 = vpop.f32.mrb[0].mxu0
    %2711 = vmatprep.mubr.f32.mxu0 0.0
    %2712 = vmatmul.mubr.f32.gmra.mrb[0].mxu0 %v411
    %v2713 = vpop.f32.mrb[0].mxu0
    %v2714 = vadd.f32 0.0, %v2713
    %v2715 = vpop.f32.mrb[0].mxu0
    %2716 = vmatprep.mubr.f32.mxu0 0.0
    %2717 = vmatmul.mubr.f32.gmra.mrb[0].mxu0 %v414
    %v2718 = vpop.f32.mrb[0].mxu0
    %v2719 = vadd.f32 0.0, %v2718
    %v2720 = vpop.f32.mrb[0].mxu0
    %2721 = vmatprep.mubr.f32.mxu0 0.0
    %2722 = vmatmul.mubr.f32.gmra.mrb[0].mxu0 %v417
    %v2723 = vpop.f32.mrb[0].mxu0
    %v2724 = vadd.f32 0.0, %v2723
    %v2725 = vpop.f32.mrb[0].mxu0
    %2726 = vmatprep.mubr.f32.mxu0 0.0
    %2727 = vmatmul.mubr.f32.gmra.mrb[0].mxu0 %v420
    %v2728 = vpop.f32.mrb[0].mxu0
    %v2729 = vadd.f32 0.0, %v2728
    %v2730 = vpop.f32.mrb[0].mxu0
    %2731 = vmatprep.mubr.f32.mxu0 0.0
    %2732 = vmatmul.mubr.f32.gmra.mrb[0].mxu0 %v423
    %v2733 = vpop.f32.mrb[0].mxu0
    %v2734 = vadd.f32 0.0, %v2733
    %v2735 = vpop.f32.mrb[0].mxu0
    %2736 = vmatprep.mubr.f32.mxu0 0.0
    %2737 = vmatmul.mubr.f32.gmra.mrb[0].mxu0 %v426
    %v2738 = vpop.f32.mrb[0].mxu0
    %v2739 = vadd.f32 0.0, %v2738
    %v2740 = vpop.f32.mrb[0].mxu0
    %2741 = vmatprep.mubr.f32.mxu0 0.0
    %2742 = vmatmul.mubr.f32.gmra.mrb[0].mxu0 %v429
    %v2743 = vpop.f32.mrb[0].mxu0
    %v2744 = vadd.f32 0.0, %v2743
    %v2745 = vpop.f32.mrb[0].mxu0
    %2746 = vmatprep.mubr.f32.mxu0 0.0
    %2747 = vmatmul.mubr.f32.gmra.mrb[0].mxu0 %v432
    %v2748 = vpop.f32.mrb[0].mxu0
    %v2749 = vadd.f32 0.0, %v2748
    %v2750 = vpop.f32.mrb[0].mxu0
    %2751 = vmatprep.mubr.f32.mxu0 0.0
    %2752 = vmatmul.mubr.f32.gmra.mrb[0].mxu0 %v435
    %v2753 = vpop.f32.mrb[0].mxu0
    %v2754 = vadd.f32 0.0, %v2753
    %v2755 = vpop.f32.mrb[0].mxu0
    %2756 = vmatprep.mubr.f32.mxu0 0.0
    %2757 = vmatmul.mubr.f32.gmra.mrb[0].mxu0 %v438
    %v2758 = vpop.f32.mrb[0].mxu0
    %v2759 = vadd.f32 0.0, %v2758
    %v2760 = vpop.f32.mrb[0].mxu0
    %2761 = vmatprep.mubr.f32.mxu0 0.0
    %2762 = vmatmul.mubr.f32.gmra.mrb[0].mxu0 %v441
    %v2763 = vpop.f32.mrb[0].mxu0
    %v2764 = vadd.f32 0.0, %v2763
    %v2765 = vpop.f32.mrb[0].mxu0
    %2766 = vmatprep.mubr.f32.mxu0 0.0
    %2767 = vmatmul.mubr.f32.gmra.mrb[0].mxu0 %v444
    %v2768 = vpop.f32.mrb[0].mxu0
    %v2769 = vadd.f32 0.0, %v2768
    %v2770 = vpop.f32.mrb[0].mxu0
    %2771 = vmatprep.mubr.f32.mxu0 0.0
    %2772 = vmatmul.mubr.f32.gmra.mrb[0].mxu0 %v447
    %v2773 = vpop.f32.mrb[0].mxu0
    %v2774 = vadd.f32 0.0, %v2773
    %v2775 = vpop.f32.mrb[0].mxu0
    %2776 = vmatprep.mubr.f32.mxu0 0.0
    %2777 = vmatmul.mubr.f32.gmra.mrb[0].mxu0 %v450
    %v2778 = vpop.f32.mrb[0].mxu0
    %v2779 = vadd.f32 0.0, %v2778
    %v2780 = vpop.f32.mrb[0].mxu0
    %2781 = vmatprep.mubr.f32.mxu0 0.0
    %2782 = vmatmul.mubr.f32.gmra.mrb[0].mxu0 %v453
    %v2783 = vpop.f32.mrb[0].mxu0
    %v2784 = vadd.f32 0.0, %v2783
    %v2785 = vpop.f32.mrb[0].mxu0
    %2786 = vmatprep.mubr.f32.mxu0 0.0
    %2787 = vmatmul.mubr.f32.gmra.mrb[0].mxu0 %v456
    %v2788 = vpop.f32.mrb[0].mxu0
    %v2789 = vadd.f32 0.0, %v2788
    %v2790 = vpop.f32.mrb[0].mxu0
    %2791 = vmatprep.mubr.f32.mxu0 0.0
    %2792 = vmatmul.mubr.f32.gmra.mrb[0].mxu0 %v459
    %v2793 = vpop.f32.mrb[0].mxu0
    %v2794 = vadd.f32 0.0, %v2793
    %v2795 = vpop.f32.mrb[0].mxu0
    %2796 = vmatprep.mubr.f32.mxu0 0.0
    %2797 = vmatmul.mubr.f32.gmra.mrb[0].mxu0 %v462
    %v2798 = vpop.f32.mrb[0].mxu0
    %v2799 = vadd.f32 0.0, %v2798
    %v2800 = vpop.f32.mrb[0].mxu0
    %2801 = vmatprep.mubr.f32.mxu0 0.0
    %2802 = vmatmul.mubr.f32.gmra.mrb[0].mxu0 %v465
    %v2803 = vpop.f32.mrb[0].mxu0
    %v2804 = vadd.f32 0.0, %v2803
    %v2805 = vpop.f32.mrb[0].mxu0
    %2806 = vmatprep.mubr.f32.mxu0 0.0
    %2807 = vmatmul.mubr.f32.gmra.mrb[0].mxu0 %v468
    %v2808 = vpop.f32.mrb[0].mxu0
    %v2809 = vadd.f32 0.0, %v2808
    %v2810 = vpop.f32.mrb[0].mxu0
    %2811 = vmatprep.mubr.f32.mxu0 0.0
    %2812 = vmatmul.mubr.f32.gmra.mrb[0].mxu0 %v471
    %v2813 = vpop.f32.mrb[0].mxu0
    %v2814 = vadd.f32 0.0, %v2813
    %v2815 = vpop.f32.mrb[0].mxu0
    %2816 = vmatprep.mubr.f32.mxu0 0.0
    %2817 = vmatmul.mubr.f32.gmra.mrb[0].mxu0 %v474
    %v2818 = vpop.f32.mrb[0].mxu0
    %v2819 = vadd.f32 0.0, %v2818
    %v2820 = vpop.f32.mrb[0].mxu0
    %2821 = vmatprep.mubr.f32.mxu0 0.0
    %2822 = vmatmul.mubr.f32.gmra.mrb[0].mxu0 %v477
    %v2823 = vpop.f32.mrb[0].mxu0
    %v2824 = vadd.f32 0.0, %v2823
    %v2825 = vpop.f32.mrb[0].mxu0
    %2826 = vmatprep.mubr.f32.mxu0 0.0
    %2827 = vmatmul.mubr.f32.gmra.mrb[0].mxu0 %v480
    %v2828 = vpop.f32.mrb[0].mxu0
    %v2829 = vadd.f32 0.0, %v2828
    %v2830 = vpop.f32.mrb[0].mxu0
    %2831 = vmatprep.mubr.f32.mxu0 0.0
    %2832 = vmatmul.mubr.f32.gmra.mrb[0].mxu0 %v483
    %v2833 = vpop.f32.mrb[0].mxu0
    %v2834 = vadd.f32 0.0, %v2833
    %v2835 = vpop.f32.mrb[0].mxu0
    %2836 = vmatprep.mubr.f32.mxu0 0.0
    %2837 = vmatmul.mubr.f32.gmra.mrb[0].mxu0 %v486
    %v2838 = vpop.f32.mrb[0].mxu0
    %v2839 = vadd.f32 0.0, %v2838
    %v2840 = vpop.f32.mrb[0].mxu0
    %2841 = vmatprep.mubr.f32.mxu0 0.0
    %2842 = vmatmul.mubr.f32.gmra.mrb[0].mxu0 %v489
    %v2843 = vpop.f32.mrb[0].mxu0
    %v2844 = vadd.f32 0.0, %v2843
    %v2845 = vpop.f32.mrb[0].mxu0
    %2846 = vmatprep.mubr.f32.mxu0 0.0
    %2847 = vmatmul.mubr.f32.gmra.mrb[0].mxu0 %v492
    %v2848 = vpop.f32.mrb[0].mxu0
    %v2849 = vadd.f32 0.0, %v2848
    %v2850 = vpop.f32.mrb[0].mxu0
    %2851 = vmatprep.mubr.f32.mxu0 0.0
    %2852 = vmatmul.mubr.f32.gmra.mrb[0].mxu0 %v495
    %v2853 = vpop.f32.mrb[0].mxu0
    %v2854 = vadd.f32 0.0, %v2853
    %v2855 = vpop.f32.mrb[0].mxu0
    %2856 = vmatprep.mubr.f32.mxu0 0.0
    %2857 = vmatmul.mubr.f32.gmra.mrb[0].mxu0 %v498
    %v2858 = vpop.f32.mrb[0].mxu0
    %v2859 = vadd.f32 0.0, %v2858
    %v2860 = vpop.f32.mrb[0].mxu0
    %2861 = vmatprep.mubr.f32.mxu0 0.0
    %2862 = vmatmul.mubr.f32.gmra.mrb[0].mxu0 %v501
    %v2863 = vpop.f32.mrb[0].mxu0
    %v2864 = vadd.f32 0.0, %v2863
    %v2865 = vpop.f32.mrb[0].mxu0
    %2866 = vmatprep.mubr.f32.mxu0 0.0
    %2867 = vmatmul.mubr.f32.gmra.mrb[0].mxu0 %v504
    %v2868 = vpop.f32.mrb[0].mxu0
    %v2869 = vadd.f32 0.0, %v2868
    %v2870 = vpop.f32.mrb[0].mxu0
    %2871 = vmatprep.mubr.f32.mxu0 0.0
    %2872 = vmatmul.mubr.f32.gmra.mrb[0].mxu0 %v507
    %v2873 = vpop.f32.mrb[0].mxu0
    %v2874 = vadd.f32 0.0, %v2873
    %v2875 = vpop.f32.mrb[0].mxu0
    %2876 = vmatprep.mubr.f32.mxu0 0.0
    %2877 = vmatmul.mubr.f32.gmra.mrb[0].mxu0 %v510
    %v2878 = vpop.f32.mrb[0].mxu0
    %v2879 = vadd.f32 0.0, %v2878
    %v2880 = vpop.f32.mrb[0].mxu0
    %2881 = vmatprep.mubr.f32.mxu0 0.0
    %2882 = vmatmul.mubr.f32.gmra.mrb[0].mxu0 %v513
    %v2883 = vpop.f32.mrb[0].mxu0
    %v2884 = vadd.f32 0.0, %v2883
    %v2885 = vpop.f32.mrb[0].mxu0
    %2886 = vmatprep.mubr.f32.mxu0 0.0
    %2887 = vmatmul.mubr.f32.gmra.mrb[0].mxu0 %v516
    %v2888 = vpop.f32.mrb[0].mxu0
    %v2889 = vadd.f32 0.0, %v2888
    %v2890 = vpop.f32.mrb[0].mxu0
    %2891 = vmatprep.mubr.f32.mxu0 0.0
    %2892 = vmatmul.mubr.f32.gmra.mrb[0].mxu0 %v519
    %v2893 = vpop.f32.mrb[0].mxu0
    %v2894 = vadd.f32 0.0, %v2893
    %v2895 = vpop.f32.mrb[0].mxu0
    %2896 = vmatprep.mubr.f32.mxu0 0.0
    %2897 = vmatmul.mubr.f32.gmra.mrb[0].mxu0 %v522
    %v2898 = vpop.f32.mrb[0].mxu0
    %v2899 = vadd.f32 0.0, %v2898
    %v2900 = vpop.f32.mrb[0].mxu0
    %2901 = vmatprep.mubr.f32.mxu0 0.0
    %2902 = vmatmul.mubr.f32.gmra.mrb[0].mxu0 %v525
    %v2903 = vpop.f32.mrb[0].mxu0
    %v2904 = vadd.f32 0.0, %v2903
    %v2905 = vpop.f32.mrb[0].mxu0
    %2906 = vmatprep.mubr.f32.mxu0 0.0
    %2907 = vmatmul.mubr.f32.gmra.mrb[0].mxu0 %v528
    %v2908 = vpop.f32.mrb[0].mxu0
    %v2909 = vadd.f32 0.0, %v2908
    %v2910 = vpop.f32.mrb[0].mxu0
    %2911 = vmatprep.mubr.f32.mxu0 0.0
    %2912 = vmatmul.mubr.f32.gmra.mrb[0].mxu0 %v531
    %v2913 = vpop.f32.mrb[0].mxu0
    %v2914 = vadd.f32 0.0, %v2913
    %v2915 = vpop.f32.mrb[0].mxu0
    %2916 = vmatprep.mubr.f32.mxu0 0.0
    %2917 = vmatmul.mubr.f32.gmra.mrb[0].mxu0 %v534
    %v2918 = vpop.f32.mrb[0].mxu0
    %v2919 = vadd.f32 0.0, %v2918
    %v2920 = vpop.f32.mrb[0].mxu0
    %2921 = vdwg.mxu0
    %v2922 = vld [vmem:[%s10] sm:$0xff]
    %v2923 = vld [vmem:[%s10 + $0x8] sm:$0xff]
    %v2924 = vld [vmem:[%s10 + $0x10] sm:$0xff]
    %v2925 = vld [vmem:[%s10 + $0x18] sm:$0xff]
    %v2926 = vld [vmem:[%s10 + $0x20] sm:$0xff]
    %v2927 = vld [vmem:[%s10 + $0x28] sm:$0xff]
    %v2928 = vld [vmem:[%s10 + $0x30] sm:$0xff]
    %v2929 = vld [vmem:[%s10 + $0x38] sm:$0xff]
    %v2930 = vld [vmem:[%s10 + $0x40] sm:$0xff]
    %v2931 = vld [vmem:[%s10 + $0x48] sm:$0xff]
    %v2932 = vld [vmem:[%s10 + $0x50] sm:$0xff]
    %v2933 = vld [vmem:[%s10 + $0x58] sm:$0xff]
    %v2934 = vld [vmem:[%s11] sm:$0xff]
    %v2935 = vld [vmem:[%s11 + $0x8] sm:$0xff]
    %v2936 = vld [vmem:[%s11 + $0x10] sm:$0xff]
    %v2937 = vld [vmem:[%s11 + $0x18] sm:$0xff]
    %v2939 = vsel %vm144, %v2774, 0
    %v2942 = vsel %vm144, %v2779, 0
    %v2945 = vsel %vm144, %v2784, 0
    %v2948 = vsel %vm144, %v2789, 0
    %v2951 = vsel %vm144, %v2794, 0
    %v2954 = vsel %vm144, %v2799, 0
    %v2957 = vsel %vm144, %v2804, 0
    %v2960 = vsel %vm144, %v2809, 0
    %v2963 = vsel %vm144, %v2814, 0
    %v2966 = vsel %vm144, %v2819, 0
    %v2969 = vsel %vm144, %v2824, 0
    %v2972 = vsel %vm144, %v2829, 0
    %v2975 = vsel %vm144, %v2834, 0
    %v2978 = vsel %vm144, %v2839, 0
    %v2981 = vsel %vm144, %v2844, 0
    %v2984 = vsel %vm144, %v2849, 0
    %v2987 = vsel %vm144, %v2854, 0
    %v2990 = vsel %vm144, %v2859, 0
    %v2993 = vsel %vm144, %v2864, 0
    %v2996 = vsel %vm144, %v2869, 0
    %v2999 = vsel %vm144, %v2874, 0
    %v3002 = vsel %vm144, %v2879, 0
    %v3005 = vsel %vm144, %v2884, 0
    %v3008 = vsel %vm144, %v2889, 0
    %v3011 = vsel %vm144, %v2894, 0
    %v3014 = vsel %vm144, %v2899, 0
    %v3017 = vsel %vm144, %v2904, 0
    %v3020 = vsel %vm144, %v2909, 0
    %v3023 = vsel %vm144, %v2914, 0
    %v3026 = vsel %vm144, %v2919, 0
    %3028 = vmatprep.subr.mxu0 0.0
    %3029 = vmatpush1.msra.mxu0 %v2926
    %3030 = vmatprep.subr.mxu0 0.0
    %3031 = vmatpush1.msra.mxu0 %v2927
    %3032 = vmatprep.subr.mxu0 0.0
    %3033 = vmatpush1.msra.mxu0 %v2928
    %3034 = vmatprep.subr.mxu0 0.0
    %3035 = vmatpush1.msra.mxu0 %v2929
    %3036 = vmatprep.subr.mxu0 0.0
    %3037 = vmatpush1.msra.mxu0 0.0
    %3038 = vmatprep.subr.mxu0 0.0
    %3039 = vmatpush1.msra.mxu0 0.0
    %3040 = vmatprep.subr.mxu0 0.0
    %3041 = vmatpush1.msra.mxu0 0.0
    %3042 = vmatprep.subr.mxu0 0.0
    %3043 = vmatpush1.msra.mxu0 0.0
    %3044 = vmatprep.subr.mxu0 0.0
    %3045 = vmatpush1.msra.mxu0 0.0
    %3046 = vmatprep.subr.mxu0 0.0
    %3047 = vmatpush1.msra.mxu0 0.0
    %3048 = vmatprep.subr.mxu0 0.0
    %3049 = vmatpush1.msra.mxu0 0.0
    %3050 = vmatprep.subr.mxu0 0.0
    %3051 = vmatpush1.msra.mxu0 0.0
    %3052 = vmatprep.subr.mxu0 0.0
    %3053 = vmatpush1.msra.mxu0 0.0
    %3054 = vmatprep.subr.mxu0 0.0
    %3055 = vmatpush1.msra.mxu0 0.0
    %3056 = vmatprep.subr.mxu0 0.0
    %3057 = vmatpush1.msra.mxu0 0.0
    %3058 = vmatprep.subr.mxu0 0.0
    %3059 = vmatpush1.msra.mxu0 0.0
    %3060 = vmatprep.subr.mxu0 0.0
    %3061 = vmatpush1.msra.mxu0 0.0
    %3062 = vmatprep.subr.mxu0 0.0
    %3063 = vmatpush1.msra.mxu0 0.0
    %3064 = vmatprep.subr.mxu0 0.0
    %3065 = vmatpush1.msra.mxu0 0.0
    %3066 = vmatprep.subr.mxu0 0.0
    %3067 = vmatpush1.msra.mxu0 0.0
    %3068 = vmatprep.subr.mxu0 0.0
    %3069 = vmatpush1.msra.mxu0 0.0
    %3070 = vmatprep.subr.mxu0 0.0
    %3071 = vmatpush1.msra.mxu0 0.0
    %3072 = vmatprep.subr.mxu0 0.0
    %3073 = vmatpush1.msra.mxu0 0.0
    %3074 = vmatprep.subr.mxu0 0.0
    %3075 = vmatpush1.msra.mxu0 0.0
    %3076 = vmatprep.subr.mxu0 0.0
    %3077 = vmatpush1.msra.mxu0 0.0
    %3078 = vmatprep.subr.mxu0 0.0
    %3079 = vmatpush1.msra.mxu0 0.0
    %3080 = vmatprep.subr.mxu0 0.0
    %3081 = vmatpush1.msra.mxu0 0.0
    %3082 = vmatprep.subr.mxu0 0.0
    %3083 = vmatpush1.msra.mxu0 0.0
    %3084 = vmatprep.subr.mxu0 0.0
    %3085 = vmatpush1.msra.mxu0 0.0
    %3086 = vmatprep.subr.mxu0 0.0
    %3087 = vmatpush1.msra.mxu0 0.0
    %3088 = vmatprep.subr.mxu0 0.0
    %3089 = vmatpush1.msra.mxu0 0.0
    %3090 = vmatprep.subr.mxu0 0.0
    %3091 = vmatpush1.msra.mxu0 0.0
    %3092 = vmatprep.mubr.f32.mxu0 0.0
    %3093 = vmatmul.mubr.f32.gmra.mrb[0].mxu0 %v2939
    %v3094 = vpop.f32.mrb[0].mxu0
    %v3095 = vadd.f32 0.0, %v3094
    %v3096 = vpop.f32.mrb[0].mxu0
    %3097 = vmatprep.mubr.f32.mxu0 0.0
    %3098 = vmatmul.mubr.f32.gmra.mrb[0].mxu0 %v2942
    %v3099 = vpop.f32.mrb[0].mxu0
    %v3100 = vadd.f32 0.0, %v3099
    %v3101 = vpop.f32.mrb[0].mxu0
    %3102 = vmatprep.mubr.f32.mxu0 0.0
    %3103 = vmatmul.mubr.f32.gmra.mrb[0].mxu0 %v2945
    %v3104 = vpop.f32.mrb[0].mxu0
    %v3105 = vadd.f32 0.0, %v3104
    %v3106 = vpop.f32.mrb[0].mxu0
    %3107 = vmatprep.mubr.f32.mxu0 0.0
    %3108 = vmatmul.mubr.f32.gmra.mrb[0].mxu0 %v2948
    %v3109 = vpop.f32.mrb[0].mxu0
    %v3110 = vadd.f32 0.0, %v3109
    %v3111 = vpop.f32.mrb[0].mxu0
    %3112 = vmatprep.mubr.f32.mxu0 0.0
    %3113 = vmatmul.mubr.f32.gmra.mrb[0].mxu0 %v2951
    %v3114 = vpop.f32.mrb[0].mxu0
    %v3115 = vadd.f32 0.0, %v3114
    %v3116 = vpop.f32.mrb[0].mxu0
    %3117 = vmatprep.mubr.f32.mxu0 0.0
    %3118 = vmatmul.mubr.f32.gmra.mrb[0].mxu0 %v2954
    %v3119 = vpop.f32.mrb[0].mxu0
    %v3120 = vadd.f32 0.0, %v3119
    %v3121 = vpop.f32.mrb[0].mxu0
    %3122 = vmatprep.mubr.f32.mxu0 0.0
    %3123 = vmatmul.mubr.f32.gmra.mrb[0].mxu0 %v2957
    %v3124 = vpop.f32.mrb[0].mxu0
    %v3125 = vadd.f32 0.0, %v3124
    %v3126 = vpop.f32.mrb[0].mxu0
    %3127 = vmatprep.mubr.f32.mxu0 0.0
    %3128 = vmatmul.mubr.f32.gmra.mrb[0].mxu0 %v2960
    %v3129 = vpop.f32.mrb[0].mxu0
    %v3130 = vadd.f32 0.0, %v3129
    %v3131 = vpop.f32.mrb[0].mxu0
    %3132 = vmatprep.mubr.f32.mxu0 0.0
    %3133 = vmatmul.mubr.f32.gmra.mrb[0].mxu0 %v2963
    %v3134 = vpop.f32.mrb[0].mxu0
    %v3135 = vadd.f32 0.0, %v3134
    %v3136 = vpop.f32.mrb[0].mxu0
    %3137 = vmatprep.mubr.f32.mxu0 0.0
    %3138 = vmatmul.mubr.f32.gmra.mrb[0].mxu0 %v2966
    %v3139 = vpop.f32.mrb[0].mxu0
    %v3140 = vadd.f32 0.0, %v3139
    %v3141 = vpop.f32.mrb[0].mxu0
    %3142 = vmatprep.mubr.f32.mxu0 0.0
    %3143 = vmatmul.mubr.f32.gmra.mrb[0].mxu0 %v2969
    %v3144 = vpop.f32.mrb[0].mxu0
    %v3145 = vadd.f32 0.0, %v3144
    %v3146 = vpop.f32.mrb[0].mxu0
    %3147 = vmatprep.mubr.f32.mxu0 0.0
    %3148 = vmatmul.mubr.f32.gmra.mrb[0].mxu0 %v2972
    %v3149 = vpop.f32.mrb[0].mxu0
    %v3150 = vadd.f32 0.0, %v3149
    %v3151 = vpop.f32.mrb[0].mxu0
    %3152 = vmatprep.mubr.f32.mxu0 0.0
    %3153 = vmatmul.mubr.f32.gmra.mrb[0].mxu0 %v2975
    %v3154 = vpop.f32.mrb[0].mxu0
    %v3155 = vadd.f32 0.0, %v3154
    %v3156 = vpop.f32.mrb[0].mxu0
    %3157 = vmatprep.mubr.f32.mxu0 0.0
    %3158 = vmatmul.mubr.f32.gmra.mrb[0].mxu0 %v2978
    %v3159 = vpop.f32.mrb[0].mxu0
    %v3160 = vadd.f32 0.0, %v3159
    %v3161 = vpop.f32.mrb[0].mxu0
    %3162 = vmatprep.mubr.f32.mxu0 0.0
    %3163 = vmatmul.mubr.f32.gmra.mrb[0].mxu0 %v2981
    %v3164 = vpop.f32.mrb[0].mxu0
    %v3165 = vadd.f32 0.0, %v3164
    %v3166 = vpop.f32.mrb[0].mxu0
    %3167 = vmatprep.mubr.f32.mxu0 0.0
    %3168 = vmatmul.mubr.f32.gmra.mrb[0].mxu0 %v2984
    %v3169 = vpop.f32.mrb[0].mxu0
    %v3170 = vadd.f32 0.0, %v3169
    %v3171 = vpop.f32.mrb[0].mxu0
    %3172 = vmatprep.mubr.f32.mxu0 0.0
    %3173 = vmatmul.mubr.f32.gmra.mrb[0].mxu0 %v2987
    %v3174 = vpop.f32.mrb[0].mxu0
    %v3175 = vadd.f32 0.0, %v3174
    %v3176 = vpop.f32.mrb[0].mxu0
    %3177 = vmatprep.mubr.f32.mxu0 0.0
    %3178 = vmatmul.mubr.f32.gmra.mrb[0].mxu0 %v2990
    %v3179 = vpop.f32.mrb[0].mxu0
    %v3180 = vadd.f32 0.0, %v3179
    %v3181 = vpop.f32.mrb[0].mxu0
    %3182 = vmatprep.mubr.f32.mxu0 0.0
    %3183 = vmatmul.mubr.f32.gmra.mrb[0].mxu0 %v2993
    %v3184 = vpop.f32.mrb[0].mxu0
    %v3185 = vadd.f32 0.0, %v3184
    %v3186 = vpop.f32.mrb[0].mxu0
    %3187 = vmatprep.mubr.f32.mxu0 0.0
    %3188 = vmatmul.mubr.f32.gmra.mrb[0].mxu0 %v2996
    %v3189 = vpop.f32.mrb[0].mxu0
    %v3190 = vadd.f32 0.0, %v3189
    %v3191 = vpop.f32.mrb[0].mxu0
    %3192 = vmatprep.mubr.f32.mxu0 0.0
    %3193 = vmatmul.mubr.f32.gmra.mrb[0].mxu0 %v2999
    %v3194 = vpop.f32.mrb[0].mxu0
    %v3195 = vadd.f32 0.0, %v3194
    %v3196 = vpop.f32.mrb[0].mxu0
    %3197 = vmatprep.mubr.f32.mxu0 0.0
    %3198 = vmatmul.mubr.f32.gmra.mrb[0].mxu0 %v3002
    %v3199 = vpop.f32.mrb[0].mxu0
    %v3200 = vadd.f32 0.0, %v3199
    %v3201 = vpop.f32.mrb[0].mxu0
    %3202 = vmatprep.mubr.f32.mxu0 0.0
    %3203 = vmatmul.mubr.f32.gmra.mrb[0].mxu0 %v3005
    %v3204 = vpop.f32.mrb[0].mxu0
    %v3205 = vadd.f32 0.0, %v3204
    %v3206 = vpop.f32.mrb[0].mxu0
    %3207 = vmatprep.mubr.f32.mxu0 0.0
    %3208 = vmatmul.mubr.f32.gmra.mrb[0].mxu0 %v3008
    %v3209 = vpop.f32.mrb[0].mxu0
    %v3210 = vadd.f32 0.0, %v3209
    %v3211 = vpop.f32.mrb[0].mxu0
    %3212 = vmatprep.mubr.f32.mxu0 0.0
    %3213 = vmatmul.mubr.f32.gmra.mrb[0].mxu0 %v3011
    %v3214 = vpop.f32.mrb[0].mxu0
    %v3215 = vadd.f32 0.0, %v3214
    %v3216 = vpop.f32.mrb[0].mxu0
    %3217 = vmatprep.mubr.f32.mxu0 0.0
    %3218 = vmatmul.mubr.f32.gmra.mrb[0].mxu0 %v3014
    %v3219 = vpop.f32.mrb[0].mxu0
    %v3220 = vadd.f32 0.0, %v3219
    %v3221 = vpop.f32.mrb[0].mxu0
    %3222 = vmatprep.mubr.f32.mxu0 0.0
    %3223 = vmatmul.mubr.f32.gmra.mrb[0].mxu0 %v3017
    %v3224 = vpop.f32.mrb[0].mxu0
    %v3225 = vadd.f32 0.0, %v3224
    %v3226 = vpop.f32.mrb[0].mxu0
    %3227 = vmatprep.mubr.f32.mxu0 0.0
    %3228 = vmatmul.mubr.f32.gmra.mrb[0].mxu0 %v3020
    %v3229 = vpop.f32.mrb[0].mxu0
    %v3230 = vadd.f32 0.0, %v3229
    %v3231 = vpop.f32.mrb[0].mxu0
    %3232 = vmatprep.mubr.f32.mxu0 0.0
    %3233 = vmatmul.mubr.f32.gmra.mrb[0].mxu0 %v3023
    %v3234 = vpop.f32.mrb[0].mxu0
    %v3235 = vadd.f32 0.0, %v3234
    %v3236 = vpop.f32.mrb[0].mxu0
    %3237 = vmatprep.mubr.f32.mxu0 0.0
    %3238 = vmatmul.mubr.f32.gmra.mrb[0].mxu0 %v3026
    %v3239 = vpop.f32.mrb[0].mxu0
    %v3240 = vadd.f32 0.0, %v3239
    %v3241 = vpop.f32.mrb[0].mxu0
    %3242 = vdwg.mxu0
    %v3244 = vsel %vm144, %v2624, 0
    %v3247 = vsel %vm144, %v2629, 0
    %v3250 = vsel %vm144, %v2634, 0
    %v3253 = vsel %vm144, %v2639, 0
    %v3256 = vsel %vm144, %v2644, 0
    %v3259 = vsel %vm144, %v2649, 0
    %v3262 = vsel %vm144, %v2654, 0
    %v3265 = vsel %vm144, %v2659, 0
    %v3268 = vsel %vm144, %v2664, 0
    %v3271 = vsel %vm144, %v2669, 0
    %v3274 = vsel %vm144, %v2674, 0
    %v3277 = vsel %vm144, %v2679, 0
    %v3280 = vsel %vm144, %v2684, 0
    %v3283 = vsel %vm144, %v2689, 0
    %v3286 = vsel %vm144, %v2694, 0
    %v3289 = vsel %vm144, %v2699, 0
    %v3292 = vsel %vm144, %v2704, 0
    %v3295 = vsel %vm144, %v2709, 0
    %v3298 = vsel %vm144, %v2714, 0
    %v3301 = vsel %vm144, %v2719, 0
    %v3304 = vsel %vm144, %v2724, 0
    %v3307 = vsel %vm144, %v2729, 0
    %v3310 = vsel %vm144, %v2734, 0
    %v3313 = vsel %vm144, %v2739, 0
    %v3316 = vsel %vm144, %v2744, 0
    %v3319 = vsel %vm144, %v2749, 0
    %v3322 = vsel %vm144, %v2754, 0
    %v3325 = vsel %vm144, %v2759, 0
    %v3328 = vsel %vm144, %v2764, 0
    %v3331 = vsel %vm144, %v2769, 0
    %3333 = vmatprep.subr.mxu0 0.0
    %3334 = vmatpush1.msra.mxu0 %v2922
    %3335 = vmatprep.subr.mxu0 0.0
    %3336 = vmatpush1.msra.mxu0 %v2923
    %3337 = vmatprep.subr.mxu0 0.0
    %3338 = vmatpush1.msra.mxu0 %v2924
    %3339 = vmatprep.subr.mxu0 0.0
    %3340 = vmatpush1.msra.mxu0 %v2925
    %3341 = vmatprep.subr.mxu0 0.0
    %3342 = vmatpush1.msra.mxu0 0.0
    %3343 = vmatprep.subr.mxu0 0.0
    %3344 = vmatpush1.msra.mxu0 0.0
    %3345 = vmatprep.subr.mxu0 0.0
    %3346 = vmatpush1.msra.mxu0 0.0
    %3347 = vmatprep.subr.mxu0 0.0
    %3348 = vmatpush1.msra.mxu0 0.0
    %3349 = vmatprep.subr.mxu0 0.0
    %3350 = vmatpush1.msra.mxu0 0.0
    %3351 = vmatprep.subr.mxu0 0.0
    %3352 = vmatpush1.msra.mxu0 0.0
    %3353 = vmatprep.subr.mxu0 0.0
    %3354 = vmatpush1.msra.mxu0 0.0
    %3355 = vmatprep.subr.mxu0 0.0
    %3356 = vmatpush1.msra.mxu0 0.0
    %3357 = vmatprep.subr.mxu0 0.0
    %3358 = vmatpush1.msra.mxu0 0.0
    %3359 = vmatprep.subr.mxu0 0.0
    %3360 = vmatpush1.msra.mxu0 0.0
    %3361 = vmatprep.subr.mxu0 0.0
    %3362 = vmatpush1.msra.mxu0 0.0
    %3363 = vmatprep.subr.mxu0 0.0
    %3364 = vmatpush1.msra.mxu0 0.0
    %3365 = vmatprep.subr.mxu0 0.0
    %3366 = vmatpush1.msra.mxu0 0.0
    %3367 = vmatprep.subr.mxu0 0.0
    %3368 = vmatpush1.msra.mxu0 0.0
    %3369 = vmatprep.subr.mxu0 0.0
    %3370 = vmatpush1.msra.mxu0 0.0
    %3371 = vmatprep.subr.mxu0 0.0
    %3372 = vmatpush1.msra.mxu0 0.0
    %3373 = vmatprep.subr.mxu0 0.0
    %3374 = vmatpush1.msra.mxu0 0.0
    %3375 = vmatprep.subr.mxu0 0.0
    %3376 = vmatpush1.msra.mxu0 0.0
    %3377 = vmatprep.subr.mxu0 0.0
    %3378 = vmatpush1.msra.mxu0 0.0
    %3379 = vmatprep.subr.mxu0 0.0
    %3380 = vmatpush1.msra.mxu0 0.0
    %3381 = vmatprep.subr.mxu0 0.0
    %3382 = vmatpush1.msra.mxu0 0.0
    %3383 = vmatprep.subr.mxu0 0.0
    %3384 = vmatpush1.msra.mxu0 0.0
    %3385 = vmatprep.subr.mxu0 0.0
    %3386 = vmatpush1.msra.mxu0 0.0
    %3387 = vmatprep.subr.mxu0 0.0
    %3388 = vmatpush1.msra.mxu0 0.0
    %3389 = vmatprep.subr.mxu0 0.0
    %3390 = vmatpush1.msra.mxu0 0.0
    %3391 = vmatprep.subr.mxu0 0.0
    %3392 = vmatpush1.msra.mxu0 0.0
    %3393 = vmatprep.subr.mxu0 0.0
    %3394 = vmatpush1.msra.mxu0 0.0
    %3395 = vmatprep.subr.mxu0 0.0
    %3396 = vmatpush1.msra.mxu0 0.0
    %3397 = vmatprep.mubr.f32.mxu0 0.0
    %3398 = vmatmul.mubr.f32.gmra.mrb[0].mxu0 %v3244
    %v3399 = vpop.f32.mrb[0].mxu0
    %v3400 = vadd.f32 %v3095, %v3399
    %v3401 = vpop.f32.mrb[0].mxu0
    %3402 = vmatprep.mubr.f32.mxu0 0.0
    %3403 = vmatmul.mubr.f32.gmra.mrb[0].mxu0 %v3247
    %v3404 = vpop.f32.mrb[0].mxu0
    %v3405 = vadd.f32 %v3100, %v3404
    %v3406 = vpop.f32.mrb[0].mxu0
    %3407 = vmatprep.mubr.f32.mxu0 0.0
    %3408 = vmatmul.mubr.f32.gmra.mrb[0].mxu0 %v3250
    %v3409 = vpop.f32.mrb[0].mxu0
    %v3410 = vadd.f32 %v3105, %v3409
    %v3411 = vpop.f32.mrb[0].mxu0
    %3412 = vmatprep.mubr.f32.mxu0 0.0
    %3413 = vmatmul.mubr.f32.gmra.mrb[0].mxu0 %v3253
    %v3414 = vpop.f32.mrb[0].mxu0
    %v3415 = vadd.f32 %v3110, %v3414
    %v3416 = vpop.f32.mrb[0].mxu0
    %3417 = vmatprep.mubr.f32.mxu0 0.0
    %3418 = vmatmul.mubr.f32.gmra.mrb[0].mxu0 %v3256
    %v3419 = vpop.f32.mrb[0].mxu0
    %v3420 = vadd.f32 %v3115, %v3419
    %v3421 = vpop.f32.mrb[0].mxu0
    %3422 = vmatprep.mubr.f32.mxu0 0.0
    %3423 = vmatmul.mubr.f32.gmra.mrb[0].mxu0 %v3259
    %v3424 = vpop.f32.mrb[0].mxu0
    %v3425 = vadd.f32 %v3120, %v3424
    %v3426 = vpop.f32.mrb[0].mxu0
    %3427 = vmatprep.mubr.f32.mxu0 0.0
    %3428 = vmatmul.mubr.f32.gmra.mrb[0].mxu0 %v3262
    %v3429 = vpop.f32.mrb[0].mxu0
    %v3430 = vadd.f32 %v3125, %v3429
    %v3431 = vpop.f32.mrb[0].mxu0
    %3432 = vmatprep.mubr.f32.mxu0 0.0
    %3433 = vmatmul.mubr.f32.gmra.mrb[0].mxu0 %v3265
    %v3434 = vpop.f32.mrb[0].mxu0
    %v3435 = vadd.f32 %v3130, %v3434
    %v3436 = vpop.f32.mrb[0].mxu0
    %3437 = vmatprep.mubr.f32.mxu0 0.0
    %3438 = vmatmul.mubr.f32.gmra.mrb[0].mxu0 %v3268
    %v3439 = vpop.f32.mrb[0].mxu0
    %v3440 = vadd.f32 %v3135, %v3439
    %v3441 = vpop.f32.mrb[0].mxu0
    %3442 = vmatprep.mubr.f32.mxu0 0.0
    %3443 = vmatmul.mubr.f32.gmra.mrb[0].mxu0 %v3271
    %v3444 = vpop.f32.mrb[0].mxu0
    %v3445 = vadd.f32 %v3140, %v3444
    %v3446 = vpop.f32.mrb[0].mxu0
    %3447 = vmatprep.mubr.f32.mxu0 0.0
    %3448 = vmatmul.mubr.f32.gmra.mrb[0].mxu0 %v3274
    %v3449 = vpop.f32.mrb[0].mxu0
    %v3450 = vadd.f32 %v3145, %v3449
    %v3451 = vpop.f32.mrb[0].mxu0
    %3452 = vmatprep.mubr.f32.mxu0 0.0
    %3453 = vmatmul.mubr.f32.gmra.mrb[0].mxu0 %v3277
    %v3454 = vpop.f32.mrb[0].mxu0
    %v3455 = vadd.f32 %v3150, %v3454
    %v3456 = vpop.f32.mrb[0].mxu0
    %3457 = vmatprep.mubr.f32.mxu0 0.0
    %3458 = vmatmul.mubr.f32.gmra.mrb[0].mxu0 %v3280
    %v3459 = vpop.f32.mrb[0].mxu0
    %v3460 = vadd.f32 %v3155, %v3459
    %v3461 = vpop.f32.mrb[0].mxu0
    %3462 = vmatprep.mubr.f32.mxu0 0.0
    %3463 = vmatmul.mubr.f32.gmra.mrb[0].mxu0 %v3283
    %v3464 = vpop.f32.mrb[0].mxu0
    %v3465 = vadd.f32 %v3160, %v3464
    %v3466 = vpop.f32.mrb[0].mxu0
    %3467 = vmatprep.mubr.f32.mxu0 0.0
    %3468 = vmatmul.mubr.f32.gmra.mrb[0].mxu0 %v3286
    %v3469 = vpop.f32.mrb[0].mxu0
    %v3470 = vadd.f32 %v3165, %v3469
    %v3471 = vpop.f32.mrb[0].mxu0
    %3472 = vmatprep.mubr.f32.mxu0 0.0
    %3473 = vmatmul.mubr.f32.gmra.mrb[0].mxu0 %v3289
    %v3474 = vpop.f32.mrb[0].mxu0
    %v3475 = vadd.f32 %v3170, %v3474
    %v3476 = vpop.f32.mrb[0].mxu0
    %3477 = vmatprep.mubr.f32.mxu0 0.0
    %3478 = vmatmul.mubr.f32.gmra.mrb[0].mxu0 %v3292
    %v3479 = vpop.f32.mrb[0].mxu0
    %v3480 = vadd.f32 %v3175, %v3479
    %v3481 = vpop.f32.mrb[0].mxu0
    %3482 = vmatprep.mubr.f32.mxu0 0.0
    %3483 = vmatmul.mubr.f32.gmra.mrb[0].mxu0 %v3295
    %v3484 = vpop.f32.mrb[0].mxu0
    %v3485 = vadd.f32 %v3180, %v3484
    %v3486 = vpop.f32.mrb[0].mxu0
    %3487 = vmatprep.mubr.f32.mxu0 0.0
    %3488 = vmatmul.mubr.f32.gmra.mrb[0].mxu0 %v3298
    %v3489 = vpop.f32.mrb[0].mxu0
    %v3490 = vadd.f32 %v3185, %v3489
    %v3491 = vpop.f32.mrb[0].mxu0
    %3492 = vmatprep.mubr.f32.mxu0 0.0
    %3493 = vmatmul.mubr.f32.gmra.mrb[0].mxu0 %v3301
    %v3494 = vpop.f32.mrb[0].mxu0
    %v3495 = vadd.f32 %v3190, %v3494
    %v3496 = vpop.f32.mrb[0].mxu0
    %3497 = vmatprep.mubr.f32.mxu0 0.0
    %3498 = vmatmul.mubr.f32.gmra.mrb[0].mxu0 %v3304
    %v3499 = vpop.f32.mrb[0].mxu0
    %v3500 = vadd.f32 %v3195, %v3499
    %v3501 = vpop.f32.mrb[0].mxu0
    %3502 = vmatprep.mubr.f32.mxu0 0.0
    %3503 = vmatmul.mubr.f32.gmra.mrb[0].mxu0 %v3307
    %v3504 = vpop.f32.mrb[0].mxu0
    %v3505 = vadd.f32 %v3200, %v3504
    %v3506 = vpop.f32.mrb[0].mxu0
    %3507 = vmatprep.mubr.f32.mxu0 0.0
    %3508 = vmatmul.mubr.f32.gmra.mrb[0].mxu0 %v3310
    %v3509 = vpop.f32.mrb[0].mxu0
    %v3510 = vadd.f32 %v3205, %v3509
    %v3511 = vpop.f32.mrb[0].mxu0
    %3512 = vmatprep.mubr.f32.mxu0 0.0
    %3513 = vmatmul.mubr.f32.gmra.mrb[0].mxu0 %v3313
    %v3514 = vpop.f32.mrb[0].mxu0
    %v3515 = vadd.f32 %v3210, %v3514
    %v3516 = vpop.f32.mrb[0].mxu0
    %3517 = vmatprep.mubr.f32.mxu0 0.0
    %3518 = vmatmul.mubr.f32.gmra.mrb[0].mxu0 %v3316
    %v3519 = vpop.f32.mrb[0].mxu0
    %v3520 = vadd.f32 %v3215, %v3519
    %v3521 = vpop.f32.mrb[0].mxu0
    %3522 = vmatprep.mubr.f32.mxu0 0.0
    %3523 = vmatmul.mubr.f32.gmra.mrb[0].mxu0 %v3319
    %v3524 = vpop.f32.mrb[0].mxu0
    %v3525 = vadd.f32 %v3220, %v3524
    %v3526 = vpop.f32.mrb[0].mxu0
    %3527 = vmatprep.mubr.f32.mxu0 0.0
    %3528 = vmatmul.mubr.f32.gmra.mrb[0].mxu0 %v3322
    %v3529 = vpop.f32.mrb[0].mxu0
    %v3530 = vadd.f32 %v3225, %v3529
    %v3531 = vpop.f32.mrb[0].mxu0
    %3532 = vmatprep.mubr.f32.mxu0 0.0
    %3533 = vmatmul.mubr.f32.gmra.mrb[0].mxu0 %v3325
    %v3534 = vpop.f32.mrb[0].mxu0
    %v3535 = vadd.f32 %v3230, %v3534
    %v3536 = vpop.f32.mrb[0].mxu0
    %3537 = vmatprep.mubr.f32.mxu0 0.0
    %3538 = vmatmul.mubr.f32.gmra.mrb[0].mxu0 %v3328
    %v3539 = vpop.f32.mrb[0].mxu0
    %v3540 = vadd.f32 %v3235, %v3539
    %v3541 = vpop.f32.mrb[0].mxu0
    %3542 = vmatprep.mubr.f32.mxu0 0.0
    %3543 = vmatmul.mubr.f32.gmra.mrb[0].mxu0 %v3331
    %v3544 = vpop.f32.mrb[0].mxu0
    %v3545 = vadd.f32 %v3240, %v3544
    %v3546 = vpop.f32.mrb[0].mxu0
    %3547 = vdwg.mxu0
    %v3549 = vsel %vm144, %v2160, 0
    %v3552 = vsel %vm144, %v2161, 0
    %v3555 = vsel %vm144, %v2162, 0
    %v3558 = vsel %vm144, %v2163, 0
    %v3561 = vsel %vm144, %v2164, 0
    %v3564 = vsel %vm144, %v2165, 0
    %v3567 = vsel %vm144, %v2166, 0
    %v3570 = vsel %vm144, %v2167, 0
    %v3573 = vsel %vm144, %v2168, 0
    %v3576 = vsel %vm144, %v2169, 0
    %v3579 = vsel %vm144, %v2170, 0
    %v3582 = vsel %vm144, %v2171, 0
    %v3585 = vsel %vm144, %v2172, 0
    %v3588 = vsel %vm144, %v2173, 0
    %v3591 = vsel %vm144, %v2174, 0
    %v3594 = vsel %vm144, %v2175, 0
    %v3597 = vsel %vm144, %v2176, 0
    %v3600 = vsel %vm144, %v2177, 0
    %v3603 = vsel %vm144, %v2178, 0
    %v3606 = vsel %vm144, %v2179, 0
    %v3609 = vsel %vm144, %v2180, 0
    %v3612 = vsel %vm144, %v2181, 0
    %v3615 = vsel %vm144, %v2182, 0
    %v3618 = vsel %vm144, %v2183, 0
    %v3621 = vsel %vm144, %v2184, 0
    %v3624 = vsel %vm144, %v2185, 0
    %v3627 = vsel %vm144, %v2186, 0
    %v3630 = vsel %vm144, %v2187, 0
    %v3633 = vsel %vm144, %v2188, 0
    %v3636 = vsel %vm144, %v2189, 0
    %3638 = vmatprep.subr.mxu0 0.0
    %3639 = vmatpush1.msra.mxu0 %v2930
    %3640 = vmatprep.subr.mxu0 0.0
    %3641 = vmatpush1.msra.mxu0 %v2931
    %3642 = vmatprep.subr.mxu0 0.0
    %3643 = vmatpush1.msra.mxu0 %v2932
    %3644 = vmatprep.subr.mxu0 0.0
    %3645 = vmatpush1.msra.mxu0 %v2933
    %3646 = vmatprep.subr.mxu0 0.0
    %3647 = vmatpush1.msra.mxu0 0.0
    %3648 = vmatprep.subr.mxu0 0.0
    %3649 = vmatpush1.msra.mxu0 0.0
    %3650 = vmatprep.subr.mxu0 0.0
    %3651 = vmatpush1.msra.mxu0 0.0
    %3652 = vmatprep.subr.mxu0 0.0
    %3653 = vmatpush1.msra.mxu0 0.0
    %3654 = vmatprep.subr.mxu0 0.0
    %3655 = vmatpush1.msra.mxu0 0.0
    %3656 = vmatprep.subr.mxu0 0.0
    %3657 = vmatpush1.msra.mxu0 0.0
    %3658 = vmatprep.subr.mxu0 0.0
    %3659 = vmatpush1.msra.mxu0 0.0
    %3660 = vmatprep.subr.mxu0 0.0
    %3661 = vmatpush1.msra.mxu0 0.0
    %3662 = vmatprep.subr.mxu0 0.0
    %3663 = vmatpush1.msra.mxu0 0.0
    %3664 = vmatprep.subr.mxu0 0.0
    %3665 = vmatpush1.msra.mxu0 0.0
    %3666 = vmatprep.subr.mxu0 0.0
    %3667 = vmatpush1.msra.mxu0 0.0
    %3668 = vmatprep.subr.mxu0 0.0
    %3669 = vmatpush1.msra.mxu0 0.0
    %3670 = vmatprep.subr.mxu0 0.0
    %3671 = vmatpush1.msra.mxu0 0.0
    %3672 = vmatprep.subr.mxu0 0.0
    %3673 = vmatpush1.msra.mxu0 0.0
    %3674 = vmatprep.subr.mxu0 0.0
    %3675 = vmatpush1.msra.mxu0 0.0
    %3676 = vmatprep.subr.mxu0 0.0
    %3677 = vmatpush1.msra.mxu0 0.0
    %3678 = vmatprep.subr.mxu0 0.0
    %3679 = vmatpush1.msra.mxu0 0.0
    %3680 = vmatprep.subr.mxu0 0.0
    %3681 = vmatpush1.msra.mxu0 0.0
    %3682 = vmatprep.subr.mxu0 0.0
    %3683 = vmatpush1.msra.mxu0 0.0
    %3684 = vmatprep.subr.mxu0 0.0
    %3685 = vmatpush1.msra.mxu0 0.0
    %3686 = vmatprep.subr.mxu0 0.0
    %3687 = vmatpush1.msra.mxu0 0.0
    %3688 = vmatprep.subr.mxu0 0.0
    %3689 = vmatpush1.msra.mxu0 0.0
    %3690 = vmatprep.subr.mxu0 0.0
    %3691 = vmatpush1.msra.mxu0 0.0
    %3692 = vmatprep.subr.mxu0 0.0
    %3693 = vmatpush1.msra.mxu0 0.0
    %3694 = vmatprep.subr.mxu0 0.0
    %3695 = vmatpush1.msra.mxu0 0.0
    %3696 = vmatprep.subr.mxu0 0.0
    %3697 = vmatpush1.msra.mxu0 0.0
    %3698 = vmatprep.subr.mxu0 0.0
    %3699 = vmatpush1.msra.mxu0 0.0
    %3700 = vmatprep.subr.mxu0 0.0
    %3701 = vmatpush1.msra.mxu0 0.0
    %3702 = vmatprep.mubr.f32.mxu0 0.0
    %3703 = vmatmul.mubr.f32.gmra.mrb[0].mxu0 %v3549
    %v3704 = vpop.f32.mrb[0].mxu0
    %v3705 = vadd.f32 0.0, %v3704
    %v3706 = vpop.f32.mrb[0].mxu0
    %3707 = vmatprep.mubr.f32.mxu0 0.0
    %3708 = vmatmul.mubr.f32.gmra.mrb[0].mxu0 %v3552
    %v3709 = vpop.f32.mrb[0].mxu0
    %v3710 = vadd.f32 0.0, %v3709
    %v3711 = vpop.f32.mrb[0].mxu0
    %3712 = vmatprep.mubr.f32.mxu0 0.0
    %3713 = vmatmul.mubr.f32.gmra.mrb[0].mxu0 %v3555
    %v3714 = vpop.f32.mrb[0].mxu0
    %v3715 = vadd.f32 0.0, %v3714
    %v3716 = vpop.f32.mrb[0].mxu0
    %3717 = vmatprep.mubr.f32.mxu0 0.0
    %3718 = vmatmul.mubr.f32.gmra.mrb[0].mxu0 %v3558
    %v3719 = vpop.f32.mrb[0].mxu0
    %v3720 = vadd.f32 0.0, %v3719
    %v3721 = vpop.f32.mrb[0].mxu0
    %3722 = vmatprep.mubr.f32.mxu0 0.0
    %3723 = vmatmul.mubr.f32.gmra.mrb[0].mxu0 %v3561
    %v3724 = vpop.f32.mrb[0].mxu0
    %v3725 = vadd.f32 0.0, %v3724
    %v3726 = vpop.f32.mrb[0].mxu0
    %3727 = vmatprep.mubr.f32.mxu0 0.0
    %3728 = vmatmul.mubr.f32.gmra.mrb[0].mxu0 %v3564
    %v3729 = vpop.f32.mrb[0].mxu0
    %v3730 = vadd.f32 0.0, %v3729
    %v3731 = vpop.f32.mrb[0].mxu0
    %3732 = vmatprep.mubr.f32.mxu0 0.0
    %3733 = vmatmul.mubr.f32.gmra.mrb[0].mxu0 %v3567
    %v3734 = vpop.f32.mrb[0].mxu0
    %v3735 = vadd.f32 0.0, %v3734
    %v3736 = vpop.f32.mrb[0].mxu0
    %3737 = vmatprep.mubr.f32.mxu0 0.0
    %3738 = vmatmul.mubr.f32.gmra.mrb[0].mxu0 %v3570
    %v3739 = vpop.f32.mrb[0].mxu0
    %v3740 = vadd.f32 0.0, %v3739
    %v3741 = vpop.f32.mrb[0].mxu0
    %3742 = vmatprep.mubr.f32.mxu0 0.0
    %3743 = vmatmul.mubr.f32.gmra.mrb[0].mxu0 %v3573
    %v3744 = vpop.f32.mrb[0].mxu0
    %v3745 = vadd.f32 0.0, %v3744
    %v3746 = vpop.f32.mrb[0].mxu0
    %3747 = vmatprep.mubr.f32.mxu0 0.0
    %3748 = vmatmul.mubr.f32.gmra.mrb[0].mxu0 %v3576
    %v3749 = vpop.f32.mrb[0].mxu0
    %v3750 = vadd.f32 0.0, %v3749
    %v3751 = vpop.f32.mrb[0].mxu0
    %3752 = vmatprep.mubr.f32.mxu0 0.0
    %3753 = vmatmul.mubr.f32.gmra.mrb[0].mxu0 %v3579
    %v3754 = vpop.f32.mrb[0].mxu0
    %v3755 = vadd.f32 0.0, %v3754
    %v3756 = vpop.f32.mrb[0].mxu0
    %3757 = vmatprep.mubr.f32.mxu0 0.0
    %3758 = vmatmul.mubr.f32.gmra.mrb[0].mxu0 %v3582
    %v3759 = vpop.f32.mrb[0].mxu0
    %v3760 = vadd.f32 0.0, %v3759
    %v3761 = vpop.f32.mrb[0].mxu0
    %3762 = vmatprep.mubr.f32.mxu0 0.0
    %3763 = vmatmul.mubr.f32.gmra.mrb[0].mxu0 %v3585
    %v3764 = vpop.f32.mrb[0].mxu0
    %v3765 = vadd.f32 0.0, %v3764
    %v3766 = vpop.f32.mrb[0].mxu0
    %3767 = vmatprep.mubr.f32.mxu0 0.0
    %3768 = vmatmul.mubr.f32.gmra.mrb[0].mxu0 %v3588
    %v3769 = vpop.f32.mrb[0].mxu0
    %v3770 = vadd.f32 0.0, %v3769
    %v3771 = vpop.f32.mrb[0].mxu0
    %3772 = vmatprep.mubr.f32.mxu0 0.0
    %3773 = vmatmul.mubr.f32.gmra.mrb[0].mxu0 %v3591
    %v3774 = vpop.f32.mrb[0].mxu0
    %v3775 = vadd.f32 0.0, %v3774
    %v3776 = vpop.f32.mrb[0].mxu0
    %3777 = vmatprep.mubr.f32.mxu0 0.0
    %3778 = vmatmul.mubr.f32.gmra.mrb[0].mxu0 %v3594
    %v3779 = vpop.f32.mrb[0].mxu0
    %v3780 = vadd.f32 0.0, %v3779
    %v3781 = vpop.f32.mrb[0].mxu0
    %3782 = vmatprep.mubr.f32.mxu0 0.0
    %3783 = vmatmul.mubr.f32.gmra.mrb[0].mxu0 %v3597
    %v3784 = vpop.f32.mrb[0].mxu0
    %v3785 = vadd.f32 0.0, %v3784
    %v3786 = vpop.f32.mrb[0].mxu0
    %3787 = vmatprep.mubr.f32.mxu0 0.0
    %3788 = vmatmul.mubr.f32.gmra.mrb[0].mxu0 %v3600
    %v3789 = vpop.f32.mrb[0].mxu0
    %v3790 = vadd.f32 0.0, %v3789
    %v3791 = vpop.f32.mrb[0].mxu0
    %3792 = vmatprep.mubr.f32.mxu0 0.0
    %3793 = vmatmul.mubr.f32.gmra.mrb[0].mxu0 %v3603
    %v3794 = vpop.f32.mrb[0].mxu0
    %v3795 = vadd.f32 0.0, %v3794
    %v3796 = vpop.f32.mrb[0].mxu0
    %3797 = vmatprep.mubr.f32.mxu0 0.0
    %3798 = vmatmul.mubr.f32.gmra.mrb[0].mxu0 %v3606
    %v3799 = vpop.f32.mrb[0].mxu0
    %v3800 = vadd.f32 0.0, %v3799
    %v3801 = vpop.f32.mrb[0].mxu0
    %3802 = vmatprep.mubr.f32.mxu0 0.0
    %3803 = vmatmul.mubr.f32.gmra.mrb[0].mxu0 %v3609
    %v3804 = vpop.f32.mrb[0].mxu0
    %v3805 = vadd.f32 0.0, %v3804
    %v3806 = vpop.f32.mrb[0].mxu0
    %3807 = vmatprep.mubr.f32.mxu0 0.0
    %3808 = vmatmul.mubr.f32.gmra.mrb[0].mxu0 %v3612
    %v3809 = vpop.f32.mrb[0].mxu0
    %v3810 = vadd.f32 0.0, %v3809
    %v3811 = vpop.f32.mrb[0].mxu0
    %3812 = vmatprep.mubr.f32.mxu0 0.0
    %3813 = vmatmul.mubr.f32.gmra.mrb[0].mxu0 %v3615
    %v3814 = vpop.f32.mrb[0].mxu0
    %v3815 = vadd.f32 0.0, %v3814
    %v3816 = vpop.f32.mrb[0].mxu0
    %3817 = vmatprep.mubr.f32.mxu0 0.0
    %3818 = vmatmul.mubr.f32.gmra.mrb[0].mxu0 %v3618
    %v3819 = vpop.f32.mrb[0].mxu0
    %v3820 = vadd.f32 0.0, %v3819
    %v3821 = vpop.f32.mrb[0].mxu0
    %3822 = vmatprep.mubr.f32.mxu0 0.0
    %3823 = vmatmul.mubr.f32.gmra.mrb[0].mxu0 %v3621
    %v3824 = vpop.f32.mrb[0].mxu0
    %v3825 = vadd.f32 0.0, %v3824
    %v3826 = vpop.f32.mrb[0].mxu0
    %3827 = vmatprep.mubr.f32.mxu0 0.0
    %3828 = vmatmul.mubr.f32.gmra.mrb[0].mxu0 %v3624
    %v3829 = vpop.f32.mrb[0].mxu0
    %v3830 = vadd.f32 0.0, %v3829
    %v3831 = vpop.f32.mrb[0].mxu0
    %3832 = vmatprep.mubr.f32.mxu0 0.0
    %3833 = vmatmul.mubr.f32.gmra.mrb[0].mxu0 %v3627
    %v3834 = vpop.f32.mrb[0].mxu0
    %v3835 = vadd.f32 0.0, %v3834
    %v3836 = vpop.f32.mrb[0].mxu0
    %3837 = vmatprep.mubr.f32.mxu0 0.0
    %3838 = vmatmul.mubr.f32.gmra.mrb[0].mxu0 %v3630
    %v3839 = vpop.f32.mrb[0].mxu0
    %v3840 = vadd.f32 0.0, %v3839
    %v3841 = vpop.f32.mrb[0].mxu0
    %3842 = vmatprep.mubr.f32.mxu0 0.0
    %3843 = vmatmul.mubr.f32.gmra.mrb[0].mxu0 %v3633
    %v3844 = vpop.f32.mrb[0].mxu0
    %v3845 = vadd.f32 0.0, %v3844
    %v3846 = vpop.f32.mrb[0].mxu0
    %3847 = vmatprep.mubr.f32.mxu0 0.0
    %3848 = vmatmul.mubr.f32.gmra.mrb[0].mxu0 %v3636
    %v3849 = vpop.f32.mrb[0].mxu0
    %v3850 = vadd.f32 0.0, %v3849
    %v3851 = vpop.f32.mrb[0].mxu0
    %3852 = vdwg.mxu0
    %v3853 = vadd.f32 %v3400, %v3705
    %v3854 = vadd.f32 %v3405, %v3710
    %v3855 = vadd.f32 %v3410, %v3715
    %v3856 = vadd.f32 %v3415, %v3720
    %v3857 = vadd.f32 %v3420, %v3725
    %v3858 = vadd.f32 %v3425, %v3730
    %v3859 = vadd.f32 %v3430, %v3735
    %v3860 = vadd.f32 %v3435, %v3740
    %v3861 = vadd.f32 %v3440, %v3745
    %v3862 = vadd.f32 %v3445, %v3750
    %v3863 = vadd.f32 %v3450, %v3755
    %v3864 = vadd.f32 %v3455, %v3760
    %v3865 = vadd.f32 %v3460, %v3765
    %v3866 = vadd.f32 %v3465, %v3770
    %v3867 = vadd.f32 %v3470, %v3775
    %v3868 = vadd.f32 %v3475, %v3780
    %v3869 = vadd.f32 %v3480, %v3785
    %v3870 = vadd.f32 %v3485, %v3790
    %v3871 = vadd.f32 %v3490, %v3795
    %v3872 = vadd.f32 %v3495, %v3800
    %v3873 = vadd.f32 %v3500, %v3805
    %v3874 = vadd.f32 %v3505, %v3810
    %v3875 = vadd.f32 %v3510, %v3815
    %v3876 = vadd.f32 %v3515, %v3820
    %v3877 = vadd.f32 %v3520, %v3825
    %v3878 = vadd.f32 %v3525, %v3830
    %v3879 = vadd.f32 %v3530, %v3835
    %v3880 = vadd.f32 %v3535, %v3840
    %v3881 = vadd.f32 %v3540, %v3845
    %v3882 = vadd.f32 %v3545, %v3850
    %v3883 = vlaneseq
    %v3884 = vshrl.u32 %v3883, 7
    %v3885 = vsub.s32 4, %v3884
    %v3886 = vrot.slane %v130, %v3885
    %v3887 = vadd.f32 %v3853, %v3886
    %v3888 = vadd.f32 %v3854, %v3886
    %v3889 = vadd.f32 %v3855, %v3886
    %v3890 = vadd.f32 %v3856, %v3886
    %v3891 = vadd.f32 %v3857, %v3886
    %v3892 = vadd.f32 %v3858, %v3886
    %v3893 = vadd.f32 %v3859, %v3886
    %v3894 = vadd.f32 %v3860, %v3886
    %v3895 = vadd.f32 %v3861, %v3886
    %v3896 = vadd.f32 %v3862, %v3886
    %v3897 = vadd.f32 %v3863, %v3886
    %v3898 = vadd.f32 %v3864, %v3886
    %v3899 = vadd.f32 %v3865, %v3886
    %v3900 = vadd.f32 %v3866, %v3886
    %v3901 = vadd.f32 %v3867, %v3886
    %v3902 = vadd.f32 %v3868, %v3886
    %v3903 = vadd.f32 %v3869, %v3886
    %v3904 = vadd.f32 %v3870, %v3886
    %v3905 = vadd.f32 %v3871, %v3886
    %v3906 = vadd.f32 %v3872, %v3886
    %v3907 = vadd.f32 %v3873, %v3886
    %v3908 = vadd.f32 %v3874, %v3886
    %v3909 = vadd.f32 %v3875, %v3886
    %v3910 = vadd.f32 %v3876, %v3886
    %v3911 = vadd.f32 %v3877, %v3886
    %v3912 = vadd.f32 %v3878, %v3886
    %v3913 = vadd.f32 %v3879, %v3886
    %v3914 = vadd.f32 %v3880, %v3886
    %v3915 = vadd.f32 %v3881, %v3886
    %v3916 = vadd.f32 %v3882, %v3886
    %v3917 = vmax.f32 %v3887, 0.0
    %v3918 = vmax.f32 %v3888, 0.0
    %v3919 = vmax.f32 %v3889, 0.0
    %v3920 = vmax.f32 %v3890, 0.0
    %v3921 = vmax.f32 %v3891, 0.0
    %v3922 = vmax.f32 %v3892, 0.0
    %v3923 = vmax.f32 %v3893, 0.0
    %v3924 = vmax.f32 %v3894, 0.0
    %v3925 = vmax.f32 %v3895, 0.0
    %v3926 = vmax.f32 %v3896, 0.0
    %v3927 = vmax.f32 %v3897, 0.0
    %v3928 = vmax.f32 %v3898, 0.0
    %v3929 = vmax.f32 %v3899, 0.0
    %v3930 = vmax.f32 %v3900, 0.0
    %v3931 = vmax.f32 %v3901, 0.0
    %v3932 = vmax.f32 %v3902, 0.0
    %v3933 = vmax.f32 %v3903, 0.0
    %v3934 = vmax.f32 %v3904, 0.0
    %v3935 = vmax.f32 %v3905, 0.0
    %v3936 = vmax.f32 %v3906, 0.0
    %v3937 = vmax.f32 %v3907, 0.0
    %v3938 = vmax.f32 %v3908, 0.0
    %v3939 = vmax.f32 %v3909, 0.0
    %v3940 = vmax.f32 %v3910, 0.0
    %v3941 = vmax.f32 %v3911, 0.0
    %v3942 = vmax.f32 %v3912, 0.0
    %v3943 = vmax.f32 %v3913, 0.0
    %v3944 = vmax.f32 %v3914, 0.0
    %v3945 = vmax.f32 %v3915, 0.0
    %v3946 = vmax.f32 %v3916, 0.0
    %v3947 = vlaneseq
    %v3948 = vshrl.u32 %v3947, 7
    %v3949 = vsub.s32 5, %v3948
    %v3950 = vrot.slane %v130, %v3949
    %v3952 = vsel %vm144, %v3917, 0
    %v3955 = vsel %vm144, %v3918, 0
    %v3958 = vsel %vm144, %v3919, 0
    %v3961 = vsel %vm144, %v3920, 0
    %v3964 = vsel %vm144, %v3921, 0
    %v3967 = vsel %vm144, %v3922, 0
    %v3970 = vsel %vm144, %v3923, 0
    %v3973 = vsel %vm144, %v3924, 0
    %v3976 = vsel %vm144, %v3925, 0
    %v3979 = vsel %vm144, %v3926, 0
    %v3982 = vsel %vm144, %v3927, 0
    %v3985 = vsel %vm144, %v3928, 0
    %v3988 = vsel %vm144, %v3929, 0
    %v3991 = vsel %vm144, %v3930, 0
    %v3994 = vsel %vm144, %v3931, 0
    %v3997 = vsel %vm144, %v3932, 0
    %v4000 = vsel %vm144, %v3933, 0
    %v4003 = vsel %vm144, %v3934, 0
    %v4006 = vsel %vm144, %v3935, 0
    %v4009 = vsel %vm144, %v3936, 0
    %v4012 = vsel %vm144, %v3937, 0
    %v4015 = vsel %vm144, %v3938, 0
    %v4018 = vsel %vm144, %v3939, 0
    %v4021 = vsel %vm144, %v3940, 0
    %v4024 = vsel %vm144, %v3941, 0
    %v4027 = vsel %vm144, %v3942, 0
    %v4030 = vsel %vm144, %v3943, 0
    %v4033 = vsel %vm144, %v3944, 0
    %v4036 = vsel %vm144, %v3945, 0
    %v4039 = vsel %vm144, %v3946, 0
    %4041 = vmatprep.subr.mxu0 0.0
    %4042 = vmatpush1.msra.mxu0 %v2934
    %4043 = vmatprep.subr.mxu0 0.0
    %4044 = vmatpush1.msra.mxu0 %v2935
    %4045 = vmatprep.subr.mxu0 0.0
    %4046 = vmatpush1.msra.mxu0 %v2936
    %4047 = vmatprep.subr.mxu0 0.0
    %4048 = vmatpush1.msra.mxu0 %v2937
    %4049 = vmatprep.subr.mxu0 0.0
    %4050 = vmatpush1.msra.mxu0 0.0
    %4051 = vmatprep.subr.mxu0 0.0
    %4052 = vmatpush1.msra.mxu0 0.0
    %4053 = vmatprep.subr.mxu0 0.0
    %4054 = vmatpush1.msra.mxu0 0.0
    %4055 = vmatprep.subr.mxu0 0.0
    %4056 = vmatpush1.msra.mxu0 0.0
    %4057 = vmatprep.subr.mxu0 0.0
    %4058 = vmatpush1.msra.mxu0 0.0
    %4059 = vmatprep.subr.mxu0 0.0
    %4060 = vmatpush1.msra.mxu0 0.0
    %4061 = vmatprep.subr.mxu0 0.0
    %4062 = vmatpush1.msra.mxu0 0.0
    %4063 = vmatprep.subr.mxu0 0.0
    %4064 = vmatpush1.msra.mxu0 0.0
    %4065 = vmatprep.subr.mxu0 0.0
    %4066 = vmatpush1.msra.mxu0 0.0
    %4067 = vmatprep.subr.mxu0 0.0
    %4068 = vmatpush1.msra.mxu0 0.0
    %4069 = vmatprep.subr.mxu0 0.0
    %4070 = vmatpush1.msra.mxu0 0.0
    %4071 = vmatprep.subr.mxu0 0.0
    %4072 = vmatpush1.msra.mxu0 0.0
    %4073 = vmatprep.subr.mxu0 0.0
    %4074 = vmatpush1.msra.mxu0 0.0
    %4075 = vmatprep.subr.mxu0 0.0
    %4076 = vmatpush1.msra.mxu0 0.0
    %4077 = vmatprep.subr.mxu0 0.0
    %4078 = vmatpush1.msra.mxu0 0.0
    %4079 = vmatprep.subr.mxu0 0.0
    %4080 = vmatpush1.msra.mxu0 0.0
    %4081 = vmatprep.subr.mxu0 0.0
    %4082 = vmatpush1.msra.mxu0 0.0
    %4083 = vmatprep.subr.mxu0 0.0
    %4084 = vmatpush1.msra.mxu0 0.0
    %4085 = vmatprep.subr.mxu0 0.0
    %4086 = vmatpush1.msra.mxu0 0.0
    %4087 = vmatprep.subr.mxu0 0.0
    %4088 = vmatpush1.msra.mxu0 0.0
    %4089 = vmatprep.subr.mxu0 0.0
    %4090 = vmatpush1.msra.mxu0 0.0
    %4091 = vmatprep.subr.mxu0 0.0
    %4092 = vmatpush1.msra.mxu0 0.0
    %4093 = vmatprep.subr.mxu0 0.0
    %4094 = vmatpush1.msra.mxu0 0.0
    %4095 = vmatprep.subr.mxu0 0.0
    %4096 = vmatpush1.msra.mxu0 0.0
    %4097 = vmatprep.subr.mxu0 0.0
    %4098 = vmatpush1.msra.mxu0 0.0
    %4099 = vmatprep.subr.mxu0 0.0
    %4100 = vmatpush1.msra.mxu0 0.0
    %4101 = vmatprep.subr.mxu0 0.0
    %4102 = vmatpush1.msra.mxu0 0.0
    %4103 = vmatprep.subr.mxu0 0.0
    %4104 = vmatpush1.msra.mxu0 0.0
    %4105 = vmatprep.mubr.f32.mxu0 0.0
    %4106 = vmatmul.mubr.f32.gmra.mrb[0].mxu0 %v3952
    %v4107 = vpop.f32.mrb[0].mxu0
    %v4108 = vadd.f32 %v3950, %v4107
    %v4109 = vpop.f32.mrb[0].mxu0
    %4110 = vmatprep.mubr.f32.mxu0 0.0
    %4111 = vmatmul.mubr.f32.gmra.mrb[0].mxu0 %v3955
    %v4112 = vpop.f32.mrb[0].mxu0
    %v4113 = vadd.f32 %v3950, %v4112
    %v4114 = vpop.f32.mrb[0].mxu0
    %4115 = vmatprep.mubr.f32.mxu0 0.0
    %4116 = vmatmul.mubr.f32.gmra.mrb[0].mxu0 %v3958
    %v4117 = vpop.f32.mrb[0].mxu0
    %v4118 = vadd.f32 %v3950, %v4117
    %v4119 = vpop.f32.mrb[0].mxu0
    %4120 = vmatprep.mubr.f32.mxu0 0.0
    %4121 = vmatmul.mubr.f32.gmra.mrb[0].mxu0 %v3961
    %v4122 = vpop.f32.mrb[0].mxu0
    %v4123 = vadd.f32 %v3950, %v4122
    %v4124 = vpop.f32.mrb[0].mxu0
    %4125 = vmatprep.mubr.f32.mxu0 0.0
    %4126 = vmatmul.mubr.f32.gmra.mrb[0].mxu0 %v3964
    %v4127 = vpop.f32.mrb[0].mxu0
    %v4128 = vadd.f32 %v3950, %v4127
    %v4129 = vpop.f32.mrb[0].mxu0
    %4130 = vmatprep.mubr.f32.mxu0 0.0
    %4131 = vmatmul.mubr.f32.gmra.mrb[0].mxu0 %v3967
    %v4132 = vpop.f32.mrb[0].mxu0
    %v4133 = vadd.f32 %v3950, %v4132
    %v4134 = vpop.f32.mrb[0].mxu0
    %4135 = vmatprep.mubr.f32.mxu0 0.0
    %4136 = vmatmul.mubr.f32.gmra.mrb[0].mxu0 %v3970
    %v4137 = vpop.f32.mrb[0].mxu0
    %v4138 = vadd.f32 %v3950, %v4137
    %v4139 = vpop.f32.mrb[0].mxu0
    %4140 = vmatprep.mubr.f32.mxu0 0.0
    %4141 = vmatmul.mubr.f32.gmra.mrb[0].mxu0 %v3973
    %v4142 = vpop.f32.mrb[0].mxu0
    %v4143 = vadd.f32 %v3950, %v4142
    %v4144 = vpop.f32.mrb[0].mxu0
    %4145 = vmatprep.mubr.f32.mxu0 0.0
    %4146 = vmatmul.mubr.f32.gmra.mrb[0].mxu0 %v3976
    %v4147 = vpop.f32.mrb[0].mxu0
    %v4148 = vadd.f32 %v3950, %v4147
    %v4149 = vpop.f32.mrb[0].mxu0
    %4150 = vmatprep.mubr.f32.mxu0 0.0
    %4151 = vmatmul.mubr.f32.gmra.mrb[0].mxu0 %v3979
    %v4152 = vpop.f32.mrb[0].mxu0
    %v4153 = vadd.f32 %v3950, %v4152
    %v4154 = vpop.f32.mrb[0].mxu0
    %4155 = vmatprep.mubr.f32.mxu0 0.0
    %4156 = vmatmul.mubr.f32.gmra.mrb[0].mxu0 %v3982
    %v4157 = vpop.f32.mrb[0].mxu0
    %v4158 = vadd.f32 %v3950, %v4157
    %v4159 = vpop.f32.mrb[0].mxu0
    %4160 = vmatprep.mubr.f32.mxu0 0.0
    %4161 = vmatmul.mubr.f32.gmra.mrb[0].mxu0 %v3985
    %v4162 = vpop.f32.mrb[0].mxu0
    %v4163 = vadd.f32 %v3950, %v4162
    %v4164 = vpop.f32.mrb[0].mxu0
    %4165 = vmatprep.mubr.f32.mxu0 0.0
    %4166 = vmatmul.mubr.f32.gmra.mrb[0].mxu0 %v3988
    %v4167 = vpop.f32.mrb[0].mxu0
    %v4168 = vadd.f32 %v3950, %v4167
    %v4169 = vpop.f32.mrb[0].mxu0
    %4170 = vmatprep.mubr.f32.mxu0 0.0
    %4171 = vmatmul.mubr.f32.gmra.mrb[0].mxu0 %v3991
    %v4172 = vpop.f32.mrb[0].mxu0
    %v4173 = vadd.f32 %v3950, %v4172
    %v4174 = vpop.f32.mrb[0].mxu0
    %4175 = vmatprep.mubr.f32.mxu0 0.0
    %4176 = vmatmul.mubr.f32.gmra.mrb[0].mxu0 %v3994
    %v4177 = vpop.f32.mrb[0].mxu0
    %v4178 = vadd.f32 %v3950, %v4177
    %v4179 = vpop.f32.mrb[0].mxu0
    %4180 = vmatprep.mubr.f32.mxu0 0.0
    %4181 = vmatmul.mubr.f32.gmra.mrb[0].mxu0 %v3997
    %v4182 = vpop.f32.mrb[0].mxu0
    %v4183 = vadd.f32 %v3950, %v4182
    %v4184 = vpop.f32.mrb[0].mxu0
    %4185 = vmatprep.mubr.f32.mxu0 0.0
    %4186 = vmatmul.mubr.f32.gmra.mrb[0].mxu0 %v4000
    %v4187 = vpop.f32.mrb[0].mxu0
    %v4188 = vadd.f32 %v3950, %v4187
    %v4189 = vpop.f32.mrb[0].mxu0
    %4190 = vmatprep.mubr.f32.mxu0 0.0
    %4191 = vmatmul.mubr.f32.gmra.mrb[0].mxu0 %v4003
    %v4192 = vpop.f32.mrb[0].mxu0
    %v4193 = vadd.f32 %v3950, %v4192
    %v4194 = vpop.f32.mrb[0].mxu0
    %4195 = vmatprep.mubr.f32.mxu0 0.0
    %4196 = vmatmul.mubr.f32.gmra.mrb[0].mxu0 %v4006
    %v4197 = vpop.f32.mrb[0].mxu0
    %v4198 = vadd.f32 %v3950, %v4197
    %v4199 = vpop.f32.mrb[0].mxu0
    %4200 = vmatprep.mubr.f32.mxu0 0.0
    %4201 = vmatmul.mubr.f32.gmra.mrb[0].mxu0 %v4009
    %v4202 = vpop.f32.mrb[0].mxu0
    %v4203 = vadd.f32 %v3950, %v4202
    %v4204 = vpop.f32.mrb[0].mxu0
    %4205 = vmatprep.mubr.f32.mxu0 0.0
    %4206 = vmatmul.mubr.f32.gmra.mrb[0].mxu0 %v4012
    %v4207 = vpop.f32.mrb[0].mxu0
    %v4208 = vadd.f32 %v3950, %v4207
    %v4209 = vpop.f32.mrb[0].mxu0
    %4210 = vmatprep.mubr.f32.mxu0 0.0
    %4211 = vmatmul.mubr.f32.gmra.mrb[0].mxu0 %v4015
    %v4212 = vpop.f32.mrb[0].mxu0
    %v4213 = vadd.f32 %v3950, %v4212
    %v4214 = vpop.f32.mrb[0].mxu0
    %4215 = vmatprep.mubr.f32.mxu0 0.0
    %4216 = vmatmul.mubr.f32.gmra.mrb[0].mxu0 %v4018
    %v4217 = vpop.f32.mrb[0].mxu0
    %v4218 = vadd.f32 %v3950, %v4217
    %v4219 = vpop.f32.mrb[0].mxu0
    %4220 = vmatprep.mubr.f32.mxu0 0.0
    %4221 = vmatmul.mubr.f32.gmra.mrb[0].mxu0 %v4021
    %v4222 = vpop.f32.mrb[0].mxu0
    %v4223 = vadd.f32 %v3950, %v4222
    %v4224 = vpop.f32.mrb[0].mxu0
    %4225 = vmatprep.mubr.f32.mxu0 0.0
    %4226 = vmatmul.mubr.f32.gmra.mrb[0].mxu0 %v4024
    %v4227 = vpop.f32.mrb[0].mxu0
    %v4228 = vadd.f32 %v3950, %v4227
    %v4229 = vpop.f32.mrb[0].mxu0
    %4230 = vmatprep.mubr.f32.mxu0 0.0
    %4231 = vmatmul.mubr.f32.gmra.mrb[0].mxu0 %v4027
    %v4232 = vpop.f32.mrb[0].mxu0
    %v4233 = vadd.f32 %v3950, %v4232
    %v4234 = vpop.f32.mrb[0].mxu0
    %4235 = vmatprep.mubr.f32.mxu0 0.0
    %4236 = vmatmul.mubr.f32.gmra.mrb[0].mxu0 %v4030
    %v4237 = vpop.f32.mrb[0].mxu0
    %v4238 = vadd.f32 %v3950, %v4237
    %v4239 = vpop.f32.mrb[0].mxu0
    %4240 = vmatprep.mubr.f32.mxu0 0.0
    %4241 = vmatmul.mubr.f32.gmra.mrb[0].mxu0 %v4033
    %v4242 = vpop.f32.mrb[0].mxu0
    %v4243 = vadd.f32 %v3950, %v4242
    %v4244 = vpop.f32.mrb[0].mxu0
    %4245 = vmatprep.mubr.f32.mxu0 0.0
    %4246 = vmatmul.mubr.f32.gmra.mrb[0].mxu0 %v4036
    %v4247 = vpop.f32.mrb[0].mxu0
    %v4248 = vadd.f32 %v3950, %v4247
    %v4249 = vpop.f32.mrb[0].mxu0
    %4250 = vmatprep.mubr.f32.mxu0 0.0
    %4251 = vmatmul.mubr.f32.gmra.mrb[0].mxu0 %v4039
    %v4252 = vpop.f32.mrb[0].mxu0
    %v4253 = vadd.f32 %v3950, %v4252
    %v4254 = vpop.f32.mrb[0].mxu0
    %4255 = vdwg.mxu0
    %v4256 = vmax.f32 %v4108, 0.0
    %v4257 = vmax.f32 %v4113, 0.0
    %v4258 = vmax.f32 %v4118, 0.0
    %v4259 = vmax.f32 %v4123, 0.0
    %v4260 = vmax.f32 %v4128, 0.0
    %v4261 = vmax.f32 %v4133, 0.0
    %v4262 = vmax.f32 %v4138, 0.0
    %v4263 = vmax.f32 %v4143, 0.0
    %v4264 = vmax.f32 %v4148, 0.0
    %v4265 = vmax.f32 %v4153, 0.0
    %v4266 = vmax.f32 %v4158, 0.0
    %v4267 = vmax.f32 %v4163, 0.0
    %v4268 = vmax.f32 %v4168, 0.0
    %v4269 = vmax.f32 %v4173, 0.0
    %v4270 = vmax.f32 %v4178, 0.0
    %v4271 = vmax.f32 %v4183, 0.0
    %v4272 = vmax.f32 %v4188, 0.0
    %v4273 = vmax.f32 %v4193, 0.0
    %v4274 = vmax.f32 %v4198, 0.0
    %v4275 = vmax.f32 %v4203, 0.0
    %v4276 = vmax.f32 %v4208, 0.0
    %v4277 = vmax.f32 %v4213, 0.0
    %v4278 = vmax.f32 %v4218, 0.0
    %v4279 = vmax.f32 %v4223, 0.0
    %v4280 = vmax.f32 %v4228, 0.0
    %v4281 = vmax.f32 %v4233, 0.0
    %v4282 = vmax.f32 %v4238, 0.0
    %v4283 = vmax.f32 %v4243, 0.0
    %v4284 = vmax.f32 %v4248, 0.0
    %v4285 = vmax.f32 %v4253, 0.0
    %v4286 = vsel %vm144, %v4256, 0.0
    %v4287 = vsel %vm144, %v4257, 0.0
    %v4288 = vadd.f32 %v4286, %v4287
    %v4289 = vsel %vm144, %v4258, 0.0
    %v4290 = vadd.f32 %v4288, %v4289
    %v4291 = vsel %vm144, %v4259, 0.0
    %v4292 = vadd.f32 %v4290, %v4291
    %v4293 = vsel %vm144, %v4260, 0.0
    %v4294 = vadd.f32 %v4292, %v4293
    %v4295 = vsel %vm144, %v4261, 0.0
    %v4296 = vadd.f32 %v4294, %v4295
    %v4297 = vsel %vm144, %v4262, 0.0
    %v4298 = vadd.f32 %v4296, %v4297
    %v4299 = vsel %vm144, %v4263, 0.0
    %v4300 = vadd.f32 %v4298, %v4299
    %v4301 = vsel %vm144, %v4264, 0.0
    %v4302 = vadd.f32 %v4300, %v4301
    %v4303 = vsel %vm144, %v4265, 0.0
    %v4304 = vadd.f32 %v4302, %v4303
    %v4305 = vsel %vm144, %v4266, 0.0
    %v4306 = vadd.f32 %v4304, %v4305
    %v4307 = vsel %vm144, %v4267, 0.0
    %v4308 = vadd.f32 %v4306, %v4307
    %v4309 = vsel %vm144, %v4268, 0.0
    %v4310 = vadd.f32 %v4308, %v4309
    %v4311 = vsel %vm144, %v4269, 0.0
    %v4312 = vadd.f32 %v4310, %v4311
    %v4313 = vsel %vm144, %v4270, 0.0
    %v4314 = vadd.f32 %v4312, %v4313
    %v4315 = vsel %vm144, %v4271, 0.0
    %v4316 = vadd.f32 %v4314, %v4315
    %v4317 = vsel %vm144, %v4272, 0.0
    %v4318 = vadd.f32 %v4316, %v4317
    %v4319 = vsel %vm144, %v4273, 0.0
    %v4320 = vadd.f32 %v4318, %v4319
    %v4321 = vsel %vm144, %v4274, 0.0
    %v4322 = vadd.f32 %v4320, %v4321
    %v4323 = vsel %vm144, %v4275, 0.0
    %v4324 = vadd.f32 %v4322, %v4323
    %v4325 = vsel %vm144, %v4276, 0.0
    %v4326 = vadd.f32 %v4324, %v4325
    %v4327 = vsel %vm144, %v4277, 0.0
    %v4328 = vadd.f32 %v4326, %v4327
    %v4329 = vsel %vm144, %v4278, 0.0
    %v4330 = vadd.f32 %v4328, %v4329
    %v4331 = vsel %vm144, %v4279, 0.0
    %v4332 = vadd.f32 %v4330, %v4331
    %v4333 = vsel %vm144, %v4280, 0.0
    %v4334 = vadd.f32 %v4332, %v4333
    %v4335 = vsel %vm144, %v4281, 0.0
    %v4336 = vadd.f32 %v4334, %v4335
    %v4337 = vsel %vm144, %v4282, 0.0
    %v4338 = vadd.f32 %v4336, %v4337
    %v4339 = vsel %vm144, %v4283, 0.0
    %v4340 = vadd.f32 %v4338, %v4339
    %v4341 = vsel %vm144, %v4284, 0.0
    %v4342 = vadd.f32 %v4340, %v4341
    %v4343 = vsel %vm144, %v4285, 0.0
    %v4344 = vadd.f32 %v4342, %v4343
    %v4345 = vrot.slane %v4344, 4
    %v4346 = vadd.f32 %v4344, %v4345
    %v4347 = vrot.slane %v4346, 2
    %v4348 = vadd.f32 %v4346, %v4347
    %v4349 = vrot.slane %v4348, 1
    %v4350 = vadd.f32 %v4348, %v4349
    %v4351 = vmul.f32 %v4350, %v1991
    %v4352 = vsub.f32 %v4256, %v4351
    %v4353 = vsub.f32 %v4257, %v4351
    %v4354 = vsub.f32 %v4258, %v4351
    %v4355 = vsub.f32 %v4259, %v4351
    %v4356 = vsub.f32 %v4260, %v4351
    %v4357 = vsub.f32 %v4261, %v4351
    %v4358 = vsub.f32 %v4262, %v4351
    %v4359 = vsub.f32 %v4263, %v4351
    %v4360 = vsub.f32 %v4264, %v4351
    %v4361 = vsub.f32 %v4265, %v4351
    %v4362 = vsub.f32 %v4266, %v4351
    %v4363 = vsub.f32 %v4267, %v4351
    %v4364 = vsub.f32 %v4268, %v4351
    %v4365 = vsub.f32 %v4269, %v4351
    %v4366 = vsub.f32 %v4270, %v4351
    %v4367 = vsub.f32 %v4271, %v4351
    %v4368 = vsub.f32 %v4272, %v4351
    %v4369 = vsub.f32 %v4273, %v4351
    %v4370 = vsub.f32 %v4274, %v4351
    %v4371 = vsub.f32 %v4275, %v4351
    %v4372 = vsub.f32 %v4276, %v4351
    %v4373 = vsub.f32 %v4277, %v4351
    %v4374 = vsub.f32 %v4278, %v4351
    %v4375 = vsub.f32 %v4279, %v4351
    %v4376 = vsub.f32 %v4280, %v4351
    %v4377 = vsub.f32 %v4281, %v4351
    %v4378 = vsub.f32 %v4282, %v4351
    %v4379 = vsub.f32 %v4283, %v4351
    %v4380 = vsub.f32 %v4284, %v4351
    %v4381 = vsub.f32 %v4285, %v4351
    %v4382 = vmul.f32 %v4352, %v4352
    %v4383 = vmul.f32 %v4353, %v4353
    %v4384 = vmul.f32 %v4354, %v4354
    %v4385 = vmul.f32 %v4355, %v4355
    %v4386 = vmul.f32 %v4356, %v4356
    %v4387 = vmul.f32 %v4357, %v4357
    %v4388 = vmul.f32 %v4358, %v4358
    %v4389 = vmul.f32 %v4359, %v4359
    %v4390 = vmul.f32 %v4360, %v4360
    %v4391 = vmul.f32 %v4361, %v4361
    %v4392 = vmul.f32 %v4362, %v4362
    %v4393 = vmul.f32 %v4363, %v4363
    %v4394 = vmul.f32 %v4364, %v4364
    %v4395 = vmul.f32 %v4365, %v4365
    %v4396 = vmul.f32 %v4366, %v4366
    %v4397 = vmul.f32 %v4367, %v4367
    %v4398 = vmul.f32 %v4368, %v4368
    %v4399 = vmul.f32 %v4369, %v4369
    %v4400 = vmul.f32 %v4370, %v4370
    %v4401 = vmul.f32 %v4371, %v4371
    %v4402 = vmul.f32 %v4372, %v4372
    %v4403 = vmul.f32 %v4373, %v4373
    %v4404 = vmul.f32 %v4374, %v4374
    %v4405 = vmul.f32 %v4375, %v4375
    %v4406 = vmul.f32 %v4376, %v4376
    %v4407 = vmul.f32 %v4377, %v4377
    %v4408 = vmul.f32 %v4378, %v4378
    %v4409 = vmul.f32 %v4379, %v4379
    %v4410 = vmul.f32 %v4380, %v4380
    %v4411 = vmul.f32 %v4381, %v4381
    %v4412 = vsel %vm144, %v4382, 0.0
    %v4413 = vsel %vm144, %v4383, 0.0
    %v4414 = vadd.f32 %v4412, %v4413
    %v4415 = vsel %vm144, %v4384, 0.0
    %v4416 = vadd.f32 %v4414, %v4415
    %v4417 = vsel %vm144, %v4385, 0.0
    %v4418 = vadd.f32 %v4416, %v4417
    %v4419 = vsel %vm144, %v4386, 0.0
    %v4420 = vadd.f32 %v4418, %v4419
    %v4421 = vsel %vm144, %v4387, 0.0
    %v4422 = vadd.f32 %v4420, %v4421
    %v4423 = vsel %vm144, %v4388, 0.0
    %v4424 = vadd.f32 %v4422, %v4423
    %v4425 = vsel %vm144, %v4389, 0.0
    %v4426 = vadd.f32 %v4424, %v4425
    %v4427 = vsel %vm144, %v4390, 0.0
    %v4428 = vadd.f32 %v4426, %v4427
    %v4429 = vsel %vm144, %v4391, 0.0
    %v4430 = vadd.f32 %v4428, %v4429
    %v4431 = vsel %vm144, %v4392, 0.0
    %v4432 = vadd.f32 %v4430, %v4431
    %v4433 = vsel %vm144, %v4393, 0.0
    %v4434 = vadd.f32 %v4432, %v4433
    %v4435 = vsel %vm144, %v4394, 0.0
    %v4436 = vadd.f32 %v4434, %v4435
    %v4437 = vsel %vm144, %v4395, 0.0
    %v4438 = vadd.f32 %v4436, %v4437
    %v4439 = vsel %vm144, %v4396, 0.0
    %v4440 = vadd.f32 %v4438, %v4439
    %v4441 = vsel %vm144, %v4397, 0.0
    %v4442 = vadd.f32 %v4440, %v4441
    %v4443 = vsel %vm144, %v4398, 0.0
    %v4444 = vadd.f32 %v4442, %v4443
    %v4445 = vsel %vm144, %v4399, 0.0
    %v4446 = vadd.f32 %v4444, %v4445
    %v4447 = vsel %vm144, %v4400, 0.0
    %v4448 = vadd.f32 %v4446, %v4447
    %v4449 = vsel %vm144, %v4401, 0.0
    %v4450 = vadd.f32 %v4448, %v4449
    %v4451 = vsel %vm144, %v4402, 0.0
    %v4452 = vadd.f32 %v4450, %v4451
    %v4453 = vsel %vm144, %v4403, 0.0
    %v4454 = vadd.f32 %v4452, %v4453
    %v4455 = vsel %vm144, %v4404, 0.0
    %v4456 = vadd.f32 %v4454, %v4455
    %v4457 = vsel %vm144, %v4405, 0.0
    %v4458 = vadd.f32 %v4456, %v4457
    %v4459 = vsel %vm144, %v4406, 0.0
    %v4460 = vadd.f32 %v4458, %v4459
    %v4461 = vsel %vm144, %v4407, 0.0
    %v4462 = vadd.f32 %v4460, %v4461
    %v4463 = vsel %vm144, %v4408, 0.0
    %v4464 = vadd.f32 %v4462, %v4463
    %v4465 = vsel %vm144, %v4409, 0.0
    %v4466 = vadd.f32 %v4464, %v4465
    %v4467 = vsel %vm144, %v4410, 0.0
    %v4468 = vadd.f32 %v4466, %v4467
    %v4469 = vsel %vm144, %v4411, 0.0
    %v4470 = vadd.f32 %v4468, %v4469
    %v4471 = vrot.slane %v4470, 4
    %v4472 = vadd.f32 %v4470, %v4471
    %v4473 = vrot.slane %v4472, 2
    %v4474 = vadd.f32 %v4472, %v4473
    %v4475 = vrot.slane %v4474, 1
    %v4476 = vadd.f32 %v4474, %v4475
    %v4477 = vmul.f32 %v4476, %v1991
    %v4478 = vadd.f32 %v4477, 1e-05
    %v4479 = vrsqrt.pop %v4478
    %v4480 = vmul.f32 %v130, %v4479
    %v4481 = vlaneseq
    %v4482 = vshrl.u32 %v4481, 7
    %v4483 = vsub.s32 6, %v4482
    %v4484 = vrot.slane %v4480, %v4483
    %v4485 = vmul.f32 %v4352, %v4484
    %v4486 = vmul.f32 %v4353, %v4484
    %v4487 = vmul.f32 %v4354, %v4484
    %v4488 = vmul.f32 %v4355, %v4484
    %v4489 = vmul.f32 %v4356, %v4484
    %v4490 = vmul.f32 %v4357, %v4484
    %v4491 = vmul.f32 %v4358, %v4484
    %v4492 = vmul.f32 %v4359, %v4484
    %v4493 = vmul.f32 %v4360, %v4484
    %v4494 = vmul.f32 %v4361, %v4484
    %v4495 = vmul.f32 %v4362, %v4484
    %v4496 = vmul.f32 %v4363, %v4484
    %v4497 = vmul.f32 %v4364, %v4484
    %v4498 = vmul.f32 %v4365, %v4484
    %v4499 = vmul.f32 %v4366, %v4484
    %v4500 = vmul.f32 %v4367, %v4484
    %v4501 = vmul.f32 %v4368, %v4484
    %v4502 = vmul.f32 %v4369, %v4484
    %v4503 = vmul.f32 %v4370, %v4484
    %v4504 = vmul.f32 %v4371, %v4484
    %v4505 = vmul.f32 %v4372, %v4484
    %v4506 = vmul.f32 %v4373, %v4484
    %v4507 = vmul.f32 %v4374, %v4484
    %v4508 = vmul.f32 %v4375, %v4484
    %v4509 = vmul.f32 %v4376, %v4484
    %v4510 = vmul.f32 %v4377, %v4484
    %v4511 = vmul.f32 %v4378, %v4484
    %v4512 = vmul.f32 %v4379, %v4484
    %v4513 = vmul.f32 %v4380, %v4484
    %v4514 = vmul.f32 %v4381, %v4484
    %v4515 = vlaneseq
    %v4516 = vshrl.u32 %v4515, 7
    %v4517 = vsub.s32 7, %v4516
    %v4518 = vrot.slane %v130, %v4517
    %v4519 = vadd.f32 %v4485, %v4518
    %v4520 = vadd.f32 %v4486, %v4518
    %v4521 = vadd.f32 %v4487, %v4518
    %v4522 = vadd.f32 %v4488, %v4518
    %v4523 = vadd.f32 %v4489, %v4518
    %v4524 = vadd.f32 %v4490, %v4518
    %v4525 = vadd.f32 %v4491, %v4518
    %v4526 = vadd.f32 %v4492, %v4518
    %v4527 = vadd.f32 %v4493, %v4518
    %v4528 = vadd.f32 %v4494, %v4518
    %v4529 = vadd.f32 %v4495, %v4518
    %v4530 = vadd.f32 %v4496, %v4518
    %v4531 = vadd.f32 %v4497, %v4518
    %v4532 = vadd.f32 %v4498, %v4518
    %v4533 = vadd.f32 %v4499, %v4518
    %v4534 = vadd.f32 %v4500, %v4518
    %v4535 = vadd.f32 %v4501, %v4518
    %v4536 = vadd.f32 %v4502, %v4518
    %v4537 = vadd.f32 %v4503, %v4518
    %v4538 = vadd.f32 %v4504, %v4518
    %v4539 = vadd.f32 %v4505, %v4518
    %v4540 = vadd.f32 %v4506, %v4518
    %v4541 = vadd.f32 %v4507, %v4518
    %v4542 = vadd.f32 %v4508, %v4518
    %v4543 = vadd.f32 %v4509, %v4518
    %v4544 = vadd.f32 %v4510, %v4518
    %v4545 = vadd.f32 %v4511, %v4518
    %v4546 = vadd.f32 %v4512, %v4518
    %v4547 = vadd.f32 %v4513, %v4518
    %v4548 = vadd.f32 %v4514, %v4518
    %v4549 = vld [vmem:[%s12] sm:$0xff]
    %v4550 = vld [vmem:[%s12 + $0x8] sm:$0xff]
    %v4551 = vld [vmem:[%s12 + $0x10] sm:$0xff]
    %v4552 = vld [vmem:[%s12 + $0x18] sm:$0xff]
    %v4553 = vlaneseq
    %v4554 = vshrl.u32 %v4553, 7
    %v4555 = vsub.s32 0, %v4554
    %v4556 = vrot.slane %v131, %v4555
    %v4558 = vsel %vm144, %v4519, 0
    %v4561 = vsel %vm144, %v4520, 0
    %v4564 = vsel %vm144, %v4521, 0
    %v4567 = vsel %vm144, %v4522, 0
    %v4570 = vsel %vm144, %v4523, 0
    %v4573 = vsel %vm144, %v4524, 0
    %v4576 = vsel %vm144, %v4525, 0
    %v4579 = vsel %vm144, %v4526, 0
    %v4582 = vsel %vm144, %v4527, 0
    %v4585 = vsel %vm144, %v4528, 0
    %v4588 = vsel %vm144, %v4529, 0
    %v4591 = vsel %vm144, %v4530, 0
    %v4594 = vsel %vm144, %v4531, 0
    %v4597 = vsel %vm144, %v4532, 0
    %v4600 = vsel %vm144, %v4533, 0
    %v4603 = vsel %vm144, %v4534, 0
    %v4606 = vsel %vm144, %v4535, 0
    %v4609 = vsel %vm144, %v4536, 0
    %v4612 = vsel %vm144, %v4537, 0
    %v4615 = vsel %vm144, %v4538, 0
    %v4618 = vsel %vm144, %v4539, 0
    %v4621 = vsel %vm144, %v4540, 0
    %v4624 = vsel %vm144, %v4541, 0
    %v4627 = vsel %vm144, %v4542, 0
    %v4630 = vsel %vm144, %v4543, 0
    %v4633 = vsel %vm144, %v4544, 0
    %v4636 = vsel %vm144, %v4545, 0
    %v4639 = vsel %vm144, %v4546, 0
    %v4642 = vsel %vm144, %v4547, 0
    %v4645 = vsel %vm144, %v4548, 0
    %4647 = vmatprep.subr.mxu0 0.0
    %4648 = vmatpush1.msra.mxu0 %v4549
    %4649 = vmatprep.subr.mxu0 0.0
    %4650 = vmatpush1.msra.mxu0 %v4550
    %4651 = vmatprep.subr.mxu0 0.0
    %4652 = vmatpush1.msra.mxu0 %v4551
    %4653 = vmatprep.subr.mxu0 0.0
    %4654 = vmatpush1.msra.mxu0 %v4552
    %4655 = vmatprep.subr.mxu0 0.0
    %4656 = vmatpush1.msra.mxu0 0.0
    %4657 = vmatprep.subr.mxu0 0.0
    %4658 = vmatpush1.msra.mxu0 0.0
    %4659 = vmatprep.subr.mxu0 0.0
    %4660 = vmatpush1.msra.mxu0 0.0
    %4661 = vmatprep.subr.mxu0 0.0
    %4662 = vmatpush1.msra.mxu0 0.0
    %4663 = vmatprep.subr.mxu0 0.0
    %4664 = vmatpush1.msra.mxu0 0.0
    %4665 = vmatprep.subr.mxu0 0.0
    %4666 = vmatpush1.msra.mxu0 0.0
    %4667 = vmatprep.subr.mxu0 0.0
    %4668 = vmatpush1.msra.mxu0 0.0
    %4669 = vmatprep.subr.mxu0 0.0
    %4670 = vmatpush1.msra.mxu0 0.0
    %4671 = vmatprep.subr.mxu0 0.0
    %4672 = vmatpush1.msra.mxu0 0.0
    %4673 = vmatprep.subr.mxu0 0.0
    %4674 = vmatpush1.msra.mxu0 0.0
    %4675 = vmatprep.subr.mxu0 0.0
    %4676 = vmatpush1.msra.mxu0 0.0
    %4677 = vmatprep.subr.mxu0 0.0
    %4678 = vmatpush1.msra.mxu0 0.0
    %4679 = vmatprep.subr.mxu0 0.0
    %4680 = vmatpush1.msra.mxu0 0.0
    %4681 = vmatprep.subr.mxu0 0.0
    %4682 = vmatpush1.msra.mxu0 0.0
    %4683 = vmatprep.subr.mxu0 0.0
    %4684 = vmatpush1.msra.mxu0 0.0
    %4685 = vmatprep.subr.mxu0 0.0
    %4686 = vmatpush1.msra.mxu0 0.0
    %4687 = vmatprep.subr.mxu0 0.0
    %4688 = vmatpush1.msra.mxu0 0.0
    %4689 = vmatprep.subr.mxu0 0.0
    %4690 = vmatpush1.msra.mxu0 0.0
    %4691 = vmatprep.subr.mxu0 0.0
    %4692 = vmatpush1.msra.mxu0 0.0
    %4693 = vmatprep.subr.mxu0 0.0
    %4694 = vmatpush1.msra.mxu0 0.0
    %4695 = vmatprep.subr.mxu0 0.0
    %4696 = vmatpush1.msra.mxu0 0.0
    %4697 = vmatprep.subr.mxu0 0.0
    %4698 = vmatpush1.msra.mxu0 0.0
    %4699 = vmatprep.subr.mxu0 0.0
    %4700 = vmatpush1.msra.mxu0 0.0
    %4701 = vmatprep.subr.mxu0 0.0
    %4702 = vmatpush1.msra.mxu0 0.0
    %4703 = vmatprep.subr.mxu0 0.0
    %4704 = vmatpush1.msra.mxu0 0.0
    %4705 = vmatprep.subr.mxu0 0.0
    %4706 = vmatpush1.msra.mxu0 0.0
    %4707 = vmatprep.subr.mxu0 0.0
    %4708 = vmatpush1.msra.mxu0 0.0
    %4709 = vmatprep.subr.mxu0 0.0
    %4710 = vmatpush1.msra.mxu0 0.0
    %4711 = vmatprep.mubr.f32.mxu0 0.0
    %4712 = vmatmul.mubr.f32.gmra.mrb[0].mxu0 %v4558
    %v4713 = vpop.f32.mrb[0].mxu0
    %v4714 = vadd.f32 %v4556, %v4713
    %v4715 = vpop.f32.mrb[0].mxu0
    %4716 = vmatprep.mubr.f32.mxu0 0.0
    %4717 = vmatmul.mubr.f32.gmra.mrb[0].mxu0 %v4561
    %v4718 = vpop.f32.mrb[0].mxu0
    %v4719 = vadd.f32 %v4556, %v4718
    %v4720 = vpop.f32.mrb[0].mxu0
    %4721 = vmatprep.mubr.f32.mxu0 0.0
    %4722 = vmatmul.mubr.f32.gmra.mrb[0].mxu0 %v4564
    %v4723 = vpop.f32.mrb[0].mxu0
    %v4724 = vadd.f32 %v4556, %v4723
    %v4725 = vpop.f32.mrb[0].mxu0
    %4726 = vmatprep.mubr.f32.mxu0 0.0
    %4727 = vmatmul.mubr.f32.gmra.mrb[0].mxu0 %v4567
    %v4728 = vpop.f32.mrb[0].mxu0
    %v4729 = vadd.f32 %v4556, %v4728
    %v4730 = vpop.f32.mrb[0].mxu0
    %4731 = vmatprep.mubr.f32.mxu0 0.0
    %4732 = vmatmul.mubr.f32.gmra.mrb[0].mxu0 %v4570
    %v4733 = vpop.f32.mrb[0].mxu0
    %v4734 = vadd.f32 %v4556, %v4733
    %v4735 = vpop.f32.mrb[0].mxu0
    %4736 = vmatprep.mubr.f32.mxu0 0.0
    %4737 = vmatmul.mubr.f32.gmra.mrb[0].mxu0 %v4573
    %v4738 = vpop.f32.mrb[0].mxu0
    %v4739 = vadd.f32 %v4556, %v4738
    %v4740 = vpop.f32.mrb[0].mxu0
    %4741 = vmatprep.mubr.f32.mxu0 0.0
    %4742 = vmatmul.mubr.f32.gmra.mrb[0].mxu0 %v4576
    %v4743 = vpop.f32.mrb[0].mxu0
    %v4744 = vadd.f32 %v4556, %v4743
    %v4745 = vpop.f32.mrb[0].mxu0
    %4746 = vmatprep.mubr.f32.mxu0 0.0
    %4747 = vmatmul.mubr.f32.gmra.mrb[0].mxu0 %v4579
    %v4748 = vpop.f32.mrb[0].mxu0
    %v4749 = vadd.f32 %v4556, %v4748
    %v4750 = vpop.f32.mrb[0].mxu0
    %4751 = vmatprep.mubr.f32.mxu0 0.0
    %4752 = vmatmul.mubr.f32.gmra.mrb[0].mxu0 %v4582
    %v4753 = vpop.f32.mrb[0].mxu0
    %v4754 = vadd.f32 %v4556, %v4753
    %v4755 = vpop.f32.mrb[0].mxu0
    %4756 = vmatprep.mubr.f32.mxu0 0.0
    %4757 = vmatmul.mubr.f32.gmra.mrb[0].mxu0 %v4585
    %v4758 = vpop.f32.mrb[0].mxu0
    %v4759 = vadd.f32 %v4556, %v4758
    %v4760 = vpop.f32.mrb[0].mxu0
    %4761 = vmatprep.mubr.f32.mxu0 0.0
    %4762 = vmatmul.mubr.f32.gmra.mrb[0].mxu0 %v4588
    %v4763 = vpop.f32.mrb[0].mxu0
    %v4764 = vadd.f32 %v4556, %v4763
    %v4765 = vpop.f32.mrb[0].mxu0
    %4766 = vmatprep.mubr.f32.mxu0 0.0
    %4767 = vmatmul.mubr.f32.gmra.mrb[0].mxu0 %v4591
    %v4768 = vpop.f32.mrb[0].mxu0
    %v4769 = vadd.f32 %v4556, %v4768
    %v4770 = vpop.f32.mrb[0].mxu0
    %4771 = vmatprep.mubr.f32.mxu0 0.0
    %4772 = vmatmul.mubr.f32.gmra.mrb[0].mxu0 %v4594
    %v4773 = vpop.f32.mrb[0].mxu0
    %v4774 = vadd.f32 %v4556, %v4773
    %v4775 = vpop.f32.mrb[0].mxu0
    %4776 = vmatprep.mubr.f32.mxu0 0.0
    %4777 = vmatmul.mubr.f32.gmra.mrb[0].mxu0 %v4597
    %v4778 = vpop.f32.mrb[0].mxu0
    %v4779 = vadd.f32 %v4556, %v4778
    %v4780 = vpop.f32.mrb[0].mxu0
    %4781 = vmatprep.mubr.f32.mxu0 0.0
    %4782 = vmatmul.mubr.f32.gmra.mrb[0].mxu0 %v4600
    %v4783 = vpop.f32.mrb[0].mxu0
    %v4784 = vadd.f32 %v4556, %v4783
    %v4785 = vpop.f32.mrb[0].mxu0
    %4786 = vmatprep.mubr.f32.mxu0 0.0
    %4787 = vmatmul.mubr.f32.gmra.mrb[0].mxu0 %v4603
    %v4788 = vpop.f32.mrb[0].mxu0
    %v4789 = vadd.f32 %v4556, %v4788
    %v4790 = vpop.f32.mrb[0].mxu0
    %4791 = vmatprep.mubr.f32.mxu0 0.0
    %4792 = vmatmul.mubr.f32.gmra.mrb[0].mxu0 %v4606
    %v4793 = vpop.f32.mrb[0].mxu0
    %v4794 = vadd.f32 %v4556, %v4793
    %v4795 = vpop.f32.mrb[0].mxu0
    %4796 = vmatprep.mubr.f32.mxu0 0.0
    %4797 = vmatmul.mubr.f32.gmra.mrb[0].mxu0 %v4609
    %v4798 = vpop.f32.mrb[0].mxu0
    %v4799 = vadd.f32 %v4556, %v4798
    %v4800 = vpop.f32.mrb[0].mxu0
    %4801 = vmatprep.mubr.f32.mxu0 0.0
    %4802 = vmatmul.mubr.f32.gmra.mrb[0].mxu0 %v4612
    %v4803 = vpop.f32.mrb[0].mxu0
    %v4804 = vadd.f32 %v4556, %v4803
    %v4805 = vpop.f32.mrb[0].mxu0
    %4806 = vmatprep.mubr.f32.mxu0 0.0
    %4807 = vmatmul.mubr.f32.gmra.mrb[0].mxu0 %v4615
    %v4808 = vpop.f32.mrb[0].mxu0
    %v4809 = vadd.f32 %v4556, %v4808
    %v4810 = vpop.f32.mrb[0].mxu0
    %4811 = vmatprep.mubr.f32.mxu0 0.0
    %4812 = vmatmul.mubr.f32.gmra.mrb[0].mxu0 %v4618
    %v4813 = vpop.f32.mrb[0].mxu0
    %v4814 = vadd.f32 %v4556, %v4813
    %v4815 = vpop.f32.mrb[0].mxu0
    %4816 = vmatprep.mubr.f32.mxu0 0.0
    %4817 = vmatmul.mubr.f32.gmra.mrb[0].mxu0 %v4621
    %v4818 = vpop.f32.mrb[0].mxu0
    %v4819 = vadd.f32 %v4556, %v4818
    %v4820 = vpop.f32.mrb[0].mxu0
    %4821 = vmatprep.mubr.f32.mxu0 0.0
    %4822 = vmatmul.mubr.f32.gmra.mrb[0].mxu0 %v4624
    %v4823 = vpop.f32.mrb[0].mxu0
    %v4824 = vadd.f32 %v4556, %v4823
    %v4825 = vpop.f32.mrb[0].mxu0
    %4826 = vmatprep.mubr.f32.mxu0 0.0
    %4827 = vmatmul.mubr.f32.gmra.mrb[0].mxu0 %v4627
    %v4828 = vpop.f32.mrb[0].mxu0
    %v4829 = vadd.f32 %v4556, %v4828
    %v4830 = vpop.f32.mrb[0].mxu0
    %4831 = vmatprep.mubr.f32.mxu0 0.0
    %4832 = vmatmul.mubr.f32.gmra.mrb[0].mxu0 %v4630
    %v4833 = vpop.f32.mrb[0].mxu0
    %v4834 = vadd.f32 %v4556, %v4833
    %v4835 = vpop.f32.mrb[0].mxu0
    %4836 = vmatprep.mubr.f32.mxu0 0.0
    %4837 = vmatmul.mubr.f32.gmra.mrb[0].mxu0 %v4633
    %v4838 = vpop.f32.mrb[0].mxu0
    %v4839 = vadd.f32 %v4556, %v4838
    %v4840 = vpop.f32.mrb[0].mxu0
    %4841 = vmatprep.mubr.f32.mxu0 0.0
    %4842 = vmatmul.mubr.f32.gmra.mrb[0].mxu0 %v4636
    %v4843 = vpop.f32.mrb[0].mxu0
    %v4844 = vadd.f32 %v4556, %v4843
    %v4845 = vpop.f32.mrb[0].mxu0
    %4846 = vmatprep.mubr.f32.mxu0 0.0
    %4847 = vmatmul.mubr.f32.gmra.mrb[0].mxu0 %v4639
    %v4848 = vpop.f32.mrb[0].mxu0
    %v4849 = vadd.f32 %v4556, %v4848
    %v4850 = vpop.f32.mrb[0].mxu0
    %4851 = vmatprep.mubr.f32.mxu0 0.0
    %4852 = vmatmul.mubr.f32.gmra.mrb[0].mxu0 %v4642
    %v4853 = vpop.f32.mrb[0].mxu0
    %v4854 = vadd.f32 %v4556, %v4853
    %v4855 = vpop.f32.mrb[0].mxu0
    %4856 = vmatprep.mubr.f32.mxu0 0.0
    %4857 = vmatmul.mubr.f32.gmra.mrb[0].mxu0 %v4645
    %v4858 = vpop.f32.mrb[0].mxu0
    %v4859 = vadd.f32 %v4556, %v4858
    %v4860 = vpop.f32.mrb[0].mxu0
    %4861 = vdwg.mxu0
    %v4862 = vlaneseq
    %v4863 = vand.u32 %v4862, 127
    %vm4864 = vcmp.eq.s32.totalorder %v4863, 0
    %4895 = vrot.lane.b32.xlu0 %v4714, 127
    %v4896 = vpop.permute.xlu0 %4895
    %4897 = vrot.lane.b32.xlu0 %v4719, 127
    %v4898 = vpop.permute.xlu0 %4897
    %4899 = vrot.lane.b32.xlu0 %v4724, 127
    %v4900 = vpop.permute.xlu0 %4899
    %4901 = vrot.lane.b32.xlu0 %v4729, 127
    %v4902 = vpop.permute.xlu0 %4901
    %4903 = vrot.lane.b32.xlu0 %v4734, 127
    %v4904 = vpop.permute.xlu0 %4903
    %4905 = vrot.lane.b32.xlu0 %v4739, 127
    %v4906 = vpop.permute.xlu0 %4905
    %4907 = vrot.lane.b32.xlu0 %v4744, 127
    %v4908 = vpop.permute.xlu0 %4907
    %4909 = vrot.lane.b32.xlu0 %v4749, 127
    %v4910 = vpop.permute.xlu0 %4909
    %4911 = vrot.lane.b32.xlu0 %v4754, 127
    %v4912 = vpop.permute.xlu0 %4911
    %4913 = vrot.lane.b32.xlu0 %v4759, 127
    %v4914 = vpop.permute.xlu0 %4913
    %4915 = vrot.lane.b32.xlu0 %v4764, 127
    %v4916 = vpop.permute.xlu0 %4915
    %4917 = vrot.lane.b32.xlu0 %v4769, 127
    %v4918 = vpop.permute.xlu0 %4917
    %4919 = vrot.lane.b32.xlu0 %v4774, 127
    %v4920 = vpop.permute.xlu0 %4919
    %4921 = vrot.lane.b32.xlu0 %v4779, 127
    %v4922 = vpop.permute.xlu0 %4921
    %4923 = vrot.lane.b32.xlu0 %v4784, 127
    %v4924 = vpop.permute.xlu0 %4923
    %4925 = vrot.lane.b32.xlu0 %v4789, 127
    %v4926 = vpop.permute.xlu0 %4925
    %4927 = vrot.lane.b32.xlu0 %v4794, 127
    %v4928 = vpop.permute.xlu0 %4927
    %4929 = vrot.lane.b32.xlu0 %v4799, 127
    %v4930 = vpop.permute.xlu0 %4929
    %4931 = vrot.lane.b32.xlu0 %v4804, 127
    %v4932 = vpop.permute.xlu0 %4931
    %4933 = vrot.lane.b32.xlu0 %v4809, 127
    %v4934 = vpop.permute.xlu0 %4933
    %4935 = vrot.lane.b32.xlu0 %v4814, 127
    %v4936 = vpop.permute.xlu0 %4935
    %4937 = vrot.lane.b32.xlu0 %v4819, 127
    %v4938 = vpop.permute.xlu0 %4937
    %4939 = vrot.lane.b32.xlu0 %v4824, 127
    %v4940 = vpop.permute.xlu0 %4939
    %4941 = vrot.lane.b32.xlu0 %v4829, 127
    %v4942 = vpop.permute.xlu0 %4941
    %4943 = vrot.lane.b32.xlu0 %v4834, 127
    %v4944 = vpop.permute.xlu0 %4943
    %4945 = vrot.lane.b32.xlu0 %v4839, 127
    %v4946 = vpop.permute.xlu0 %4945
    %4947 = vrot.lane.b32.xlu0 %v4844, 127
    %v4948 = vpop.permute.xlu0 %4947
    %4949 = vrot.lane.b32.xlu0 %v4849, 127
    %v4950 = vpop.permute.xlu0 %4949
    %4951 = vrot.lane.b32.xlu0 %v4854, 127
    %v4952 = vpop.permute.xlu0 %4951
    %4953 = vrot.lane.b32.xlu0 %v4859, 127
    %v4954 = vpop.permute.xlu0 %4953
    %v4985 = vsub.f32 %v4714, %v4896
    %v4986 = vsub.f32 %v4719, %v4898
    %v4987 = vsub.f32 %v4724, %v4900
    %v4988 = vsub.f32 %v4729, %v4902
    %v4989 = vsub.f32 %v4734, %v4904
    %v4990 = vsub.f32 %v4739, %v4906
    %v4991 = vsub.f32 %v4744, %v4908
    %v4992 = vsub.f32 %v4749, %v4910
    %v4993 = vsub.f32 %v4754, %v4912
    %v4994 = vsub.f32 %v4759, %v4914
    %v4995 = vsub.f32 %v4764, %v4916
    %v4996 = vsub.f32 %v4769, %v4918
    %v4997 = vsub.f32 %v4774, %v4920
    %v4998 = vsub.f32 %v4779, %v4922
    %v4999 = vsub.f32 %v4784, %v4924
    %v5000 = vsub.f32 %v4789, %v4926
    %v5001 = vsub.f32 %v4794, %v4928
    %v5002 = vsub.f32 %v4799, %v4930
    %v5003 = vsub.f32 %v4804, %v4932
    %v5004 = vsub.f32 %v4809, %v4934
    %v5005 = vsub.f32 %v4814, %v4936
    %v5006 = vsub.f32 %v4819, %v4938
    %v5007 = vsub.f32 %v4824, %v4940
    %v5008 = vsub.f32 %v4829, %v4942
    %v5009 = vsub.f32 %v4834, %v4944
    %v5010 = vsub.f32 %v4839, %v4946
    %v5011 = vsub.f32 %v4844, %v4948
    %v5012 = vsub.f32 %v4849, %v4950
    %v5013 = vsub.f32 %v4854, %v4952
    %v5014 = vsub.f32 %v4859, %v4954
    %v5015 = vand.u32 2147483647, %v4985
    %v5016 = vand.u32 2147483647, %v4986
    %v5017 = vand.u32 2147483647, %v4987
    %v5018 = vand.u32 2147483647, %v4988
    %v5019 = vand.u32 2147483647, %v4989
    %v5020 = vand.u32 2147483647, %v4990
    %v5021 = vand.u32 2147483647, %v4991
    %v5022 = vand.u32 2147483647, %v4992
    %v5023 = vand.u32 2147483647, %v4993
    %v5024 = vand.u32 2147483647, %v4994
    %v5025 = vand.u32 2147483647, %v4995
    %v5026 = vand.u32 2147483647, %v4996
    %v5027 = vand.u32 2147483647, %v4997
    %v5028 = vand.u32 2147483647, %v4998
    %v5029 = vand.u32 2147483647, %v4999
    %v5030 = vand.u32 2147483647, %v5000
    %v5031 = vand.u32 2147483647, %v5001
    %v5032 = vand.u32 2147483647, %v5002
    %v5033 = vand.u32 2147483647, %v5003
    %v5034 = vand.u32 2147483647, %v5004
    %v5035 = vand.u32 2147483647, %v5005
    %v5036 = vand.u32 2147483647, %v5006
    %v5037 = vand.u32 2147483647, %v5007
    %v5038 = vand.u32 2147483647, %v5008
    %v5039 = vand.u32 2147483647, %v5009
    %v5040 = vand.u32 2147483647, %v5010
    %v5041 = vand.u32 2147483647, %v5011
    %v5042 = vand.u32 2147483647, %v5012
    %v5043 = vand.u32 2147483647, %v5013
    %v5044 = vand.u32 2147483647, %v5014
    %v5045 = vsub.f32 0.0, %v5015
    %v5046 = vsub.f32 0.0, %v5016
    %v5047 = vsub.f32 0.0, %v5017
    %v5048 = vsub.f32 0.0, %v5018
    %v5049 = vsub.f32 0.0, %v5019
    %v5050 = vsub.f32 0.0, %v5020
    %v5051 = vsub.f32 0.0, %v5021
    %v5052 = vsub.f32 0.0, %v5022
    %v5053 = vsub.f32 0.0, %v5023
    %v5054 = vsub.f32 0.0, %v5024
    %v5055 = vsub.f32 0.0, %v5025
    %v5056 = vsub.f32 0.0, %v5026
    %v5057 = vsub.f32 0.0, %v5027
    %v5058 = vsub.f32 0.0, %v5028
    %v5059 = vsub.f32 0.0, %v5029
    %v5060 = vsub.f32 0.0, %v5030
    %v5061 = vsub.f32 0.0, %v5031
    %v5062 = vsub.f32 0.0, %v5032
    %v5063 = vsub.f32 0.0, %v5033
    %v5064 = vsub.f32 0.0, %v5034
    %v5065 = vsub.f32 0.0, %v5035
    %v5066 = vsub.f32 0.0, %v5036
    %v5067 = vsub.f32 0.0, %v5037
    %v5068 = vsub.f32 0.0, %v5038
    %v5069 = vsub.f32 0.0, %v5039
    %v5070 = vsub.f32 0.0, %v5040
    %v5071 = vsub.f32 0.0, %v5041
    %v5072 = vsub.f32 0.0, %v5042
    %v5073 = vsub.f32 0.0, %v5043
    %v5074 = vsub.f32 0.0, %v5044
    %v5075 = vmul.f32 %v5045, 1.442695
    %v5076 = vpow.pop %v5075
    %v5077 = vmul.f32 %v5046, 1.442695
    %v5078 = vpow.pop %v5077
    %v5079 = vmul.f32 %v5047, 1.442695
    %v5080 = vpow.pop %v5079
    %v5081 = vmul.f32 %v5048, 1.442695
    %v5082 = vpow.pop %v5081
    %v5083 = vmul.f32 %v5049, 1.442695
    %v5084 = vpow.pop %v5083
    %v5085 = vmul.f32 %v5050, 1.442695
    %v5086 = vpow.pop %v5085
    %v5087 = vmul.f32 %v5051, 1.442695
    %v5088 = vpow.pop %v5087
    %v5089 = vmul.f32 %v5052, 1.442695
    %v5090 = vpow.pop %v5089
    %v5091 = vmul.f32 %v5053, 1.442695
    %v5092 = vpow.pop %v5091
    %v5093 = vmul.f32 %v5054, 1.442695
    %v5094 = vpow.pop %v5093
    %v5095 = vmul.f32 %v5055, 1.442695
    %v5096 = vpow.pop %v5095
    %v5097 = vmul.f32 %v5056, 1.442695
    %v5098 = vpow.pop %v5097
    %v5099 = vmul.f32 %v5057, 1.442695
    %v5100 = vpow.pop %v5099
    %v5101 = vmul.f32 %v5058, 1.442695
    %v5102 = vpow.pop %v5101
    %v5103 = vmul.f32 %v5059, 1.442695
    %v5104 = vpow.pop %v5103
    %v5105 = vmul.f32 %v5060, 1.442695
    %v5106 = vpow.pop %v5105
    %v5107 = vmul.f32 %v5061, 1.442695
    %v5108 = vpow.pop %v5107
    %v5109 = vmul.f32 %v5062, 1.442695
    %v5110 = vpow.pop %v5109
    %v5111 = vmul.f32 %v5063, 1.442695
    %v5112 = vpow.pop %v5111
    %v5113 = vmul.f32 %v5064, 1.442695
    %v5114 = vpow.pop %v5113
    %v5115 = vmul.f32 %v5065, 1.442695
    %v5116 = vpow.pop %v5115
    %v5117 = vmul.f32 %v5066, 1.442695
    %v5118 = vpow.pop %v5117
    %v5119 = vmul.f32 %v5067, 1.442695
    %v5120 = vpow.pop %v5119
    %v5121 = vmul.f32 %v5068, 1.442695
    %v5122 = vpow.pop %v5121
    %v5123 = vmul.f32 %v5069, 1.442695
    %v5124 = vpow.pop %v5123
    %v5125 = vmul.f32 %v5070, 1.442695
    %v5126 = vpow.pop %v5125
    %v5127 = vmul.f32 %v5071, 1.442695
    %v5128 = vpow.pop %v5127
    %v5129 = vmul.f32 %v5072, 1.442695
    %v5130 = vpow.pop %v5129
    %v5131 = vmul.f32 %v5073, 1.442695
    %v5132 = vpow.pop %v5131
    %v5133 = vmul.f32 %v5074, 1.442695
    %v5134 = vpow.pop %v5133
    %v5135 = vadd.f32 %v5076, 1.0
    %v5136 = vadd.f32 %v5078, 1.0
    %v5137 = vadd.f32 %v5080, 1.0
    %v5138 = vadd.f32 %v5082, 1.0
    %v5139 = vadd.f32 %v5084, 1.0
    %v5140 = vadd.f32 %v5086, 1.0
    %v5141 = vadd.f32 %v5088, 1.0
    %v5142 = vadd.f32 %v5090, 1.0
    %v5143 = vadd.f32 %v5092, 1.0
    %v5144 = vadd.f32 %v5094, 1.0
    %v5145 = vadd.f32 %v5096, 1.0
    %v5146 = vadd.f32 %v5098, 1.0
    %v5147 = vadd.f32 %v5100, 1.0
    %v5148 = vadd.f32 %v5102, 1.0
    %v5149 = vadd.f32 %v5104, 1.0
    %v5150 = vadd.f32 %v5106, 1.0
    %v5151 = vadd.f32 %v5108, 1.0
    %v5152 = vadd.f32 %v5110, 1.0
    %v5153 = vadd.f32 %v5112, 1.0
    %v5154 = vadd.f32 %v5114, 1.0
    %v5155 = vadd.f32 %v5116, 1.0
    %v5156 = vadd.f32 %v5118, 1.0
    %v5157 = vadd.f32 %v5120, 1.0
    %v5158 = vadd.f32 %v5122, 1.0
    %v5159 = vadd.f32 %v5124, 1.0
    %v5160 = vadd.f32 %v5126, 1.0
    %v5161 = vadd.f32 %v5128, 1.0
    %v5162 = vadd.f32 %v5130, 1.0
    %v5163 = vadd.f32 %v5132, 1.0
    %v5164 = vadd.f32 %v5134, 1.0
    %v5165 = vrcp.pop %v5135
    %v5166 = vrcp.pop %v5136
    %v5167 = vrcp.pop %v5137
    %v5168 = vrcp.pop %v5138
    %v5169 = vrcp.pop %v5139
    %v5170 = vrcp.pop %v5140
    %v5171 = vrcp.pop %v5141
    %v5172 = vrcp.pop %v5142
    %v5173 = vrcp.pop %v5143
    %v5174 = vrcp.pop %v5144
    %v5175 = vrcp.pop %v5145
    %v5176 = vrcp.pop %v5146
    %v5177 = vrcp.pop %v5147
    %v5178 = vrcp.pop %v5148
    %v5179 = vrcp.pop %v5149
    %v5180 = vrcp.pop %v5150
    %v5181 = vrcp.pop %v5151
    %v5182 = vrcp.pop %v5152
    %v5183 = vrcp.pop %v5153
    %v5184 = vrcp.pop %v5154
    %v5185 = vrcp.pop %v5155
    %v5186 = vrcp.pop %v5156
    %v5187 = vrcp.pop %v5157
    %v5188 = vrcp.pop %v5158
    %v5189 = vrcp.pop %v5159
    %v5190 = vrcp.pop %v5160
    %v5191 = vrcp.pop %v5161
    %v5192 = vrcp.pop %v5162
    %v5193 = vrcp.pop %v5163
    %v5194 = vrcp.pop %v5164
    %vm5195 = vcmp.ge.f32.partialorder %v4985, 0.0
    %vm5196 = vcmp.ge.f32.partialorder %v4986, 0.0
    %vm5197 = vcmp.ge.f32.partialorder %v4987, 0.0
    %vm5198 = vcmp.ge.f32.partialorder %v4988, 0.0
    %vm5199 = vcmp.ge.f32.partialorder %v4989, 0.0
    %vm5200 = vcmp.ge.f32.partialorder %v4990, 0.0
    %vm5201 = vcmp.ge.f32.partialorder %v4991, 0.0
    %vm5202 = vcmp.ge.f32.partialorder %v4992, 0.0
    %vm5203 = vcmp.ge.f32.partialorder %v4993, 0.0
    %vm5204 = vcmp.ge.f32.partialorder %v4994, 0.0
    %vm5205 = vcmp.ge.f32.partialorder %v4995, 0.0
    %vm5206 = vcmp.ge.f32.partialorder %v4996, 0.0
    %vm5207 = vcmp.ge.f32.partialorder %v4997, 0.0
    %vm5208 = vcmp.ge.f32.partialorder %v4998, 0.0
    %vm5209 = vcmp.ge.f32.partialorder %v4999, 0.0
    %vm5210 = vcmp.ge.f32.partialorder %v5000, 0.0
    %vm5211 = vcmp.ge.f32.partialorder %v5001, 0.0
    %vm5212 = vcmp.ge.f32.partialorder %v5002, 0.0
    %vm5213 = vcmp.ge.f32.partialorder %v5003, 0.0
    %vm5214 = vcmp.ge.f32.partialorder %v5004, 0.0
    %vm5215 = vcmp.ge.f32.partialorder %v5005, 0.0
    %vm5216 = vcmp.ge.f32.partialorder %v5006, 0.0
    %vm5217 = vcmp.ge.f32.partialorder %v5007, 0.0
    %vm5218 = vcmp.ge.f32.partialorder %v5008, 0.0
    %vm5219 = vcmp.ge.f32.partialorder %v5009, 0.0
    %vm5220 = vcmp.ge.f32.partialorder %v5010, 0.0
    %vm5221 = vcmp.ge.f32.partialorder %v5011, 0.0
    %vm5222 = vcmp.ge.f32.partialorder %v5012, 0.0
    %vm5223 = vcmp.ge.f32.partialorder %v5013, 0.0
    %vm5224 = vcmp.ge.f32.partialorder %v5014, 0.0
    %v5225 = vmul.f32 %v5076, %v5165
    %v5226 = vmul.f32 %v5078, %v5166
    %v5227 = vmul.f32 %v5080, %v5167
    %v5228 = vmul.f32 %v5082, %v5168
    %v5229 = vmul.f32 %v5084, %v5169
    %v5230 = vmul.f32 %v5086, %v5170
    %v5231 = vmul.f32 %v5088, %v5171
    %v5232 = vmul.f32 %v5090, %v5172
    %v5233 = vmul.f32 %v5092, %v5173
    %v5234 = vmul.f32 %v5094, %v5174
    %v5235 = vmul.f32 %v5096, %v5175
    %v5236 = vmul.f32 %v5098, %v5176
    %v5237 = vmul.f32 %v5100, %v5177
    %v5238 = vmul.f32 %v5102, %v5178
    %v5239 = vmul.f32 %v5104, %v5179
    %v5240 = vmul.f32 %v5106, %v5180
    %v5241 = vmul.f32 %v5108, %v5181
    %v5242 = vmul.f32 %v5110, %v5182
    %v5243 = vmul.f32 %v5112, %v5183
    %v5244 = vmul.f32 %v5114, %v5184
    %v5245 = vmul.f32 %v5116, %v5185
    %v5246 = vmul.f32 %v5118, %v5186
    %v5247 = vmul.f32 %v5120, %v5187
    %v5248 = vmul.f32 %v5122, %v5188
    %v5249 = vmul.f32 %v5124, %v5189
    %v5250 = vmul.f32 %v5126, %v5190
    %v5251 = vmul.f32 %v5128, %v5191
    %v5252 = vmul.f32 %v5130, %v5192
    %v5253 = vmul.f32 %v5132, %v5193
    %v5254 = vmul.f32 %v5134, %v5194
    %v5255 = vsel %vm5195, %v5165, %v5225
    %v5256 = vsel %vm5196, %v5166, %v5226
    %v5257 = vsel %vm5197, %v5167, %v5227
    %v5258 = vsel %vm5198, %v5168, %v5228
    %v5259 = vsel %vm5199, %v5169, %v5229
    %v5260 = vsel %vm5200, %v5170, %v5230
    %v5261 = vsel %vm5201, %v5171, %v5231
    %v5262 = vsel %vm5202, %v5172, %v5232
    %v5263 = vsel %vm5203, %v5173, %v5233
    %v5264 = vsel %vm5204, %v5174, %v5234
    %v5265 = vsel %vm5205, %v5175, %v5235
    %v5266 = vsel %vm5206, %v5176, %v5236
    %v5267 = vsel %vm5207, %v5177, %v5237
    %v5268 = vsel %vm5208, %v5178, %v5238
    %v5269 = vsel %vm5209, %v5179, %v5239
    %v5270 = vsel %vm5210, %v5180, %v5240
    %v5271 = vsel %vm5211, %v5181, %v5241
    %v5272 = vsel %vm5212, %v5182, %v5242
    %v5273 = vsel %vm5213, %v5183, %v5243
    %v5274 = vsel %vm5214, %v5184, %v5244
    %v5275 = vsel %vm5215, %v5185, %v5245
    %v5276 = vsel %vm5216, %v5186, %v5246
    %v5277 = vsel %vm5217, %v5187, %v5247
    %v5278 = vsel %vm5218, %v5188, %v5248
    %v5279 = vsel %vm5219, %v5189, %v5249
    %v5280 = vsel %vm5220, %v5190, %v5250
    %v5281 = vsel %vm5221, %v5191, %v5251
    %v5282 = vsel %vm5222, %v5192, %v5252
    %v5283 = vsel %vm5223, %v5193, %v5253
    %v5284 = vsel %vm5224, %v5194, %v5254
    %v5285 = vsub.f32 1.0, %v5255
    %v5286 = vsub.f32 1.0, %v5256
    %v5287 = vsub.f32 1.0, %v5257
    %v5288 = vsub.f32 1.0, %v5258
    %v5289 = vsub.f32 1.0, %v5259
    %v5290 = vsub.f32 1.0, %v5260
    %v5291 = vsub.f32 1.0, %v5261
    %v5292 = vsub.f32 1.0, %v5262
    %v5293 = vsub.f32 1.0, %v5263
    %v5294 = vsub.f32 1.0, %v5264
    %v5295 = vsub.f32 1.0, %v5265
    %v5296 = vsub.f32 1.0, %v5266
    %v5297 = vsub.f32 1.0, %v5267
    %v5298 = vsub.f32 1.0, %v5268
    %v5299 = vsub.f32 1.0, %v5269
    %v5300 = vsub.f32 1.0, %v5270
    %v5301 = vsub.f32 1.0, %v5271
    %v5302 = vsub.f32 1.0, %v5272
    %v5303 = vsub.f32 1.0, %v5273
    %v5304 = vsub.f32 1.0, %v5274
    %v5305 = vsub.f32 1.0, %v5275
    %v5306 = vsub.f32 1.0, %v5276
    %v5307 = vsub.f32 1.0, %v5277
    %v5308 = vsub.f32 1.0, %v5278
    %v5309 = vsub.f32 1.0, %v5279
    %v5310 = vsub.f32 1.0, %v5280
    %v5311 = vsub.f32 1.0, %v5281
    %v5312 = vsub.f32 1.0, %v5282
    %v5313 = vsub.f32 1.0, %v5283
    %v5314 = vsub.f32 1.0, %v5284
    %5316 = vset.pattern.permute.xlu0 0
    %5317 = vperm.xlu0 %5316, %v5255
    %v5318 = vpop.permute.xlu0 %5317
    %5321 = vset.pattern.permute.xlu0 0
    %5322 = vperm.xlu0 %5321, %v5256
    %v5323 = vpop.permute.xlu0 %5322
    %5326 = vset.pattern.permute.xlu0 0
    %5327 = vperm.xlu0 %5326, %v5257
    %v5328 = vpop.permute.xlu0 %5327
    %5331 = vset.pattern.permute.xlu0 0
    %5332 = vperm.xlu0 %5331, %v5258
    %v5333 = vpop.permute.xlu0 %5332
    %5336 = vset.pattern.permute.xlu0 0
    %5337 = vperm.xlu0 %5336, %v5259
    %v5338 = vpop.permute.xlu0 %5337
    %5341 = vset.pattern.permute.xlu0 0
    %5342 = vperm.xlu0 %5341, %v5260
    %v5343 = vpop.permute.xlu0 %5342
    %5346 = vset.pattern.permute.xlu0 0
    %5347 = vperm.xlu0 %5346, %v5261
    %v5348 = vpop.permute.xlu0 %5347
    %5351 = vset.pattern.permute.xlu0 0
    %5352 = vperm.xlu0 %5351, %v5262
    %v5353 = vpop.permute.xlu0 %5352
    %5356 = vset.pattern.permute.xlu0 0
    %5357 = vperm.xlu0 %5356, %v5263
    %v5358 = vpop.permute.xlu0 %5357
    %5361 = vset.pattern.permute.xlu0 0
    %5362 = vperm.xlu0 %5361, %v5264
    %v5363 = vpop.permute.xlu0 %5362
    %5366 = vset.pattern.permute.xlu0 0
    %5367 = vperm.xlu0 %5366, %v5265
    %v5368 = vpop.permute.xlu0 %5367
    %5371 = vset.pattern.permute.xlu0 0
    %5372 = vperm.xlu0 %5371, %v5266
    %v5373 = vpop.permute.xlu0 %5372
    %5376 = vset.pattern.permute.xlu0 0
    %5377 = vperm.xlu0 %5376, %v5267
    %v5378 = vpop.permute.xlu0 %5377
    %5381 = vset.pattern.permute.xlu0 0
    %5382 = vperm.xlu0 %5381, %v5268
    %v5383 = vpop.permute.xlu0 %5382
    %5386 = vset.pattern.permute.xlu0 0
    %5387 = vperm.xlu0 %5386, %v5269
    %v5388 = vpop.permute.xlu0 %5387
    %5391 = vset.pattern.permute.xlu0 0
    %5392 = vperm.xlu0 %5391, %v5270
    %v5393 = vpop.permute.xlu0 %5392
    %5396 = vset.pattern.permute.xlu0 0
    %5397 = vperm.xlu0 %5396, %v5271
    %v5398 = vpop.permute.xlu0 %5397
    %5401 = vset.pattern.permute.xlu0 0
    %5402 = vperm.xlu0 %5401, %v5272
    %v5403 = vpop.permute.xlu0 %5402
    %5406 = vset.pattern.permute.xlu0 0
    %5407 = vperm.xlu0 %5406, %v5273
    %v5408 = vpop.permute.xlu0 %5407
    %5411 = vset.pattern.permute.xlu0 0
    %5412 = vperm.xlu0 %5411, %v5274
    %v5413 = vpop.permute.xlu0 %5412
    %5416 = vset.pattern.permute.xlu0 0
    %5417 = vperm.xlu0 %5416, %v5275
    %v5418 = vpop.permute.xlu0 %5417
    %5421 = vset.pattern.permute.xlu0 0
    %5422 = vperm.xlu0 %5421, %v5276
    %v5423 = vpop.permute.xlu0 %5422
    %5426 = vset.pattern.permute.xlu0 0
    %5427 = vperm.xlu0 %5426, %v5277
    %v5428 = vpop.permute.xlu0 %5427
    %5431 = vset.pattern.permute.xlu0 0
    %5432 = vperm.xlu0 %5431, %v5278
    %v5433 = vpop.permute.xlu0 %5432
    %5436 = vset.pattern.permute.xlu0 0
    %5437 = vperm.xlu0 %5436, %v5279
    %v5438 = vpop.permute.xlu0 %5437
    %5441 = vset.pattern.permute.xlu0 0
    %5442 = vperm.xlu0 %5441, %v5280
    %v5443 = vpop.permute.xlu0 %5442
    %5446 = vset.pattern.permute.xlu0 0
    %5447 = vperm.xlu0 %5446, %v5281
    %v5448 = vpop.permute.xlu0 %5447
    %5451 = vset.pattern.permute.xlu0 0
    %5452 = vperm.xlu0 %5451, %v5282
    %v5453 = vpop.permute.xlu0 %5452
    %5456 = vset.pattern.permute.xlu0 0
    %5457 = vperm.xlu0 %5456, %v5283
    %v5458 = vpop.permute.xlu0 %5457
    %5461 = vset.pattern.permute.xlu0 0
    %5462 = vperm.xlu0 %5461, %v5284
    %v5463 = vpop.permute.xlu0 %5462
    %5466 = vset.pattern.permute.xlu0 0
    %5467 = vperm.xlu0 %5466, %v5285
    %v5468 = vpop.permute.xlu0 %5467
    %5471 = vset.pattern.permute.xlu0 0
    %5472 = vperm.xlu0 %5471, %v5286
    %v5473 = vpop.permute.xlu0 %5472
    %5476 = vset.pattern.permute.xlu0 0
    %5477 = vperm.xlu0 %5476, %v5287
    %v5478 = vpop.permute.xlu0 %5477
    %5481 = vset.pattern.permute.xlu0 0
    %5482 = vperm.xlu0 %5481, %v5288
    %v5483 = vpop.permute.xlu0 %5482
    %5486 = vset.pattern.permute.xlu0 0
    %5487 = vperm.xlu0 %5486, %v5289
    %v5488 = vpop.permute.xlu0 %5487
    %5491 = vset.pattern.permute.xlu0 0
    %5492 = vperm.xlu0 %5491, %v5290
    %v5493 = vpop.permute.xlu0 %5492
    %5496 = vset.pattern.permute.xlu0 0
    %5497 = vperm.xlu0 %5496, %v5291
    %v5498 = vpop.permute.xlu0 %5497
    %5501 = vset.pattern.permute.xlu0 0
    %5502 = vperm.xlu0 %5501, %v5292
    %v5503 = vpop.permute.xlu0 %5502
    %5506 = vset.pattern.permute.xlu0 0
    %5507 = vperm.xlu0 %5506, %v5293
    %v5508 = vpop.permute.xlu0 %5507
    %5511 = vset.pattern.permute.xlu0 0
    %5512 = vperm.xlu0 %5511, %v5294
    %v5513 = vpop.permute.xlu0 %5512
    %5516 = vset.pattern.permute.xlu0 0
    %5517 = vperm.xlu0 %5516, %v5295
    %v5518 = vpop.permute.xlu0 %5517
    %5521 = vset.pattern.permute.xlu0 0
    %5522 = vperm.xlu0 %5521, %v5296
    %v5523 = vpop.permute.xlu0 %5522
    %5526 = vset.pattern.permute.xlu0 0
    %5527 = vperm.xlu0 %5526, %v5297
    %v5528 = vpop.permute.xlu0 %5527
    %5531 = vset.pattern.permute.xlu0 0
    %5532 = vperm.xlu0 %5531, %v5298
    %v5533 = vpop.permute.xlu0 %5532
    %5536 = vset.pattern.permute.xlu0 0
    %5537 = vperm.xlu0 %5536, %v5299
    %v5538 = vpop.permute.xlu0 %5537
    %5541 = vset.pattern.permute.xlu0 0
    %5542 = vperm.xlu0 %5541, %v5300
    %v5543 = vpop.permute.xlu0 %5542
    %5546 = vset.pattern.permute.xlu0 0
    %5547 = vperm.xlu0 %5546, %v5301
    %v5548 = vpop.permute.xlu0 %5547
    %5551 = vset.pattern.permute.xlu0 0
    %5552 = vperm.xlu0 %5551, %v5302
    %v5553 = vpop.permute.xlu0 %5552
    %5556 = vset.pattern.permute.xlu0 0
    %5557 = vperm.xlu0 %5556, %v5303
    %v5558 = vpop.permute.xlu0 %5557
    %5561 = vset.pattern.permute.xlu0 0
    %5562 = vperm.xlu0 %5561, %v5304
    %v5563 = vpop.permute.xlu0 %5562
    %5566 = vset.pattern.permute.xlu0 0
    %5567 = vperm.xlu0 %5566, %v5305
    %v5568 = vpop.permute.xlu0 %5567
    %5571 = vset.pattern.permute.xlu0 0
    %5572 = vperm.xlu0 %5571, %v5306
    %v5573 = vpop.permute.xlu0 %5572
    %5576 = vset.pattern.permute.xlu0 0
    %5577 = vperm.xlu0 %5576, %v5307
    %v5578 = vpop.permute.xlu0 %5577
    %5581 = vset.pattern.permute.xlu0 0
    %5582 = vperm.xlu0 %5581, %v5308
    %v5583 = vpop.permute.xlu0 %5582
    %5586 = vset.pattern.permute.xlu0 0
    %5587 = vperm.xlu0 %5586, %v5309
    %v5588 = vpop.permute.xlu0 %5587
    %5591 = vset.pattern.permute.xlu0 0
    %5592 = vperm.xlu0 %5591, %v5310
    %v5593 = vpop.permute.xlu0 %5592
    %5596 = vset.pattern.permute.xlu0 0
    %5597 = vperm.xlu0 %5596, %v5311
    %v5598 = vpop.permute.xlu0 %5597
    %5601 = vset.pattern.permute.xlu0 0
    %5602 = vperm.xlu0 %5601, %v5312
    %v5603 = vpop.permute.xlu0 %5602
    %5606 = vset.pattern.permute.xlu0 0
    %5607 = vperm.xlu0 %5606, %v5313
    %v5608 = vpop.permute.xlu0 %5607
    %5611 = vset.pattern.permute.xlu0 0
    %5612 = vperm.xlu0 %5611, %v5314
    %v5613 = vpop.permute.xlu0 %5612
    %v5615 = vsel %vm4864, %v5318, %v5468
    %v5616 = vsel %vm4864, %v5323, %v5473
    %v5617 = vsel %vm4864, %v5328, %v5478
    %v5618 = vsel %vm4864, %v5333, %v5483
    %v5619 = vsel %vm4864, %v5338, %v5488
    %v5620 = vsel %vm4864, %v5343, %v5493
    %v5621 = vsel %vm4864, %v5348, %v5498
    %v5622 = vsel %vm4864, %v5353, %v5503
    %v5623 = vsel %vm4864, %v5358, %v5508
    %v5624 = vsel %vm4864, %v5363, %v5513
    %v5625 = vsel %vm4864, %v5368, %v5518
    %v5626 = vsel %vm4864, %v5373, %v5523
    %v5627 = vsel %vm4864, %v5378, %v5528
    %v5628 = vsel %vm4864, %v5383, %v5533
    %v5629 = vsel %vm4864, %v5388, %v5538
    %v5630 = vsel %vm4864, %v5393, %v5543
    %v5631 = vsel %vm4864, %v5398, %v5548
    %v5632 = vsel %vm4864, %v5403, %v5553
    %v5633 = vsel %vm4864, %v5408, %v5558
    %v5634 = vsel %vm4864, %v5413, %v5563
    %v5635 = vsel %vm4864, %v5418, %v5568
    %v5636 = vsel %vm4864, %v5423, %v5573
    %v5637 = vsel %vm4864, %v5428, %v5578
    %v5638 = vsel %vm4864, %v5433, %v5583
    %v5639 = vsel %vm4864, %v5438, %v5588
    %v5640 = vsel %vm4864, %v5443, %v5593
    %v5641 = vsel %vm4864, %v5448, %v5598
    %v5642 = vsel %vm4864, %v5453, %v5603
    %v5643 = vsel %vm4864, %v5458, %v5608
    %v5644 = vsel %vm4864, %v5463, %v5613
    %vm5645 = vcmask 15360
    %5646 = vst.msk [vmem:[%s21] sm:$0xff] %vm5645, %v5615
    %5647 = vst.msk [vmem:[%s21 + $0x8] sm:$0xff] %vm5645, %v5616
    %5648 = vst.msk [vmem:[%s21 + $0x10] sm:$0xff] %vm5645, %v5617
    %5649 = vst.msk [vmem:[%s21 + $0x18] sm:$0xff] %vm5645, %v5618
    %5650 = vst.msk [vmem:[%s21 + $0x20] sm:$0xff] %vm5645, %v5619
    %5651 = vst.msk [vmem:[%s21 + $0x28] sm:$0xff] %vm5645, %v5620
    %5652 = vst.msk [vmem:[%s21 + $0x30] sm:$0xff] %vm5645, %v5621
    %5653 = vst.msk [vmem:[%s21 + $0x38] sm:$0xff] %vm5645, %v5622
    %5654 = vst.msk [vmem:[%s21 + $0x40] sm:$0xff] %vm5645, %v5623
    %5655 = vst.msk [vmem:[%s21 + $0x48] sm:$0xff] %vm5645, %v5624
    %5656 = vst.msk [vmem:[%s21 + $0x50] sm:$0xff] %vm5645, %v5625
    %5657 = vst.msk [vmem:[%s21 + $0x58] sm:$0xff] %vm5645, %v5626
    %5658 = vst.msk [vmem:[%s21 + $0x60] sm:$0xff] %vm5645, %v5627
    %5659 = vst.msk [vmem:[%s21 + $0x68] sm:$0xff] %vm5645, %v5628
    %5660 = vst.msk [vmem:[%s21 + $0x70] sm:$0xff] %vm5645, %v5629
    %5661 = vst.msk [vmem:[%s21 + $0x78] sm:$0xff] %vm5645, %v5630
    %5662 = vst.msk [vmem:[%s21 + $0x80] sm:$0xff] %vm5645, %v5631
    %5663 = vst.msk [vmem:[%s21 + $0x88] sm:$0xff] %vm5645, %v5632
    %5664 = vst.msk [vmem:[%s21 + $0x90] sm:$0xff] %vm5645, %v5633
    %5665 = vst.msk [vmem:[%s21 + $0x98] sm:$0xff] %vm5645, %v5634
    %5666 = vst.msk [vmem:[%s21 + $0xa0] sm:$0xff] %vm5645, %v5635
    %5667 = vst.msk [vmem:[%s21 + $0xa8] sm:$0xff] %vm5645, %v5636
    %5668 = vst.msk [vmem:[%s21 + $0xb0] sm:$0xff] %vm5645, %v5637
    %5669 = vst.msk [vmem:[%s21 + $0xb8] sm:$0xff] %vm5645, %v5638
    %5670 = vst.msk [vmem:[%s21 + $0xc0] sm:$0xff] %vm5645, %v5639
    %5671 = vst.msk [vmem:[%s21 + $0xc8] sm:$0xff] %vm5645, %v5640
    %5672 = vst.msk [vmem:[%s21 + $0xd0] sm:$0xff] %vm5645, %v5641
    %5673 = vst.msk [vmem:[%s21 + $0xd8] sm:$0xff] %vm5645, %v5642
    %5674 = vst.msk [vmem:[%s21 + $0xe0] sm:$0xff] %vm5645, %v5643
    %5675 = vst.msk [vmem:[%s21 + $0xe8] sm:$0xff] %vm5645, %v5644
    %v5676 = vld [vmem:[%s2] sm:$0xff]
    %v5677 = vld [vmem:[%s2 + $0x8] sm:$0xff]
    %v5678 = vld [vmem:[%s2 + $0x10] sm:$0xff]
    %v5679 = vld [vmem:[%s2 + $0x18] sm:$0xff]
    %v5680 = vld [vmem:[%s2 + $0x20] sm:$0xff]
    %v5681 = vld [vmem:[%s2 + $0x28] sm:$0xff]
    %v5682 = vld [vmem:[%s2 + $0x30] sm:$0xff]
    %v5683 = vld [vmem:[%s2 + $0x38] sm:$0xff]
    %v5684 = vld [vmem:[%s2 + $0x40] sm:$0xff]
    %v5685 = vld [vmem:[%s2 + $0x48] sm:$0xff]
    %v5686 = vld [vmem:[%s2 + $0x50] sm:$0xff]
    %v5687 = vld [vmem:[%s2 + $0x58] sm:$0xff]
    %v5688 = vld [vmem:[%s2 + $0x60] sm:$0xff]
    %v5689 = vld [vmem:[%s2 + $0x68] sm:$0xff]
    %v5690 = vld [vmem:[%s2 + $0x70] sm:$0xff]
    %v5691 = vld [vmem:[%s2 + $0x78] sm:$0xff]
    %v5692 = vld [vmem:[%s2 + $0x80] sm:$0xff]
    %v5693 = vld [vmem:[%s2 + $0x88] sm:$0xff]
    %v5694 = vld [vmem:[%s2 + $0x90] sm:$0xff]
    %v5695 = vld [vmem:[%s2 + $0x98] sm:$0xff]
    %v5696 = vld [vmem:[%s2 + $0xa0] sm:$0xff]
    %v5697 = vld [vmem:[%s2 + $0xa8] sm:$0xff]
    %v5698 = vld [vmem:[%s2 + $0xb0] sm:$0xff]
    %v5699 = vld [vmem:[%s2 + $0xb8] sm:$0xff]
    %v5700 = vld [vmem:[%s2 + $0xc0] sm:$0xff]
    %v5701 = vld [vmem:[%s2 + $0xc8] sm:$0xff]
    %v5702 = vld [vmem:[%s2 + $0xd0] sm:$0xff]
    %v5703 = vld [vmem:[%s2 + $0xd8] sm:$0xff]
    %v5704 = vld [vmem:[%s2 + $0xe0] sm:$0xff]
    %v5705 = vld [vmem:[%s2 + $0xe8] sm:$0xff]
    %v5706 = vadd.f32 %v4714, %v5676
    %v5707 = vadd.f32 %v4719, %v5677
    %v5708 = vadd.f32 %v4724, %v5678
    %v5709 = vadd.f32 %v4729, %v5679
    %v5710 = vadd.f32 %v4734, %v5680
    %v5711 = vadd.f32 %v4739, %v5681
    %v5712 = vadd.f32 %v4744, %v5682
    %v5713 = vadd.f32 %v4749, %v5683
    %v5714 = vadd.f32 %v4754, %v5684
    %v5715 = vadd.f32 %v4759, %v5685
    %v5716 = vadd.f32 %v4764, %v5686
    %v5717 = vadd.f32 %v4769, %v5687
    %v5718 = vadd.f32 %v4774, %v5688
    %v5719 = vadd.f32 %v4779, %v5689
    %v5720 = vadd.f32 %v4784, %v5690
    %v5721 = vadd.f32 %v4789, %v5691
    %v5722 = vadd.f32 %v4794, %v5692
    %v5723 = vadd.f32 %v4799, %v5693
    %v5724 = vadd.f32 %v4804, %v5694
    %v5725 = vadd.f32 %v4809, %v5695
    %v5726 = vadd.f32 %v4814, %v5696
    %v5727 = vadd.f32 %v4819, %v5697
    %v5728 = vadd.f32 %v4824, %v5698
    %v5729 = vadd.f32 %v4829, %v5699
    %v5730 = vadd.f32 %v4834, %v5700
    %v5731 = vadd.f32 %v4839, %v5701
    %v5732 = vadd.f32 %v4844, %v5702
    %v5733 = vadd.f32 %v4849, %v5703
    %v5734 = vadd.f32 %v4854, %v5704
    %v5735 = vadd.f32 %v4859, %v5705
    %5766 = vrot.lane.b32.xlu0 %v5706, 127
    %v5767 = vpop.permute.xlu0 %5766
    %5768 = vrot.lane.b32.xlu0 %v5707, 127
    %v5769 = vpop.permute.xlu0 %5768
    %5770 = vrot.lane.b32.xlu0 %v5708, 127
    %v5771 = vpop.permute.xlu0 %5770
    %5772 = vrot.lane.b32.xlu0 %v5709, 127
    %v5773 = vpop.permute.xlu0 %5772
    %5774 = vrot.lane.b32.xlu0 %v5710, 127
    %v5775 = vpop.permute.xlu0 %5774
    %5776 = vrot.lane.b32.xlu0 %v5711, 127
    %v5777 = vpop.permute.xlu0 %5776
    %5778 = vrot.lane.b32.xlu0 %v5712, 127
    %v5779 = vpop.permute.xlu0 %5778
    %5780 = vrot.lane.b32.xlu0 %v5713, 127
    %v5781 = vpop.permute.xlu0 %5780
    %5782 = vrot.lane.b32.xlu0 %v5714, 127
    %v5783 = vpop.permute.xlu0 %5782
    %5784 = vrot.lane.b32.xlu0 %v5715, 127
    %v5785 = vpop.permute.xlu0 %5784
    %5786 = vrot.lane.b32.xlu0 %v5716, 127
    %v5787 = vpop.permute.xlu0 %5786
    %5788 = vrot.lane.b32.xlu0 %v5717, 127
    %v5789 = vpop.permute.xlu0 %5788
    %5790 = vrot.lane.b32.xlu0 %v5718, 127
    %v5791 = vpop.permute.xlu0 %5790
    %5792 = vrot.lane.b32.xlu0 %v5719, 127
    %v5793 = vpop.permute.xlu0 %5792
    %5794 = vrot.lane.b32.xlu0 %v5720, 127
    %v5795 = vpop.permute.xlu0 %5794
    %5796 = vrot.lane.b32.xlu0 %v5721, 127
    %v5797 = vpop.permute.xlu0 %5796
    %5798 = vrot.lane.b32.xlu0 %v5722, 127
    %v5799 = vpop.permute.xlu0 %5798
    %5800 = vrot.lane.b32.xlu0 %v5723, 127
    %v5801 = vpop.permute.xlu0 %5800
    %5802 = vrot.lane.b32.xlu0 %v5724, 127
    %v5803 = vpop.permute.xlu0 %5802
    %5804 = vrot.lane.b32.xlu0 %v5725, 127
    %v5805 = vpop.permute.xlu0 %5804
    %5806 = vrot.lane.b32.xlu0 %v5726, 127
    %v5807 = vpop.permute.xlu0 %5806
    %5808 = vrot.lane.b32.xlu0 %v5727, 127
    %v5809 = vpop.permute.xlu0 %5808
    %5810 = vrot.lane.b32.xlu0 %v5728, 127
    %v5811 = vpop.permute.xlu0 %5810
    %5812 = vrot.lane.b32.xlu0 %v5729, 127
    %v5813 = vpop.permute.xlu0 %5812
    %5814 = vrot.lane.b32.xlu0 %v5730, 127
    %v5815 = vpop.permute.xlu0 %5814
    %5816 = vrot.lane.b32.xlu0 %v5731, 127
    %v5817 = vpop.permute.xlu0 %5816
    %5818 = vrot.lane.b32.xlu0 %v5732, 127
    %v5819 = vpop.permute.xlu0 %5818
    %5820 = vrot.lane.b32.xlu0 %v5733, 127
    %v5821 = vpop.permute.xlu0 %5820
    %5822 = vrot.lane.b32.xlu0 %v5734, 127
    %v5823 = vpop.permute.xlu0 %5822
    %5824 = vrot.lane.b32.xlu0 %v5735, 127
    %v5825 = vpop.permute.xlu0 %5824
    %v5856 = vsub.f32 %v5706, %v5767
    %v5857 = vsub.f32 %v5707, %v5769
    %v5858 = vsub.f32 %v5708, %v5771
    %v5859 = vsub.f32 %v5709, %v5773
    %v5860 = vsub.f32 %v5710, %v5775
    %v5861 = vsub.f32 %v5711, %v5777
    %v5862 = vsub.f32 %v5712, %v5779
    %v5863 = vsub.f32 %v5713, %v5781
    %v5864 = vsub.f32 %v5714, %v5783
    %v5865 = vsub.f32 %v5715, %v5785
    %v5866 = vsub.f32 %v5716, %v5787
    %v5867 = vsub.f32 %v5717, %v5789
    %v5868 = vsub.f32 %v5718, %v5791
    %v5869 = vsub.f32 %v5719, %v5793
    %v5870 = vsub.f32 %v5720, %v5795
    %v5871 = vsub.f32 %v5721, %v5797
    %v5872 = vsub.f32 %v5722, %v5799
    %v5873 = vsub.f32 %v5723, %v5801
    %v5874 = vsub.f32 %v5724, %v5803
    %v5875 = vsub.f32 %v5725, %v5805
    %v5876 = vsub.f32 %v5726, %v5807
    %v5877 = vsub.f32 %v5727, %v5809
    %v5878 = vsub.f32 %v5728, %v5811
    %v5879 = vsub.f32 %v5729, %v5813
    %v5880 = vsub.f32 %v5730, %v5815
    %v5881 = vsub.f32 %v5731, %v5817
    %v5882 = vsub.f32 %v5732, %v5819
    %v5883 = vsub.f32 %v5733, %v5821
    %v5884 = vsub.f32 %v5734, %v5823
    %v5885 = vsub.f32 %v5735, %v5825
    %v5886 = vmul.f32 %v5856, 10.0
    %v5887 = vmul.f32 %v5857, 10.0
    %v5888 = vmul.f32 %v5858, 10.0
    %v5889 = vmul.f32 %v5859, 10.0
    %v5890 = vmul.f32 %v5860, 10.0
    %v5891 = vmul.f32 %v5861, 10.0
    %v5892 = vmul.f32 %v5862, 10.0
    %v5893 = vmul.f32 %v5863, 10.0
    %v5894 = vmul.f32 %v5864, 10.0
    %v5895 = vmul.f32 %v5865, 10.0
    %v5896 = vmul.f32 %v5866, 10.0
    %v5897 = vmul.f32 %v5867, 10.0
    %v5898 = vmul.f32 %v5868, 10.0
    %v5899 = vmul.f32 %v5869, 10.0
    %v5900 = vmul.f32 %v5870, 10.0
    %v5901 = vmul.f32 %v5871, 10.0
    %v5902 = vmul.f32 %v5872, 10.0
    %v5903 = vmul.f32 %v5873, 10.0
    %v5904 = vmul.f32 %v5874, 10.0
    %v5905 = vmul.f32 %v5875, 10.0
    %v5906 = vmul.f32 %v5876, 10.0
    %v5907 = vmul.f32 %v5877, 10.0
    %v5908 = vmul.f32 %v5878, 10.0
    %v5909 = vmul.f32 %v5879, 10.0
    %v5910 = vmul.f32 %v5880, 10.0
    %v5911 = vmul.f32 %v5881, 10.0
    %v5912 = vmul.f32 %v5882, 10.0
    %v5913 = vmul.f32 %v5883, 10.0
    %v5914 = vmul.f32 %v5884, 10.0
    %v5915 = vmul.f32 %v5885, 10.0
    %v5916 = vand.u32 2147483647, %v5886
    %v5917 = vand.u32 2147483647, %v5887
    %v5918 = vand.u32 2147483647, %v5888
    %v5919 = vand.u32 2147483647, %v5889
    %v5920 = vand.u32 2147483647, %v5890
    %v5921 = vand.u32 2147483647, %v5891
    %v5922 = vand.u32 2147483647, %v5892
    %v5923 = vand.u32 2147483647, %v5893
    %v5924 = vand.u32 2147483647, %v5894
    %v5925 = vand.u32 2147483647, %v5895
    %v5926 = vand.u32 2147483647, %v5896
    %v5927 = vand.u32 2147483647, %v5897
    %v5928 = vand.u32 2147483647, %v5898
    %v5929 = vand.u32 2147483647, %v5899
    %v5930 = vand.u32 2147483647, %v5900
    %v5931 = vand.u32 2147483647, %v5901
    %v5932 = vand.u32 2147483647, %v5902
    %v5933 = vand.u32 2147483647, %v5903
    %v5934 = vand.u32 2147483647, %v5904
    %v5935 = vand.u32 2147483647, %v5905
    %v5936 = vand.u32 2147483647, %v5906
    %v5937 = vand.u32 2147483647, %v5907
    %v5938 = vand.u32 2147483647, %v5908
    %v5939 = vand.u32 2147483647, %v5909
    %v5940 = vand.u32 2147483647, %v5910
    %v5941 = vand.u32 2147483647, %v5911
    %v5942 = vand.u32 2147483647, %v5912
    %v5943 = vand.u32 2147483647, %v5913
    %v5944 = vand.u32 2147483647, %v5914
    %v5945 = vand.u32 2147483647, %v5915
    %v5946 = vsub.f32 0.0, %v5916
    %v5947 = vsub.f32 0.0, %v5917
    %v5948 = vsub.f32 0.0, %v5918
    %v5949 = vsub.f32 0.0, %v5919
    %v5950 = vsub.f32 0.0, %v5920
    %v5951 = vsub.f32 0.0, %v5921
    %v5952 = vsub.f32 0.0, %v5922
    %v5953 = vsub.f32 0.0, %v5923
    %v5954 = vsub.f32 0.0, %v5924
    %v5955 = vsub.f32 0.0, %v5925
    %v5956 = vsub.f32 0.0, %v5926
    %v5957 = vsub.f32 0.0, %v5927
    %v5958 = vsub.f32 0.0, %v5928
    %v5959 = vsub.f32 0.0, %v5929
    %v5960 = vsub.f32 0.0, %v5930
    %v5961 = vsub.f32 0.0, %v5931
    %v5962 = vsub.f32 0.0, %v5932
    %v5963 = vsub.f32 0.0, %v5933
    %v5964 = vsub.f32 0.0, %v5934
    %v5965 = vsub.f32 0.0, %v5935
    %v5966 = vsub.f32 0.0, %v5936
    %v5967 = vsub.f32 0.0, %v5937
    %v5968 = vsub.f32 0.0, %v5938
    %v5969 = vsub.f32 0.0, %v5939
    %v5970 = vsub.f32 0.0, %v5940
    %v5971 = vsub.f32 0.0, %v5941
    %v5972 = vsub.f32 0.0, %v5942
    %v5973 = vsub.f32 0.0, %v5943
    %v5974 = vsub.f32 0.0, %v5944
    %v5975 = vsub.f32 0.0, %v5945
    %v5976 = vmul.f32 %v5946, 1.442695
    %v5977 = vpow.pop %v5976
    %v5978 = vmul.f32 %v5947, 1.442695
    %v5979 = vpow.pop %v5978
    %v5980 = vmul.f32 %v5948, 1.442695
    %v5981 = vpow.pop %v5980
    %v5982 = vmul.f32 %v5949, 1.442695
    %v5983 = vpow.pop %v5982
    %v5984 = vmul.f32 %v5950, 1.442695
    %v5985 = vpow.pop %v5984
    %v5986 = vmul.f32 %v5951, 1.442695
    %v5987 = vpow.pop %v5986
    %v5988 = vmul.f32 %v5952, 1.442695
    %v5989 = vpow.pop %v5988
    %v5990 = vmul.f32 %v5953, 1.442695
    %v5991 = vpow.pop %v5990
    %v5992 = vmul.f32 %v5954, 1.442695
    %v5993 = vpow.pop %v5992
    %v5994 = vmul.f32 %v5955, 1.442695
    %v5995 = vpow.pop %v5994
    %v5996 = vmul.f32 %v5956, 1.442695
    %v5997 = vpow.pop %v5996
    %v5998 = vmul.f32 %v5957, 1.442695
    %v5999 = vpow.pop %v5998
    %v6000 = vmul.f32 %v5958, 1.442695
    %v6001 = vpow.pop %v6000
    %v6002 = vmul.f32 %v5959, 1.442695
    %v6003 = vpow.pop %v6002
    %v6004 = vmul.f32 %v5960, 1.442695
    %v6005 = vpow.pop %v6004
    %v6006 = vmul.f32 %v5961, 1.442695
    %v6007 = vpow.pop %v6006
    %v6008 = vmul.f32 %v5962, 1.442695
    %v6009 = vpow.pop %v6008
    %v6010 = vmul.f32 %v5963, 1.442695
    %v6011 = vpow.pop %v6010
    %v6012 = vmul.f32 %v5964, 1.442695
    %v6013 = vpow.pop %v6012
    %v6014 = vmul.f32 %v5965, 1.442695
    %v6015 = vpow.pop %v6014
    %v6016 = vmul.f32 %v5966, 1.442695
    %v6017 = vpow.pop %v6016
    %v6018 = vmul.f32 %v5967, 1.442695
    %v6019 = vpow.pop %v6018
    %v6020 = vmul.f32 %v5968, 1.442695
    %v6021 = vpow.pop %v6020
    %v6022 = vmul.f32 %v5969, 1.442695
    %v6023 = vpow.pop %v6022
    %v6024 = vmul.f32 %v5970, 1.442695
    %v6025 = vpow.pop %v6024
    %v6026 = vmul.f32 %v5971, 1.442695
    %v6027 = vpow.pop %v6026
    %v6028 = vmul.f32 %v5972, 1.442695
    %v6029 = vpow.pop %v6028
    %v6030 = vmul.f32 %v5973, 1.442695
    %v6031 = vpow.pop %v6030
    %v6032 = vmul.f32 %v5974, 1.442695
    %v6033 = vpow.pop %v6032
    %v6034 = vmul.f32 %v5975, 1.442695
    %v6035 = vpow.pop %v6034
    %v6036 = vadd.f32 %v5977, 1.0
    %v6037 = vadd.f32 %v5979, 1.0
    %v6038 = vadd.f32 %v5981, 1.0
    %v6039 = vadd.f32 %v5983, 1.0
    %v6040 = vadd.f32 %v5985, 1.0
    %v6041 = vadd.f32 %v5987, 1.0
    %v6042 = vadd.f32 %v5989, 1.0
    %v6043 = vadd.f32 %v5991, 1.0
    %v6044 = vadd.f32 %v5993, 1.0
    %v6045 = vadd.f32 %v5995, 1.0
    %v6046 = vadd.f32 %v5997, 1.0
    %v6047 = vadd.f32 %v5999, 1.0
    %v6048 = vadd.f32 %v6001, 1.0
    %v6049 = vadd.f32 %v6003, 1.0
    %v6050 = vadd.f32 %v6005, 1.0
    %v6051 = vadd.f32 %v6007, 1.0
    %v6052 = vadd.f32 %v6009, 1.0
    %v6053 = vadd.f32 %v6011, 1.0
    %v6054 = vadd.f32 %v6013, 1.0
    %v6055 = vadd.f32 %v6015, 1.0
    %v6056 = vadd.f32 %v6017, 1.0
    %v6057 = vadd.f32 %v6019, 1.0
    %v6058 = vadd.f32 %v6021, 1.0
    %v6059 = vadd.f32 %v6023, 1.0
    %v6060 = vadd.f32 %v6025, 1.0
    %v6061 = vadd.f32 %v6027, 1.0
    %v6062 = vadd.f32 %v6029, 1.0
    %v6063 = vadd.f32 %v6031, 1.0
    %v6064 = vadd.f32 %v6033, 1.0
    %v6065 = vadd.f32 %v6035, 1.0
    %v6066 = vrcp.pop %v6036
    %v6067 = vrcp.pop %v6037
    %v6068 = vrcp.pop %v6038
    %v6069 = vrcp.pop %v6039
    %v6070 = vrcp.pop %v6040
    %v6071 = vrcp.pop %v6041
    %v6072 = vrcp.pop %v6042
    %v6073 = vrcp.pop %v6043
    %v6074 = vrcp.pop %v6044
    %v6075 = vrcp.pop %v6045
    %v6076 = vrcp.pop %v6046
    %v6077 = vrcp.pop %v6047
    %v6078 = vrcp.pop %v6048
    %v6079 = vrcp.pop %v6049
    %v6080 = vrcp.pop %v6050
    %v6081 = vrcp.pop %v6051
    %v6082 = vrcp.pop %v6052
    %v6083 = vrcp.pop %v6053
    %v6084 = vrcp.pop %v6054
    %v6085 = vrcp.pop %v6055
    %v6086 = vrcp.pop %v6056
    %v6087 = vrcp.pop %v6057
    %v6088 = vrcp.pop %v6058
    %v6089 = vrcp.pop %v6059
    %v6090 = vrcp.pop %v6060
    %v6091 = vrcp.pop %v6061
    %v6092 = vrcp.pop %v6062
    %v6093 = vrcp.pop %v6063
    %v6094 = vrcp.pop %v6064
    %v6095 = vrcp.pop %v6065
    %vm6096 = vcmp.ge.f32.partialorder %v5886, 0.0
    %vm6097 = vcmp.ge.f32.partialorder %v5887, 0.0
    %vm6098 = vcmp.ge.f32.partialorder %v5888, 0.0
    %vm6099 = vcmp.ge.f32.partialorder %v5889, 0.0
    %vm6100 = vcmp.ge.f32.partialorder %v5890, 0.0
    %vm6101 = vcmp.ge.f32.partialorder %v5891, 0.0
    %vm6102 = vcmp.ge.f32.partialorder %v5892, 0.0
    %vm6103 = vcmp.ge.f32.partialorder %v5893, 0.0
    %vm6104 = vcmp.ge.f32.partialorder %v5894, 0.0
    %vm6105 = vcmp.ge.f32.partialorder %v5895, 0.0
    %vm6106 = vcmp.ge.f32.partialorder %v5896, 0.0
    %vm6107 = vcmp.ge.f32.partialorder %v5897, 0.0
    %vm6108 = vcmp.ge.f32.partialorder %v5898, 0.0
    %vm6109 = vcmp.ge.f32.partialorder %v5899, 0.0
    %vm6110 = vcmp.ge.f32.partialorder %v5900, 0.0
    %vm6111 = vcmp.ge.f32.partialorder %v5901, 0.0
    %vm6112 = vcmp.ge.f32.partialorder %v5902, 0.0
    %vm6113 = vcmp.ge.f32.partialorder %v5903, 0.0
    %vm6114 = vcmp.ge.f32.partialorder %v5904, 0.0
    %vm6115 = vcmp.ge.f32.partialorder %v5905, 0.0
    %vm6116 = vcmp.ge.f32.partialorder %v5906, 0.0
    %vm6117 = vcmp.ge.f32.partialorder %v5907, 0.0
    %vm6118 = vcmp.ge.f32.partialorder %v5908, 0.0
    %vm6119 = vcmp.ge.f32.partialorder %v5909, 0.0
    %vm6120 = vcmp.ge.f32.partialorder %v5910, 0.0
    %vm6121 = vcmp.ge.f32.partialorder %v5911, 0.0
    %vm6122 = vcmp.ge.f32.partialorder %v5912, 0.0
    %vm6123 = vcmp.ge.f32.partialorder %v5913, 0.0
    %vm6124 = vcmp.ge.f32.partialorder %v5914, 0.0
    %vm6125 = vcmp.ge.f32.partialorder %v5915, 0.0
    %v6126 = vmul.f32 %v5977, %v6066
    %v6127 = vmul.f32 %v5979, %v6067
    %v6128 = vmul.f32 %v5981, %v6068
    %v6129 = vmul.f32 %v5983, %v6069
    %v6130 = vmul.f32 %v5985, %v6070
    %v6131 = vmul.f32 %v5987, %v6071
    %v6132 = vmul.f32 %v5989, %v6072
    %v6133 = vmul.f32 %v5991, %v6073
    %v6134 = vmul.f32 %v5993, %v6074
    %v6135 = vmul.f32 %v5995, %v6075
    %v6136 = vmul.f32 %v5997, %v6076
    %v6137 = vmul.f32 %v5999, %v6077
    %v6138 = vmul.f32 %v6001, %v6078
    %v6139 = vmul.f32 %v6003, %v6079
    %v6140 = vmul.f32 %v6005, %v6080
    %v6141 = vmul.f32 %v6007, %v6081
    %v6142 = vmul.f32 %v6009, %v6082
    %v6143 = vmul.f32 %v6011, %v6083
    %v6144 = vmul.f32 %v6013, %v6084
    %v6145 = vmul.f32 %v6015, %v6085
    %v6146 = vmul.f32 %v6017, %v6086
    %v6147 = vmul.f32 %v6019, %v6087
    %v6148 = vmul.f32 %v6021, %v6088
    %v6149 = vmul.f32 %v6023, %v6089
    %v6150 = vmul.f32 %v6025, %v6090
    %v6151 = vmul.f32 %v6027, %v6091
    %v6152 = vmul.f32 %v6029, %v6092
    %v6153 = vmul.f32 %v6031, %v6093
    %v6154 = vmul.f32 %v6033, %v6094
    %v6155 = vmul.f32 %v6035, %v6095
    %v6156 = vsel %vm6096, %v6066, %v6126
    %v6157 = vsel %vm6097, %v6067, %v6127
    %v6158 = vsel %vm6098, %v6068, %v6128
    %v6159 = vsel %vm6099, %v6069, %v6129
    %v6160 = vsel %vm6100, %v6070, %v6130
    %v6161 = vsel %vm6101, %v6071, %v6131
    %v6162 = vsel %vm6102, %v6072, %v6132
    %v6163 = vsel %vm6103, %v6073, %v6133
    %v6164 = vsel %vm6104, %v6074, %v6134
    %v6165 = vsel %vm6105, %v6075, %v6135
    %v6166 = vsel %vm6106, %v6076, %v6136
    %v6167 = vsel %vm6107, %v6077, %v6137
    %v6168 = vsel %vm6108, %v6078, %v6138
    %v6169 = vsel %vm6109, %v6079, %v6139
    %v6170 = vsel %vm6110, %v6080, %v6140
    %v6171 = vsel %vm6111, %v6081, %v6141
    %v6172 = vsel %vm6112, %v6082, %v6142
    %v6173 = vsel %vm6113, %v6083, %v6143
    %v6174 = vsel %vm6114, %v6084, %v6144
    %v6175 = vsel %vm6115, %v6085, %v6145
    %v6176 = vsel %vm6116, %v6086, %v6146
    %v6177 = vsel %vm6117, %v6087, %v6147
    %v6178 = vsel %vm6118, %v6088, %v6148
    %v6179 = vsel %vm6119, %v6089, %v6149
    %v6180 = vsel %vm6120, %v6090, %v6150
    %v6181 = vsel %vm6121, %v6091, %v6151
    %v6182 = vsel %vm6122, %v6092, %v6152
    %v6183 = vsel %vm6123, %v6093, %v6153
    %v6184 = vsel %vm6124, %v6094, %v6154
    %v6185 = vsel %vm6125, %v6095, %v6155
    %v6186 = vsub.f32 1.0, %v6156
    %v6187 = vsub.f32 1.0, %v6157
    %v6188 = vsub.f32 1.0, %v6158
    %v6189 = vsub.f32 1.0, %v6159
    %v6190 = vsub.f32 1.0, %v6160
    %v6191 = vsub.f32 1.0, %v6161
    %v6192 = vsub.f32 1.0, %v6162
    %v6193 = vsub.f32 1.0, %v6163
    %v6194 = vsub.f32 1.0, %v6164
    %v6195 = vsub.f32 1.0, %v6165
    %v6196 = vsub.f32 1.0, %v6166
    %v6197 = vsub.f32 1.0, %v6167
    %v6198 = vsub.f32 1.0, %v6168
    %v6199 = vsub.f32 1.0, %v6169
    %v6200 = vsub.f32 1.0, %v6170
    %v6201 = vsub.f32 1.0, %v6171
    %v6202 = vsub.f32 1.0, %v6172
    %v6203 = vsub.f32 1.0, %v6173
    %v6204 = vsub.f32 1.0, %v6174
    %v6205 = vsub.f32 1.0, %v6175
    %v6206 = vsub.f32 1.0, %v6176
    %v6207 = vsub.f32 1.0, %v6177
    %v6208 = vsub.f32 1.0, %v6178
    %v6209 = vsub.f32 1.0, %v6179
    %v6210 = vsub.f32 1.0, %v6180
    %v6211 = vsub.f32 1.0, %v6181
    %v6212 = vsub.f32 1.0, %v6182
    %v6213 = vsub.f32 1.0, %v6183
    %v6214 = vsub.f32 1.0, %v6184
    %v6215 = vsub.f32 1.0, %v6185
    %6217 = vset.pattern.permute.xlu0 0
    %6218 = vperm.xlu0 %6217, %v6156
    %v6219 = vpop.permute.xlu0 %6218
    %6222 = vset.pattern.permute.xlu0 0
    %6223 = vperm.xlu0 %6222, %v6157
    %v6224 = vpop.permute.xlu0 %6223
    %6227 = vset.pattern.permute.xlu0 0
    %6228 = vperm.xlu0 %6227, %v6158
    %v6229 = vpop.permute.xlu0 %6228
    %6232 = vset.pattern.permute.xlu0 0
    %6233 = vperm.xlu0 %6232, %v6159
    %v6234 = vpop.permute.xlu0 %6233
    %6237 = vset.pattern.permute.xlu0 0
    %6238 = vperm.xlu0 %6237, %v6160
    %v6239 = vpop.permute.xlu0 %6238
    %6242 = vset.pattern.permute.xlu0 0
    %6243 = vperm.xlu0 %6242, %v6161
    %v6244 = vpop.permute.xlu0 %6243
    %6247 = vset.pattern.permute.xlu0 0
    %6248 = vperm.xlu0 %6247, %v6162
    %v6249 = vpop.permute.xlu0 %6248
    %6252 = vset.pattern.permute.xlu0 0
    %6253 = vperm.xlu0 %6252, %v6163
    %v6254 = vpop.permute.xlu0 %6253
    %6257 = vset.pattern.permute.xlu0 0
    %6258 = vperm.xlu0 %6257, %v6164
    %v6259 = vpop.permute.xlu0 %6258
    %6262 = vset.pattern.permute.xlu0 0
    %6263 = vperm.xlu0 %6262, %v6165
    %v6264 = vpop.permute.xlu0 %6263
    %6267 = vset.pattern.permute.xlu0 0
    %6268 = vperm.xlu0 %6267, %v6166
    %v6269 = vpop.permute.xlu0 %6268
    %6272 = vset.pattern.permute.xlu0 0
    %6273 = vperm.xlu0 %6272, %v6167
    %v6274 = vpop.permute.xlu0 %6273
    %6277 = vset.pattern.permute.xlu0 0
    %6278 = vperm.xlu0 %6277, %v6168
    %v6279 = vpop.permute.xlu0 %6278
    %6282 = vset.pattern.permute.xlu0 0
    %6283 = vperm.xlu0 %6282, %v6169
    %v6284 = vpop.permute.xlu0 %6283
    %6287 = vset.pattern.permute.xlu0 0
    %6288 = vperm.xlu0 %6287, %v6170
    %v6289 = vpop.permute.xlu0 %6288
    %6292 = vset.pattern.permute.xlu0 0
    %6293 = vperm.xlu0 %6292, %v6171
    %v6294 = vpop.permute.xlu0 %6293
    %6297 = vset.pattern.permute.xlu0 0
    %6298 = vperm.xlu0 %6297, %v6172
    %v6299 = vpop.permute.xlu0 %6298
    %6302 = vset.pattern.permute.xlu0 0
    %6303 = vperm.xlu0 %6302, %v6173
    %v6304 = vpop.permute.xlu0 %6303
    %6307 = vset.pattern.permute.xlu0 0
    %6308 = vperm.xlu0 %6307, %v6174
    %v6309 = vpop.permute.xlu0 %6308
    %6312 = vset.pattern.permute.xlu0 0
    %6313 = vperm.xlu0 %6312, %v6175
    %v6314 = vpop.permute.xlu0 %6313
    %6317 = vset.pattern.permute.xlu0 0
    %6318 = vperm.xlu0 %6317, %v6176
    %v6319 = vpop.permute.xlu0 %6318
    %6322 = vset.pattern.permute.xlu0 0
    %6323 = vperm.xlu0 %6322, %v6177
    %v6324 = vpop.permute.xlu0 %6323
    %6327 = vset.pattern.permute.xlu0 0
    %6328 = vperm.xlu0 %6327, %v6178
    %v6329 = vpop.permute.xlu0 %6328
    %6332 = vset.pattern.permute.xlu0 0
    %6333 = vperm.xlu0 %6332, %v6179
    %v6334 = vpop.permute.xlu0 %6333
    %6337 = vset.pattern.permute.xlu0 0
    %6338 = vperm.xlu0 %6337, %v6180
    %v6339 = vpop.permute.xlu0 %6338
    %6342 = vset.pattern.permute.xlu0 0
    %6343 = vperm.xlu0 %6342, %v6181
    %v6344 = vpop.permute.xlu0 %6343
    %6347 = vset.pattern.permute.xlu0 0
    %6348 = vperm.xlu0 %6347, %v6182
    %v6349 = vpop.permute.xlu0 %6348
    %6352 = vset.pattern.permute.xlu0 0
    %6353 = vperm.xlu0 %6352, %v6183
    %v6354 = vpop.permute.xlu0 %6353
    %6357 = vset.pattern.permute.xlu0 0
    %6358 = vperm.xlu0 %6357, %v6184
    %v6359 = vpop.permute.xlu0 %6358
    %6362 = vset.pattern.permute.xlu0 0
    %6363 = vperm.xlu0 %6362, %v6185
    %v6364 = vpop.permute.xlu0 %6363
    %6367 = vset.pattern.permute.xlu0 0
    %6368 = vperm.xlu0 %6367, %v6186
    %v6369 = vpop.permute.xlu0 %6368
    %6372 = vset.pattern.permute.xlu0 0
    %6373 = vperm.xlu0 %6372, %v6187
    %v6374 = vpop.permute.xlu0 %6373
    %6377 = vset.pattern.permute.xlu0 0
    %6378 = vperm.xlu0 %6377, %v6188
    %v6379 = vpop.permute.xlu0 %6378
    %6382 = vset.pattern.permute.xlu0 0
    %6383 = vperm.xlu0 %6382, %v6189
    %v6384 = vpop.permute.xlu0 %6383
    %6387 = vset.pattern.permute.xlu0 0
    %6388 = vperm.xlu0 %6387, %v6190
    %v6389 = vpop.permute.xlu0 %6388
    %6392 = vset.pattern.permute.xlu0 0
    %6393 = vperm.xlu0 %6392, %v6191
    %v6394 = vpop.permute.xlu0 %6393
    %6397 = vset.pattern.permute.xlu0 0
    %6398 = vperm.xlu0 %6397, %v6192
    %v6399 = vpop.permute.xlu0 %6398
    %6402 = vset.pattern.permute.xlu0 0
    %6403 = vperm.xlu0 %6402, %v6193
    %v6404 = vpop.permute.xlu0 %6403
    %6407 = vset.pattern.permute.xlu0 0
    %6408 = vperm.xlu0 %6407, %v6194
    %v6409 = vpop.permute.xlu0 %6408
    %6412 = vset.pattern.permute.xlu0 0
    %6413 = vperm.xlu0 %6412, %v6195
    %v6414 = vpop.permute.xlu0 %6413
    %6417 = vset.pattern.permute.xlu0 0
    %6418 = vperm.xlu0 %6417, %v6196
    %v6419 = vpop.permute.xlu0 %6418
    %6422 = vset.pattern.permute.xlu0 0
    %6423 = vperm.xlu0 %6422, %v6197
    %v6424 = vpop.permute.xlu0 %6423
    %6427 = vset.pattern.permute.xlu0 0
    %6428 = vperm.xlu0 %6427, %v6198
    %v6429 = vpop.permute.xlu0 %6428
    %6432 = vset.pattern.permute.xlu0 0
    %6433 = vperm.xlu0 %6432, %v6199
    %v6434 = vpop.permute.xlu0 %6433
    %6437 = vset.pattern.permute.xlu0 0
    %6438 = vperm.xlu0 %6437, %v6200
    %v6439 = vpop.permute.xlu0 %6438
    %6442 = vset.pattern.permute.xlu0 0
    %6443 = vperm.xlu0 %6442, %v6201
    %v6444 = vpop.permute.xlu0 %6443
    %6447 = vset.pattern.permute.xlu0 0
    %6448 = vperm.xlu0 %6447, %v6202
    %v6449 = vpop.permute.xlu0 %6448
    %6452 = vset.pattern.permute.xlu0 0
    %6453 = vperm.xlu0 %6452, %v6203
    %v6454 = vpop.permute.xlu0 %6453
    %6457 = vset.pattern.permute.xlu0 0
    %6458 = vperm.xlu0 %6457, %v6204
    %v6459 = vpop.permute.xlu0 %6458
    %6462 = vset.pattern.permute.xlu0 0
    %6463 = vperm.xlu0 %6462, %v6205
    %v6464 = vpop.permute.xlu0 %6463
    %6467 = vset.pattern.permute.xlu0 0
    %6468 = vperm.xlu0 %6467, %v6206
    %v6469 = vpop.permute.xlu0 %6468
    %6472 = vset.pattern.permute.xlu0 0
    %6473 = vperm.xlu0 %6472, %v6207
    %v6474 = vpop.permute.xlu0 %6473
    %6477 = vset.pattern.permute.xlu0 0
    %6478 = vperm.xlu0 %6477, %v6208
    %v6479 = vpop.permute.xlu0 %6478
    %6482 = vset.pattern.permute.xlu0 0
    %6483 = vperm.xlu0 %6482, %v6209
    %v6484 = vpop.permute.xlu0 %6483
    %6487 = vset.pattern.permute.xlu0 0
    %6488 = vperm.xlu0 %6487, %v6210
    %v6489 = vpop.permute.xlu0 %6488
    %6492 = vset.pattern.permute.xlu0 0
    %6493 = vperm.xlu0 %6492, %v6211
    %v6494 = vpop.permute.xlu0 %6493
    %6497 = vset.pattern.permute.xlu0 0
    %6498 = vperm.xlu0 %6497, %v6212
    %v6499 = vpop.permute.xlu0 %6498
    %6502 = vset.pattern.permute.xlu0 0
    %6503 = vperm.xlu0 %6502, %v6213
    %v6504 = vpop.permute.xlu0 %6503
    %6507 = vset.pattern.permute.xlu0 0
    %6508 = vperm.xlu0 %6507, %v6214
    %v6509 = vpop.permute.xlu0 %6508
    %6512 = vset.pattern.permute.xlu0 0
    %6513 = vperm.xlu0 %6512, %v6215
    %v6514 = vpop.permute.xlu0 %6513
    %v6516 = vsel %vm4864, %v6219, %v6369
    %v6517 = vsel %vm4864, %v6224, %v6374
    %v6518 = vsel %vm4864, %v6229, %v6379
    %v6519 = vsel %vm4864, %v6234, %v6384
    %v6520 = vsel %vm4864, %v6239, %v6389
    %v6521 = vsel %vm4864, %v6244, %v6394
    %v6522 = vsel %vm4864, %v6249, %v6399
    %v6523 = vsel %vm4864, %v6254, %v6404
    %v6524 = vsel %vm4864, %v6259, %v6409
    %v6525 = vsel %vm4864, %v6264, %v6414
    %v6526 = vsel %vm4864, %v6269, %v6419
    %v6527 = vsel %vm4864, %v6274, %v6424
    %v6528 = vsel %vm4864, %v6279, %v6429
    %v6529 = vsel %vm4864, %v6284, %v6434
    %v6530 = vsel %vm4864, %v6289, %v6439
    %v6531 = vsel %vm4864, %v6294, %v6444
    %v6532 = vsel %vm4864, %v6299, %v6449
    %v6533 = vsel %vm4864, %v6304, %v6454
    %v6534 = vsel %vm4864, %v6309, %v6459
    %v6535 = vsel %vm4864, %v6314, %v6464
    %v6536 = vsel %vm4864, %v6319, %v6469
    %v6537 = vsel %vm4864, %v6324, %v6474
    %v6538 = vsel %vm4864, %v6329, %v6479
    %v6539 = vsel %vm4864, %v6334, %v6484
    %v6540 = vsel %vm4864, %v6339, %v6489
    %v6541 = vsel %vm4864, %v6344, %v6494
    %v6542 = vsel %vm4864, %v6349, %v6499
    %v6543 = vsel %vm4864, %v6354, %v6504
    %v6544 = vsel %vm4864, %v6359, %v6509
    %v6545 = vsel %vm4864, %v6364, %v6514
    %6547 = vset.pattern.permute.xlu0 0
    %6548 = vperm.xlu0 %6547, %v6516
    %v6549 = vpop.permute.xlu0 %6548
    %6552 = vset.pattern.permute.xlu0 0
    %6553 = vperm.xlu0 %6552, %v6517
    %v6554 = vpop.permute.xlu0 %6553
    %6557 = vset.pattern.permute.xlu0 0
    %6558 = vperm.xlu0 %6557, %v6518
    %v6559 = vpop.permute.xlu0 %6558
    %6562 = vset.pattern.permute.xlu0 0
    %6563 = vperm.xlu0 %6562, %v6519
    %v6564 = vpop.permute.xlu0 %6563
    %6567 = vset.pattern.permute.xlu0 0
    %6568 = vperm.xlu0 %6567, %v6520
    %v6569 = vpop.permute.xlu0 %6568
    %6572 = vset.pattern.permute.xlu0 0
    %6573 = vperm.xlu0 %6572, %v6521
    %v6574 = vpop.permute.xlu0 %6573
    %6577 = vset.pattern.permute.xlu0 0
    %6578 = vperm.xlu0 %6577, %v6522
    %v6579 = vpop.permute.xlu0 %6578
    %6582 = vset.pattern.permute.xlu0 0
    %6583 = vperm.xlu0 %6582, %v6523
    %v6584 = vpop.permute.xlu0 %6583
    %6587 = vset.pattern.permute.xlu0 0
    %6588 = vperm.xlu0 %6587, %v6524
    %v6589 = vpop.permute.xlu0 %6588
    %6592 = vset.pattern.permute.xlu0 0
    %6593 = vperm.xlu0 %6592, %v6525
    %v6594 = vpop.permute.xlu0 %6593
    %6597 = vset.pattern.permute.xlu0 0
    %6598 = vperm.xlu0 %6597, %v6526
    %v6599 = vpop.permute.xlu0 %6598
    %6602 = vset.pattern.permute.xlu0 0
    %6603 = vperm.xlu0 %6602, %v6527
    %v6604 = vpop.permute.xlu0 %6603
    %6607 = vset.pattern.permute.xlu0 0
    %6608 = vperm.xlu0 %6607, %v6528
    %v6609 = vpop.permute.xlu0 %6608
    %6612 = vset.pattern.permute.xlu0 0
    %6613 = vperm.xlu0 %6612, %v6529
    %v6614 = vpop.permute.xlu0 %6613
    %6617 = vset.pattern.permute.xlu0 0
    %6618 = vperm.xlu0 %6617, %v6530
    %v6619 = vpop.permute.xlu0 %6618
    %6622 = vset.pattern.permute.xlu0 0
    %6623 = vperm.xlu0 %6622, %v6531
    %v6624 = vpop.permute.xlu0 %6623
    %6627 = vset.pattern.permute.xlu0 0
    %6628 = vperm.xlu0 %6627, %v6532
    %v6629 = vpop.permute.xlu0 %6628
    %6632 = vset.pattern.permute.xlu0 0
    %6633 = vperm.xlu0 %6632, %v6533
    %v6634 = vpop.permute.xlu0 %6633
    %6637 = vset.pattern.permute.xlu0 0
    %6638 = vperm.xlu0 %6637, %v6534
    %v6639 = vpop.permute.xlu0 %6638
    %6642 = vset.pattern.permute.xlu0 0
    %6643 = vperm.xlu0 %6642, %v6535
    %v6644 = vpop.permute.xlu0 %6643
    %6647 = vset.pattern.permute.xlu0 0
    %6648 = vperm.xlu0 %6647, %v6536
    %v6649 = vpop.permute.xlu0 %6648
    %6652 = vset.pattern.permute.xlu0 0
    %6653 = vperm.xlu0 %6652, %v6537
    %v6654 = vpop.permute.xlu0 %6653
    %6657 = vset.pattern.permute.xlu0 0
    %6658 = vperm.xlu0 %6657, %v6538
    %v6659 = vpop.permute.xlu0 %6658
    %6662 = vset.pattern.permute.xlu0 0
    %6663 = vperm.xlu0 %6662, %v6539
    %v6664 = vpop.permute.xlu0 %6663
    %6667 = vset.pattern.permute.xlu0 0
    %6668 = vperm.xlu0 %6667, %v6540
    %v6669 = vpop.permute.xlu0 %6668
    %6672 = vset.pattern.permute.xlu0 0
    %6673 = vperm.xlu0 %6672, %v6541
    %v6674 = vpop.permute.xlu0 %6673
    %6677 = vset.pattern.permute.xlu0 0
    %6678 = vperm.xlu0 %6677, %v6542
    %v6679 = vpop.permute.xlu0 %6678
    %6682 = vset.pattern.permute.xlu0 0
    %6683 = vperm.xlu0 %6682, %v6543
    %v6684 = vpop.permute.xlu0 %6683
    %6687 = vset.pattern.permute.xlu0 0
    %6688 = vperm.xlu0 %6687, %v6544
    %v6689 = vpop.permute.xlu0 %6688
    %6692 = vset.pattern.permute.xlu0 0
    %6693 = vperm.xlu0 %6692, %v6545
    %v6694 = vpop.permute.xlu0 %6693
    %v6696 = vmul.f32 %v69, %v6549
    %v6697 = vmul.f32 %v70, %v6554
    %v6698 = vmul.f32 %v71, %v6559
    %v6699 = vmul.f32 %v72, %v6564
    %v6700 = vmul.f32 %v73, %v6569
    %v6701 = vmul.f32 %v74, %v6574
    %v6702 = vmul.f32 %v75, %v6579
    %v6703 = vmul.f32 %v76, %v6584
    %v6704 = vmul.f32 %v77, %v6589
    %v6705 = vmul.f32 %v78, %v6594
    %v6706 = vmul.f32 %v79, %v6599
    %v6707 = vmul.f32 %v80, %v6604
    %v6708 = vmul.f32 %v81, %v6609
    %v6709 = vmul.f32 %v82, %v6614
    %v6710 = vmul.f32 %v83, %v6619
    %v6711 = vmul.f32 %v84, %v6624
    %v6712 = vmul.f32 %v85, %v6629
    %v6713 = vmul.f32 %v86, %v6634
    %v6714 = vmul.f32 %v87, %v6639
    %v6715 = vmul.f32 %v88, %v6644
    %v6716 = vmul.f32 %v89, %v6649
    %v6717 = vmul.f32 %v90, %v6654
    %v6718 = vmul.f32 %v91, %v6659
    %v6719 = vmul.f32 %v92, %v6664
    %v6720 = vmul.f32 %v93, %v6669
    %v6721 = vmul.f32 %v94, %v6674
    %v6722 = vmul.f32 %v95, %v6679
    %v6723 = vmul.f32 %v96, %v6684
    %v6724 = vmul.f32 %v97, %v6689
    %v6725 = vmul.f32 %v98, %v6694
    %6726 = vxpose.xlu0.b32.start [1/16] %v6696, 128
    %6727 = vxpose.xlu0.b32.cont [2/16] %v6697, 128
    %6728 = vxpose.xlu0.b32.cont [3/16] %v6698, 128
    %6729 = vxpose.xlu0.b32.cont [4/16] %v6699, 128
    %6730 = vxpose.xlu0.b32.cont [5/16] %v6700, 128
    %6731 = vxpose.xlu0.b32.cont [6/16] %v6701, 128
    %6732 = vxpose.xlu0.b32.cont [7/16] %v6702, 128
    %6733 = vxpose.xlu0.b32.cont [8/16] %v6703, 128
    %6734 = vxpose.xlu0.b32.cont [9/16] %v6704, 128
    %6735 = vxpose.xlu0.b32.cont [10/16] %v6705, 128
    %6736 = vxpose.xlu0.b32.cont [11/16] %v6706, 128
    %6737 = vxpose.xlu0.b32.cont [12/16] %v6707, 128
    %6738 = vxpose.xlu0.b32.cont [13/16] %v6708, 128
    %6739 = vxpose.xlu0.b32.cont [14/16] %v6709, 128
    %6740 = vxpose.xlu0.b32.cont [15/16] %v6710, 128
    %6741 = vxpose.xlu0.b32.end [16/16] %v6711, 128
    %v6742 = vpop.trf.xlu0
    %v6743 = vpop.trf.xlu0
    %v6744 = vpop.trf.xlu0
    %v6745 = vpop.trf.xlu0
    %v6746 = vpop.trf.xlu0
    %v6747 = vpop.trf.xlu0
    %v6748 = vpop.trf.xlu0
    %v6749 = vpop.trf.xlu0
    %v6750 = vpop.trf.xlu0
    %v6751 = vpop.trf.xlu0
    %v6752 = vpop.trf.xlu0
    %v6753 = vpop.trf.xlu0
    %v6754 = vpop.trf.xlu0
    %v6755 = vpop.trf.xlu0
    %v6756 = vpop.trf.xlu0
    %v6757 = vpop.trf.xlu0
    %6758 = vxpose.xlu0.b32.start [1/16] %v6712, 128
    %6759 = vxpose.xlu0.b32.cont [2/16] %v6713, 128
    %6760 = vxpose.xlu0.b32.cont [3/16] %v6714, 128
    %6761 = vxpose.xlu0.b32.cont [4/16] %v6715, 128
    %6762 = vxpose.xlu0.b32.cont [5/16] %v6716, 128
    %6763 = vxpose.xlu0.b32.cont [6/16] %v6717, 128
    %6764 = vxpose.xlu0.b32.cont [7/16] %v6718, 128
    %6765 = vxpose.xlu0.b32.cont [8/16] %v6719, 128
    %6766 = vxpose.xlu0.b32.cont [9/16] %v6720, 128
    %6767 = vxpose.xlu0.b32.cont [10/16] %v6721, 128
    %6768 = vxpose.xlu0.b32.cont [11/16] %v6722, 128
    %6769 = vxpose.xlu0.b32.cont [12/16] %v6723, 128
    %6770 = vxpose.xlu0.b32.cont [13/16] %v6724, 128
    %6771 = vxpose.xlu0.b32.cont [14/16] %v6725, 128
    %6772 = vxpose.xlu0.b32.cont [15/16] 0.0, 128
    %6773 = vxpose.xlu0.b32.end [16/16] 0.0, 128
    %v6774 = vpop.trf.xlu0
    %v6775 = vpop.trf.xlu0
    %v6776 = vpop.trf.xlu0
    %v6777 = vpop.trf.xlu0
    %v6778 = vpop.trf.xlu0
    %v6779 = vpop.trf.xlu0
    %v6780 = vpop.trf.xlu0
    %v6781 = vpop.trf.xlu0
    %v6782 = vpop.trf.xlu0
    %v6783 = vpop.trf.xlu0
    %v6784 = vpop.trf.xlu0
    %v6785 = vpop.trf.xlu0
    %v6786 = vpop.trf.xlu0
    %v6787 = vpop.trf.xlu0
    %v6788 = vpop.trf.xlu0
    %v6789 = vpop.trf.xlu0
    %v6791 = vsel %vm2254, %v6774, 0
    %v6794 = vsel %vm2254, %v6775, 0
    %6796 = vmatprep.subr.mxu0 0.0
    %6797 = vmatpush1.msra.mxu0 %v99
    %6798 = vmatprep.subr.mxu0 0.0
    %6799 = vmatpush1.msra.mxu0 %v100
    %6800 = vmatprep.subr.mxu0 0.0
    %6801 = vmatpush1.msra.mxu0 %v101
    %6802 = vmatprep.subr.mxu0 0.0
    %6803 = vmatpush1.msra.mxu0 %v102
    %6804 = vmatprep.subr.mxu0 0.0
    %6805 = vmatpush1.msra.mxu0 %v103
    %6806 = vmatprep.subr.mxu0 0.0
    %6807 = vmatpush1.msra.mxu0 %v104
    %6808 = vmatprep.subr.mxu0 0.0
    %6809 = vmatpush1.msra.mxu0 %v105
    %6810 = vmatprep.subr.mxu0 0.0
    %6811 = vmatpush1.msra.mxu0 %v106
    %6812 = vmatprep.subr.mxu0 0.0
    %6813 = vmatpush1.msra.mxu0 %v107
    %6814 = vmatprep.subr.mxu0 0.0
    %6815 = vmatpush1.msra.mxu0 %v108
    %6816 = vmatprep.subr.mxu0 0.0
    %6817 = vmatpush1.msra.mxu0 %v109
    %6818 = vmatprep.subr.mxu0 0.0
    %6819 = vmatpush1.msra.mxu0 %v110
    %6820 = vmatprep.subr.mxu0 0.0
    %6821 = vmatpush1.msra.mxu0 %v111
    %6822 = vmatprep.subr.mxu0 0.0
    %6823 = vmatpush1.msra.mxu0 %v112
    %6824 = vmatprep.subr.mxu0 0.0
    %6825 = vmatpush1.msra.mxu0 %v113
    %6826 = vmatprep.subr.mxu0 0.0
    %6827 = vmatpush1.msra.mxu0 %v114
    %6828 = vmatprep.subr.mxu0 0.0
    %6829 = vmatpush1.msra.mxu0 %v115
    %6830 = vmatprep.subr.mxu0 0.0
    %6831 = vmatpush1.msra.mxu0 %v116
    %6832 = vmatprep.subr.mxu0 0.0
    %6833 = vmatpush1.msra.mxu0 %v117
    %6834 = vmatprep.subr.mxu0 0.0
    %6835 = vmatpush1.msra.mxu0 %v118
    %6836 = vmatprep.subr.mxu0 0.0
    %6837 = vmatpush1.msra.mxu0 %v119
    %6838 = vmatprep.subr.mxu0 0.0
    %6839 = vmatpush1.msra.mxu0 %v120
    %6840 = vmatprep.subr.mxu0 0.0
    %6841 = vmatpush1.msra.mxu0 %v121
    %6842 = vmatprep.subr.mxu0 0.0
    %6843 = vmatpush1.msra.mxu0 %v122
    %6844 = vmatprep.subr.mxu0 0.0
    %6845 = vmatpush1.msra.mxu0 %v123
    %6846 = vmatprep.subr.mxu0 0.0
    %6847 = vmatpush1.msra.mxu0 %v124
    %6848 = vmatprep.subr.mxu0 0.0
    %6849 = vmatpush1.msra.mxu0 %v125
    %6850 = vmatprep.subr.mxu0 0.0
    %6851 = vmatpush1.msra.mxu0 %v126
    %6852 = vmatprep.subr.mxu0 0.0
    %6853 = vmatpush1.msra.mxu0 %v127
    %6854 = vmatprep.subr.mxu0 0.0
    %6855 = vmatpush1.msra.mxu0 %v128
    %6856 = vmatprep.subr.mxu0 0.0
    %6857 = vmatpush1.msra.mxu0 0.0
    %6858 = vmatprep.subr.mxu0 0.0
    %6859 = vmatpush1.msra.mxu0 0.0
    %6860 = vmatprep.mubr.f32.mxu0 %v6791
    %6861 = vmatmul.mubr.f32.gmra.mrb[0].mxu0 %v6742
    %v6862 = vpop.f32.mrb[0].mxu0
    %v6863 = vadd.f32 0.0, %v6862
    %v6864 = vpop.f32.mrb[0].mxu0
    %6865 = vmatprep.mubr.f32.mxu0 %v6794
    %6866 = vmatmul.mubr.f32.gmra.mrb[0].mxu0 %v6743
    %v6867 = vpop.f32.mrb[0].mxu0
    %v6868 = vadd.f32 0.0, %v6867
    %v6869 = vpop.f32.mrb[0].mxu0
    %6870 = vdwg.mxu0
    %6871 = vst.msk [vmem:[#allocation2] sm:$0xff] %vm355, %v6863
    %6872 = vst.msk [vmem:[#allocation2 + $0x8] sm:$0xff] %vm355, %v6868
    %6873 = vset.pattern.permute.xlu0 1
    %6874 = vperm.xlu0 %6873, %v6516
    %v6875 = vpop.permute.xlu0 %6874
    %6877 = vset.pattern.permute.xlu0 1
    %6878 = vperm.xlu0 %6877, %v6517
    %v6879 = vpop.permute.xlu0 %6878
    %6881 = vset.pattern.permute.xlu0 1
    %6882 = vperm.xlu0 %6881, %v6518
    %v6883 = vpop.permute.xlu0 %6882
    %6885 = vset.pattern.permute.xlu0 1
    %6886 = vperm.xlu0 %6885, %v6519
    %v6887 = vpop.permute.xlu0 %6886
    %6889 = vset.pattern.permute.xlu0 1
    %6890 = vperm.xlu0 %6889, %v6520
    %v6891 = vpop.permute.xlu0 %6890
    %6893 = vset.pattern.permute.xlu0 1
    %6894 = vperm.xlu0 %6893, %v6521
    %v6895 = vpop.permute.xlu0 %6894
    %6897 = vset.pattern.permute.xlu0 1
    %6898 = vperm.xlu0 %6897, %v6522
    %v6899 = vpop.permute.xlu0 %6898
    %6901 = vset.pattern.permute.xlu0 1
    %6902 = vperm.xlu0 %6901, %v6523
    %v6903 = vpop.permute.xlu0 %6902
    %6905 = vset.pattern.permute.xlu0 1
    %6906 = vperm.xlu0 %6905, %v6524
    %v6907 = vpop.permute.xlu0 %6906
    %6909 = vset.pattern.permute.xlu0 1
    %6910 = vperm.xlu0 %6909, %v6525
    %v6911 = vpop.permute.xlu0 %6910
    %6913 = vset.pattern.permute.xlu0 1
    %6914 = vperm.xlu0 %6913, %v6526
    %v6915 = vpop.permute.xlu0 %6914
    %6917 = vset.pattern.permute.xlu0 1
    %6918 = vperm.xlu0 %6917, %v6527
    %v6919 = vpop.permute.xlu0 %6918
    %6921 = vset.pattern.permute.xlu0 1
    %6922 = vperm.xlu0 %6921, %v6528
    %v6923 = vpop.permute.xlu0 %6922
    %6925 = vset.pattern.permute.xlu0 1
    %6926 = vperm.xlu0 %6925, %v6529
    %v6927 = vpop.permute.xlu0 %6926
    %6929 = vset.pattern.permute.xlu0 1
    %6930 = vperm.xlu0 %6929, %v6530
    %v6931 = vpop.permute.xlu0 %6930
    %6933 = vset.pattern.permute.xlu0 1
    %6934 = vperm.xlu0 %6933, %v6531
    %v6935 = vpop.permute.xlu0 %6934
    %6937 = vset.pattern.permute.xlu0 1
    %6938 = vperm.xlu0 %6937, %v6532
    %v6939 = vpop.permute.xlu0 %6938
    %6941 = vset.pattern.permute.xlu0 1
    %6942 = vperm.xlu0 %6941, %v6533
    %v6943 = vpop.permute.xlu0 %6942
    %6945 = vset.pattern.permute.xlu0 1
    %6946 = vperm.xlu0 %6945, %v6534
    %v6947 = vpop.permute.xlu0 %6946
    %6949 = vset.pattern.permute.xlu0 1
    %6950 = vperm.xlu0 %6949, %v6535
    %v6951 = vpop.permute.xlu0 %6950
    %6953 = vset.pattern.permute.xlu0 1
    %6954 = vperm.xlu0 %6953, %v6536
    %v6955 = vpop.permute.xlu0 %6954
    %6957 = vset.pattern.permute.xlu0 1
    %6958 = vperm.xlu0 %6957, %v6537
    %v6959 = vpop.permute.xlu0 %6958
    %6961 = vset.pattern.permute.xlu0 1
    %6962 = vperm.xlu0 %6961, %v6538
    %v6963 = vpop.permute.xlu0 %6962
    %6965 = vset.pattern.permute.xlu0 1
    %6966 = vperm.xlu0 %6965, %v6539
    %v6967 = vpop.permute.xlu0 %6966
    %6969 = vset.pattern.permute.xlu0 1
    %6970 = vperm.xlu0 %6969, %v6540
    %v6971 = vpop.permute.xlu0 %6970
    %6973 = vset.pattern.permute.xlu0 1
    %6974 = vperm.xlu0 %6973, %v6541
    %v6975 = vpop.permute.xlu0 %6974
    %6977 = vset.pattern.permute.xlu0 1
    %6978 = vperm.xlu0 %6977, %v6542
    %v6979 = vpop.permute.xlu0 %6978
    %6981 = vset.pattern.permute.xlu0 1
    %6982 = vperm.xlu0 %6981, %v6543
    %v6983 = vpop.permute.xlu0 %6982
    %6985 = vset.pattern.permute.xlu0 1
    %6986 = vperm.xlu0 %6985, %v6544
    %v6987 = vpop.permute.xlu0 %6986
    %6989 = vset.pattern.permute.xlu0 1
    %6990 = vperm.xlu0 %6989, %v6545
    %v6991 = vpop.permute.xlu0 %6990
    %v6993 = vmul.f32 %v69, %v6875
    %v6994 = vmul.f32 %v70, %v6879
    %v6995 = vmul.f32 %v71, %v6883
    %v6996 = vmul.f32 %v72, %v6887
    %v6997 = vmul.f32 %v73, %v6891
    %v6998 = vmul.f32 %v74, %v6895
    %v6999 = vmul.f32 %v75, %v6899
    %v7000 = vmul.f32 %v76, %v6903
    %v7001 = vmul.f32 %v77, %v6907
    %v7002 = vmul.f32 %v78, %v6911
    %v7003 = vmul.f32 %v79, %v6915
    %v7004 = vmul.f32 %v80, %v6919
    %v7005 = vmul.f32 %v81, %v6923
    %v7006 = vmul.f32 %v82, %v6927
    %v7007 = vmul.f32 %v83, %v6931
    %v7008 = vmul.f32 %v84, %v6935
    %v7009 = vmul.f32 %v85, %v6939
    %v7010 = vmul.f32 %v86, %v6943
    %v7011 = vmul.f32 %v87, %v6947
    %v7012 = vmul.f32 %v88, %v6951
    %v7013 = vmul.f32 %v89, %v6955
    %v7014 = vmul.f32 %v90, %v6959
    %v7015 = vmul.f32 %v91, %v6963
    %v7016 = vmul.f32 %v92, %v6967
    %v7017 = vmul.f32 %v93, %v6971
    %v7018 = vmul.f32 %v94, %v6975
    %v7019 = vmul.f32 %v95, %v6979
    %v7020 = vmul.f32 %v96, %v6983
    %v7021 = vmul.f32 %v97, %v6987
    %v7022 = vmul.f32 %v98, %v6991
    %7023 = vxpose.xlu0.b32.start [1/16] %v6993, 128
    %7024 = vxpose.xlu0.b32.cont [2/16] %v6994, 128
    %7025 = vxpose.xlu0.b32.cont [3/16] %v6995, 128
    %7026 = vxpose.xlu0.b32.cont [4/16] %v6996, 128
    %7027 = vxpose.xlu0.b32.cont [5/16] %v6997, 128
    %7028 = vxpose.xlu0.b32.cont [6/16] %v6998, 128
    %7029 = vxpose.xlu0.b32.cont [7/16] %v6999, 128
    %7030 = vxpose.xlu0.b32.cont [8/16] %v7000, 128
    %7031 = vxpose.xlu0.b32.cont [9/16] %v7001, 128
    %7032 = vxpose.xlu0.b32.cont [10/16] %v7002, 128
    %7033 = vxpose.xlu0.b32.cont [11/16] %v7003, 128
    %7034 = vxpose.xlu0.b32.cont [12/16] %v7004, 128
    %7035 = vxpose.xlu0.b32.cont [13/16] %v7005, 128
    %7036 = vxpose.xlu0.b32.cont [14/16] %v7006, 128
    %7037 = vxpose.xlu0.b32.cont [15/16] %v7007, 128
    %7038 = vxpose.xlu0.b32.end [16/16] %v7008, 128
    %v7039 = vpop.trf.xlu0
    %v7040 = vpop.trf.xlu0
    %v7041 = vpop.trf.xlu0
    %v7042 = vpop.trf.xlu0
    %v7043 = vpop.trf.xlu0
    %v7044 = vpop.trf.xlu0
    %v7045 = vpop.trf.xlu0
    %v7046 = vpop.trf.xlu0
    %v7047 = vpop.trf.xlu0
    %v7048 = vpop.trf.xlu0
    %v7049 = vpop.trf.xlu0
    %v7050 = vpop.trf.xlu0
    %v7051 = vpop.trf.xlu0
    %v7052 = vpop.trf.xlu0
    %v7053 = vpop.trf.xlu0
    %v7054 = vpop.trf.xlu0
    %7055 = vxpose.xlu0.b32.start [1/16] %v7009, 128
    %7056 = vxpose.xlu0.b32.cont [2/16] %v7010, 128
    %7057 = vxpose.xlu0.b32.cont [3/16] %v7011, 128
    %7058 = vxpose.xlu0.b32.cont [4/16] %v7012, 128
    %7059 = vxpose.xlu0.b32.cont [5/16] %v7013, 128
    %7060 = vxpose.xlu0.b32.cont [6/16] %v7014, 128
    %7061 = vxpose.xlu0.b32.cont [7/16] %v7015, 128
    %7062 = vxpose.xlu0.b32.cont [8/16] %v7016, 128
    %7063 = vxpose.xlu0.b32.cont [9/16] %v7017, 128
    %7064 = vxpose.xlu0.b32.cont [10/16] %v7018, 128
    %7065 = vxpose.xlu0.b32.cont [11/16] %v7019, 128
    %7066 = vxpose.xlu0.b32.cont [12/16] %v7020, 128
    %7067 = vxpose.xlu0.b32.cont [13/16] %v7021, 128
    %7068 = vxpose.xlu0.b32.cont [14/16] %v7022, 128
    %7069 = vxpose.xlu0.b32.cont [15/16] 0.0, 128
    %7070 = vxpose.xlu0.b32.end [16/16] 0.0, 128
    %v7071 = vpop.trf.xlu0
    %v7072 = vpop.trf.xlu0
    %v7073 = vpop.trf.xlu0
    %v7074 = vpop.trf.xlu0
    %v7075 = vpop.trf.xlu0
    %v7076 = vpop.trf.xlu0
    %v7077 = vpop.trf.xlu0
    %v7078 = vpop.trf.xlu0
    %v7079 = vpop.trf.xlu0
    %v7080 = vpop.trf.xlu0
    %v7081 = vpop.trf.xlu0
    %v7082 = vpop.trf.xlu0
    %v7083 = vpop.trf.xlu0
    %v7084 = vpop.trf.xlu0
    %v7085 = vpop.trf.xlu0
    %v7086 = vpop.trf.xlu0
    %v7088 = vsel %vm2254, %v7071, 0
    %v7091 = vsel %vm2254, %v7072, 0
    %7093 = vmatprep.subr.mxu0 0.0
    %7094 = vmatpush1.msra.mxu0 %v99
    %7095 = vmatprep.subr.mxu0 0.0
    %7096 = vmatpush1.msra.mxu0 %v100
    %7097 = vmatprep.subr.mxu0 0.0
    %7098 = vmatpush1.msra.mxu0 %v101
    %7099 = vmatprep.subr.mxu0 0.0
    %7100 = vmatpush1.msra.mxu0 %v102
    %7101 = vmatprep.subr.mxu0 0.0
    %7102 = vmatpush1.msra.mxu0 %v103
    %7103 = vmatprep.subr.mxu0 0.0
    %7104 = vmatpush1.msra.mxu0 %v104
    %7105 = vmatprep.subr.mxu0 0.0
    %7106 = vmatpush1.msra.mxu0 %v105
    %7107 = vmatprep.subr.mxu0 0.0
    %7108 = vmatpush1.msra.mxu0 %v106
    %7109 = vmatprep.subr.mxu0 0.0
    %7110 = vmatpush1.msra.mxu0 %v107
    %7111 = vmatprep.subr.mxu0 0.0
    %7112 = vmatpush1.msra.mxu0 %v108
    %7113 = vmatprep.subr.mxu0 0.0
    %7114 = vmatpush1.msra.mxu0 %v109
    %7115 = vmatprep.subr.mxu0 0.0
    %7116 = vmatpush1.msra.mxu0 %v110
    %7117 = vmatprep.subr.mxu0 0.0
    %7118 = vmatpush1.msra.mxu0 %v111
    %7119 = vmatprep.subr.mxu0 0.0
    %7120 = vmatpush1.msra.mxu0 %v112
    %7121 = vmatprep.subr.mxu0 0.0
    %7122 = vmatpush1.msra.mxu0 %v113
    %7123 = vmatprep.subr.mxu0 0.0
    %7124 = vmatpush1.msra.mxu0 %v114
    %7125 = vmatprep.subr.mxu0 0.0
    %7126 = vmatpush1.msra.mxu0 %v115
    %7127 = vmatprep.subr.mxu0 0.0
    %7128 = vmatpush1.msra.mxu0 %v116
    %7129 = vmatprep.subr.mxu0 0.0
    %7130 = vmatpush1.msra.mxu0 %v117
    %7131 = vmatprep.subr.mxu0 0.0
    %7132 = vmatpush1.msra.mxu0 %v118
    %7133 = vmatprep.subr.mxu0 0.0
    %7134 = vmatpush1.msra.mxu0 %v119
    %7135 = vmatprep.subr.mxu0 0.0
    %7136 = vmatpush1.msra.mxu0 %v120
    %7137 = vmatprep.subr.mxu0 0.0
    %7138 = vmatpush1.msra.mxu0 %v121
    %7139 = vmatprep.subr.mxu0 0.0
    %7140 = vmatpush1.msra.mxu0 %v122
    %7141 = vmatprep.subr.mxu0 0.0
    %7142 = vmatpush1.msra.mxu0 %v123
    %7143 = vmatprep.subr.mxu0 0.0
    %7144 = vmatpush1.msra.mxu0 %v124
    %7145 = vmatprep.subr.mxu0 0.0
    %7146 = vmatpush1.msra.mxu0 %v125
    %7147 = vmatprep.subr.mxu0 0.0
    %7148 = vmatpush1.msra.mxu0 %v126
    %7149 = vmatprep.subr.mxu0 0.0
    %7150 = vmatpush1.msra.mxu0 %v127
    %7151 = vmatprep.subr.mxu0 0.0
    %7152 = vmatpush1.msra.mxu0 %v128
    %7153 = vmatprep.subr.mxu0 0.0
    %7154 = vmatpush1.msra.mxu0 0.0
    %7155 = vmatprep.subr.mxu0 0.0
    %7156 = vmatpush1.msra.mxu0 0.0
    %7157 = vmatprep.mubr.f32.mxu0 %v7088
    %7158 = vmatmul.mubr.f32.gmra.mrb[0].mxu0 %v7039
    %v7159 = vpop.f32.mrb[0].mxu0
    %v7160 = vadd.f32 0.0, %v7159
    %v7161 = vpop.f32.mrb[0].mxu0
    %7162 = vmatprep.mubr.f32.mxu0 %v7091
    %7163 = vmatmul.mubr.f32.gmra.mrb[0].mxu0 %v7040
    %v7164 = vpop.f32.mrb[0].mxu0
    %v7165 = vadd.f32 0.0, %v7164
    %v7166 = vpop.f32.mrb[0].mxu0
    %7167 = vdwg.mxu0
    %s7168 = scalar_lea.vmem [#allocation2], 16
    %7169 = vst.msk [vmem:[%s7168] sm:$0xff] %vm355, %v7160
    %7170 = vst.msk [vmem:[%s7168 + $0x8] sm:$0xff] %vm355, %v7165
    %7171 = vmatprep.subr.mxu0 0.0
    %7172 = vmatpush1.msra.mxu0 %v67
    %7173 = vmatprep.subr.mxu0 0.0
    %7174 = vmatpush1.msra.mxu0 %v68
    %7175 = vmatprep.subr.mxu0 0.0
    %7176 = vmatpush1.msra.mxu0 0.0
    %7177 = vmatprep.subr.mxu0 0.0
    %7178 = vmatpush1.msra.mxu0 0.0
    %7179 = vmatprep.subr.mxu0 0.0
    %7180 = vmatpush1.msra.mxu0 0.0
    %7181 = vmatprep.subr.mxu0 0.0
    %7182 = vmatpush1.msra.mxu0 0.0
    %7183 = vmatprep.subr.mxu0 0.0
    %7184 = vmatpush1.msra.mxu0 0.0
    %7185 = vmatprep.subr.mxu0 0.0
    %7186 = vmatpush1.msra.mxu0 0.0
    %7187 = vmatprep.subr.mxu0 0.0
    %7188 = vmatpush1.msra.mxu0 0.0
    %7189 = vmatprep.subr.mxu0 0.0
    %7190 = vmatpush1.msra.mxu0 0.0
    %7191 = vmatprep.subr.mxu0 0.0
    %7192 = vmatpush1.msra.mxu0 0.0
    %7193 = vmatprep.subr.mxu0 0.0
    %7194 = vmatpush1.msra.mxu0 0.0
    %7195 = vmatprep.subr.mxu0 0.0
    %7196 = vmatpush1.msra.mxu0 0.0
    %7197 = vmatprep.subr.mxu0 0.0
    %7198 = vmatpush1.msra.mxu0 0.0
    %7199 = vmatprep.subr.mxu0 0.0
    %7200 = vmatpush1.msra.mxu0 0.0
    %7201 = vmatprep.subr.mxu0 0.0
    %7202 = vmatpush1.msra.mxu0 0.0
    %7203 = vmatprep.subr.mxu0 0.0
    %7204 = vmatpush1.msra.mxu0 0.0
    %7205 = vmatprep.subr.mxu0 0.0
    %7206 = vmatpush1.msra.mxu0 0.0
    %7207 = vmatprep.subr.mxu0 0.0
    %7208 = vmatpush1.msra.mxu0 0.0
    %7209 = vmatprep.subr.mxu0 0.0
    %7210 = vmatpush1.msra.mxu0 0.0
    %7211 = vmatprep.subr.mxu0 0.0
    %7212 = vmatpush1.msra.mxu0 0.0
    %7213 = vmatprep.subr.mxu0 0.0
    %7214 = vmatpush1.msra.mxu0 0.0
    %7215 = vmatprep.subr.mxu0 0.0
    %7216 = vmatpush1.msra.mxu0 0.0
    %7217 = vmatprep.subr.mxu0 0.0
    %7218 = vmatpush1.msra.mxu0 0.0
    %7219 = vmatprep.subr.mxu0 0.0
    %7220 = vmatpush1.msra.mxu0 0.0
    %7221 = vmatprep.subr.mxu0 0.0
    %7222 = vmatpush1.msra.mxu0 0.0
    %7223 = vmatprep.subr.mxu0 0.0
    %7224 = vmatpush1.msra.mxu0 0.0
    %7225 = vmatprep.subr.mxu0 0.0
    %7226 = vmatpush1.msra.mxu0 0.0
    %7227 = vmatprep.subr.mxu0 0.0
    %7228 = vmatpush1.msra.mxu0 0.0
    %7229 = vmatprep.subr.mxu0 0.0
    %7230 = vmatpush1.msra.mxu0 0.0
    %7231 = vmatprep.subr.mxu0 0.0
    %7232 = vmatpush1.msra.mxu0 0.0
    %7233 = vmatprep.subr.mxu0 0.0
    %7234 = vmatpush1.msra.mxu0 0.0
    %7235 = vmatprep.mubr.f32.mxu0 0.0
    %7236 = vmatmul.mubr.f32.gmra.mrb[0].mxu0 %v357
    %v7237 = vpop.f32.mrb[0].mxu0
    %v7238 = vadd.f32 0.0, %v7237
    %v7239 = vpop.f32.mrb[0].mxu0
    %7240 = vmatprep.mubr.f32.mxu0 0.0
    %7241 = vmatmul.mubr.f32.gmra.mrb[0].mxu0 %v360
    %v7242 = vpop.f32.mrb[0].mxu0
    %v7243 = vadd.f32 0.0, %v7242
    %v7244 = vpop.f32.mrb[0].mxu0
    %7245 = vmatprep.mubr.f32.mxu0 0.0
    %7246 = vmatmul.mubr.f32.gmra.mrb[0].mxu0 %v363
    %v7247 = vpop.f32.mrb[0].mxu0
    %v7248 = vadd.f32 0.0, %v7247
    %v7249 = vpop.f32.mrb[0].mxu0
    %7250 = vmatprep.mubr.f32.mxu0 0.0
    %7251 = vmatmul.mubr.f32.gmra.mrb[0].mxu0 %v366
    %v7252 = vpop.f32.mrb[0].mxu0
    %v7253 = vadd.f32 0.0, %v7252
    %v7254 = vpop.f32.mrb[0].mxu0
    %7255 = vmatprep.mubr.f32.mxu0 0.0
    %7256 = vmatmul.mubr.f32.gmra.mrb[0].mxu0 %v369
    %v7257 = vpop.f32.mrb[0].mxu0
    %v7258 = vadd.f32 0.0, %v7257
    %v7259 = vpop.f32.mrb[0].mxu0
    %7260 = vmatprep.mubr.f32.mxu0 0.0
    %7261 = vmatmul.mubr.f32.gmra.mrb[0].mxu0 %v372
    %v7262 = vpop.f32.mrb[0].mxu0
    %v7263 = vadd.f32 0.0, %v7262
    %v7264 = vpop.f32.mrb[0].mxu0
    %7265 = vmatprep.mubr.f32.mxu0 0.0
    %7266 = vmatmul.mubr.f32.gmra.mrb[0].mxu0 %v375
    %v7267 = vpop.f32.mrb[0].mxu0
    %v7268 = vadd.f32 0.0, %v7267
    %v7269 = vpop.f32.mrb[0].mxu0
    %7270 = vmatprep.mubr.f32.mxu0 0.0
    %7271 = vmatmul.mubr.f32.gmra.mrb[0].mxu0 %v378
    %v7272 = vpop.f32.mrb[0].mxu0
    %v7273 = vadd.f32 0.0, %v7272
    %v7274 = vpop.f32.mrb[0].mxu0
    %7275 = vmatprep.mubr.f32.mxu0 0.0
    %7276 = vmatmul.mubr.f32.gmra.mrb[0].mxu0 %v381
    %v7277 = vpop.f32.mrb[0].mxu0
    %v7278 = vadd.f32 0.0, %v7277
    %v7279 = vpop.f32.mrb[0].mxu0
    %7280 = vmatprep.mubr.f32.mxu0 0.0
    %7281 = vmatmul.mubr.f32.gmra.mrb[0].mxu0 %v384
    %v7282 = vpop.f32.mrb[0].mxu0
    %v7283 = vadd.f32 0.0, %v7282
    %v7284 = vpop.f32.mrb[0].mxu0
    %7285 = vmatprep.mubr.f32.mxu0 0.0
    %7286 = vmatmul.mubr.f32.gmra.mrb[0].mxu0 %v387
    %v7287 = vpop.f32.mrb[0].mxu0
    %v7288 = vadd.f32 0.0, %v7287
    %v7289 = vpop.f32.mrb[0].mxu0
    %7290 = vmatprep.mubr.f32.mxu0 0.0
    %7291 = vmatmul.mubr.f32.gmra.mrb[0].mxu0 %v390
    %v7292 = vpop.f32.mrb[0].mxu0
    %v7293 = vadd.f32 0.0, %v7292
    %v7294 = vpop.f32.mrb[0].mxu0
    %7295 = vmatprep.mubr.f32.mxu0 0.0
    %7296 = vmatmul.mubr.f32.gmra.mrb[0].mxu0 %v393
    %v7297 = vpop.f32.mrb[0].mxu0
    %v7298 = vadd.f32 0.0, %v7297
    %v7299 = vpop.f32.mrb[0].mxu0
    %7300 = vmatprep.mubr.f32.mxu0 0.0
    %7301 = vmatmul.mubr.f32.gmra.mrb[0].mxu0 %v396
    %v7302 = vpop.f32.mrb[0].mxu0
    %v7303 = vadd.f32 0.0, %v7302
    %v7304 = vpop.f32.mrb[0].mxu0
    %7305 = vmatprep.mubr.f32.mxu0 0.0
    %7306 = vmatmul.mubr.f32.gmra.mrb[0].mxu0 %v399
    %v7307 = vpop.f32.mrb[0].mxu0
    %v7308 = vadd.f32 0.0, %v7307
    %v7309 = vpop.f32.mrb[0].mxu0
    %7310 = vmatprep.mubr.f32.mxu0 0.0
    %7311 = vmatmul.mubr.f32.gmra.mrb[0].mxu0 %v402
    %v7312 = vpop.f32.mrb[0].mxu0
    %v7313 = vadd.f32 0.0, %v7312
    %v7314 = vpop.f32.mrb[0].mxu0
    %7315 = vmatprep.mubr.f32.mxu0 0.0
    %7316 = vmatmul.mubr.f32.gmra.mrb[0].mxu0 %v405
    %v7317 = vpop.f32.mrb[0].mxu0
    %v7318 = vadd.f32 0.0, %v7317
    %v7319 = vpop.f32.mrb[0].mxu0
    %7320 = vmatprep.mubr.f32.mxu0 0.0
    %7321 = vmatmul.mubr.f32.gmra.mrb[0].mxu0 %v408
    %v7322 = vpop.f32.mrb[0].mxu0
    %v7323 = vadd.f32 0.0, %v7322
    %v7324 = vpop.f32.mrb[0].mxu0
    %7325 = vmatprep.mubr.f32.mxu0 0.0
    %7326 = vmatmul.mubr.f32.gmra.mrb[0].mxu0 %v411
    %v7327 = vpop.f32.mrb[0].mxu0
    %v7328 = vadd.f32 0.0, %v7327
    %v7329 = vpop.f32.mrb[0].mxu0
    %7330 = vmatprep.mubr.f32.mxu0 0.0
    %7331 = vmatmul.mubr.f32.gmra.mrb[0].mxu0 %v414
    %v7332 = vpop.f32.mrb[0].mxu0
    %v7333 = vadd.f32 0.0, %v7332
    %v7334 = vpop.f32.mrb[0].mxu0
    %7335 = vmatprep.mubr.f32.mxu0 0.0
    %7336 = vmatmul.mubr.f32.gmra.mrb[0].mxu0 %v417
    %v7337 = vpop.f32.mrb[0].mxu0
    %v7338 = vadd.f32 0.0, %v7337
    %v7339 = vpop.f32.mrb[0].mxu0
    %7340 = vmatprep.mubr.f32.mxu0 0.0
    %7341 = vmatmul.mubr.f32.gmra.mrb[0].mxu0 %v420
    %v7342 = vpop.f32.mrb[0].mxu0
    %v7343 = vadd.f32 0.0, %v7342
    %v7344 = vpop.f32.mrb[0].mxu0
    %7345 = vmatprep.mubr.f32.mxu0 0.0
    %7346 = vmatmul.mubr.f32.gmra.mrb[0].mxu0 %v423
    %v7347 = vpop.f32.mrb[0].mxu0
    %v7348 = vadd.f32 0.0, %v7347
    %v7349 = vpop.f32.mrb[0].mxu0
    %7350 = vmatprep.mubr.f32.mxu0 0.0
    %7351 = vmatmul.mubr.f32.gmra.mrb[0].mxu0 %v426
    %v7352 = vpop.f32.mrb[0].mxu0
    %v7353 = vadd.f32 0.0, %v7352
    %v7354 = vpop.f32.mrb[0].mxu0
    %7355 = vmatprep.mubr.f32.mxu0 0.0
    %7356 = vmatmul.mubr.f32.gmra.mrb[0].mxu0 %v429
    %v7357 = vpop.f32.mrb[0].mxu0
    %v7358 = vadd.f32 0.0, %v7357
    %v7359 = vpop.f32.mrb[0].mxu0
    %7360 = vmatprep.mubr.f32.mxu0 0.0
    %7361 = vmatmul.mubr.f32.gmra.mrb[0].mxu0 %v432
    %v7362 = vpop.f32.mrb[0].mxu0
    %v7363 = vadd.f32 0.0, %v7362
    %v7364 = vpop.f32.mrb[0].mxu0
    %7365 = vmatprep.mubr.f32.mxu0 0.0
    %7366 = vmatmul.mubr.f32.gmra.mrb[0].mxu0 %v435
    %v7367 = vpop.f32.mrb[0].mxu0
    %v7368 = vadd.f32 0.0, %v7367
    %v7369 = vpop.f32.mrb[0].mxu0
    %7370 = vmatprep.mubr.f32.mxu0 0.0
    %7371 = vmatmul.mubr.f32.gmra.mrb[0].mxu0 %v438
    %v7372 = vpop.f32.mrb[0].mxu0
    %v7373 = vadd.f32 0.0, %v7372
    %v7374 = vpop.f32.mrb[0].mxu0
    %7375 = vmatprep.mubr.f32.mxu0 0.0
    %7376 = vmatmul.mubr.f32.gmra.mrb[0].mxu0 %v441
    %v7377 = vpop.f32.mrb[0].mxu0
    %v7378 = vadd.f32 0.0, %v7377
    %v7379 = vpop.f32.mrb[0].mxu0
    %7380 = vmatprep.mubr.f32.mxu0 0.0
    %7381 = vmatmul.mubr.f32.gmra.mrb[0].mxu0 %v444
    %v7382 = vpop.f32.mrb[0].mxu0
    %v7383 = vadd.f32 0.0, %v7382
    %v7384 = vpop.f32.mrb[0].mxu0
    %7385 = vmatprep.mubr.f32.mxu0 0.0
    %7386 = vmatmul.mubr.f32.gmra.mrb[0].mxu0 %v447
    %v7387 = vpop.f32.mrb[0].mxu0
    %v7388 = vadd.f32 0.0, %v7387
    %v7389 = vpop.f32.mrb[0].mxu0
    %7390 = vmatprep.mubr.f32.mxu0 0.0
    %7391 = vmatmul.mubr.f32.gmra.mrb[0].mxu0 %v450
    %v7392 = vpop.f32.mrb[0].mxu0
    %v7393 = vadd.f32 0.0, %v7392
    %v7394 = vpop.f32.mrb[0].mxu0
    %7395 = vmatprep.mubr.f32.mxu0 0.0
    %7396 = vmatmul.mubr.f32.gmra.mrb[0].mxu0 %v453
    %v7397 = vpop.f32.mrb[0].mxu0
    %v7398 = vadd.f32 0.0, %v7397
    %v7399 = vpop.f32.mrb[0].mxu0
    %7400 = vmatprep.mubr.f32.mxu0 0.0
    %7401 = vmatmul.mubr.f32.gmra.mrb[0].mxu0 %v456
    %v7402 = vpop.f32.mrb[0].mxu0
    %v7403 = vadd.f32 0.0, %v7402
    %v7404 = vpop.f32.mrb[0].mxu0
    %7405 = vmatprep.mubr.f32.mxu0 0.0
    %7406 = vmatmul.mubr.f32.gmra.mrb[0].mxu0 %v459
    %v7407 = vpop.f32.mrb[0].mxu0
    %v7408 = vadd.f32 0.0, %v7407
    %v7409 = vpop.f32.mrb[0].mxu0
    %7410 = vmatprep.mubr.f32.mxu0 0.0
    %7411 = vmatmul.mubr.f32.gmra.mrb[0].mxu0 %v462
    %v7412 = vpop.f32.mrb[0].mxu0
    %v7413 = vadd.f32 0.0, %v7412
    %v7414 = vpop.f32.mrb[0].mxu0
    %7415 = vmatprep.mubr.f32.mxu0 0.0
    %7416 = vmatmul.mubr.f32.gmra.mrb[0].mxu0 %v465
    %v7417 = vpop.f32.mrb[0].mxu0
    %v7418 = vadd.f32 0.0, %v7417
    %v7419 = vpop.f32.mrb[0].mxu0
    %7420 = vmatprep.mubr.f32.mxu0 0.0
    %7421 = vmatmul.mubr.f32.gmra.mrb[0].mxu0 %v468
    %v7422 = vpop.f32.mrb[0].mxu0
    %v7423 = vadd.f32 0.0, %v7422
    %v7424 = vpop.f32.mrb[0].mxu0
    %7425 = vmatprep.mubr.f32.mxu0 0.0
    %7426 = vmatmul.mubr.f32.gmra.mrb[0].mxu0 %v471
    %v7427 = vpop.f32.mrb[0].mxu0
    %v7428 = vadd.f32 0.0, %v7427
    %v7429 = vpop.f32.mrb[0].mxu0
    %7430 = vmatprep.mubr.f32.mxu0 0.0
    %7431 = vmatmul.mubr.f32.gmra.mrb[0].mxu0 %v474
    %v7432 = vpop.f32.mrb[0].mxu0
    %v7433 = vadd.f32 0.0, %v7432
    %v7434 = vpop.f32.mrb[0].mxu0
    %7435 = vmatprep.mubr.f32.mxu0 0.0
    %7436 = vmatmul.mubr.f32.gmra.mrb[0].mxu0 %v477
    %v7437 = vpop.f32.mrb[0].mxu0
    %v7438 = vadd.f32 0.0, %v7437
    %v7439 = vpop.f32.mrb[0].mxu0
    %7440 = vmatprep.mubr.f32.mxu0 0.0
    %7441 = vmatmul.mubr.f32.gmra.mrb[0].mxu0 %v480
    %v7442 = vpop.f32.mrb[0].mxu0
    %v7443 = vadd.f32 0.0, %v7442
    %v7444 = vpop.f32.mrb[0].mxu0
    %7445 = vmatprep.mubr.f32.mxu0 0.0
    %7446 = vmatmul.mubr.f32.gmra.mrb[0].mxu0 %v483
    %v7447 = vpop.f32.mrb[0].mxu0
    %v7448 = vadd.f32 0.0, %v7447
    %v7449 = vpop.f32.mrb[0].mxu0
    %7450 = vmatprep.mubr.f32.mxu0 0.0
    %7451 = vmatmul.mubr.f32.gmra.mrb[0].mxu0 %v486
    %v7452 = vpop.f32.mrb[0].mxu0
    %v7453 = vadd.f32 0.0, %v7452
    %v7454 = vpop.f32.mrb[0].mxu0
    %7455 = vmatprep.mubr.f32.mxu0 0.0
    %7456 = vmatmul.mubr.f32.gmra.mrb[0].mxu0 %v489
    %v7457 = vpop.f32.mrb[0].mxu0
    %v7458 = vadd.f32 0.0, %v7457
    %v7459 = vpop.f32.mrb[0].mxu0
    %7460 = vmatprep.mubr.f32.mxu0 0.0
    %7461 = vmatmul.mubr.f32.gmra.mrb[0].mxu0 %v492
    %v7462 = vpop.f32.mrb[0].mxu0
    %v7463 = vadd.f32 0.0, %v7462
    %v7464 = vpop.f32.mrb[0].mxu0
    %7465 = vmatprep.mubr.f32.mxu0 0.0
    %7466 = vmatmul.mubr.f32.gmra.mrb[0].mxu0 %v495
    %v7467 = vpop.f32.mrb[0].mxu0
    %v7468 = vadd.f32 0.0, %v7467
    %v7469 = vpop.f32.mrb[0].mxu0
    %7470 = vmatprep.mubr.f32.mxu0 0.0
    %7471 = vmatmul.mubr.f32.gmra.mrb[0].mxu0 %v498
    %v7472 = vpop.f32.mrb[0].mxu0
    %v7473 = vadd.f32 0.0, %v7472
    %v7474 = vpop.f32.mrb[0].mxu0
    %7475 = vmatprep.mubr.f32.mxu0 0.0
    %7476 = vmatmul.mubr.f32.gmra.mrb[0].mxu0 %v501
    %v7477 = vpop.f32.mrb[0].mxu0
    %v7478 = vadd.f32 0.0, %v7477
    %v7479 = vpop.f32.mrb[0].mxu0
    %7480 = vmatprep.mubr.f32.mxu0 0.0
    %7481 = vmatmul.mubr.f32.gmra.mrb[0].mxu0 %v504
    %v7482 = vpop.f32.mrb[0].mxu0
    %v7483 = vadd.f32 0.0, %v7482
    %v7484 = vpop.f32.mrb[0].mxu0
    %7485 = vmatprep.mubr.f32.mxu0 0.0
    %7486 = vmatmul.mubr.f32.gmra.mrb[0].mxu0 %v507
    %v7487 = vpop.f32.mrb[0].mxu0
    %v7488 = vadd.f32 0.0, %v7487
    %v7489 = vpop.f32.mrb[0].mxu0
    %7490 = vmatprep.mubr.f32.mxu0 0.0
    %7491 = vmatmul.mubr.f32.gmra.mrb[0].mxu0 %v510
    %v7492 = vpop.f32.mrb[0].mxu0
    %v7493 = vadd.f32 0.0, %v7492
    %v7494 = vpop.f32.mrb[0].mxu0
    %7495 = vmatprep.mubr.f32.mxu0 0.0
    %7496 = vmatmul.mubr.f32.gmra.mrb[0].mxu0 %v513
    %v7497 = vpop.f32.mrb[0].mxu0
    %v7498 = vadd.f32 0.0, %v7497
    %v7499 = vpop.f32.mrb[0].mxu0
    %7500 = vmatprep.mubr.f32.mxu0 0.0
    %7501 = vmatmul.mubr.f32.gmra.mrb[0].mxu0 %v516
    %v7502 = vpop.f32.mrb[0].mxu0
    %v7503 = vadd.f32 0.0, %v7502
    %v7504 = vpop.f32.mrb[0].mxu0
    %7505 = vmatprep.mubr.f32.mxu0 0.0
    %7506 = vmatmul.mubr.f32.gmra.mrb[0].mxu0 %v519
    %v7507 = vpop.f32.mrb[0].mxu0
    %v7508 = vadd.f32 0.0, %v7507
    %v7509 = vpop.f32.mrb[0].mxu0
    %7510 = vmatprep.mubr.f32.mxu0 0.0
    %7511 = vmatmul.mubr.f32.gmra.mrb[0].mxu0 %v522
    %v7512 = vpop.f32.mrb[0].mxu0
    %v7513 = vadd.f32 0.0, %v7512
    %v7514 = vpop.f32.mrb[0].mxu0
    %7515 = vmatprep.mubr.f32.mxu0 0.0
    %7516 = vmatmul.mubr.f32.gmra.mrb[0].mxu0 %v525
    %v7517 = vpop.f32.mrb[0].mxu0
    %v7518 = vadd.f32 0.0, %v7517
    %v7519 = vpop.f32.mrb[0].mxu0
    %7520 = vmatprep.mubr.f32.mxu0 0.0
    %7521 = vmatmul.mubr.f32.gmra.mrb[0].mxu0 %v528
    %v7522 = vpop.f32.mrb[0].mxu0
    %v7523 = vadd.f32 0.0, %v7522
    %v7524 = vpop.f32.mrb[0].mxu0
    %7525 = vmatprep.mubr.f32.mxu0 0.0
    %7526 = vmatmul.mubr.f32.gmra.mrb[0].mxu0 %v531
    %v7527 = vpop.f32.mrb[0].mxu0
    %v7528 = vadd.f32 0.0, %v7527
    %v7529 = vpop.f32.mrb[0].mxu0
    %7530 = vmatprep.mubr.f32.mxu0 0.0
    %7531 = vmatmul.mubr.f32.gmra.mrb[0].mxu0 %v534
    %v7532 = vpop.f32.mrb[0].mxu0
    %v7533 = vadd.f32 0.0, %v7532
    %v7534 = vpop.f32.mrb[0].mxu0
    %7535 = vdwg.mxu0
    %v7536 = vld [vmem:[%s13] sm:$0xff]
    %v7537 = vld [vmem:[%s13 + $0x8] sm:$0xff]
    %v7538 = vld [vmem:[%s13 + $0x10] sm:$0xff]
    %v7539 = vld [vmem:[%s13 + $0x18] sm:$0xff]
    %v7540 = vld [vmem:[%s13 + $0x20] sm:$0xff]
    %v7541 = vld [vmem:[%s13 + $0x28] sm:$0xff]
    %v7542 = vld [vmem:[%s13 + $0x30] sm:$0xff]
    %v7543 = vld [vmem:[%s13 + $0x38] sm:$0xff]
    %v7545 = vsel %vm144, %v7388, 0
    %v7548 = vsel %vm144, %v7393, 0
    %v7551 = vsel %vm144, %v7398, 0
    %v7554 = vsel %vm144, %v7403, 0
    %v7557 = vsel %vm144, %v7408, 0
    %v7560 = vsel %vm144, %v7413, 0
    %v7563 = vsel %vm144, %v7418, 0
    %v7566 = vsel %vm144, %v7423, 0
    %v7569 = vsel %vm144, %v7428, 0
    %v7572 = vsel %vm144, %v7433, 0
    %v7575 = vsel %vm144, %v7438, 0
    %v7578 = vsel %vm144, %v7443, 0
    %v7581 = vsel %vm144, %v7448, 0
    %v7584 = vsel %vm144, %v7453, 0
    %v7587 = vsel %vm144, %v7458, 0
    %v7590 = vsel %vm144, %v7463, 0
    %v7593 = vsel %vm144, %v7468, 0
    %v7596 = vsel %vm144, %v7473, 0
    %v7599 = vsel %vm144, %v7478, 0
    %v7602 = vsel %vm144, %v7483, 0
    %v7605 = vsel %vm144, %v7488, 0
    %v7608 = vsel %vm144, %v7493, 0
    %v7611 = vsel %vm144, %v7498, 0
    %v7614 = vsel %vm144, %v7503, 0
    %v7617 = vsel %vm144, %v7508, 0
    %v7620 = vsel %vm144, %v7513, 0
    %v7623 = vsel %vm144, %v7518, 0
    %v7626 = vsel %vm144, %v7523, 0
    %v7629 = vsel %vm144, %v7528, 0
    %v7632 = vsel %vm144, %v7533, 0
    %7634 = vmatprep.subr.mxu0 0.0
    %7635 = vmatpush1.msra.mxu0 %v7540
    %7636 = vmatprep.subr.mxu0 0.0
    %7637 = vmatpush1.msra.mxu0 %v7541
    %7638 = vmatprep.subr.mxu0 0.0
    %7639 = vmatpush1.msra.mxu0 %v7542
    %7640 = vmatprep.subr.mxu0 0.0
    %7641 = vmatpush1.msra.mxu0 %v7543
    %7642 = vmatprep.subr.mxu0 0.0
    %7643 = vmatpush1.msra.mxu0 0.0
    %7644 = vmatprep.subr.mxu0 0.0
    %7645 = vmatpush1.msra.mxu0 0.0
    %7646 = vmatprep.subr.mxu0 0.0
    %7647 = vmatpush1.msra.mxu0 0.0
    %7648 = vmatprep.subr.mxu0 0.0
    %7649 = vmatpush1.msra.mxu0 0.0
    %7650 = vmatprep.subr.mxu0 0.0
    %7651 = vmatpush1.msra.mxu0 0.0
    %7652 = vmatprep.subr.mxu0 0.0
    %7653 = vmatpush1.msra.mxu0 0.0
    %7654 = vmatprep.subr.mxu0 0.0
    %7655 = vmatpush1.msra.mxu0 0.0
    %7656 = vmatprep.subr.mxu0 0.0
    %7657 = vmatpush1.msra.mxu0 0.0
    %7658 = vmatprep.subr.mxu0 0.0
    %7659 = vmatpush1.msra.mxu0 0.0
    %7660 = vmatprep.subr.mxu0 0.0
    %7661 = vmatpush1.msra.mxu0 0.0
    %7662 = vmatprep.subr.mxu0 0.0
    %7663 = vmatpush1.msra.mxu0 0.0
    %7664 = vmatprep.subr.mxu0 0.0
    %7665 = vmatpush1.msra.mxu0 0.0
    %7666 = vmatprep.subr.mxu0 0.0
    %7667 = vmatpush1.msra.mxu0 0.0
    %7668 = vmatprep.subr.mxu0 0.0
    %7669 = vmatpush1.msra.mxu0 0.0
    %7670 = vmatprep.subr.mxu0 0.0
    %7671 = vmatpush1.msra.mxu0 0.0
    %7672 = vmatprep.subr.mxu0 0.0
    %7673 = vmatpush1.msra.mxu0 0.0
    %7674 = vmatprep.subr.mxu0 0.0
    %7675 = vmatpush1.msra.mxu0 0.0
    %7676 = vmatprep.subr.mxu0 0.0
    %7677 = vmatpush1.msra.mxu0 0.0
    %7678 = vmatprep.subr.mxu0 0.0
    %7679 = vmatpush1.msra.mxu0 0.0
    %7680 = vmatprep.subr.mxu0 0.0
    %7681 = vmatpush1.msra.mxu0 0.0
    %7682 = vmatprep.subr.mxu0 0.0
    %7683 = vmatpush1.msra.mxu0 0.0
    %7684 = vmatprep.subr.mxu0 0.0
    %7685 = vmatpush1.msra.mxu0 0.0
    %7686 = vmatprep.subr.mxu0 0.0
    %7687 = vmatpush1.msra.mxu0 0.0
    %7688 = vmatprep.subr.mxu0 0.0
    %7689 = vmatpush1.msra.mxu0 0.0
    %7690 = vmatprep.subr.mxu0 0.0
    %7691 = vmatpush1.msra.mxu0 0.0
    %7692 = vmatprep.subr.mxu0 0.0
    %7693 = vmatpush1.msra.mxu0 0.0
    %7694 = vmatprep.subr.mxu0 0.0
    %7695 = vmatpush1.msra.mxu0 0.0
    %7696 = vmatprep.subr.mxu0 0.0
    %7697 = vmatpush1.msra.mxu0 0.0
    %7698 = vmatprep.mubr.f32.mxu0 0.0
    %7699 = vmatmul.mubr.f32.gmra.mrb[0].mxu0 %v7545
    %v7700 = vpop.f32.mrb[0].mxu0
    %v7701 = vadd.f32 0.0, %v7700
    %v7702 = vpop.f32.mrb[0].mxu0
    %7703 = vmatprep.mubr.f32.mxu0 0.0
    %7704 = vmatmul.mubr.f32.gmra.mrb[0].mxu0 %v7548
    %v7705 = vpop.f32.mrb[0].mxu0
    %v7706 = vadd.f32 0.0, %v7705
    %v7707 = vpop.f32.mrb[0].mxu0
    %7708 = vmatprep.mubr.f32.mxu0 0.0
    %7709 = vmatmul.mubr.f32.gmra.mrb[0].mxu0 %v7551
    %v7710 = vpop.f32.mrb[0].mxu0
    %v7711 = vadd.f32 0.0, %v7710
    %v7712 = vpop.f32.mrb[0].mxu0
    %7713 = vmatprep.mubr.f32.mxu0 0.0
    %7714 = vmatmul.mubr.f32.gmra.mrb[0].mxu0 %v7554
    %v7715 = vpop.f32.mrb[0].mxu0
    %v7716 = vadd.f32 0.0, %v7715
    %v7717 = vpop.f32.mrb[0].mxu0
    %7718 = vmatprep.mubr.f32.mxu0 0.0
    %7719 = vmatmul.mubr.f32.gmra.mrb[0].mxu0 %v7557
    %v7720 = vpop.f32.mrb[0].mxu0
    %v7721 = vadd.f32 0.0, %v7720
    %v7722 = vpop.f32.mrb[0].mxu0
    %7723 = vmatprep.mubr.f32.mxu0 0.0
    %7724 = vmatmul.mubr.f32.gmra.mrb[0].mxu0 %v7560
    %v7725 = vpop.f32.mrb[0].mxu0
    %v7726 = vadd.f32 0.0, %v7725
    %v7727 = vpop.f32.mrb[0].mxu0
    %7728 = vmatprep.mubr.f32.mxu0 0.0
    %7729 = vmatmul.mubr.f32.gmra.mrb[0].mxu0 %v7563
    %v7730 = vpop.f32.mrb[0].mxu0
    %v7731 = vadd.f32 0.0, %v7730
    %v7732 = vpop.f32.mrb[0].mxu0
    %7733 = vmatprep.mubr.f32.mxu0 0.0
    %7734 = vmatmul.mubr.f32.gmra.mrb[0].mxu0 %v7566
    %v7735 = vpop.f32.mrb[0].mxu0
    %v7736 = vadd.f32 0.0, %v7735
    %v7737 = vpop.f32.mrb[0].mxu0
    %7738 = vmatprep.mubr.f32.mxu0 0.0
    %7739 = vmatmul.mubr.f32.gmra.mrb[0].mxu0 %v7569
    %v7740 = vpop.f32.mrb[0].mxu0
    %v7741 = vadd.f32 0.0, %v7740
    %v7742 = vpop.f32.mrb[0].mxu0
    %7743 = vmatprep.mubr.f32.mxu0 0.0
    %7744 = vmatmul.mubr.f32.gmra.mrb[0].mxu0 %v7572
    %v7745 = vpop.f32.mrb[0].mxu0
    %v7746 = vadd.f32 0.0, %v7745
    %v7747 = vpop.f32.mrb[0].mxu0
    %7748 = vmatprep.mubr.f32.mxu0 0.0
    %7749 = vmatmul.mubr.f32.gmra.mrb[0].mxu0 %v7575
    %v7750 = vpop.f32.mrb[0].mxu0
    %v7751 = vadd.f32 0.0, %v7750
    %v7752 = vpop.f32.mrb[0].mxu0
    %7753 = vmatprep.mubr.f32.mxu0 0.0
    %7754 = vmatmul.mubr.f32.gmra.mrb[0].mxu0 %v7578
    %v7755 = vpop.f32.mrb[0].mxu0
    %v7756 = vadd.f32 0.0, %v7755
    %v7757 = vpop.f32.mrb[0].mxu0
    %7758 = vmatprep.mubr.f32.mxu0 0.0
    %7759 = vmatmul.mubr.f32.gmra.mrb[0].mxu0 %v7581
    %v7760 = vpop.f32.mrb[0].mxu0
    %v7761 = vadd.f32 0.0, %v7760
    %v7762 = vpop.f32.mrb[0].mxu0
    %7763 = vmatprep.mubr.f32.mxu0 0.0
    %7764 = vmatmul.mubr.f32.gmra.mrb[0].mxu0 %v7584
    %v7765 = vpop.f32.mrb[0].mxu0
    %v7766 = vadd.f32 0.0, %v7765
    %v7767 = vpop.f32.mrb[0].mxu0
    %7768 = vmatprep.mubr.f32.mxu0 0.0
    %7769 = vmatmul.mubr.f32.gmra.mrb[0].mxu0 %v7587
    %v7770 = vpop.f32.mrb[0].mxu0
    %v7771 = vadd.f32 0.0, %v7770
    %v7772 = vpop.f32.mrb[0].mxu0
    %7773 = vmatprep.mubr.f32.mxu0 0.0
    %7774 = vmatmul.mubr.f32.gmra.mrb[0].mxu0 %v7590
    %v7775 = vpop.f32.mrb[0].mxu0
    %v7776 = vadd.f32 0.0, %v7775
    %v7777 = vpop.f32.mrb[0].mxu0
    %7778 = vmatprep.mubr.f32.mxu0 0.0
    %7779 = vmatmul.mubr.f32.gmra.mrb[0].mxu0 %v7593
    %v7780 = vpop.f32.mrb[0].mxu0
    %v7781 = vadd.f32 0.0, %v7780
    %v7782 = vpop.f32.mrb[0].mxu0
    %7783 = vmatprep.mubr.f32.mxu0 0.0
    %7784 = vmatmul.mubr.f32.gmra.mrb[0].mxu0 %v7596
    %v7785 = vpop.f32.mrb[0].mxu0
    %v7786 = vadd.f32 0.0, %v7785
    %v7787 = vpop.f32.mrb[0].mxu0
    %7788 = vmatprep.mubr.f32.mxu0 0.0
    %7789 = vmatmul.mubr.f32.gmra.mrb[0].mxu0 %v7599
    %v7790 = vpop.f32.mrb[0].mxu0
    %v7791 = vadd.f32 0.0, %v7790
    %v7792 = vpop.f32.mrb[0].mxu0
    %7793 = vmatprep.mubr.f32.mxu0 0.0
    %7794 = vmatmul.mubr.f32.gmra.mrb[0].mxu0 %v7602
    %v7795 = vpop.f32.mrb[0].mxu0
    %v7796 = vadd.f32 0.0, %v7795
    %v7797 = vpop.f32.mrb[0].mxu0
    %7798 = vmatprep.mubr.f32.mxu0 0.0
    %7799 = vmatmul.mubr.f32.gmra.mrb[0].mxu0 %v7605
    %v7800 = vpop.f32.mrb[0].mxu0
    %v7801 = vadd.f32 0.0, %v7800
    %v7802 = vpop.f32.mrb[0].mxu0
    %7803 = vmatprep.mubr.f32.mxu0 0.0
    %7804 = vmatmul.mubr.f32.gmra.mrb[0].mxu0 %v7608
    %v7805 = vpop.f32.mrb[0].mxu0
    %v7806 = vadd.f32 0.0, %v7805
    %v7807 = vpop.f32.mrb[0].mxu0
    %7808 = vmatprep.mubr.f32.mxu0 0.0
    %7809 = vmatmul.mubr.f32.gmra.mrb[0].mxu0 %v7611
    %v7810 = vpop.f32.mrb[0].mxu0
    %v7811 = vadd.f32 0.0, %v7810
    %v7812 = vpop.f32.mrb[0].mxu0
    %7813 = vmatprep.mubr.f32.mxu0 0.0
    %7814 = vmatmul.mubr.f32.gmra.mrb[0].mxu0 %v7614
    %v7815 = vpop.f32.mrb[0].mxu0
    %v7816 = vadd.f32 0.0, %v7815
    %v7817 = vpop.f32.mrb[0].mxu0
    %7818 = vmatprep.mubr.f32.mxu0 0.0
    %7819 = vmatmul.mubr.f32.gmra.mrb[0].mxu0 %v7617
    %v7820 = vpop.f32.mrb[0].mxu0
    %v7821 = vadd.f32 0.0, %v7820
    %v7822 = vpop.f32.mrb[0].mxu0
    %7823 = vmatprep.mubr.f32.mxu0 0.0
    %7824 = vmatmul.mubr.f32.gmra.mrb[0].mxu0 %v7620
    %v7825 = vpop.f32.mrb[0].mxu0
    %v7826 = vadd.f32 0.0, %v7825
    %v7827 = vpop.f32.mrb[0].mxu0
    %7828 = vmatprep.mubr.f32.mxu0 0.0
    %7829 = vmatmul.mubr.f32.gmra.mrb[0].mxu0 %v7623
    %v7830 = vpop.f32.mrb[0].mxu0
    %v7831 = vadd.f32 0.0, %v7830
    %v7832 = vpop.f32.mrb[0].mxu0
    %7833 = vmatprep.mubr.f32.mxu0 0.0
    %7834 = vmatmul.mubr.f32.gmra.mrb[0].mxu0 %v7626
    %v7835 = vpop.f32.mrb[0].mxu0
    %v7836 = vadd.f32 0.0, %v7835
    %v7837 = vpop.f32.mrb[0].mxu0
    %7838 = vmatprep.mubr.f32.mxu0 0.0
    %7839 = vmatmul.mubr.f32.gmra.mrb[0].mxu0 %v7629
    %v7840 = vpop.f32.mrb[0].mxu0
    %v7841 = vadd.f32 0.0, %v7840
    %v7842 = vpop.f32.mrb[0].mxu0
    %7843 = vmatprep.mubr.f32.mxu0 0.0
    %7844 = vmatmul.mubr.f32.gmra.mrb[0].mxu0 %v7632
    %v7845 = vpop.f32.mrb[0].mxu0
    %v7846 = vadd.f32 0.0, %v7845
    %v7847 = vpop.f32.mrb[0].mxu0
    %7848 = vdwg.mxu0
    %v7850 = vsel %vm144, %v7238, 0
    %v7853 = vsel %vm144, %v7243, 0
    %v7856 = vsel %vm144, %v7248, 0
    %v7859 = vsel %vm144, %v7253, 0
    %v7862 = vsel %vm144, %v7258, 0
    %v7865 = vsel %vm144, %v7263, 0
    %v7868 = vsel %vm144, %v7268, 0
    %v7871 = vsel %vm144, %v7273, 0
    %v7874 = vsel %vm144, %v7278, 0
    %v7877 = vsel %vm144, %v7283, 0
    %v7880 = vsel %vm144, %v7288, 0
    %v7883 = vsel %vm144, %v7293, 0
    %v7886 = vsel %vm144, %v7298, 0
    %v7889 = vsel %vm144, %v7303, 0
    %v7892 = vsel %vm144, %v7308, 0
    %v7895 = vsel %vm144, %v7313, 0
    %v7898 = vsel %vm144, %v7318, 0
    %v7901 = vsel %vm144, %v7323, 0
    %v7904 = vsel %vm144, %v7328, 0
    %v7907 = vsel %vm144, %v7333, 0
    %v7910 = vsel %vm144, %v7338, 0
    %v7913 = vsel %vm144, %v7343, 0
    %v7916 = vsel %vm144, %v7348, 0
    %v7919 = vsel %vm144, %v7353, 0
    %v7922 = vsel %vm144, %v7358, 0
    %v7925 = vsel %vm144, %v7363, 0
    %v7928 = vsel %vm144, %v7368, 0
    %v7931 = vsel %vm144, %v7373, 0
    %v7934 = vsel %vm144, %v7378, 0
    %v7937 = vsel %vm144, %v7383, 0
    %7939 = vmatprep.subr.mxu0 0.0
    %7940 = vmatpush1.msra.mxu0 %v7536
    %7941 = vmatprep.subr.mxu0 0.0
    %7942 = vmatpush1.msra.mxu0 %v7537
    %7943 = vmatprep.subr.mxu0 0.0
    %7944 = vmatpush1.msra.mxu0 %v7538
    %7945 = vmatprep.subr.mxu0 0.0
    %7946 = vmatpush1.msra.mxu0 %v7539
    %7947 = vmatprep.subr.mxu0 0.0
    %7948 = vmatpush1.msra.mxu0 0.0
    %7949 = vmatprep.subr.mxu0 0.0
    %7950 = vmatpush1.msra.mxu0 0.0
    %7951 = vmatprep.subr.mxu0 0.0
    %7952 = vmatpush1.msra.mxu0 0.0
    %7953 = vmatprep.subr.mxu0 0.0
    %7954 = vmatpush1.msra.mxu0 0.0
    %7955 = vmatprep.subr.mxu0 0.0
    %7956 = vmatpush1.msra.mxu0 0.0
    %7957 = vmatprep.subr.mxu0 0.0
    %7958 = vmatpush1.msra.mxu0 0.0
    %7959 = vmatprep.subr.mxu0 0.0
    %7960 = vmatpush1.msra.mxu0 0.0
    %7961 = vmatprep.subr.mxu0 0.0
    %7962 = vmatpush1.msra.mxu0 0.0
    %7963 = vmatprep.subr.mxu0 0.0
    %7964 = vmatpush1.msra.mxu0 0.0
    %7965 = vmatprep.subr.mxu0 0.0
    %7966 = vmatpush1.msra.mxu0 0.0
    %7967 = vmatprep.subr.mxu0 0.0
    %7968 = vmatpush1.msra.mxu0 0.0
    %7969 = vmatprep.subr.mxu0 0.0
    %7970 = vmatpush1.msra.mxu0 0.0
    %7971 = vmatprep.subr.mxu0 0.0
    %7972 = vmatpush1.msra.mxu0 0.0
    %7973 = vmatprep.subr.mxu0 0.0
    %7974 = vmatpush1.msra.mxu0 0.0
    %7975 = vmatprep.subr.mxu0 0.0
    %7976 = vmatpush1.msra.mxu0 0.0
    %7977 = vmatprep.subr.mxu0 0.0
    %7978 = vmatpush1.msra.mxu0 0.0
    %7979 = vmatprep.subr.mxu0 0.0
    %7980 = vmatpush1.msra.mxu0 0.0
    %7981 = vmatprep.subr.mxu0 0.0
    %7982 = vmatpush1.msra.mxu0 0.0
    %7983 = vmatprep.subr.mxu0 0.0
    %7984 = vmatpush1.msra.mxu0 0.0
    %7985 = vmatprep.subr.mxu0 0.0
    %7986 = vmatpush1.msra.mxu0 0.0
    %7987 = vmatprep.subr.mxu0 0.0
    %7988 = vmatpush1.msra.mxu0 0.0
    %7989 = vmatprep.subr.mxu0 0.0
    %7990 = vmatpush1.msra.mxu0 0.0
    %7991 = vmatprep.subr.mxu0 0.0
    %7992 = vmatpush1.msra.mxu0 0.0
    %7993 = vmatprep.subr.mxu0 0.0
    %7994 = vmatpush1.msra.mxu0 0.0
    %7995 = vmatprep.subr.mxu0 0.0
    %7996 = vmatpush1.msra.mxu0 0.0
    %7997 = vmatprep.subr.mxu0 0.0
    %7998 = vmatpush1.msra.mxu0 0.0
    %7999 = vmatprep.subr.mxu0 0.0
    %8000 = vmatpush1.msra.mxu0 0.0
    %8001 = vmatprep.subr.mxu0 0.0
    %8002 = vmatpush1.msra.mxu0 0.0
    %8003 = vmatprep.mubr.f32.mxu0 0.0
    %8004 = vmatmul.mubr.f32.gmra.mrb[0].mxu0 %v7850
    %v8005 = vpop.f32.mrb[0].mxu0
    %v8006 = vadd.f32 %v7701, %v8005
    %v8007 = vpop.f32.mrb[0].mxu0
    %8008 = vmatprep.mubr.f32.mxu0 0.0
    %8009 = vmatmul.mubr.f32.gmra.mrb[0].mxu0 %v7853
    %v8010 = vpop.f32.mrb[0].mxu0
    %v8011 = vadd.f32 %v7706, %v8010
    %v8012 = vpop.f32.mrb[0].mxu0
    %8013 = vmatprep.mubr.f32.mxu0 0.0
    %8014 = vmatmul.mubr.f32.gmra.mrb[0].mxu0 %v7856
    %v8015 = vpop.f32.mrb[0].mxu0
    %v8016 = vadd.f32 %v7711, %v8015
    %v8017 = vpop.f32.mrb[0].mxu0
    %8018 = vmatprep.mubr.f32.mxu0 0.0
    %8019 = vmatmul.mubr.f32.gmra.mrb[0].mxu0 %v7859
    %v8020 = vpop.f32.mrb[0].mxu0
    %v8021 = vadd.f32 %v7716, %v8020
    %v8022 = vpop.f32.mrb[0].mxu0
    %8023 = vmatprep.mubr.f32.mxu0 0.0
    %8024 = vmatmul.mubr.f32.gmra.mrb[0].mxu0 %v7862
    %v8025 = vpop.f32.mrb[0].mxu0
    %v8026 = vadd.f32 %v7721, %v8025
    %v8027 = vpop.f32.mrb[0].mxu0
    %8028 = vmatprep.mubr.f32.mxu0 0.0
    %8029 = vmatmul.mubr.f32.gmra.mrb[0].mxu0 %v7865
    %v8030 = vpop.f32.mrb[0].mxu0
    %v8031 = vadd.f32 %v7726, %v8030
    %v8032 = vpop.f32.mrb[0].mxu0
    %8033 = vmatprep.mubr.f32.mxu0 0.0
    %8034 = vmatmul.mubr.f32.gmra.mrb[0].mxu0 %v7868
    %v8035 = vpop.f32.mrb[0].mxu0
    %v8036 = vadd.f32 %v7731, %v8035
    %v8037 = vpop.f32.mrb[0].mxu0
    %8038 = vmatprep.mubr.f32.mxu0 0.0
    %8039 = vmatmul.mubr.f32.gmra.mrb[0].mxu0 %v7871
    %v8040 = vpop.f32.mrb[0].mxu0
    %v8041 = vadd.f32 %v7736, %v8040
    %v8042 = vpop.f32.mrb[0].mxu0
    %8043 = vmatprep.mubr.f32.mxu0 0.0
    %8044 = vmatmul.mubr.f32.gmra.mrb[0].mxu0 %v7874
    %v8045 = vpop.f32.mrb[0].mxu0
    %v8046 = vadd.f32 %v7741, %v8045
    %v8047 = vpop.f32.mrb[0].mxu0
    %8048 = vmatprep.mubr.f32.mxu0 0.0
    %8049 = vmatmul.mubr.f32.gmra.mrb[0].mxu0 %v7877
    %v8050 = vpop.f32.mrb[0].mxu0
    %v8051 = vadd.f32 %v7746, %v8050
    %v8052 = vpop.f32.mrb[0].mxu0
    %8053 = vmatprep.mubr.f32.mxu0 0.0
    %8054 = vmatmul.mubr.f32.gmra.mrb[0].mxu0 %v7880
    %v8055 = vpop.f32.mrb[0].mxu0
    %v8056 = vadd.f32 %v7751, %v8055
    %v8057 = vpop.f32.mrb[0].mxu0
    %8058 = vmatprep.mubr.f32.mxu0 0.0
    %8059 = vmatmul.mubr.f32.gmra.mrb[0].mxu0 %v7883
    %v8060 = vpop.f32.mrb[0].mxu0
    %v8061 = vadd.f32 %v7756, %v8060
    %v8062 = vpop.f32.mrb[0].mxu0
    %8063 = vmatprep.mubr.f32.mxu0 0.0
    %8064 = vmatmul.mubr.f32.gmra.mrb[0].mxu0 %v7886
    %v8065 = vpop.f32.mrb[0].mxu0
    %v8066 = vadd.f32 %v7761, %v8065
    %v8067 = vpop.f32.mrb[0].mxu0
    %8068 = vmatprep.mubr.f32.mxu0 0.0
    %8069 = vmatmul.mubr.f32.gmra.mrb[0].mxu0 %v7889
    %v8070 = vpop.f32.mrb[0].mxu0
    %v8071 = vadd.f32 %v7766, %v8070
    %v8072 = vpop.f32.mrb[0].mxu0
    %8073 = vmatprep.mubr.f32.mxu0 0.0
    %8074 = vmatmul.mubr.f32.gmra.mrb[0].mxu0 %v7892
    %v8075 = vpop.f32.mrb[0].mxu0
    %v8076 = vadd.f32 %v7771, %v8075
    %v8077 = vpop.f32.mrb[0].mxu0
    %8078 = vmatprep.mubr.f32.mxu0 0.0
    %8079 = vmatmul.mubr.f32.gmra.mrb[0].mxu0 %v7895
    %v8080 = vpop.f32.mrb[0].mxu0
    %v8081 = vadd.f32 %v7776, %v8080
    %v8082 = vpop.f32.mrb[0].mxu0
    %8083 = vmatprep.mubr.f32.mxu0 0.0
    %8084 = vmatmul.mubr.f32.gmra.mrb[0].mxu0 %v7898
    %v8085 = vpop.f32.mrb[0].mxu0
    %v8086 = vadd.f32 %v7781, %v8085
    %v8087 = vpop.f32.mrb[0].mxu0
    %8088 = vmatprep.mubr.f32.mxu0 0.0
    %8089 = vmatmul.mubr.f32.gmra.mrb[0].mxu0 %v7901
    %v8090 = vpop.f32.mrb[0].mxu0
    %v8091 = vadd.f32 %v7786, %v8090
    %v8092 = vpop.f32.mrb[0].mxu0
    %8093 = vmatprep.mubr.f32.mxu0 0.0
    %8094 = vmatmul.mubr.f32.gmra.mrb[0].mxu0 %v7904
    %v8095 = vpop.f32.mrb[0].mxu0
    %v8096 = vadd.f32 %v7791, %v8095
    %v8097 = vpop.f32.mrb[0].mxu0
    %8098 = vmatprep.mubr.f32.mxu0 0.0
    %8099 = vmatmul.mubr.f32.gmra.mrb[0].mxu0 %v7907
    %v8100 = vpop.f32.mrb[0].mxu0
    %v8101 = vadd.f32 %v7796, %v8100
    %v8102 = vpop.f32.mrb[0].mxu0
    %8103 = vmatprep.mubr.f32.mxu0 0.0
    %8104 = vmatmul.mubr.f32.gmra.mrb[0].mxu0 %v7910
    %v8105 = vpop.f32.mrb[0].mxu0
    %v8106 = vadd.f32 %v7801, %v8105
    %v8107 = vpop.f32.mrb[0].mxu0
    %8108 = vmatprep.mubr.f32.mxu0 0.0
    %8109 = vmatmul.mubr.f32.gmra.mrb[0].mxu0 %v7913
    %v8110 = vpop.f32.mrb[0].mxu0
    %v8111 = vadd.f32 %v7806, %v8110
    %v8112 = vpop.f32.mrb[0].mxu0
    %8113 = vmatprep.mubr.f32.mxu0 0.0
    %8114 = vmatmul.mubr.f32.gmra.mrb[0].mxu0 %v7916
    %v8115 = vpop.f32.mrb[0].mxu0
    %v8116 = vadd.f32 %v7811, %v8115
    %v8117 = vpop.f32.mrb[0].mxu0
    %8118 = vmatprep.mubr.f32.mxu0 0.0
    %8119 = vmatmul.mubr.f32.gmra.mrb[0].mxu0 %v7919
    %v8120 = vpop.f32.mrb[0].mxu0
    %v8121 = vadd.f32 %v7816, %v8120
    %v8122 = vpop.f32.mrb[0].mxu0
    %8123 = vmatprep.mubr.f32.mxu0 0.0
    %8124 = vmatmul.mubr.f32.gmra.mrb[0].mxu0 %v7922
    %v8125 = vpop.f32.mrb[0].mxu0
    %v8126 = vadd.f32 %v7821, %v8125
    %v8127 = vpop.f32.mrb[0].mxu0
    %8128 = vmatprep.mubr.f32.mxu0 0.0
    %8129 = vmatmul.mubr.f32.gmra.mrb[0].mxu0 %v7925
    %v8130 = vpop.f32.mrb[0].mxu0
    %v8131 = vadd.f32 %v7826, %v8130
    %v8132 = vpop.f32.mrb[0].mxu0
    %8133 = vmatprep.mubr.f32.mxu0 0.0
    %8134 = vmatmul.mubr.f32.gmra.mrb[0].mxu0 %v7928
    %v8135 = vpop.f32.mrb[0].mxu0
    %v8136 = vadd.f32 %v7831, %v8135
    %v8137 = vpop.f32.mrb[0].mxu0
    %8138 = vmatprep.mubr.f32.mxu0 0.0
    %8139 = vmatmul.mubr.f32.gmra.mrb[0].mxu0 %v7931
    %v8140 = vpop.f32.mrb[0].mxu0
    %v8141 = vadd.f32 %v7836, %v8140
    %v8142 = vpop.f32.mrb[0].mxu0
    %8143 = vmatprep.mubr.f32.mxu0 0.0
    %8144 = vmatmul.mubr.f32.gmra.mrb[0].mxu0 %v7934
    %v8145 = vpop.f32.mrb[0].mxu0
    %v8146 = vadd.f32 %v7841, %v8145
    %v8147 = vpop.f32.mrb[0].mxu0
    %8148 = vmatprep.mubr.f32.mxu0 0.0
    %8149 = vmatmul.mubr.f32.gmra.mrb[0].mxu0 %v7937
    %v8150 = vpop.f32.mrb[0].mxu0
    %v8151 = vadd.f32 %v7846, %v8150
    %v8152 = vpop.f32.mrb[0].mxu0
    %8153 = vdwg.mxu0
    %v8154 = vlaneseq
    %v8155 = vshrl.u32 %v8154, 7
    %v8156 = vsub.s32 1, %v8155
    %v8157 = vrot.slane %v131, %v8156
    %v8158 = vadd.f32 %v8006, %v8157
    %v8159 = vadd.f32 %v8011, %v8157
    %v8160 = vadd.f32 %v8016, %v8157
    %v8161 = vadd.f32 %v8021, %v8157
    %v8162 = vadd.f32 %v8026, %v8157
    %v8163 = vadd.f32 %v8031, %v8157
    %v8164 = vadd.f32 %v8036, %v8157
    %v8165 = vadd.f32 %v8041, %v8157
    %v8166 = vadd.f32 %v8046, %v8157
    %v8167 = vadd.f32 %v8051, %v8157
    %v8168 = vadd.f32 %v8056, %v8157
    %v8169 = vadd.f32 %v8061, %v8157
    %v8170 = vadd.f32 %v8066, %v8157
    %v8171 = vadd.f32 %v8071, %v8157
    %v8172 = vadd.f32 %v8076, %v8157
    %v8173 = vadd.f32 %v8081, %v8157
    %v8174 = vadd.f32 %v8086, %v8157
    %v8175 = vadd.f32 %v8091, %v8157
    %v8176 = vadd.f32 %v8096, %v8157
    %v8177 = vadd.f32 %v8101, %v8157
    %v8178 = vadd.f32 %v8106, %v8157
    %v8179 = vadd.f32 %v8111, %v8157
    %v8180 = vadd.f32 %v8116, %v8157
    %v8181 = vadd.f32 %v8121, %v8157
    %v8182 = vadd.f32 %v8126, %v8157
    %v8183 = vadd.f32 %v8131, %v8157
    %v8184 = vadd.f32 %v8136, %v8157
    %v8185 = vadd.f32 %v8141, %v8157
    %v8186 = vadd.f32 %v8146, %v8157
    %v8187 = vadd.f32 %v8151, %v8157
    %v8188 = vmax.f32 %v8158, 0.0
    %v8189 = vmax.f32 %v8159, 0.0
    %v8190 = vmax.f32 %v8160, 0.0
    %v8191 = vmax.f32 %v8161, 0.0
    %v8192 = vmax.f32 %v8162, 0.0
    %v8193 = vmax.f32 %v8163, 0.0
    %v8194 = vmax.f32 %v8164, 0.0
    %v8195 = vmax.f32 %v8165, 0.0
    %v8196 = vmax.f32 %v8166, 0.0
    %v8197 = vmax.f32 %v8167, 0.0
    %v8198 = vmax.f32 %v8168, 0.0
    %v8199 = vmax.f32 %v8169, 0.0
    %v8200 = vmax.f32 %v8170, 0.0
    %v8201 = vmax.f32 %v8171, 0.0
    %v8202 = vmax.f32 %v8172, 0.0
    %v8203 = vmax.f32 %v8173, 0.0
    %v8204 = vmax.f32 %v8174, 0.0
    %v8205 = vmax.f32 %v8175, 0.0
    %v8206 = vmax.f32 %v8176, 0.0
    %v8207 = vmax.f32 %v8177, 0.0
    %v8208 = vmax.f32 %v8178, 0.0
    %v8209 = vmax.f32 %v8179, 0.0
    %v8210 = vmax.f32 %v8180, 0.0
    %v8211 = vmax.f32 %v8181, 0.0
    %v8212 = vmax.f32 %v8182, 0.0
    %v8213 = vmax.f32 %v8183, 0.0
    %v8214 = vmax.f32 %v8184, 0.0
    %v8215 = vmax.f32 %v8185, 0.0
    %v8216 = vmax.f32 %v8186, 0.0
    %v8217 = vmax.f32 %v8187, 0.0
    %v8218 = vld [vmem:[%s14] sm:$0xff]
    %v8219 = vld [vmem:[%s14 + $0x8] sm:$0xff]
    %v8220 = vld [vmem:[%s14 + $0x10] sm:$0xff]
    %v8221 = vld [vmem:[%s14 + $0x18] sm:$0xff]
    %v8222 = vld [vmem:[%s14 + $0x20] sm:$0xff]
    %v8223 = vld [vmem:[%s14 + $0x28] sm:$0xff]
    %v8224 = vld [vmem:[%s14 + $0x30] sm:$0xff]
    %v8225 = vld [vmem:[%s14 + $0x38] sm:$0xff]
    %v8226 = vlaneseq
    %v8227 = vshrl.u32 %v8226, 7
    %v8228 = vsub.s32 2, %v8227
    %v8229 = vrot.slane %v131, %v8228
    %vm8230 = vcmask 523264
    %v8232 = vsel %vm8230, %v8188, 0
    %v8235 = vsel %vm8230, %v8189, 0
    %v8238 = vsel %vm8230, %v8190, 0
    %v8241 = vsel %vm8230, %v8191, 0
    %v8244 = vsel %vm8230, %v8192, 0
    %v8247 = vsel %vm8230, %v8193, 0
    %v8250 = vsel %vm8230, %v8194, 0
    %v8253 = vsel %vm8230, %v8195, 0
    %v8256 = vsel %vm8230, %v8196, 0
    %v8259 = vsel %vm8230, %v8197, 0
    %v8262 = vsel %vm8230, %v8198, 0
    %v8265 = vsel %vm8230, %v8199, 0
    %v8268 = vsel %vm8230, %v8200, 0
    %v8271 = vsel %vm8230, %v8201, 0
    %v8274 = vsel %vm8230, %v8202, 0
    %v8277 = vsel %vm8230, %v8203, 0
    %v8280 = vsel %vm8230, %v8204, 0
    %v8283 = vsel %vm8230, %v8205, 0
    %v8286 = vsel %vm8230, %v8206, 0
    %v8289 = vsel %vm8230, %v8207, 0
    %v8292 = vsel %vm8230, %v8208, 0
    %v8295 = vsel %vm8230, %v8209, 0
    %v8298 = vsel %vm8230, %v8210, 0
    %v8301 = vsel %vm8230, %v8211, 0
    %v8304 = vsel %vm8230, %v8212, 0
    %v8307 = vsel %vm8230, %v8213, 0
    %v8310 = vsel %vm8230, %v8214, 0
    %v8313 = vsel %vm8230, %v8215, 0
    %v8316 = vsel %vm8230, %v8216, 0
    %v8319 = vsel %vm8230, %v8217, 0
    %8321 = vmatprep.subr.mxu0 0.0
    %8322 = vmatpush1.msra.mxu0 %v8218
    %8323 = vmatprep.subr.mxu0 0.0
    %8324 = vmatpush1.msra.mxu0 %v8219
    %8325 = vmatprep.subr.mxu0 0.0
    %8326 = vmatpush1.msra.mxu0 %v8220
    %8327 = vmatprep.subr.mxu0 0.0
    %8328 = vmatpush1.msra.mxu0 %v8221
    %8329 = vmatprep.subr.mxu0 0.0
    %8330 = vmatpush1.msra.mxu0 %v8222
    %8331 = vmatprep.subr.mxu0 0.0
    %8332 = vmatpush1.msra.mxu0 %v8223
    %8333 = vmatprep.subr.mxu0 0.0
    %8334 = vmatpush1.msra.mxu0 %v8224
    %8335 = vmatprep.subr.mxu0 0.0
    %8336 = vmatpush1.msra.mxu0 %v8225
    %8337 = vmatprep.subr.mxu0 0.0
    %8338 = vmatpush1.msra.mxu0 0.0
    %8339 = vmatprep.subr.mxu0 0.0
    %8340 = vmatpush1.msra.mxu0 0.0
    %8341 = vmatprep.subr.mxu0 0.0
    %8342 = vmatpush1.msra.mxu0 0.0
    %8343 = vmatprep.subr.mxu0 0.0
    %8344 = vmatpush1.msra.mxu0 0.0
    %8345 = vmatprep.subr.mxu0 0.0
    %8346 = vmatpush1.msra.mxu0 0.0
    %8347 = vmatprep.subr.mxu0 0.0
    %8348 = vmatpush1.msra.mxu0 0.0
    %8349 = vmatprep.subr.mxu0 0.0
    %8350 = vmatpush1.msra.mxu0 0.0
    %8351 = vmatprep.subr.mxu0 0.0
    %8352 = vmatpush1.msra.mxu0 0.0
    %8353 = vmatprep.subr.mxu0 0.0
    %8354 = vmatpush1.msra.mxu0 0.0
    %8355 = vmatprep.subr.mxu0 0.0
    %8356 = vmatpush1.msra.mxu0 0.0
    %8357 = vmatprep.subr.mxu0 0.0
    %8358 = vmatpush1.msra.mxu0 0.0
    %8359 = vmatprep.subr.mxu0 0.0
    %8360 = vmatpush1.msra.mxu0 0.0
    %8361 = vmatprep.subr.mxu0 0.0
    %8362 = vmatpush1.msra.mxu0 0.0
    %8363 = vmatprep.subr.mxu0 0.0
    %8364 = vmatpush1.msra.mxu0 0.0
    %8365 = vmatprep.subr.mxu0 0.0
    %8366 = vmatpush1.msra.mxu0 0.0
    %8367 = vmatprep.subr.mxu0 0.0
    %8368 = vmatpush1.msra.mxu0 0.0
    %8369 = vmatprep.subr.mxu0 0.0
    %8370 = vmatpush1.msra.mxu0 0.0
    %8371 = vmatprep.subr.mxu0 0.0
    %8372 = vmatpush1.msra.mxu0 0.0
    %8373 = vmatprep.subr.mxu0 0.0
    %8374 = vmatpush1.msra.mxu0 0.0
    %8375 = vmatprep.subr.mxu0 0.0
    %8376 = vmatpush1.msra.mxu0 0.0
    %8377 = vmatprep.subr.mxu0 0.0
    %8378 = vmatpush1.msra.mxu0 0.0
    %8379 = vmatprep.subr.mxu0 0.0
    %8380 = vmatpush1.msra.mxu0 0.0
    %8381 = vmatprep.subr.mxu0 0.0
    %8382 = vmatpush1.msra.mxu0 0.0
    %8383 = vmatprep.subr.mxu0 0.0
    %8384 = vmatpush1.msra.mxu0 0.0
    %8385 = vmatprep.mubr.f32.mxu0 0.0
    %8386 = vmatmul.mubr.f32.gmra.mrb[0].mxu0 %v8232
    %v8387 = vpop.f32.mrb[0].mxu0
    %v8388 = vadd.f32 %v8229, %v8387
    %v8389 = vpop.f32.mrb[0].mxu0
    %8390 = vmatprep.mubr.f32.mxu0 0.0
    %8391 = vmatmul.mubr.f32.gmra.mrb[0].mxu0 %v8235
    %v8392 = vpop.f32.mrb[0].mxu0
    %v8393 = vadd.f32 %v8229, %v8392
    %v8394 = vpop.f32.mrb[0].mxu0
    %8395 = vmatprep.mubr.f32.mxu0 0.0
    %8396 = vmatmul.mubr.f32.gmra.mrb[0].mxu0 %v8238
    %v8397 = vpop.f32.mrb[0].mxu0
    %v8398 = vadd.f32 %v8229, %v8397
    %v8399 = vpop.f32.mrb[0].mxu0
    %8400 = vmatprep.mubr.f32.mxu0 0.0
    %8401 = vmatmul.mubr.f32.gmra.mrb[0].mxu0 %v8241
    %v8402 = vpop.f32.mrb[0].mxu0
    %v8403 = vadd.f32 %v8229, %v8402
    %v8404 = vpop.f32.mrb[0].mxu0
    %8405 = vmatprep.mubr.f32.mxu0 0.0
    %8406 = vmatmul.mubr.f32.gmra.mrb[0].mxu0 %v8244
    %v8407 = vpop.f32.mrb[0].mxu0
    %v8408 = vadd.f32 %v8229, %v8407
    %v8409 = vpop.f32.mrb[0].mxu0
    %8410 = vmatprep.mubr.f32.mxu0 0.0
    %8411 = vmatmul.mubr.f32.gmra.mrb[0].mxu0 %v8247
    %v8412 = vpop.f32.mrb[0].mxu0
    %v8413 = vadd.f32 %v8229, %v8412
    %v8414 = vpop.f32.mrb[0].mxu0
    %8415 = vmatprep.mubr.f32.mxu0 0.0
    %8416 = vmatmul.mubr.f32.gmra.mrb[0].mxu0 %v8250
    %v8417 = vpop.f32.mrb[0].mxu0
    %v8418 = vadd.f32 %v8229, %v8417
    %v8419 = vpop.f32.mrb[0].mxu0
    %8420 = vmatprep.mubr.f32.mxu0 0.0
    %8421 = vmatmul.mubr.f32.gmra.mrb[0].mxu0 %v8253
    %v8422 = vpop.f32.mrb[0].mxu0
    %v8423 = vadd.f32 %v8229, %v8422
    %v8424 = vpop.f32.mrb[0].mxu0
    %8425 = vmatprep.mubr.f32.mxu0 0.0
    %8426 = vmatmul.mubr.f32.gmra.mrb[0].mxu0 %v8256
    %v8427 = vpop.f32.mrb[0].mxu0
    %v8428 = vadd.f32 %v8229, %v8427
    %v8429 = vpop.f32.mrb[0].mxu0
    %8430 = vmatprep.mubr.f32.mxu0 0.0
    %8431 = vmatmul.mubr.f32.gmra.mrb[0].mxu0 %v8259
    %v8432 = vpop.f32.mrb[0].mxu0
    %v8433 = vadd.f32 %v8229, %v8432
    %v8434 = vpop.f32.mrb[0].mxu0
    %8435 = vmatprep.mubr.f32.mxu0 0.0
    %8436 = vmatmul.mubr.f32.gmra.mrb[0].mxu0 %v8262
    %v8437 = vpop.f32.mrb[0].mxu0
    %v8438 = vadd.f32 %v8229, %v8437
    %v8439 = vpop.f32.mrb[0].mxu0
    %8440 = vmatprep.mubr.f32.mxu0 0.0
    %8441 = vmatmul.mubr.f32.gmra.mrb[0].mxu0 %v8265
    %v8442 = vpop.f32.mrb[0].mxu0
    %v8443 = vadd.f32 %v8229, %v8442
    %v8444 = vpop.f32.mrb[0].mxu0
    %8445 = vmatprep.mubr.f32.mxu0 0.0
    %8446 = vmatmul.mubr.f32.gmra.mrb[0].mxu0 %v8268
    %v8447 = vpop.f32.mrb[0].mxu0
    %v8448 = vadd.f32 %v8229, %v8447
    %v8449 = vpop.f32.mrb[0].mxu0
    %8450 = vmatprep.mubr.f32.mxu0 0.0
    %8451 = vmatmul.mubr.f32.gmra.mrb[0].mxu0 %v8271
    %v8452 = vpop.f32.mrb[0].mxu0
    %v8453 = vadd.f32 %v8229, %v8452
    %v8454 = vpop.f32.mrb[0].mxu0
    %8455 = vmatprep.mubr.f32.mxu0 0.0
    %8456 = vmatmul.mubr.f32.gmra.mrb[0].mxu0 %v8274
    %v8457 = vpop.f32.mrb[0].mxu0
    %v8458 = vadd.f32 %v8229, %v8457
    %v8459 = vpop.f32.mrb[0].mxu0
    %8460 = vmatprep.mubr.f32.mxu0 0.0
    %8461 = vmatmul.mubr.f32.gmra.mrb[0].mxu0 %v8277
    %v8462 = vpop.f32.mrb[0].mxu0
    %v8463 = vadd.f32 %v8229, %v8462
    %v8464 = vpop.f32.mrb[0].mxu0
    %8465 = vmatprep.mubr.f32.mxu0 0.0
    %8466 = vmatmul.mubr.f32.gmra.mrb[0].mxu0 %v8280
    %v8467 = vpop.f32.mrb[0].mxu0
    %v8468 = vadd.f32 %v8229, %v8467
    %v8469 = vpop.f32.mrb[0].mxu0
    %8470 = vmatprep.mubr.f32.mxu0 0.0
    %8471 = vmatmul.mubr.f32.gmra.mrb[0].mxu0 %v8283
    %v8472 = vpop.f32.mrb[0].mxu0
    %v8473 = vadd.f32 %v8229, %v8472
    %v8474 = vpop.f32.mrb[0].mxu0
    %8475 = vmatprep.mubr.f32.mxu0 0.0
    %8476 = vmatmul.mubr.f32.gmra.mrb[0].mxu0 %v8286
    %v8477 = vpop.f32.mrb[0].mxu0
    %v8478 = vadd.f32 %v8229, %v8477
    %v8479 = vpop.f32.mrb[0].mxu0
    %8480 = vmatprep.mubr.f32.mxu0 0.0
    %8481 = vmatmul.mubr.f32.gmra.mrb[0].mxu0 %v8289
    %v8482 = vpop.f32.mrb[0].mxu0
    %v8483 = vadd.f32 %v8229, %v8482
    %v8484 = vpop.f32.mrb[0].mxu0
    %8485 = vmatprep.mubr.f32.mxu0 0.0
    %8486 = vmatmul.mubr.f32.gmra.mrb[0].mxu0 %v8292
    %v8487 = vpop.f32.mrb[0].mxu0
    %v8488 = vadd.f32 %v8229, %v8487
    %v8489 = vpop.f32.mrb[0].mxu0
    %8490 = vmatprep.mubr.f32.mxu0 0.0
    %8491 = vmatmul.mubr.f32.gmra.mrb[0].mxu0 %v8295
    %v8492 = vpop.f32.mrb[0].mxu0
    %v8493 = vadd.f32 %v8229, %v8492
    %v8494 = vpop.f32.mrb[0].mxu0
    %8495 = vmatprep.mubr.f32.mxu0 0.0
    %8496 = vmatmul.mubr.f32.gmra.mrb[0].mxu0 %v8298
    %v8497 = vpop.f32.mrb[0].mxu0
    %v8498 = vadd.f32 %v8229, %v8497
    %v8499 = vpop.f32.mrb[0].mxu0
    %8500 = vmatprep.mubr.f32.mxu0 0.0
    %8501 = vmatmul.mubr.f32.gmra.mrb[0].mxu0 %v8301
    %v8502 = vpop.f32.mrb[0].mxu0
    %v8503 = vadd.f32 %v8229, %v8502
    %v8504 = vpop.f32.mrb[0].mxu0
    %8505 = vmatprep.mubr.f32.mxu0 0.0
    %8506 = vmatmul.mubr.f32.gmra.mrb[0].mxu0 %v8304
    %v8507 = vpop.f32.mrb[0].mxu0
    %v8508 = vadd.f32 %v8229, %v8507
    %v8509 = vpop.f32.mrb[0].mxu0
    %8510 = vmatprep.mubr.f32.mxu0 0.0
    %8511 = vmatmul.mubr.f32.gmra.mrb[0].mxu0 %v8307
    %v8512 = vpop.f32.mrb[0].mxu0
    %v8513 = vadd.f32 %v8229, %v8512
    %v8514 = vpop.f32.mrb[0].mxu0
    %8515 = vmatprep.mubr.f32.mxu0 0.0
    %8516 = vmatmul.mubr.f32.gmra.mrb[0].mxu0 %v8310
    %v8517 = vpop.f32.mrb[0].mxu0
    %v8518 = vadd.f32 %v8229, %v8517
    %v8519 = vpop.f32.mrb[0].mxu0
    %8520 = vmatprep.mubr.f32.mxu0 0.0
    %8521 = vmatmul.mubr.f32.gmra.mrb[0].mxu0 %v8313
    %v8522 = vpop.f32.mrb[0].mxu0
    %v8523 = vadd.f32 %v8229, %v8522
    %v8524 = vpop.f32.mrb[0].mxu0
    %8525 = vmatprep.mubr.f32.mxu0 0.0
    %8526 = vmatmul.mubr.f32.gmra.mrb[0].mxu0 %v8316
    %v8527 = vpop.f32.mrb[0].mxu0
    %v8528 = vadd.f32 %v8229, %v8527
    %v8529 = vpop.f32.mrb[0].mxu0
    %8530 = vmatprep.mubr.f32.mxu0 0.0
    %8531 = vmatmul.mubr.f32.gmra.mrb[0].mxu0 %v8319
    %v8532 = vpop.f32.mrb[0].mxu0
    %v8533 = vadd.f32 %v8229, %v8532
    %v8534 = vpop.f32.mrb[0].mxu0
    %8535 = vdwg.mxu0
    %v8536 = vmax.f32 %v8388, 0.0
    %v8537 = vmax.f32 %v8393, 0.0
    %v8538 = vmax.f32 %v8398, 0.0
    %v8539 = vmax.f32 %v8403, 0.0
    %v8540 = vmax.f32 %v8408, 0.0
    %v8541 = vmax.f32 %v8413, 0.0
    %v8542 = vmax.f32 %v8418, 0.0
    %v8543 = vmax.f32 %v8423, 0.0
    %v8544 = vmax.f32 %v8428, 0.0
    %v8545 = vmax.f32 %v8433, 0.0
    %v8546 = vmax.f32 %v8438, 0.0
    %v8547 = vmax.f32 %v8443, 0.0
    %v8548 = vmax.f32 %v8448, 0.0
    %v8549 = vmax.f32 %v8453, 0.0
    %v8550 = vmax.f32 %v8458, 0.0
    %v8551 = vmax.f32 %v8463, 0.0
    %v8552 = vmax.f32 %v8468, 0.0
    %v8553 = vmax.f32 %v8473, 0.0
    %v8554 = vmax.f32 %v8478, 0.0
    %v8555 = vmax.f32 %v8483, 0.0
    %v8556 = vmax.f32 %v8488, 0.0
    %v8557 = vmax.f32 %v8493, 0.0
    %v8558 = vmax.f32 %v8498, 0.0
    %v8559 = vmax.f32 %v8503, 0.0
    %v8560 = vmax.f32 %v8508, 0.0
    %v8561 = vmax.f32 %v8513, 0.0
    %v8562 = vmax.f32 %v8518, 0.0
    %v8563 = vmax.f32 %v8523, 0.0
    %v8564 = vmax.f32 %v8528, 0.0
    %v8565 = vmax.f32 %v8533, 0.0
    %v8567 = vrot.slane %v131, 6
    %v8568 = vsel %vm5645, %v6516, 0
    %v8570 = vsel %vm5645, %v6517, 0
    %v8572 = vsel %vm5645, %v6518, 0
    %v8574 = vsel %vm5645, %v6519, 0
    %v8576 = vsel %vm5645, %v6520, 0
    %v8578 = vsel %vm5645, %v6521, 0
    %v8580 = vsel %vm5645, %v6522, 0
    %v8582 = vsel %vm5645, %v6523, 0
    %v8584 = vsel %vm5645, %v6524, 0
    %v8586 = vsel %vm5645, %v6525, 0
    %v8588 = vsel %vm5645, %v6526, 0
    %v8590 = vsel %vm5645, %v6527, 0
    %v8592 = vsel %vm5645, %v6528, 0
    %v8594 = vsel %vm5645, %v6529, 0
    %v8596 = vsel %vm5645, %v6530, 0
    %v8598 = vsel %vm5645, %v6531, 0
    %v8600 = vsel %vm5645, %v6532, 0
    %v8602 = vsel %vm5645, %v6533, 0
    %v8604 = vsel %vm5645, %v6534, 0
    %v8606 = vsel %vm5645, %v6535, 0
    %v8608 = vsel %vm5645, %v6536, 0
    %v8610 = vsel %vm5645, %v6537, 0
    %v8612 = vsel %vm5645, %v6538, 0
    %v8614 = vsel %vm5645, %v6539, 0
    %v8616 = vsel %vm5645, %v6540, 0
    %v8618 = vsel %vm5645, %v6541, 0
    %v8620 = vsel %vm5645, %v6542, 0
    %v8622 = vsel %vm5645, %v6543, 0
    %v8624 = vsel %vm5645, %v6544, 0
    %v8626 = vsel %vm5645, %v6545, 0
    %vm8628 = vcmask 1041408
    %v8629 = vsel %vm8628, %v8567, 0
    %8631 = vmatprep.subr.mxu0 0.0
    %8632 = vmatpush1.msra.mxu0 %v8629
    %8633 = vmatprep.subr.mxu0 0.0
    %8634 = vmatpush1.msra.mxu0 0.0
    %8635 = vmatprep.subr.mxu0 0.0
    %8636 = vmatpush1.msra.mxu0 0.0
    %8637 = vmatprep.subr.mxu0 0.0
    %8638 = vmatpush1.msra.mxu0 0.0
    %8639 = vmatprep.subr.mxu0 0.0
    %8640 = vmatpush1.msra.mxu0 0.0
    %8641 = vmatprep.subr.mxu0 0.0
    %8642 = vmatpush1.msra.mxu0 0.0
    %8643 = vmatprep.subr.mxu0 0.0
    %8644 = vmatpush1.msra.mxu0 0.0
    %8645 = vmatprep.subr.mxu0 0.0
    %8646 = vmatpush1.msra.mxu0 0.0
    %8647 = vmatprep.subr.mxu0 0.0
    %8648 = vmatpush1.msra.mxu0 0.0
    %8649 = vmatprep.subr.mxu0 0.0
    %8650 = vmatpush1.msra.mxu0 0.0
    %8651 = vmatprep.subr.mxu0 0.0
    %8652 = vmatpush1.msra.mxu0 0.0
    %8653 = vmatprep.subr.mxu0 0.0
    %8654 = vmatpush1.msra.mxu0 0.0
    %8655 = vmatprep.subr.mxu0 0.0
    %8656 = vmatpush1.msra.mxu0 0.0
    %8657 = vmatprep.subr.mxu0 0.0
    %8658 = vmatpush1.msra.mxu0 0.0
    %8659 = vmatprep.subr.mxu0 0.0
    %8660 = vmatpush1.msra.mxu0 0.0
    %8661 = vmatprep.subr.mxu0 0.0
    %8662 = vmatpush1.msra.mxu0 0.0
    %8663 = vmatprep.subr.mxu0 0.0
    %8664 = vmatpush1.msra.mxu0 0.0
    %8665 = vmatprep.subr.mxu0 0.0
    %8666 = vmatpush1.msra.mxu0 0.0
    %8667 = vmatprep.subr.mxu0 0.0
    %8668 = vmatpush1.msra.mxu0 0.0
    %8669 = vmatprep.subr.mxu0 0.0
    %8670 = vmatpush1.msra.mxu0 0.0
    %8671 = vmatprep.subr.mxu0 0.0
    %8672 = vmatpush1.msra.mxu0 0.0
    %8673 = vmatprep.subr.mxu0 0.0
    %8674 = vmatpush1.msra.mxu0 0.0
    %8675 = vmatprep.subr.mxu0 0.0
    %8676 = vmatpush1.msra.mxu0 0.0
    %8677 = vmatprep.subr.mxu0 0.0
    %8678 = vmatpush1.msra.mxu0 0.0
    %8679 = vmatprep.subr.mxu0 0.0
    %8680 = vmatpush1.msra.mxu0 0.0
    %8681 = vmatprep.subr.mxu0 0.0
    %8682 = vmatpush1.msra.mxu0 0.0
    %8683 = vmatprep.subr.mxu0 0.0
    %8684 = vmatpush1.msra.mxu0 0.0
    %8685 = vmatprep.subr.mxu0 0.0
    %8686 = vmatpush1.msra.mxu0 0.0
    %8687 = vmatprep.subr.mxu0 0.0
    %8688 = vmatpush1.msra.mxu0 0.0
    %8689 = vmatprep.subr.mxu0 0.0
    %8690 = vmatpush1.msra.mxu0 0.0
    %8691 = vmatprep.subr.mxu0 0.0
    %8692 = vmatpush1.msra.mxu0 0.0
    %8693 = vmatprep.subr.mxu0 0.0
    %8694 = vmatpush1.msra.mxu0 0.0
    %8695 = vmatprep.mubr.f32.mxu0 0.0
    %8696 = vmatmul.mubr.f32.gmra.mrb[0].mxu0 %v8568
    %v8697 = vpop.f32.mrb[0].mxu0
    %v8698 = vadd.f32 0.0, %v8697
    %v8699 = vpop.f32.mrb[0].mxu0
    %8700 = vmatprep.mubr.f32.mxu0 0.0
    %8701 = vmatmul.mubr.f32.gmra.mrb[0].mxu0 %v8570
    %v8702 = vpop.f32.mrb[0].mxu0
    %v8703 = vadd.f32 0.0, %v8702
    %v8704 = vpop.f32.mrb[0].mxu0
    %8705 = vmatprep.mubr.f32.mxu0 0.0
    %8706 = vmatmul.mubr.f32.gmra.mrb[0].mxu0 %v8572
    %v8707 = vpop.f32.mrb[0].mxu0
    %v8708 = vadd.f32 0.0, %v8707
    %v8709 = vpop.f32.mrb[0].mxu0
    %8710 = vmatprep.mubr.f32.mxu0 0.0
    %8711 = vmatmul.mubr.f32.gmra.mrb[0].mxu0 %v8574
    %v8712 = vpop.f32.mrb[0].mxu0
    %v8713 = vadd.f32 0.0, %v8712
    %v8714 = vpop.f32.mrb[0].mxu0
    %8715 = vmatprep.mubr.f32.mxu0 0.0
    %8716 = vmatmul.mubr.f32.gmra.mrb[0].mxu0 %v8576
    %v8717 = vpop.f32.mrb[0].mxu0
    %v8718 = vadd.f32 0.0, %v8717
    %v8719 = vpop.f32.mrb[0].mxu0
    %8720 = vmatprep.mubr.f32.mxu0 0.0
    %8721 = vmatmul.mubr.f32.gmra.mrb[0].mxu0 %v8578
    %v8722 = vpop.f32.mrb[0].mxu0
    %v8723 = vadd.f32 0.0, %v8722
    %v8724 = vpop.f32.mrb[0].mxu0
    %8725 = vmatprep.mubr.f32.mxu0 0.0
    %8726 = vmatmul.mubr.f32.gmra.mrb[0].mxu0 %v8580
    %v8727 = vpop.f32.mrb[0].mxu0
    %v8728 = vadd.f32 0.0, %v8727
    %v8729 = vpop.f32.mrb[0].mxu0
    %8730 = vmatprep.mubr.f32.mxu0 0.0
    %8731 = vmatmul.mubr.f32.gmra.mrb[0].mxu0 %v8582
    %v8732 = vpop.f32.mrb[0].mxu0
    %v8733 = vadd.f32 0.0, %v8732
    %v8734 = vpop.f32.mrb[0].mxu0
    %8735 = vmatprep.mubr.f32.mxu0 0.0
    %8736 = vmatmul.mubr.f32.gmra.mrb[0].mxu0 %v8584
    %v8737 = vpop.f32.mrb[0].mxu0
    %v8738 = vadd.f32 0.0, %v8737
    %v8739 = vpop.f32.mrb[0].mxu0
    %8740 = vmatprep.mubr.f32.mxu0 0.0
    %8741 = vmatmul.mubr.f32.gmra.mrb[0].mxu0 %v8586
    %v8742 = vpop.f32.mrb[0].mxu0
    %v8743 = vadd.f32 0.0, %v8742
    %v8744 = vpop.f32.mrb[0].mxu0
    %8745 = vmatprep.mubr.f32.mxu0 0.0
    %8746 = vmatmul.mubr.f32.gmra.mrb[0].mxu0 %v8588
    %v8747 = vpop.f32.mrb[0].mxu0
    %v8748 = vadd.f32 0.0, %v8747
    %v8749 = vpop.f32.mrb[0].mxu0
    %8750 = vmatprep.mubr.f32.mxu0 0.0
    %8751 = vmatmul.mubr.f32.gmra.mrb[0].mxu0 %v8590
    %v8752 = vpop.f32.mrb[0].mxu0
    %v8753 = vadd.f32 0.0, %v8752
    %v8754 = vpop.f32.mrb[0].mxu0
    %8755 = vmatprep.mubr.f32.mxu0 0.0
    %8756 = vmatmul.mubr.f32.gmra.mrb[0].mxu0 %v8592
    %v8757 = vpop.f32.mrb[0].mxu0
    %v8758 = vadd.f32 0.0, %v8757
    %v8759 = vpop.f32.mrb[0].mxu0
    %8760 = vmatprep.mubr.f32.mxu0 0.0
    %8761 = vmatmul.mubr.f32.gmra.mrb[0].mxu0 %v8594
    %v8762 = vpop.f32.mrb[0].mxu0
    %v8763 = vadd.f32 0.0, %v8762
    %v8764 = vpop.f32.mrb[0].mxu0
    %8765 = vmatprep.mubr.f32.mxu0 0.0
    %8766 = vmatmul.mubr.f32.gmra.mrb[0].mxu0 %v8596
    %v8767 = vpop.f32.mrb[0].mxu0
    %v8768 = vadd.f32 0.0, %v8767
    %v8769 = vpop.f32.mrb[0].mxu0
    %8770 = vmatprep.mubr.f32.mxu0 0.0
    %8771 = vmatmul.mubr.f32.gmra.mrb[0].mxu0 %v8598
    %v8772 = vpop.f32.mrb[0].mxu0
    %v8773 = vadd.f32 0.0, %v8772
    %v8774 = vpop.f32.mrb[0].mxu0
    %8775 = vmatprep.mubr.f32.mxu0 0.0
    %8776 = vmatmul.mubr.f32.gmra.mrb[0].mxu0 %v8600
    %v8777 = vpop.f32.mrb[0].mxu0
    %v8778 = vadd.f32 0.0, %v8777
    %v8779 = vpop.f32.mrb[0].mxu0
    %8780 = vmatprep.mubr.f32.mxu0 0.0
    %8781 = vmatmul.mubr.f32.gmra.mrb[0].mxu0 %v8602
    %v8782 = vpop.f32.mrb[0].mxu0
    %v8783 = vadd.f32 0.0, %v8782
    %v8784 = vpop.f32.mrb[0].mxu0
    %8785 = vmatprep.mubr.f32.mxu0 0.0
    %8786 = vmatmul.mubr.f32.gmra.mrb[0].mxu0 %v8604
    %v8787 = vpop.f32.mrb[0].mxu0
    %v8788 = vadd.f32 0.0, %v8787
    %v8789 = vpop.f32.mrb[0].mxu0
    %8790 = vmatprep.mubr.f32.mxu0 0.0
    %8791 = vmatmul.mubr.f32.gmra.mrb[0].mxu0 %v8606
    %v8792 = vpop.f32.mrb[0].mxu0
    %v8793 = vadd.f32 0.0, %v8792
    %v8794 = vpop.f32.mrb[0].mxu0
    %8795 = vmatprep.mubr.f32.mxu0 0.0
    %8796 = vmatmul.mubr.f32.gmra.mrb[0].mxu0 %v8608
    %v8797 = vpop.f32.mrb[0].mxu0
    %v8798 = vadd.f32 0.0, %v8797
    %v8799 = vpop.f32.mrb[0].mxu0
    %8800 = vmatprep.mubr.f32.mxu0 0.0
    %8801 = vmatmul.mubr.f32.gmra.mrb[0].mxu0 %v8610
    %v8802 = vpop.f32.mrb[0].mxu0
    %v8803 = vadd.f32 0.0, %v8802
    %v8804 = vpop.f32.mrb[0].mxu0
    %8805 = vmatprep.mubr.f32.mxu0 0.0
    %8806 = vmatmul.mubr.f32.gmra.mrb[0].mxu0 %v8612
    %v8807 = vpop.f32.mrb[0].mxu0
    %v8808 = vadd.f32 0.0, %v8807
    %v8809 = vpop.f32.mrb[0].mxu0
    %8810 = vmatprep.mubr.f32.mxu0 0.0
    %8811 = vmatmul.mubr.f32.gmra.mrb[0].mxu0 %v8614
    %v8812 = vpop.f32.mrb[0].mxu0
    %v8813 = vadd.f32 0.0, %v8812
    %v8814 = vpop.f32.mrb[0].mxu0
    %8815 = vmatprep.mubr.f32.mxu0 0.0
    %8816 = vmatmul.mubr.f32.gmra.mrb[0].mxu0 %v8616
    %v8817 = vpop.f32.mrb[0].mxu0
    %v8818 = vadd.f32 0.0, %v8817
    %v8819 = vpop.f32.mrb[0].mxu0
    %8820 = vmatprep.mubr.f32.mxu0 0.0
    %8821 = vmatmul.mubr.f32.gmra.mrb[0].mxu0 %v8618
    %v8822 = vpop.f32.mrb[0].mxu0
    %v8823 = vadd.f32 0.0, %v8822
    %v8824 = vpop.f32.mrb[0].mxu0
    %8825 = vmatprep.mubr.f32.mxu0 0.0
    %8826 = vmatmul.mubr.f32.gmra.mrb[0].mxu0 %v8620
    %v8827 = vpop.f32.mrb[0].mxu0
    %v8828 = vadd.f32 0.0, %v8827
    %v8829 = vpop.f32.mrb[0].mxu0
    %8830 = vmatprep.mubr.f32.mxu0 0.0
    %8831 = vmatmul.mubr.f32.gmra.mrb[0].mxu0 %v8622
    %v8832 = vpop.f32.mrb[0].mxu0
    %v8833 = vadd.f32 0.0, %v8832
    %v8834 = vpop.f32.mrb[0].mxu0
    %8835 = vmatprep.mubr.f32.mxu0 0.0
    %8836 = vmatmul.mubr.f32.gmra.mrb[0].mxu0 %v8624
    %v8837 = vpop.f32.mrb[0].mxu0
    %v8838 = vadd.f32 0.0, %v8837
    %v8839 = vpop.f32.mrb[0].mxu0
    %8840 = vmatprep.mubr.f32.mxu0 0.0
    %8841 = vmatmul.mubr.f32.gmra.mrb[0].mxu0 %v8626
    %v8842 = vpop.f32.mrb[0].mxu0
    %v8843 = vadd.f32 0.0, %v8842
    %v8844 = vpop.f32.mrb[0].mxu0
    %8845 = vdwg.mxu0
    %v8846 = vmul.f32 %v8536, %v8698
    %v8847 = vmul.f32 %v8537, %v8703
    %v8848 = vmul.f32 %v8538, %v8708
    %v8849 = vmul.f32 %v8539, %v8713
    %v8850 = vmul.f32 %v8540, %v8718
    %v8851 = vmul.f32 %v8541, %v8723
    %v8852 = vmul.f32 %v8542, %v8728
    %v8853 = vmul.f32 %v8543, %v8733
    %v8854 = vmul.f32 %v8544, %v8738
    %v8855 = vmul.f32 %v8545, %v8743
    %v8856 = vmul.f32 %v8546, %v8748
    %v8857 = vmul.f32 %v8547, %v8753
    %v8858 = vmul.f32 %v8548, %v8758
    %v8859 = vmul.f32 %v8549, %v8763
    %v8860 = vmul.f32 %v8550, %v8768
    %v8861 = vmul.f32 %v8551, %v8773
    %v8862 = vmul.f32 %v8552, %v8778
    %v8863 = vmul.f32 %v8553, %v8783
    %v8864 = vmul.f32 %v8554, %v8788
    %v8865 = vmul.f32 %v8555, %v8793
    %v8866 = vmul.f32 %v8556, %v8798
    %v8867 = vmul.f32 %v8557, %v8803
    %v8868 = vmul.f32 %v8558, %v8808
    %v8869 = vmul.f32 %v8559, %v8813
    %v8870 = vmul.f32 %v8560, %v8818
    %v8871 = vmul.f32 %v8561, %v8823
    %v8872 = vmul.f32 %v8562, %v8828
    %v8873 = vmul.f32 %v8563, %v8833
    %v8874 = vmul.f32 %v8564, %v8838
    %v8875 = vmul.f32 %v8565, %v8843
    %8876 = vmatprep.subr.mxu0 0.0
    %8877 = vmatpush1.msra.mxu0 %v8846
    %8878 = vmatprep.subr.mxu0 0.0
    %8879 = vmatpush1.msra.mxu0 %v8847
    %8880 = vmatprep.subr.mxu0 0.0
    %8881 = vmatpush1.msra.mxu0 %v8848
    %8882 = vmatprep.subr.mxu0 0.0
    %8883 = vmatpush1.msra.mxu0 %v8849
    %8884 = vmatprep.subr.mxu0 0.0
    %8885 = vmatpush1.msra.mxu0 %v8850
    %8886 = vmatprep.subr.mxu0 0.0
    %8887 = vmatpush1.msra.mxu0 %v8851
    %8888 = vmatprep.subr.mxu0 0.0
    %8889 = vmatpush1.msra.mxu0 %v8852
    %8890 = vmatprep.subr.mxu0 0.0
    %8891 = vmatpush1.msra.mxu0 %v8853
    %8892 = vmatprep.subr.mxu0 0.0
    %8893 = vmatpush1.msra.mxu0 %v8854
    %8894 = vmatprep.subr.mxu0 0.0
    %8895 = vmatpush1.msra.mxu0 %v8855
    %8896 = vmatprep.subr.mxu0 0.0
    %8897 = vmatpush1.msra.mxu0 %v8856
    %8898 = vmatprep.subr.mxu0 0.0
    %8899 = vmatpush1.msra.mxu0 %v8857
    %8900 = vmatprep.subr.mxu0 0.0
    %8901 = vmatpush1.msra.mxu0 %v8858
    %8902 = vmatprep.subr.mxu0 0.0
    %8903 = vmatpush1.msra.mxu0 %v8859
    %8904 = vmatprep.subr.mxu0 0.0
    %8905 = vmatpush1.msra.mxu0 %v8860
    %8906 = vmatprep.subr.mxu0 0.0
    %8907 = vmatpush1.msra.mxu0 %v8861
    %8908 = vmatprep.subr.mxu0 0.0
    %8909 = vmatpush1.msra.mxu0 %v8862
    %8910 = vmatprep.subr.mxu0 0.0
    %8911 = vmatpush1.msra.mxu0 %v8863
    %8912 = vmatprep.subr.mxu0 0.0
    %8913 = vmatpush1.msra.mxu0 %v8864
    %8914 = vmatprep.subr.mxu0 0.0
    %8915 = vmatpush1.msra.mxu0 %v8865
    %8916 = vmatprep.subr.mxu0 0.0
    %8917 = vmatpush1.msra.mxu0 %v8866
    %8918 = vmatprep.subr.mxu0 0.0
    %8919 = vmatpush1.msra.mxu0 %v8867
    %8920 = vmatprep.subr.mxu0 0.0
    %8921 = vmatpush1.msra.mxu0 %v8868
    %8922 = vmatprep.subr.mxu0 0.0
    %8923 = vmatpush1.msra.mxu0 %v8869
    %8924 = vmatprep.subr.mxu0 0.0
    %8925 = vmatpush1.msra.mxu0 %v8870
    %8926 = vmatprep.subr.mxu0 0.0
    %8927 = vmatpush1.msra.mxu0 %v8871
    %8928 = vmatprep.subr.mxu0 0.0
    %8929 = vmatpush1.msra.mxu0 %v8872
    %8930 = vmatprep.subr.mxu0 0.0
    %8931 = vmatpush1.msra.mxu0 %v8873
    %8932 = vmatprep.subr.mxu0 0.0
    %8933 = vmatpush1.msra.mxu0 %v8874
    %8934 = vmatprep.subr.mxu0 0.0
    %8935 = vmatpush1.msra.mxu0 %v8875
    %8936 = vmatprep.subr.mxu0 0.0
    %8937 = vmatpush1.msra.mxu0 0.0
    %8938 = vmatprep.subr.mxu0 0.0
    %8939 = vmatpush1.msra.mxu0 0.0
    %8940 = vmatprep.mubr.f32.mxu0 %v2256
    %8941 = vmatmul.mubr.f32.gmra.mrb[0].mxu0 %v2206
    %v8942 = vpop.f32.mrb[0].mxu0
    %v8943 = vadd.f32 0.0, %v8942
    %v8944 = vpop.f32.mrb[0].mxu0
    %8945 = vmatprep.mubr.f32.mxu0 %v2259
    %8946 = vmatmul.mubr.f32.gmra.mrb[0].mxu0 %v2207
    %v8947 = vpop.f32.mrb[0].mxu0
    %v8948 = vadd.f32 0.0, %v8947
    %v8949 = vpop.f32.mrb[0].mxu0
    %8950 = vdwg.mxu0
    %v8951 = vld [vmem:[%s15] sm:$0xff]
    %v8952 = vld [vmem:[%s15 + $0x8] sm:$0xff]
    %v8953 = vld [vmem:[%s15 + $0x10] sm:$0xff]
    %v8954 = vld [vmem:[%s15 + $0x18] sm:$0xff]
    %v8955 = vld [vmem:[%s16] sm:$0xff]
    %v8956 = vld [vmem:[%s16 + $0x8] sm:$0xff]
    %v8957 = vld [vmem:[%s16 + $0x10] sm:$0xff]
    %v8958 = vld [vmem:[%s16 + $0x18] sm:$0xff]
    %v8959 = vld [vmem:[%s16 + $0x20] sm:$0xff]
    %v8960 = vld [vmem:[%s16 + $0x28] sm:$0xff]
    %v8961 = vld [vmem:[%s16 + $0x30] sm:$0xff]
    %v8962 = vld [vmem:[%s16 + $0x38] sm:$0xff]
    %v8964 = vsel %vm8230, %v8943, 0
    %v8967 = vsel %vm8230, %v8948, 0
    %8969 = vmatprep.subr.mxu0 0.0
    %8970 = vmatpush1.msra.mxu0 %v8955
    %8971 = vmatprep.subr.mxu0 0.0
    %8972 = vmatpush1.msra.mxu0 %v8956
    %8973 = vmatprep.subr.mxu0 0.0
    %8974 = vmatpush1.msra.mxu0 %v8957
    %8975 = vmatprep.subr.mxu0 0.0
    %8976 = vmatpush1.msra.mxu0 %v8958
    %8977 = vmatprep.subr.mxu0 0.0
    %8978 = vmatpush1.msra.mxu0 %v8959
    %8979 = vmatprep.subr.mxu0 0.0
    %8980 = vmatpush1.msra.mxu0 %v8960
    %8981 = vmatprep.subr.mxu0 0.0
    %8982 = vmatpush1.msra.mxu0 %v8961
    %8983 = vmatprep.subr.mxu0 0.0
    %8984 = vmatpush1.msra.mxu0 %v8962
    %8985 = vmatprep.subr.mxu0 0.0
    %8986 = vmatpush1.msra.mxu0 0.0
    %8987 = vmatprep.subr.mxu0 0.0
    %8988 = vmatpush1.msra.mxu0 0.0
    %8989 = vmatprep.subr.mxu0 0.0
    %8990 = vmatpush1.msra.mxu0 0.0
    %8991 = vmatprep.subr.mxu0 0.0
    %8992 = vmatpush1.msra.mxu0 0.0
    %8993 = vmatprep.subr.mxu0 0.0
    %8994 = vmatpush1.msra.mxu0 0.0
    %8995 = vmatprep.subr.mxu0 0.0
    %8996 = vmatpush1.msra.mxu0 0.0
    %8997 = vmatprep.subr.mxu0 0.0
    %8998 = vmatpush1.msra.mxu0 0.0
    %8999 = vmatprep.subr.mxu0 0.0
    %9000 = vmatpush1.msra.mxu0 0.0
    %9001 = vmatprep.subr.mxu0 0.0
    %9002 = vmatpush1.msra.mxu0 0.0
    %9003 = vmatprep.subr.mxu0 0.0
    %9004 = vmatpush1.msra.mxu0 0.0
    %9005 = vmatprep.subr.mxu0 0.0
    %9006 = vmatpush1.msra.mxu0 0.0
    %9007 = vmatprep.subr.mxu0 0.0
    %9008 = vmatpush1.msra.mxu0 0.0
    %9009 = vmatprep.subr.mxu0 0.0
    %9010 = vmatpush1.msra.mxu0 0.0
    %9011 = vmatprep.subr.mxu0 0.0
    %9012 = vmatpush1.msra.mxu0 0.0
    %9013 = vmatprep.subr.mxu0 0.0
    %9014 = vmatpush1.msra.mxu0 0.0
    %9015 = vmatprep.subr.mxu0 0.0
    %9016 = vmatpush1.msra.mxu0 0.0
    %9017 = vmatprep.subr.mxu0 0.0
    %9018 = vmatpush1.msra.mxu0 0.0
    %9019 = vmatprep.subr.mxu0 0.0
    %9020 = vmatpush1.msra.mxu0 0.0
    %9021 = vmatprep.subr.mxu0 0.0
    %9022 = vmatpush1.msra.mxu0 0.0
    %9023 = vmatprep.subr.mxu0 0.0
    %9024 = vmatpush1.msra.mxu0 0.0
    %9025 = vmatprep.subr.mxu0 0.0
    %9026 = vmatpush1.msra.mxu0 0.0
    %9027 = vmatprep.subr.mxu0 0.0
    %9028 = vmatpush1.msra.mxu0 0.0
    %9029 = vmatprep.subr.mxu0 0.0
    %9030 = vmatpush1.msra.mxu0 0.0
    %9031 = vmatprep.subr.mxu0 0.0
    %9032 = vmatpush1.msra.mxu0 0.0
    %9033 = vmatprep.mubr.f32.mxu0 0.0
    %9034 = vmatmul.mubr.f32.gmra.mrb[0].mxu0 %v8964
    %v9035 = vpop.f32.mrb[0].mxu0
    %v9036 = vadd.f32 0.0, %v9035
    %v9037 = vpop.f32.mrb[0].mxu0
    %9038 = vmatprep.mubr.f32.mxu0 0.0
    %9039 = vmatmul.mubr.f32.gmra.mrb[0].mxu0 %v8967
    %v9040 = vpop.f32.mrb[0].mxu0
    %v9041 = vadd.f32 0.0, %v9040
    %v9042 = vpop.f32.mrb[0].mxu0
    %9043 = vdwg.mxu0
    %9044 = vmatprep.subr.mxu0 0.0
    %9045 = vmatpush1.msra.mxu0 %v8951
    %9046 = vmatprep.subr.mxu0 0.0
    %9047 = vmatpush1.msra.mxu0 %v8952
    %9048 = vmatprep.subr.mxu0 0.0
    %9049 = vmatpush1.msra.mxu0 %v8953
    %9050 = vmatprep.subr.mxu0 0.0
    %9051 = vmatpush1.msra.mxu0 %v8954
    %9052 = vmatprep.subr.mxu0 0.0
    %9053 = vmatpush1.msra.mxu0 0.0
    %9054 = vmatprep.subr.mxu0 0.0
    %9055 = vmatpush1.msra.mxu0 0.0
    %9056 = vmatprep.subr.mxu0 0.0
    %9057 = vmatpush1.msra.mxu0 0.0
    %9058 = vmatprep.subr.mxu0 0.0
    %9059 = vmatpush1.msra.mxu0 0.0
    %9060 = vmatprep.subr.mxu0 0.0
    %9061 = vmatpush1.msra.mxu0 0.0
    %9062 = vmatprep.subr.mxu0 0.0
    %9063 = vmatpush1.msra.mxu0 0.0
    %9064 = vmatprep.subr.mxu0 0.0
    %9065 = vmatpush1.msra.mxu0 0.0
    %9066 = vmatprep.subr.mxu0 0.0
    %9067 = vmatpush1.msra.mxu0 0.0
    %9068 = vmatprep.subr.mxu0 0.0
    %9069 = vmatpush1.msra.mxu0 0.0
    %9070 = vmatprep.subr.mxu0 0.0
    %9071 = vmatpush1.msra.mxu0 0.0
    %9072 = vmatprep.subr.mxu0 0.0
    %9073 = vmatpush1.msra.mxu0 0.0
    %9074 = vmatprep.subr.mxu0 0.0
    %9075 = vmatpush1.msra.mxu0 0.0
    %9076 = vmatprep.subr.mxu0 0.0
    %9077 = vmatpush1.msra.mxu0 0.0
    %9078 = vmatprep.subr.mxu0 0.0
    %9079 = vmatpush1.msra.mxu0 0.0
    %9080 = vmatprep.subr.mxu0 0.0
    %9081 = vmatpush1.msra.mxu0 0.0
    %9082 = vmatprep.subr.mxu0 0.0
    %9083 = vmatpush1.msra.mxu0 0.0
    %9084 = vmatprep.subr.mxu0 0.0
    %9085 = vmatpush1.msra.mxu0 0.0
    %9086 = vmatprep.subr.mxu0 0.0
    %9087 = vmatpush1.msra.mxu0 0.0
    %9088 = vmatprep.subr.mxu0 0.0
    %9089 = vmatpush1.msra.mxu0 0.0
    %9090 = vmatprep.subr.mxu0 0.0
    %9091 = vmatpush1.msra.mxu0 0.0
    %9092 = vmatprep.subr.mxu0 0.0
    %9093 = vmatpush1.msra.mxu0 0.0
    %9094 = vmatprep.subr.mxu0 0.0
    %9095 = vmatpush1.msra.mxu0 0.0
    %9096 = vmatprep.subr.mxu0 0.0
    %9097 = vmatpush1.msra.mxu0 0.0
    %9098 = vmatprep.subr.mxu0 0.0
    %9099 = vmatpush1.msra.mxu0 0.0
    %9100 = vmatprep.subr.mxu0 0.0
    %9101 = vmatpush1.msra.mxu0 0.0
    %9102 = vmatprep.subr.mxu0 0.0
    %9103 = vmatpush1.msra.mxu0 0.0
    %9104 = vmatprep.subr.mxu0 0.0
    %9105 = vmatpush1.msra.mxu0 0.0
    %9106 = vmatprep.subr.mxu0 0.0
    %9107 = vmatpush1.msra.mxu0 0.0
    %9108 = vmatprep.mubr.f32.mxu0 0.0
    %9109 = vmatmul.mubr.f32.gmra.mrb[0].mxu0 %v146
    %v9110 = vpop.f32.mrb[0].mxu0
    %v9111 = vadd.f32 %v9036, %v9110
    %v9112 = vpop.f32.mrb[0].mxu0
    %9113 = vmatprep.mubr.f32.mxu0 0.0
    %9114 = vmatmul.mubr.f32.gmra.mrb[0].mxu0 %v149
    %v9115 = vpop.f32.mrb[0].mxu0
    %v9116 = vadd.f32 %v9041, %v9115
    %v9117 = vpop.f32.mrb[0].mxu0
    %9118 = vdwg.mxu0
    %v9119 = vlaneseq
    %v9120 = vshrl.u32 %v9119, 7
    %v9121 = vsub.s32 3, %v9120
    %v9122 = vrot.slane %v131, %v9121
    %v9123 = vadd.f32 %v9111, %v9122
    %v9124 = vadd.f32 %v9116, %v9122
    %v9125 = vmax.f32 %v9123, 0.0
    %v9126 = vmax.f32 %v9124, 0.0
    %v9127 = vld [vmem:[%s17] sm:$0xff]
    %v9128 = vld [vmem:[%s17 + $0x8] sm:$0xff]
    %v9129 = vld [vmem:[%s17 + $0x10] sm:$0xff]
    %v9130 = vld [vmem:[%s17 + $0x18] sm:$0xff]
    %v9131 = vlaneseq
    %v9132 = vshrl.u32 %v9131, 7
    %v9133 = vsub.s32 4, %v9132
    %v9134 = vrot.slane %v131, %v9133
    %v9136 = vsel %vm144, %v9125, 0
    %v9139 = vsel %vm144, %v9126, 0
    %9141 = vmatprep.subr.mxu0 0.0
    %9142 = vmatpush1.msra.mxu0 %v9127
    %9143 = vmatprep.subr.mxu0 0.0
    %9144 = vmatpush1.msra.mxu0 %v9128
    %9145 = vmatprep.subr.mxu0 0.0
    %9146 = vmatpush1.msra.mxu0 %v9129
    %9147 = vmatprep.subr.mxu0 0.0
    %9148 = vmatpush1.msra.mxu0 %v9130
    %9149 = vmatprep.subr.mxu0 0.0
    %9150 = vmatpush1.msra.mxu0 0.0
    %9151 = vmatprep.subr.mxu0 0.0
    %9152 = vmatpush1.msra.mxu0 0.0
    %9153 = vmatprep.subr.mxu0 0.0
    %9154 = vmatpush1.msra.mxu0 0.0
    %9155 = vmatprep.subr.mxu0 0.0
    %9156 = vmatpush1.msra.mxu0 0.0
    %9157 = vmatprep.subr.mxu0 0.0
    %9158 = vmatpush1.msra.mxu0 0.0
    %9159 = vmatprep.subr.mxu0 0.0
    %9160 = vmatpush1.msra.mxu0 0.0
    %9161 = vmatprep.subr.mxu0 0.0
    %9162 = vmatpush1.msra.mxu0 0.0
    %9163 = vmatprep.subr.mxu0 0.0
    %9164 = vmatpush1.msra.mxu0 0.0
    %9165 = vmatprep.subr.mxu0 0.0
    %9166 = vmatpush1.msra.mxu0 0.0
    %9167 = vmatprep.subr.mxu0 0.0
    %9168 = vmatpush1.msra.mxu0 0.0
    %9169 = vmatprep.subr.mxu0 0.0
    %9170 = vmatpush1.msra.mxu0 0.0
    %9171 = vmatprep.subr.mxu0 0.0
    %9172 = vmatpush1.msra.mxu0 0.0
    %9173 = vmatprep.subr.mxu0 0.0
    %9174 = vmatpush1.msra.mxu0 0.0
    %9175 = vmatprep.subr.mxu0 0.0
    %9176 = vmatpush1.msra.mxu0 0.0
    %9177 = vmatprep.subr.mxu0 0.0
    %9178 = vmatpush1.msra.mxu0 0.0
    %9179 = vmatprep.subr.mxu0 0.0
    %9180 = vmatpush1.msra.mxu0 0.0
    %9181 = vmatprep.subr.mxu0 0.0
    %9182 = vmatpush1.msra.mxu0 0.0
    %9183 = vmatprep.subr.mxu0 0.0
    %9184 = vmatpush1.msra.mxu0 0.0
    %9185 = vmatprep.subr.mxu0 0.0
    %9186 = vmatpush1.msra.mxu0 0.0
    %9187 = vmatprep.subr.mxu0 0.0
    %9188 = vmatpush1.msra.mxu0 0.0
    %9189 = vmatprep.subr.mxu0 0.0
    %9190 = vmatpush1.msra.mxu0 0.0
    %9191 = vmatprep.subr.mxu0 0.0
    %9192 = vmatpush1.msra.mxu0 0.0
    %9193 = vmatprep.subr.mxu0 0.0
    %9194 = vmatpush1.msra.mxu0 0.0
    %9195 = vmatprep.subr.mxu0 0.0
    %9196 = vmatpush1.msra.mxu0 0.0
    %9197 = vmatprep.subr.mxu0 0.0
    %9198 = vmatpush1.msra.mxu0 0.0
    %9199 = vmatprep.subr.mxu0 0.0
    %9200 = vmatpush1.msra.mxu0 0.0
    %9201 = vmatprep.subr.mxu0 0.0
    %9202 = vmatpush1.msra.mxu0 0.0
    %9203 = vmatprep.subr.mxu0 0.0
    %9204 = vmatpush1.msra.mxu0 0.0
    %9205 = vmatprep.mubr.f32.mxu0 0.0
    %9206 = vmatmul.mubr.f32.gmra.mrb[0].mxu0 %v9136
    %v9207 = vpop.f32.mrb[0].mxu0
    %v9208 = vadd.f32 %v9134, %v9207
    %v9209 = vpop.f32.mrb[0].mxu0
    %9210 = vmatprep.mubr.f32.mxu0 0.0
    %9211 = vmatmul.mubr.f32.gmra.mrb[0].mxu0 %v9139
    %v9212 = vpop.f32.mrb[0].mxu0
    %v9213 = vadd.f32 %v9134, %v9212
    %v9214 = vpop.f32.mrb[0].mxu0
    %9215 = vdwg.mxu0
    %v9216 = vmax.f32 %v9208, 0.0
    %v9217 = vmax.f32 %v9213, 0.0
    %v9218 = vld [vmem:[%s18] sm:$0xff]
    %v9219 = vld [vmem:[%s18 + $0x8] sm:$0xff]
    %v9220 = vld [vmem:[%s18 + $0x10] sm:$0xff]
    %v9221 = vld [vmem:[%s18 + $0x18] sm:$0xff]
    %v9222 = vlaneseq
    %v9223 = vshrl.u32 %v9222, 7
    %v9224 = vsub.s32 5, %v9223
    %v9225 = vrot.slane %v131, %v9224
    %v9227 = vsel %vm144, %v9216, 0
    %v9230 = vsel %vm144, %v9217, 0
    %9232 = vmatprep.subr.mxu0 0.0
    %9233 = vmatpush1.msra.mxu0 %v9218
    %9234 = vmatprep.subr.mxu0 0.0
    %9235 = vmatpush1.msra.mxu0 %v9219
    %9236 = vmatprep.subr.mxu0 0.0
    %9237 = vmatpush1.msra.mxu0 %v9220
    %9238 = vmatprep.subr.mxu0 0.0
    %9239 = vmatpush1.msra.mxu0 %v9221
    %9240 = vmatprep.subr.mxu0 0.0
    %9241 = vmatpush1.msra.mxu0 0.0
    %9242 = vmatprep.subr.mxu0 0.0
    %9243 = vmatpush1.msra.mxu0 0.0
    %9244 = vmatprep.subr.mxu0 0.0
    %9245 = vmatpush1.msra.mxu0 0.0
    %9246 = vmatprep.subr.mxu0 0.0
    %9247 = vmatpush1.msra.mxu0 0.0
    %9248 = vmatprep.subr.mxu0 0.0
    %9249 = vmatpush1.msra.mxu0 0.0
    %9250 = vmatprep.subr.mxu0 0.0
    %9251 = vmatpush1.msra.mxu0 0.0
    %9252 = vmatprep.subr.mxu0 0.0
    %9253 = vmatpush1.msra.mxu0 0.0
    %9254 = vmatprep.subr.mxu0 0.0
    %9255 = vmatpush1.msra.mxu0 0.0
    %9256 = vmatprep.subr.mxu0 0.0
    %9257 = vmatpush1.msra.mxu0 0.0
    %9258 = vmatprep.subr.mxu0 0.0
    %9259 = vmatpush1.msra.mxu0 0.0
    %9260 = vmatprep.subr.mxu0 0.0
    %9261 = vmatpush1.msra.mxu0 0.0
    %9262 = vmatprep.subr.mxu0 0.0
    %9263 = vmatpush1.msra.mxu0 0.0
    %9264 = vmatprep.subr.mxu0 0.0
    %9265 = vmatpush1.msra.mxu0 0.0
    %9266 = vmatprep.subr.mxu0 0.0
    %9267 = vmatpush1.msra.mxu0 0.0
    %9268 = vmatprep.subr.mxu0 0.0
    %9269 = vmatpush1.msra.mxu0 0.0
    %9270 = vmatprep.subr.mxu0 0.0
    %9271 = vmatpush1.msra.mxu0 0.0
    %9272 = vmatprep.subr.mxu0 0.0
    %9273 = vmatpush1.msra.mxu0 0.0
    %9274 = vmatprep.subr.mxu0 0.0
    %9275 = vmatpush1.msra.mxu0 0.0
    %9276 = vmatprep.subr.mxu0 0.0
    %9277 = vmatpush1.msra.mxu0 0.0
    %9278 = vmatprep.subr.mxu0 0.0
    %9279 = vmatpush1.msra.mxu0 0.0
    %9280 = vmatprep.subr.mxu0 0.0
    %9281 = vmatpush1.msra.mxu0 0.0
    %9282 = vmatprep.subr.mxu0 0.0
    %9283 = vmatpush1.msra.mxu0 0.0
    %9284 = vmatprep.subr.mxu0 0.0
    %9285 = vmatpush1.msra.mxu0 0.0
    %9286 = vmatprep.subr.mxu0 0.0
    %9287 = vmatpush1.msra.mxu0 0.0
    %9288 = vmatprep.subr.mxu0 0.0
    %9289 = vmatpush1.msra.mxu0 0.0
    %9290 = vmatprep.subr.mxu0 0.0
    %9291 = vmatpush1.msra.mxu0 0.0
    %9292 = vmatprep.subr.mxu0 0.0
    %9293 = vmatpush1.msra.mxu0 0.0
    %9294 = vmatprep.subr.mxu0 0.0
    %9295 = vmatpush1.msra.mxu0 0.0
    %9296 = vmatprep.mubr.f32.mxu0 0.0
    %9297 = vmatmul.mubr.f32.gmra.mrb[0].mxu0 %v9227
    %v9298 = vpop.f32.mrb[0].mxu0
    %v9299 = vadd.f32 %v9225, %v9298
    %v9300 = vpop.f32.mrb[0].mxu0
    %9301 = vmatprep.mubr.f32.mxu0 0.0
    %9302 = vmatmul.mubr.f32.gmra.mrb[0].mxu0 %v9230
    %v9303 = vpop.f32.mrb[0].mxu0
    %v9304 = vadd.f32 %v9225, %v9303
    %v9305 = vpop.f32.mrb[0].mxu0
    %9306 = vdwg.mxu0
    %9307 = vst.msk [vmem:[#allocation4] sm:$0xff] %vm144, %v9299
    %9308 = vst.msk [vmem:[#allocation4 + $0x8] sm:$0xff] %vm144, %v9304
    // Predicated region
    $region78: #{tpu_custom_call.1} parent=1 // pred_check
      _
    $region79: #{tpu_custom_call.1} parent=1 // pred_check_branch
      %9310 = sbr.rel (0) target = $region81
    $region80: #{tpu_custom_call.1} parent=1 // pred_region
      %s9312 = ssub.s32 512, 512
      %9313 = vsyncadd [#allocation3], %s9312
      %s9314 = sshll.u32 [#allocation2], 4
      %s9315 = int_to_ptr.vmem [resolvable:$true] %s9314
      %9320 = dma.vmem_to_hbm [thread:$0]  %s9315, 512, %s19, [#allocation3], 128, 128, 8
    $region81: #{tpu_custom_call.1} parent=1 // pred_fallthru
      _
    // Predicated region
    $region82: #{tpu_custom_call.1} parent=1 // pred_check
      _
    $region83: #{tpu_custom_call.1} parent=1 // pred_check_branch
      %9322 = sbr.rel (0) target = $region85
    $region84: #{tpu_custom_call.1} parent=1 // pred_region
      %s9324 = ssub.s32 256, 256
      %9325 = vsyncadd [#allocation5], %s9324
      %s9326 = sshll.u32 [#allocation4], 4
      %s9327 = int_to_ptr.vmem [resolvable:$true] %s9326
      %9332 = dma.vmem_to_hbm [thread:$0]  %s9327, 256, %s20, [#allocation5], 128, 128, 8
    $region85: #{tpu_custom_call.1} parent=1 // pred_fallthru
      _
    // Predicated region
    $region86: #{tpu_custom_call.1} parent=1 // pred_check
      _
    $region87: #{tpu_custom_call.1} parent=1 // pred_check_branch
      %9334 = sbr.rel (0) target = $region89
    $region88: #{tpu_custom_call.1} parent=1 // pred_region
      _
    $region89: #{tpu_custom_call.1} parent=1 // pred_fallthru
      _
    // Predicated region
    $region90: #{tpu_custom_call.1} parent=1 // pred_check
      _
    $region91: #{tpu_custom_call.1} parent=1 // pred_check_branch
      %9336 = sbr.rel (0) target = $region93
    $region92: #{tpu_custom_call.1} parent=1 // pred_region
      %9337 = dma.done [#allocation3], 512
    $region93: #{tpu_custom_call.1} parent=1 // pred_fallthru
      _
    // Predicated region
    $region94: #{tpu_custom_call.1} parent=1 // pred_check
      _
    $region95: #{tpu_custom_call.1} parent=1 // pred_check_branch
      %9339 = sbr.rel (0) target = $region97
    $region96: #{tpu_custom_call.1} parent=1 // pred_region
      %9340 = dma.done [#allocation5], 256
    $region97: #{tpu_custom_call.1} parent=1 // pred_fallthru
      _
    // Predicated region
    $region98: #{tpu_custom_call.1} parent=1 // pred_check
      _
    $region99: #{tpu_custom_call.1} parent=1 // pred_check_branch
      %9342 = sbr.rel (0) target = $region101
    $region100: #{tpu_custom_call.1} parent=1 // pred_region
      _
    $region101: #{tpu_custom_call.1} parent=1 // pred_fallthru
      _
    %9343 = vsyncpa [#allocation3], 1
    %9344 = vsyncpa [#allocation5], 1

</llo_original>
